<compile_context>
chip_gen: v7x
topology: tpu7x:2x2x1
jax: 0.10.0
libtpu: 0.0.40
codegen_flags: <defaults>
</compile_context>

<pallas_src>
import functools

import numpy as np

import jax
import jax.numpy as jnp
from jax.experimental import pallas as pl
from jax.experimental.pallas import tpu as pltpu


# -----------------------------------------------------------------------------
# Fused kernel
# -----------------------------------------------------------------------------
def _elu(x):
  # torch.nn.ELU(alpha=1.0)
  return jnp.where(x > 0, x, jnp.exp(jnp.minimum(x, 0.0)) - 1.0)


def _fused_vae_kernel(
    patches_ref, eps_ref,                 # per-call data
    w1_ref, w2v_ref, maskw_ref, pool_ref,  # encoder
    wh2z_ref, wz2h_ref,                   # latent projections
    wfc_ref, k1_ref, k2_ref,              # decoder (wide block weights)
    bias_ref,                             # packed f32 bias slab (8, W)
    dec_ref, qz_ref,                      # outputs
    *, latent, final_act):
  f32 = jnp.float32
  bf16 = jnp.bfloat16

  def mm(a, b):
    return jnp.dot(a.astype(bf16), b.astype(bf16), preferred_element_type=f32)

  rows = patches_ref.shape[0]            # B*64
  C = w1_ref.shape[1]                    # conv_size

  # packed biases (row slices from lane 0 -> no lane realignment needed)
  b_d1 = bias_ref[0:1, 0:k1_ref.shape[1]]
  b_d2 = bias_ref[1:2, 0:k2_ref.shape[1]]
  b_fc = bias_ref[2:3, 0:wfc_ref.shape[1]]
  b_c1 = bias_ref[3:4, 0:C]
  b_c2 = bias_ref[4:5, 0:C]
  b_h2z = bias_ref[5:6, 0:wh2z_ref.shape[1]]
  b_z2h = bias_ref[6:7, 0:C]

  # ---- encoder conv1 (3x3, s2, p1) + ELU : host im2col -> one matmul --------
  a1 = _elu(mm(patches_ref[...], w1_ref[...]) + b_c1)          # (B*64, C) f32

  # ---- encoder conv2 (3x3, s2, p1) + ELU + global mean pool -----------------
  # 3x3 taps as static sublane rolls (XLU) + 0/1 boundary mask, then ONE
  # matmul against the vertically stacked tap weights (K = 9*C).
  shifted = []
  for ki in range(3):
    for kj in range(3):
      off = (ki - 1) * 8 + (kj - 1)
      if off == 0:
        shifted.append(a1)
      else:
        shifted.append(pltpu.roll(a1, shift=(-off) % rows, axis=0))
  xcat = jnp.concatenate(shifted, axis=1) * maskw_ref[...]     # (B*64, 9C) f32
  c2 = _elu(mm(xcat, w2v_ref[...]) + b_c2)                     # (B*64, C) f32
  h = mm(pool_ref[...], c2)                                    # (B, C)    f32

  # ---- h2z (Linear + ELU), reparameterization, z2h (Linear + ELU) -----------
  enc = _elu(mm(h, wh2z_ref[...]) + b_h2z)                     # (B, 2L) f32
  qz_ref[...] = enc.astype(qz_ref.dtype)
  mu = enc[:, :latent]
  logvar = enc[:, latent:]
  z = mu + jnp.exp(0.5 * logvar) * eps_ref[...]
  zh = _elu(mm(z, wz2h_ref[...]) + b_z2h)                      # (B, C) f32

  # ---- decoder: fc + deconv1 + deconv2, all single wide matmuls -------------
  a = _elu(mm(zh, wfc_ref[...]) + b_fc)                        # (B, 16C)
  o1 = _elu(mm(a, k1_ref[...]) + b_d1)                         # (B, 64C)
  dec = mm(o1, k2_ref[...]) + b_d2                             # (B, 256*c_out)
  if final_act == "sigmoid":
    dec = jax.nn.sigmoid(dec)
  dec_ref[...] = dec.astype(dec_ref.dtype)


def _full_spec(shape):
  nd = len(shape)
  return pl.BlockSpec(shape, lambda: (0,) * nd)


def _run_fused(inputs, out_shapes, latent, final_act):
  patches = inputs[0]
  rows, nine_cin = patches.shape
  C = inputs[2].shape[1]
  B = inputs[5].shape[0]
  two_l = inputs[6].shape[1]
  fcw = inputs[8].shape[1]
  d1w = inputs[9].shape[1]
  d2w = inputs[10].shape[1]

  macs = (rows * nine_cin * C + rows * (9 * C) * C + B * rows * C
          + B * C * two_l + B * latent * C
          + B * C * fcw + B * fcw * d1w + B * d1w * d2w)
  transcend = rows * C * 2 + B * (two_l + C + fcw + d1w + d2w)
  bytes_accessed = (sum(int(np.prod(a.shape)) * a.dtype.itemsize for a in inputs)
                    + sum(int(np.prod(s.shape)) * 4 for s in out_shapes))

  return pl.pallas_call(
      functools.partial(_fused_vae_kernel, latent=latent, final_act=final_act),
      out_shape=out_shapes,
      in_specs=[_full_spec(a.shape) for a in inputs],
      out_specs=tuple(_full_spec(s.shape) for s in out_shapes),
      compiler_params=pltpu.CompilerParams(vmem_limit_bytes=32 * 1024 * 1024),
      cost_estimate=pl.CostEstimate(flops=2 * macs, transcendentals=transcend,
                                    bytes_accessed=bytes_accessed),
  )(*inputs)


# -----------------------------------------------------------------------------
# Host-side parameter preparation (once): weights restructured into dense
# block matrices so every decoder layer is a single lane-dense matmul.
# -----------------------------------------------------------------------------
def prepare_params(params, batch_size):
  B = batch_size
  C = int(params["e_c1_b"].shape[0])          # conv_size
  Cin = int(params["e_c1_w"].shape[1])
  L = int(params["h2z_b"].shape[0]) // 2      # latent_size
  c_out = int(params["d_t2_b"].shape[0])
  rows = B * 64
  npf = np.float32

  def npy(a):
    return np.asarray(a, npf)

  # encoder conv1: (9*Cin, C), tap-major / ci-minor rows
  w1 = npy(params["e_c1_w"]).transpose(2, 3, 1, 0).reshape(9 * Cin, C)
  # encoder conv2: vertically stacked taps (9*C, C)
  w2v = npy(params["e_c2_w"]).transpose(2, 3, 1, 0).reshape(9 * C, C)

  # conv2 boundary mask in tap-major wide lanes: (B*64, 9*C)  -- O(B), tiny
  maskw = np.zeros((rows, 9 * C), npf)
  for p in range(rows):
    h, w = (p % 64) // 8, p % 8
    for ki in range(3):
      for kj in range(3):
        if 0 <= h + ki - 1 < 8 and 0 <= w + kj - 1 < 8:
          tap = ki * 3 + kj
          maskw[p, tap * C:(tap + 1) * C] = 1.0

  # global mean pool over the stride-2 (even, even) grid: (B, B*64)
  pool = np.zeros((B, rows), npf)
  for b in range(B):
    for u in range(4):
      for t in range(4):
        pool[b, b * 64 + (2 * u) * 8 + (2 * t)] = 1.0 / 16.0

  # decoder fc rearranged to spatial-major / channel-minor wide layout
  wfc = npy(params["d_fc_w"])                 # (C, C*16), out index = c*16 + s
  bfc = npy(params["d_fc_b"])
  wfc_r = np.zeros((C, 16 * C), npf)
  bfc_r = np.zeros((16 * C,), npf)
  for s in range(16):
    for c in range(C):
      wfc_r[:, s * C + c] = wfc[:, c * 16 + s]
      bfc_r[s * C + c] = bfc[c * 16 + s]

  # ConvTranspose2d #1 (4x4, s2, p1): dense block matrix (16C, 64C)
  k1 = npy(params["d_t1_w"])                  # (ci, co, kh, kw)
  k1big = np.zeros((16 * C, 64 * C), npf)
  for u in range(4):
    for t in range(4):
      for kh in range(4):
        for kw in range(4):
          y, x = 2 * u - 1 + kh, 2 * t - 1 + kw
          if 0 <= y < 8 and 0 <= x < 8:
            k1big[(u * 4 + t) * C:(u * 4 + t + 1) * C,
                  (y * 8 + x) * C:(y * 8 + x + 1) * C] += k1[:, :, kh, kw]

  # ConvTranspose2d #2 (4x4, s2, p1): dense block matrix (64C, 256*c_out)
  k2 = npy(params["d_t2_w"])                  # (ci, co, kh, kw)
  k2big = np.zeros((64 * C, 256 * c_out), npf)
  for y in range(8):
    for x in range(8):
      for kh in range(4):
        for kw in range(4):
          Y, X = 2 * y - 1 + kh, 2 * x - 1 + kw
          if 0 <= Y < 16 and 0 <= X < 16:
            k2big[(y * 8 + x) * C:(y * 8 + x + 1) * C,
                  (Y * 16 + X) * c_out:(Y * 16 + X + 1) * c_out] += k2[:, :, kh, kw]

  # packed f32 bias slab: one ref instead of 7 tile-padded tiny ones
  slab_w = max(64 * C, 256 * c_out, 16 * C, 128)
  bias = np.zeros((8, slab_w), npf)
  bias[0, :64 * C] = np.tile(npy(params["d_t1_b"]), 64)
  bias[1, :256 * c_out] = np.tile(npy(params["d_t2_b"]), 256)
  bias[2, :16 * C] = bfc_r
  bias[3, :C] = npy(params["e_c1_b"])
  bias[4, :C] = npy(params["e_c2_b"])
  bias[5, :2 * L] = npy(params["h2z_b"])
  bias[6, :C] = npy(params["z2h_b"])

  bf16, f32 = jnp.bfloat16, jnp.float32
  return {
      "w1": jnp.asarray(w1, bf16),
      "w2v": jnp.asarray(w2v, bf16),
      "maskw": jnp.asarray(maskw, f32),
      "pool": jnp.asarray(pool, bf16),
      "wh2z": jnp.asarray(npy(params["h2z_w"]), bf16),
      "wz2h": jnp.asarray(npy(params["z2h_w"]), bf16),
      "wfc": jnp.asarray(wfc_r, bf16),
      "k1": jnp.asarray(k1big, bf16),
      "k2": jnp.asarray(k2big, bf16),
      "bias": jnp.asarray(bias, f32),
  }


# -----------------------------------------------------------------------------
# Forward
# -----------------------------------------------------------------------------
def _im2col_s2_3x3(x):
  """x: (B, Cin, 16, 16) -> (B*64, 9*Cin) patches (tap-major, ci-minor)."""
  B, Cin, H, W = x.shape
  Ho, Wo = H // 2, W // 2
  xp = jnp.pad(x, ((0, 0), (0, 0), (1, 1), (1, 1)))
  cols = []
  for ki in range(3):
    for kj in range(3):
      cols.append(xp[:, :, ki:ki + 2 * Ho:2, kj:kj + 2 * Wo:2])  # (B,Cin,Ho,Wo)
  p = jnp.stack(cols, axis=-1)           # (B, Cin, Ho, Wo, 9)
  p = p.transpose(0, 2, 3, 4, 1)         # (B, Ho, Wo, 9, Cin)
  return p.reshape(B * Ho * Wo, 9 * Cin)


@functools.partial(jax.jit, static_argnames=("use_softmax",))
def cnnvae_forward(prep, x, eps, use_softmax=False):
  B = x.shape[0]
  assert x.shape[2] == 16 and x.shape[3] == 16, "constants built for 16x16"
  assert prep["pool"].shape[0] == B
  C = prep["w1"].shape[1]
  L = prep["wh2z"].shape[1] // 2
  c_out = prep["k2"].shape[1] // 256

  patches = _im2col_s2_3x3(x).astype(jnp.bfloat16)
  inputs = (patches, eps.astype(jnp.float32),
            prep["w1"], prep["w2v"], prep["maskw"], prep["pool"],
            prep["wh2z"], prep["wz2h"],
            prep["wfc"], prep["k1"], prep["k2"],
            prep["bias"])
  out_shapes = (
      jax.ShapeDtypeStruct((B, 256 * c_out), jnp.float32),   # wide decoded image
      jax.ShapeDtypeStruct((B, 2 * L), jnp.float32),         # [mu | logvar]
  )
  final_act = "none" if use_softmax else "sigmoid"
  dec_wide, qz = _run_fused(inputs, out_shapes, L, final_act)

  # wide (spatial-major, channel-minor) slab -> NCHW at the model boundary
  dec = dec_wide.reshape(B, 16, 16, c_out).transpose(0, 3, 1, 2)
  if use_softmax:
    dec = jax.nn.softmax(dec, axis=1)
  mu, logvar = qz[:, :L], qz[:, L:]
  return dec, (mu, logvar)


# -----------------------------------------------------------------------------
# Parameter init (assumed architecture, PyTorch-style layouts)
# -----------------------------------------------------------------------------
def init_params(key, input_size, conv_size, latent_size, output_size, h=16, w=16):
  ks = jax.random.split(key, 8)
  hq, wq = h // 4, w // 4

  def norm(k, shape, fan_in):
    return jax.random.normal(k, shape, jnp.float32) / jnp.sqrt(fan_in)

  p = {}
  p["e_c1_w"] = norm(ks[0], (conv_size, input_size, 3, 3), input_size * 9)
  p["e_c1_b"] = jnp.zeros((conv_size,), jnp.float32)
  p["e_c2_w"] = norm(ks[1], (conv_size, conv_size, 3, 3), conv_size * 9)
  p["e_c2_b"] = jnp.zeros((conv_size,), jnp.float32)
  p["h2z_w"] = norm(ks[2], (conv_size, 2 * latent_size), conv_size)
  p["h2z_b"] = jnp.zeros((2 * latent_size,), jnp.float32)
  p["z2h_w"] = norm(ks[3], (latent_size, conv_size), latent_size)
  p["z2h_b"] = jnp.zeros((conv_size,), jnp.float32)
  p["d_fc_w"] = norm(ks[4], (conv_size, conv_size * hq * wq), conv_size)
  p["d_fc_b"] = jnp.zeros((conv_size * hq * wq,), jnp.float32)
  p["d_t1_w"] = norm(ks[5], (conv_size, conv_size, 4, 4), conv_size * 16)
  p["d_t1_b"] = jnp.zeros((conv_size,), jnp.float32)
  p["d_t2_w"] = norm(ks[6], (conv_size, output_size, 4, 4), conv_size * 16)
  p["d_t2_b"] = jnp.zeros((output_size,), jnp.float32)
  return p


# -----------------------------------------------------------------------------
if __name__ == "__main__":
  B, C_in, H, W = 2, 4, 16, 16
  conv_size, latent_size, output_size = 32, 8, 4

  key = jax.random.PRNGKey(0)
  k_param, k_x, k_eps = jax.random.split(key, 3)

  params = init_params(k_param, C_in, conv_size, latent_size, output_size, H, W)
  prep = prepare_params(params, B)

  x = jax.random.normal(k_x, (B, C_in, H, W), jnp.float32)
  eps = jax.random.normal(k_eps, (B, latent_size), jnp.float32)

  dec, (mu, logvar) = cnnvae_forward(prep, x, eps, use_softmax=False)
  jax.block_until_ready(dec)
  jax.block_until_ready(mu)
  jax.block_until_ready(logvar)

  assert dec.shape == (B, output_size, H, W)
  assert mu.shape == (B, latent_size) and logvar.shape == (B, latent_size)
  assert bool(jnp.isfinite(dec).all()) and bool(jnp.isfinite(mu).all())
  print("KERNEL_OK")
</pallas_src>

<mosaic_0001>
module attributes {stable_mosaic.version = 11 : i64} {
  func.func @_fused_vae_kernel(%arg0: memref<128x36xbf16, #tpu.memory_space<vmem>>, %arg1: memref<2x8xf32, #tpu.memory_space<vmem>>, %arg2: memref<36x32xbf16, #tpu.memory_space<vmem>>, %arg3: memref<288x32xbf16, #tpu.memory_space<vmem>>, %arg4: memref<128x288xf32, #tpu.memory_space<vmem>>, %arg5: memref<2x128xbf16, #tpu.memory_space<vmem>>, %arg6: memref<32x16xbf16, #tpu.memory_space<vmem>>, %arg7: memref<8x32xbf16, #tpu.memory_space<vmem>>, %arg8: memref<32x512xbf16, #tpu.memory_space<vmem>>, %arg9: memref<512x2048xbf16, #tpu.memory_space<vmem>>, %arg10: memref<2048x1024xbf16, #tpu.memory_space<vmem>>, %arg11: memref<8x2048xf32, #tpu.memory_space<vmem>>, %arg12: memref<2x1024xf32, #tpu.memory_space<vmem>>, %arg13: memref<2x16xf32, #tpu.memory_space<vmem>>) attributes {dimension_semantics = [], scalar_prefetch = 0 : i64, scratch_operands = 0 : i64, tpu.core_type = #tpu.core_type<tc>} {
    %c0 = arith.constant 0 : index
    %c0_0 = arith.constant 0 : index
    %0 = vector.load %arg11[%c0, %c0_0] : memref<8x2048xf32, #tpu.memory_space<vmem>>, vector<1x2048xf32>
    %c1 = arith.constant 1 : index
    %c0_1 = arith.constant 0 : index
    %1 = vector.load %arg11[%c1, %c0_1] : memref<8x2048xf32, #tpu.memory_space<vmem>>, vector<1x1024xf32>
    %c2 = arith.constant 2 : index
    %c0_2 = arith.constant 0 : index
    %2 = vector.load %arg11[%c2, %c0_2] : memref<8x2048xf32, #tpu.memory_space<vmem>>, vector<1x512xf32>
    %c3 = arith.constant 3 : index
    %c0_3 = arith.constant 0 : index
    %3 = vector.load %arg11[%c3, %c0_3] : memref<8x2048xf32, #tpu.memory_space<vmem>>, vector<1x32xf32>
    %c4 = arith.constant 4 : index
    %c0_4 = arith.constant 0 : index
    %4 = vector.load %arg11[%c4, %c0_4] : memref<8x2048xf32, #tpu.memory_space<vmem>>, vector<1x32xf32>
    %c5 = arith.constant 5 : index
    %c0_5 = arith.constant 0 : index
    %5 = vector.load %arg11[%c5, %c0_5] : memref<8x2048xf32, #tpu.memory_space<vmem>>, vector<1x16xf32>
    %c6 = arith.constant 6 : index
    %c0_6 = arith.constant 0 : index
    %6 = vector.load %arg11[%c6, %c0_6] : memref<8x2048xf32, #tpu.memory_space<vmem>>, vector<1x32xf32>
    %c0_7 = arith.constant 0 : index
    %c0_8 = arith.constant 0 : index
    %7 = vector.load %arg0[%c0_7, %c0_8] : memref<128x36xbf16, #tpu.memory_space<vmem>>, vector<128x36xbf16>
    %c0_9 = arith.constant 0 : index
    %c0_10 = arith.constant 0 : index
    %8 = vector.load %arg2[%c0_9, %c0_10] : memref<36x32xbf16, #tpu.memory_space<vmem>>, vector<36x32xbf16>
    %cst = arith.constant dense<0.000000e+00> : vector<128x32xf32>
    %9 = tpu.matmul %7, %8, %cst {dimension_numbers = #tpu.dot_dimension_numbers<[1], [0], [0], [1], [0, 0, 1, 1], [], []>} : vector<128x36xbf16>, vector<36x32xbf16>, vector<128x32xf32> -> vector<128x32xf32>
    %10 = vector.broadcast %3 : vector<1x32xf32> to vector<128x32xf32>
    %11 = arith.addf %9, %10 : vector<128x32xf32>
    %cst_11 = arith.constant 0.000000e+00 : f32
    %12 = vector.broadcast %cst_11 : f32 to vector<128x32xf32>
    %13 = arith.cmpf ogt, %11, %12 : vector<128x32xf32>
    %cst_12 = arith.constant 0.000000e+00 : f32
    %14 = vector.broadcast %cst_12 : f32 to vector<128x32xf32>
    %15 = arith.minimumf %11, %14 : vector<128x32xf32>
    %16 = math.exp %15 : vector<128x32xf32>
    %cst_13 = arith.constant 1.000000e+00 : f32
    %17 = vector.broadcast %cst_13 : f32 to vector<128x32xf32>
    %18 = arith.subf %16, %17 : vector<128x32xf32>
    %19 = arith.select %13, %11, %18 : vector<128x32xi1>, vector<128x32xf32>
    %c9_i32 = arith.constant 9 : i32
    %20 = tpu.dynamic_rotate %19 by %c9_i32 dim 0 : vector<128x32xf32>, i32 -> vector<128x32xf32>
    %c8_i32 = arith.constant 8 : i32
    %21 = tpu.dynamic_rotate %19 by %c8_i32 dim 0 : vector<128x32xf32>, i32 -> vector<128x32xf32>
    %c7_i32 = arith.constant 7 : i32
    %22 = tpu.dynamic_rotate %19 by %c7_i32 dim 0 : vector<128x32xf32>, i32 -> vector<128x32xf32>
    %c1_i32 = arith.constant 1 : i32
    %23 = tpu.dynamic_rotate %19 by %c1_i32 dim 0 : vector<128x32xf32>, i32 -> vector<128x32xf32>
    %c127_i32 = arith.constant 127 : i32
    %24 = tpu.dynamic_rotate %19 by %c127_i32 dim 0 : vector<128x32xf32>, i32 -> vector<128x32xf32>
    %c121_i32 = arith.constant 121 : i32
    %25 = tpu.dynamic_rotate %19 by %c121_i32 dim 0 : vector<128x32xf32>, i32 -> vector<128x32xf32>
    %c120_i32 = arith.constant 120 : i32
    %26 = tpu.dynamic_rotate %19 by %c120_i32 dim 0 : vector<128x32xf32>, i32 -> vector<128x32xf32>
    %c119_i32 = arith.constant 119 : i32
    %27 = tpu.dynamic_rotate %19 by %c119_i32 dim 0 : vector<128x32xf32>, i32 -> vector<128x32xf32>
    %28 = tpu.concatenate %20, %21, %22, %23, %19, %24, %25, %26, %27 in 1 : vector<128x32xf32>, vector<128x32xf32>, vector<128x32xf32>, vector<128x32xf32>, vector<128x32xf32>, vector<128x32xf32>, vector<128x32xf32>, vector<128x32xf32>, vector<128x32xf32> -> vector<128x288xf32>
    %c0_14 = arith.constant 0 : index
    %c0_15 = arith.constant 0 : index
    %29 = vector.load %arg4[%c0_14, %c0_15] : memref<128x288xf32, #tpu.memory_space<vmem>>, vector<128x288xf32>
    %30 = arith.mulf %28, %29 : vector<128x288xf32>
    %c0_16 = arith.constant 0 : index
    %c0_17 = arith.constant 0 : index
    %31 = vector.load %arg3[%c0_16, %c0_17] : memref<288x32xbf16, #tpu.memory_space<vmem>>, vector<288x32xbf16>
    %32 = arith.truncf %30 : vector<128x288xf32> to vector<128x288xbf16>
    %cst_18 = arith.constant dense<0.000000e+00> : vector<128x32xf32>
    %33 = tpu.matmul %32, %31, %cst_18 {dimension_numbers = #tpu.dot_dimension_numbers<[1], [0], [0], [1], [0, 0, 1, 1], [], []>} : vector<128x288xbf16>, vector<288x32xbf16>, vector<128x32xf32> -> vector<128x32xf32>
    %34 = vector.broadcast %4 : vector<1x32xf32> to vector<128x32xf32>
    %35 = arith.addf %33, %34 : vector<128x32xf32>
    %cst_19 = arith.constant 0.000000e+00 : f32
    %36 = vector.broadcast %cst_19 : f32 to vector<128x32xf32>
    %37 = arith.cmpf ogt, %35, %36 : vector<128x32xf32>
    %cst_20 = arith.constant 0.000000e+00 : f32
    %38 = vector.broadcast %cst_20 : f32 to vector<128x32xf32>
    %39 = arith.minimumf %35, %38 : vector<128x32xf32>
    %40 = math.exp %39 : vector<128x32xf32>
    %cst_21 = arith.constant 1.000000e+00 : f32
    %41 = vector.broadcast %cst_21 : f32 to vector<128x32xf32>
    %42 = arith.subf %40, %41 : vector<128x32xf32>
    %43 = arith.select %37, %35, %42 : vector<128x32xi1>, vector<128x32xf32>
    %c0_22 = arith.constant 0 : index
    %c0_23 = arith.constant 0 : index
    %44 = vector.load %arg5[%c0_22, %c0_23] : memref<2x128xbf16, #tpu.memory_space<vmem>>, vector<2x128xbf16>
    %45 = arith.truncf %43 : vector<128x32xf32> to vector<128x32xbf16>
    %cst_24 = arith.constant dense<0.000000e+00> : vector<2x32xf32>
    %46 = tpu.matmul %44, %45, %cst_24 {dimension_numbers = #tpu.dot_dimension_numbers<[1], [0], [0], [1], [0, 0, 1, 1], [], []>} : vector<2x128xbf16>, vector<128x32xbf16>, vector<2x32xf32> -> vector<2x32xf32>
    %c0_25 = arith.constant 0 : index
    %c0_26 = arith.constant 0 : index
    %47 = vector.load %arg6[%c0_25, %c0_26] : memref<32x16xbf16, #tpu.memory_space<vmem>>, vector<32x16xbf16>
    %48 = arith.truncf %46 : vector<2x32xf32> to vector<2x32xbf16>
    %cst_27 = arith.constant dense<0.000000e+00> : vector<2x16xf32>
    %49 = tpu.matmul %48, %47, %cst_27 {dimension_numbers = #tpu.dot_dimension_numbers<[1], [0], [0], [1], [0, 0, 1, 1], [], []>} : vector<2x32xbf16>, vector<32x16xbf16>, vector<2x16xf32> -> vector<2x16xf32>
    %50 = vector.broadcast %5 : vector<1x16xf32> to vector<2x16xf32>
    %51 = arith.addf %49, %50 : vector<2x16xf32>
    %cst_28 = arith.constant 0.000000e+00 : f32
    %52 = vector.broadcast %cst_28 : f32 to vector<2x16xf32>
    %53 = arith.cmpf ogt, %51, %52 : vector<2x16xf32>
    %cst_29 = arith.constant 0.000000e+00 : f32
    %54 = vector.broadcast %cst_29 : f32 to vector<2x16xf32>
    %55 = arith.minimumf %51, %54 : vector<2x16xf32>
    %56 = math.exp %55 : vector<2x16xf32>
    %cst_30 = arith.constant 1.000000e+00 : f32
    %57 = vector.broadcast %cst_30 : f32 to vector<2x16xf32>
    %58 = arith.subf %56, %57 : vector<2x16xf32>
    %59 = arith.select %53, %51, %58 : vector<2x16xi1>, vector<2x16xf32>
    %c0_31 = arith.constant 0 : index
    %c0_32 = arith.constant 0 : index
    %60 = vector.load %arg13[%c0_31, %c0_32] : memref<2x16xf32, #tpu.memory_space<vmem>>, vector<2x16xf32>
    tpu.vector_store %arg13[%c0_31, %c0_32], %59 {strides = array<i32>} : memref<2x16xf32, #tpu.memory_space<vmem>>, vector<2x16xf32>,
    %61 = vector.extract_strided_slice %59 {offsets = [0, 0], sizes = [2, 8], strides = [1, 1]} : vector<2x16xf32> to vector<2x8xf32>
    %62 = vector.extract_strided_slice %59 {offsets = [0, 8], sizes = [2, 8], strides = [1, 1]} : vector<2x16xf32> to vector<2x8xf32>
    %cst_33 = arith.constant 5.000000e-01 : f32
    %63 = vector.broadcast %cst_33 : f32 to vector<2x8xf32>
    %64 = arith.mulf %63, %62 : vector<2x8xf32>
    %65 = math.exp %64 : vector<2x8xf32>
    %c0_34 = arith.constant 0 : index
    %c0_35 = arith.constant 0 : index
    %66 = vector.load %arg1[%c0_34, %c0_35] : memref<2x8xf32, #tpu.memory_space<vmem>>, vector<2x8xf32>
    %67 = arith.mulf %65, %66 : vector<2x8xf32>
    %68 = arith.addf %61, %67 : vector<2x8xf32>
    %c0_36 = arith.constant 0 : index
    %c0_37 = arith.constant 0 : index
    %69 = vector.load %arg7[%c0_36, %c0_37] : memref<8x32xbf16, #tpu.memory_space<vmem>>, vector<8x32xbf16>
    %70 = arith.truncf %68 : vector<2x8xf32> to vector<2x8xbf16>
    %cst_38 = arith.constant dense<0.000000e+00> : vector<2x32xf32>
    %71 = tpu.matmul %70, %69, %cst_38 {dimension_numbers = #tpu.dot_dimension_numbers<[1], [0], [0], [1], [0, 0, 1, 1], [], []>} : vector<2x8xbf16>, vector<8x32xbf16>, vector<2x32xf32> -> vector<2x32xf32>
    %72 = vector.broadcast %6 : vector<1x32xf32> to vector<2x32xf32>
    %73 = arith.addf %71, %72 : vector<2x32xf32>
    %cst_39 = arith.constant 0.000000e+00 : f32
    %74 = vector.broadcast %cst_39 : f32 to vector<2x32xf32>
    %75 = arith.cmpf ogt, %73, %74 : vector<2x32xf32>
    %cst_40 = arith.constant 0.000000e+00 : f32
    %76 = vector.broadcast %cst_40 : f32 to vector<2x32xf32>
    %77 = arith.minimumf %73, %76 : vector<2x32xf32>
    %78 = math.exp %77 : vector<2x32xf32>
    %cst_41 = arith.constant 1.000000e+00 : f32
    %79 = vector.broadcast %cst_41 : f32 to vector<2x32xf32>
    %80 = arith.subf %78, %79 : vector<2x32xf32>
    %81 = arith.select %75, %73, %80 : vector<2x32xi1>, vector<2x32xf32>
    %c0_42 = arith.constant 0 : index
    %c0_43 = arith.constant 0 : index
    %82 = vector.load %arg8[%c0_42, %c0_43] : memref<32x512xbf16, #tpu.memory_space<vmem>>, vector<32x512xbf16>
    %83 = arith.truncf %81 : vector<2x32xf32> to vector<2x32xbf16>
    %cst_44 = arith.constant dense<0.000000e+00> : vector<2x512xf32>
    %84 = tpu.matmul %83, %82, %cst_44 {dimension_numbers = #tpu.dot_dimension_numbers<[1], [0], [0], [1], [0, 0, 1, 1], [], []>} : vector<2x32xbf16>, vector<32x512xbf16>, vector<2x512xf32> -> vector<2x512xf32>
    %85 = vector.broadcast %2 : vector<1x512xf32> to vector<2x512xf32>
    %86 = arith.addf %84, %85 : vector<2x512xf32>
    %cst_45 = arith.constant 0.000000e+00 : f32
    %87 = vector.broadcast %cst_45 : f32 to vector<2x512xf32>
    %88 = arith.cmpf ogt, %86, %87 : vector<2x512xf32>
    %cst_46 = arith.constant 0.000000e+00 : f32
    %89 = vector.broadcast %cst_46 : f32 to vector<2x512xf32>
    %90 = arith.minimumf %86, %89 : vector<2x512xf32>
    %91 = math.exp %90 : vector<2x512xf32>
    %cst_47 = arith.constant 1.000000e+00 : f32
    %92 = vector.broadcast %cst_47 : f32 to vector<2x512xf32>
    %93 = arith.subf %91, %92 : vector<2x512xf32>
    %94 = arith.select %88, %86, %93 : vector<2x512xi1>, vector<2x512xf32>
    %c0_48 = arith.constant 0 : index
    %c0_49 = arith.constant 0 : index
    %95 = vector.load %arg9[%c0_48, %c0_49] : memref<512x2048xbf16, #tpu.memory_space<vmem>>, vector<512x2048xbf16>
    %96 = arith.truncf %94 : vector<2x512xf32> to vector<2x512xbf16>
    %cst_50 = arith.constant dense<0.000000e+00> : vector<2x2048xf32>
    %97 = tpu.matmul %96, %95, %cst_50 {dimension_numbers = #tpu.dot_dimension_numbers<[1], [0], [0], [1], [0, 0, 1, 1], [], []>} : vector<2x512xbf16>, vector<512x2048xbf16>, vector<2x2048xf32> -> vector<2x2048xf32>
    %98 = vector.broadcast %0 : vector<1x2048xf32> to vector<2x2048xf32>
    %99 = arith.addf %97, %98 : vector<2x2048xf32>
    %cst_51 = arith.constant 0.000000e+00 : f32
    %100 = vector.broadcast %cst_51 : f32 to vector<2x2048xf32>
    %101 = arith.cmpf ogt, %99, %100 : vector<2x2048xf32>
    %cst_52 = arith.constant 0.000000e+00 : f32
    %102 = vector.broadcast %cst_52 : f32 to vector<2x2048xf32>
    %103 = arith.minimumf %99, %102 : vector<2x2048xf32>
    %104 = math.exp %103 : vector<2x2048xf32>
    %cst_53 = arith.constant 1.000000e+00 : f32
    %105 = vector.broadcast %cst_53 : f32 to vector<2x2048xf32>
    %106 = arith.subf %104, %105 : vector<2x2048xf32>
    %107 = arith.select %101, %99, %106 : vector<2x2048xi1>, vector<2x2048xf32>
    %c0_54 = arith.constant 0 : index
    %c0_55 = arith.constant 0 : index
    %108 = vector.load %arg10[%c0_54, %c0_55] : memref<2048x1024xbf16, #tpu.memory_space<vmem>>, vector<2048x1024xbf16>
    %109 = arith.truncf %107 : vector<2x2048xf32> to vector<2x2048xbf16>
    %cst_56 = arith.constant dense<0.000000e+00> : vector<2x1024xf32>
    %110 = tpu.matmul %109, %108, %cst_56 {dimension_numbers = #tpu.dot_dimension_numbers<[1], [0], [0], [1], [0, 0, 1, 1], [], []>} : vector<2x2048xbf16>, vector<2048x1024xbf16>, vector<2x1024xf32> -> vector<2x1024xf32>
    %111 = vector.broadcast %1 : vector<1x1024xf32> to vector<2x1024xf32>
    %112 = arith.addf %110, %111 : vector<2x1024xf32>
    %113 = arith.negf %112 : vector<2x1024xf32>
    %114 = math.exp %113 : vector<2x1024xf32>
    %cst_57 = arith.constant 1.000000e+00 : f32
    %115 = vector.broadcast %cst_57 : f32 to vector<2x1024xf32>
    %116 = arith.addf %115, %114 : vector<2x1024xf32>
    %117 = arith.divf %115, %116 : vector<2x1024xf32>
    %c0_58 = arith.constant 0 : index
    %c0_59 = arith.constant 0 : index
    %118 = vector.load %arg12[%c0_58, %c0_59] : memref<2x1024xf32, #tpu.memory_space<vmem>>, vector<2x1024xf32>
    tpu.vector_store %arg12[%c0_58, %c0_59], %117 {strides = array<i32>} : memref<2x1024xf32, #tpu.memory_space<vmem>>, vector<2x1024xf32>,
    return
  }
}

</mosaic_0001>

<llo_original>
// kernel: cnnvae_forward.1
$region0: #{cnnvae_forward.1}
  #allocation0 [shape = 'u32[]', space=smem, size = 0x4, offset = 0x4, fixed_abs, tag = 'smem constant byte address 0x4 - core index']
  #allocation1 [shape = 'u32[144,128]{1,0:T(1,128)}', space=vmem, size = 0x12000, scoped, tag = 'internal scratch']
  %s0 = inlined_call_operand.vmem [shape: bf16[128,36], index: 0, kind: input, shape index: {}]
  %s1 = inlined_call_operand.hbm [shape: f32[2,8], index: 1, kind: input, shape index: {}]
  %s2 = inlined_call_operand.vmem [shape: bf16[36,32], index: 2, kind: input, shape index: {}]
  %s3 = inlined_call_operand.vmem [shape: bf16[288,32], index: 3, kind: input, shape index: {}]
  %s4 = inlined_call_operand.vmem [shape: f32[128,288], index: 4, kind: input, shape index: {}]
  %s5 = inlined_call_operand.hbm [shape: bf16[2,128], index: 5, kind: input, shape index: {}]
  %s6 = inlined_call_operand.vmem [shape: bf16[32,16], index: 6, kind: input, shape index: {}]
  %s7 = inlined_call_operand.hbm [shape: bf16[8,32], index: 7, kind: input, shape index: {}]
  %s8 = inlined_call_operand.hbm [shape: bf16[32,512], index: 8, kind: input, shape index: {}]
  %s9 = inlined_call_operand.hbm [shape: bf16[512,2048], index: 9, kind: input, shape index: {}]
  %s10 = inlined_call_operand.hbm [shape: bf16[2048,1024], index: 10, kind: input, shape index: {}]
  %s11 = inlined_call_operand.hbm [shape: f32[8,2048], index: 11, kind: input, shape index: {}]
  %s12 = inlined_call_operand.vmem [shape: f32[2,1024], index: 12, kind: output, shape index: {0}]
  %s13 = inlined_call_operand.vmem [shape: f32[2,16], index: 13, kind: output, shape index: {1}]
  %14 = xla_tuple %s12, %s13
  %s15 = sld [smem:[#allocation0]]
  $region94: #{cnnvae_forward.1} parent=0
    _
  %s17 = ssub.s32 1, %s15
  %s18 = scalar_select 0, %s17, %s15
  $region1: #{cnnvae_forward.1} parent=0
    #allocation2 [shape = 'u8[1024]{0}', space=vmem, size = 0x400, scoped, tag = 'input window, operand 1, single buffered']
    #allocation3 [shape = 's32[1]{0}', space=sflag, size = 0x4, scoped, tag = 'scoped memory for cnnvae_forward.1']
    #allocation4 [shape = 'u8[512]{0}', space=vmem, size = 0x400, scoped, tag = 'input window, operand 5, single buffered']
    #allocation5 [shape = 's32[1]{0}', space=sflag, size = 0x4, scoped, tag = 'scoped memory for cnnvae_forward.1']
    #allocation6 [shape = 'u8[2048]{0}', space=vmem, size = 0x800, scoped, tag = 'input window, operand 7, single buffered']
    #allocation7 [shape = 'u8[32768]{0}', space=vmem, size = 0x8000, scoped, tag = 'input window, operand 8, single buffered']
    #allocation8 [shape = 's32[1]{0}', space=sflag, size = 0x4, scoped, tag = 'scoped memory for cnnvae_forward.1']
    #allocation9 [shape = 'u8[2097152]{0}', space=vmem, size = 0x200000, scoped, tag = 'input window, operand 9, single buffered']
    #allocation10 [shape = 'u8[4194304]{0}', space=vmem, size = 0x400000, scoped, tag = 'input window, operand 10, single buffered']
    #allocation11 [shape = 's32[1]{0}', space=sflag, size = 0x4, scoped, tag = 'scoped memory for cnnvae_forward.1']
    #allocation12 [shape = 'u8[65536]{0}', space=vmem, size = 0x10000, scoped, tag = 'input window, operand 11, single buffered']
    %19 = vsyncpa [#allocation3], 0
    %20 = vsyncpa [#allocation5], 0
    %21 = vsyncpa [#allocation8], 0
    %22 = vsyncpa [#allocation11], 0
    // Predicated region
    $region2: #{cnnvae_forward.1} parent=1 // pred_check
      _
    $region3: #{cnnvae_forward.1} parent=1 // pred_check_branch
      %24 = sbr.rel (0) target = $region5
    $region4: #{cnnvae_forward.1} parent=1 // pred_region
      _
    $region5: #{cnnvae_forward.1} parent=1 // pred_fallthru
      _
    // Predicated region
    $region6: #{cnnvae_forward.1} parent=1 // pred_check
      _
    $region7: #{cnnvae_forward.1} parent=1 // pred_check_branch
      %26 = sbr.rel (0) target = $region9
    $region8: #{cnnvae_forward.1} parent=1 // pred_region
      %s28 = ssub.s32 32, 32
      %29 = vsyncadd [#allocation3], %s28
      %s31 = sshll.u32 [#allocation2], 4
      %s32 = int_to_ptr.vmem [resolvable:$true] %s31
      %34 = dma.hbm_to_vmem [thread:$0]  %s1, 32, %s32, [#allocation3]
    $region9: #{cnnvae_forward.1} parent=1 // pred_fallthru
      _
    // Predicated region
    $region10: #{cnnvae_forward.1} parent=1 // pred_check
      _
    $region11: #{cnnvae_forward.1} parent=1 // pred_check_branch
      %36 = sbr.rel (0) target = $region13
    $region12: #{cnnvae_forward.1} parent=1 // pred_region
      _
    $region13: #{cnnvae_forward.1} parent=1 // pred_fallthru
      _
    // Predicated region
    $region14: #{cnnvae_forward.1} parent=1 // pred_check
      _
    $region15: #{cnnvae_forward.1} parent=1 // pred_check_branch
      %38 = sbr.rel (0) target = $region17
    $region16: #{cnnvae_forward.1} parent=1 // pred_region
      _
    $region17: #{cnnvae_forward.1} parent=1 // pred_fallthru
      _
    // Predicated region
    $region18: #{cnnvae_forward.1} parent=1 // pred_check
      _
    $region19: #{cnnvae_forward.1} parent=1 // pred_check_branch
      %40 = sbr.rel (0) target = $region21
    $region20: #{cnnvae_forward.1} parent=1 // pred_region
      _
    $region21: #{cnnvae_forward.1} parent=1 // pred_fallthru
      _
    // Predicated region
    $region22: #{cnnvae_forward.1} parent=1 // pred_check
      _
    $region23: #{cnnvae_forward.1} parent=1 // pred_check_branch
      %42 = sbr.rel (0) target = $region25
    $region24: #{cnnvae_forward.1} parent=1 // pred_region
      %s44 = ssub.s32 16, 16
      %45 = vsyncadd [#allocation5], %s44
      %s47 = sshll.u32 [#allocation4], 4
      %s48 = int_to_ptr.vmem [resolvable:$true] %s47
      %50 = dma.hbm_to_vmem [thread:$0]  %s5, 16, %s48, [#allocation5]
    $region25: #{cnnvae_forward.1} parent=1 // pred_fallthru
      _
    // Predicated region
    $region26: #{cnnvae_forward.1} parent=1 // pred_check
      _
    $region27: #{cnnvae_forward.1} parent=1 // pred_check_branch
      %52 = sbr.rel (0) target = $region29
    $region28: #{cnnvae_forward.1} parent=1 // pred_region
      _
    $region29: #{cnnvae_forward.1} parent=1 // pred_fallthru
      _
    // Predicated region
    $region30: #{cnnvae_forward.1} parent=1 // pred_check
      _
    $region31: #{cnnvae_forward.1} parent=1 // pred_check_branch
      %54 = sbr.rel (0) target = $region33
    $region32: #{cnnvae_forward.1} parent=1 // pred_region
      %s56 = ssub.s32 64, 64
      %57 = vsyncadd [#allocation5], %s56
      %s59 = sshll.u32 [#allocation6], 4
      %s60 = int_to_ptr.vmem [resolvable:$true] %s59
      %62 = dma.hbm_to_vmem [thread:$0]  %s7, 64, %s60, [#allocation5]
    $region33: #{cnnvae_forward.1} parent=1 // pred_fallthru
      _
    // Predicated region
    $region34: #{cnnvae_forward.1} parent=1 // pred_check
      _
    $region35: #{cnnvae_forward.1} parent=1 // pred_check_branch
      %64 = sbr.rel (0) target = $region37
    $region36: #{cnnvae_forward.1} parent=1 // pred_region
      %s66 = ssub.s32 1024, 1024
      %67 = vsyncadd [#allocation8], %s66
      %s68 = sshll.u32 [#allocation7], 4
      %s69 = int_to_ptr.vmem [resolvable:$true] %s68
      %74 = dma.hbm_to_vmem [thread:$0]  %s8, 1024, %s69, [#allocation8], 256, 256, 16
    $region37: #{cnnvae_forward.1} parent=1 // pred_fallthru
      _
    // Predicated region
    $region38: #{cnnvae_forward.1} parent=1 // pred_check
      _
    $region39: #{cnnvae_forward.1} parent=1 // pred_check_branch
      %76 = sbr.rel (0) target = $region41
    $region40: #{cnnvae_forward.1} parent=1 // pred_region
      %s78 = ssub.s32 65536, 65536
      %79 = vsyncadd [#allocation8], %s78
      %s80 = sshll.u32 [#allocation9], 4
      %s81 = int_to_ptr.vmem [resolvable:$true] %s80
      %86 = dma.hbm_to_vmem [thread:$0]  %s9, 65536, %s81, [#allocation8], 1024, 1024, 64
    $region41: #{cnnvae_forward.1} parent=1 // pred_fallthru
      _
    // Predicated region
    $region42: #{cnnvae_forward.1} parent=1 // pred_check
      _
    $region43: #{cnnvae_forward.1} parent=1 // pred_check_branch
      %88 = sbr.rel (0) target = $region45
    $region44: #{cnnvae_forward.1} parent=1 // pred_region
      %s90 = ssub.s32 131072, 131072
      %91 = vsyncadd [#allocation11], %s90
      %s92 = sshll.u32 [#allocation10], 4
      %s93 = int_to_ptr.vmem [resolvable:$true] %s92
      %98 = dma.hbm_to_vmem [thread:$0]  %s10, 131072, %s93, [#allocation11], 512, 512, 32
    $region45: #{cnnvae_forward.1} parent=1 // pred_fallthru
      _
    // Predicated region
    $region46: #{cnnvae_forward.1} parent=1 // pred_check
      _
    $region47: #{cnnvae_forward.1} parent=1 // pred_check_branch
      %100 = sbr.rel (0) target = $region49
    $region48: #{cnnvae_forward.1} parent=1 // pred_region
      %s102 = ssub.s32 2048, 2048
      %103 = vsyncadd [#allocation11], %s102
      %s105 = sshll.u32 [#allocation12], 4
      %s106 = int_to_ptr.vmem [resolvable:$true] %s105
      %108 = dma.hbm_to_vmem [thread:$0]  %s11, 2048, %s106, [#allocation11]
    $region49: #{cnnvae_forward.1} parent=1 // pred_fallthru
      _
    // Predicated region
    $region50: #{cnnvae_forward.1} parent=1 // pred_check
      _
    $region51: #{cnnvae_forward.1} parent=1 // pred_check_branch
      %110 = sbr.rel (0) target = $region53
    $region52: #{cnnvae_forward.1} parent=1 // pred_region
      %111 = dma.done [#allocation3], 32
    $region53: #{cnnvae_forward.1} parent=1 // pred_fallthru
      _
    // Predicated region
    $region54: #{cnnvae_forward.1} parent=1 // pred_check
      _
    $region55: #{cnnvae_forward.1} parent=1 // pred_check_branch
      %113 = sbr.rel (0) target = $region57
    $region56: #{cnnvae_forward.1} parent=1 // pred_region
      %114 = dma.done [#allocation5], 16
    $region57: #{cnnvae_forward.1} parent=1 // pred_fallthru
      _
    // Predicated region
    $region58: #{cnnvae_forward.1} parent=1 // pred_check
      _
    $region59: #{cnnvae_forward.1} parent=1 // pred_check_branch
      %116 = sbr.rel (0) target = $region61
    $region60: #{cnnvae_forward.1} parent=1 // pred_region
      %117 = dma.done [#allocation5], 64
    $region61: #{cnnvae_forward.1} parent=1 // pred_fallthru
      _
    // Predicated region
    $region62: #{cnnvae_forward.1} parent=1 // pred_check
      _
    $region63: #{cnnvae_forward.1} parent=1 // pred_check_branch
      %119 = sbr.rel (0) target = $region65
    $region64: #{cnnvae_forward.1} parent=1 // pred_region
      %120 = dma.done [#allocation8], 1024
    $region65: #{cnnvae_forward.1} parent=1 // pred_fallthru
      _
    // Predicated region
    $region66: #{cnnvae_forward.1} parent=1 // pred_check
      _
    $region67: #{cnnvae_forward.1} parent=1 // pred_check_branch
      %122 = sbr.rel (0) target = $region69
    $region68: #{cnnvae_forward.1} parent=1 // pred_region
      %123 = dma.done [#allocation8], 65536
    $region69: #{cnnvae_forward.1} parent=1 // pred_fallthru
      _
    // Predicated region
    $region70: #{cnnvae_forward.1} parent=1 // pred_check
      _
    $region71: #{cnnvae_forward.1} parent=1 // pred_check_branch
      %125 = sbr.rel (0) target = $region73
    $region72: #{cnnvae_forward.1} parent=1 // pred_region
      %126 = dma.done [#allocation11], 131072
    $region73: #{cnnvae_forward.1} parent=1 // pred_fallthru
      _
    // Predicated region
    $region74: #{cnnvae_forward.1} parent=1 // pred_check
      _
    $region75: #{cnnvae_forward.1} parent=1 // pred_check_branch
      %128 = sbr.rel (0) target = $region77
    $region76: #{cnnvae_forward.1} parent=1 // pred_region
      %129 = dma.done [#allocation11], 2048
    $region77: #{cnnvae_forward.1} parent=1 // pred_fallthru
      _
    %v131 = vld [vmem:[#allocation12] ss:$8 sm:$0xf]
    %v132 = vld [vmem:[#allocation12] ss:$8 sm:$0xf0]
    %v133 = vor.u32 %v131, %v132
    %s134 = scalar_lea.vmem [#allocation12], 64
    %v135 = vld [vmem:[%s134] ss:$8 sm:$0xf]
    %v136 = vld [vmem:[%s134] ss:$8 sm:$0xf0]
    %v137 = vor.u32 %v135, %v136
    %s138 = scalar_lea.vmem [#allocation12], 1
    %v139 = vld [vmem:[%s138] ss:$8 sm:$0xf]
    %v140 = vld [vmem:[%s138] ss:$8 sm:$0xf0]
    %v141 = vor.u32 %v139, %v140
    %s142 = scalar_lea.vmem [#allocation12], 2
    %v143 = vld [vmem:[%s142] ss:$8 sm:$0xf]
    %v144 = vld [vmem:[#allocation12 + $0x3] ss:$0 sm:$0xff]
    %v145 = vld [vmem:[#allocation12 + $0x4] ss:$0 sm:$0xff]
    %v146 = vld [vmem:[#allocation12 + $0x5] ss:$0 sm:$0xff]
    %v147 = vld [vmem:[#allocation12 + $0x6] ss:$0 sm:$0xff]
    %v148 = vld [vmem:[%s0] sm:$0xf]
    %v149 = vld [vmem:[%s0 + $0x4] sm:$0xf]
    %v150 = vld [vmem:[%s0 + $0x8] sm:$0xf]
    %v151 = vld [vmem:[%s0 + $0xc] sm:$0xf]
    %v152 = vld [vmem:[%s0 + $0x10] sm:$0xf]
    %v153 = vld [vmem:[%s0 + $0x14] sm:$0xf]
    %v154 = vld [vmem:[%s0 + $0x18] sm:$0xf]
    %v155 = vld [vmem:[%s0 + $0x1c] sm:$0xf]
    %v156 = vld [vmem:[%s0 + $0x20] sm:$0xf]
    %v157 = vld [vmem:[%s0 + $0x24] sm:$0xf]
    %v158 = vld [vmem:[%s0 + $0x28] sm:$0xf]
    %v159 = vld [vmem:[%s0 + $0x2c] sm:$0xf]
    %v160 = vld [vmem:[%s0 + $0x30] sm:$0xf]
    %v161 = vld [vmem:[%s0 + $0x34] sm:$0xf]
    %v162 = vld [vmem:[%s0 + $0x38] sm:$0xf]
    %v163 = vld [vmem:[%s0 + $0x3c] sm:$0xf]
    %v164 = vld [vmem:[%s2] sm:$0xf]
    %v165 = vld [vmem:[%s2 + $0x4] sm:$0xf]
    %v166 = vld [vmem:[%s2 + $0x8] sm:$0xf]
    %v167 = vld [vmem:[%s2 + $0xc] sm:$0xf]
    %v168 = vld [vmem:[%s2 + $0x10] sm:$0x3]
    %v185 = vunpack.c.l.b16 %v148
    %v186 = vunpack.c.l.b16 %v149
    %v187 = vunpack.c.l.b16 %v150
    %v188 = vunpack.c.l.b16 %v151
    %v189 = vunpack.c.l.b16 %v152
    %v190 = vunpack.c.l.b16 %v153
    %v191 = vunpack.c.l.b16 %v154
    %v192 = vunpack.c.l.b16 %v155
    %v193 = vunpack.c.l.b16 %v156
    %v194 = vunpack.c.l.b16 %v157
    %v195 = vunpack.c.l.b16 %v158
    %v196 = vunpack.c.l.b16 %v159
    %v197 = vunpack.c.l.b16 %v160
    %v198 = vunpack.c.l.b16 %v161
    %v199 = vunpack.c.l.b16 %v162
    %v200 = vunpack.c.l.b16 %v163
    %v201 = vpack.c.b16 %v186, %v185
    %v202 = vpack.c.b16 %v188, %v187
    %v203 = vpack.c.b16 %v190, %v189
    %v204 = vpack.c.b16 %v192, %v191
    %v205 = vpack.c.b16 %v194, %v193
    %v206 = vpack.c.b16 %v196, %v195
    %v207 = vpack.c.b16 %v198, %v197
    %v208 = vpack.c.b16 %v200, %v199
    %v214 = vunpack.c.l.b16 %v164
    %v215 = vunpack.c.l.b16 %v165
    %v216 = vunpack.c.l.b16 %v166
    %v217 = vunpack.c.l.b16 %v167
    %v218 = vunpack.c.l.b16 %v168
    %v219 = vpack.c.b16 %v215, %v214
    %v220 = vpack.c.b16 %v217, %v216
    %v221 = vpack.c.b16 %v218, %v218
    %vm224 = vcmask 293888
    %v226 = vsel %vm224, %v201, 0
    %v229 = vsel %vm224, %v202, 0
    %v232 = vsel %vm224, %v203, 0
    %v235 = vsel %vm224, %v204, 0
    %v238 = vsel %vm224, %v205, 0
    %v241 = vsel %vm224, %v206, 0
    %v244 = vsel %vm224, %v207, 0
    %v247 = vsel %vm224, %v208, 0
    %vm249 = vcmask 1041408
    %v251 = vsel %vm249, %v221, 0
    %253 = vmatprep.subr.bf16.mxu0 0
    %254 = vmatpush1.bf16.msra.mxu0 %v219
    %255 = vmatprep.subr.bf16.mxu0 0
    %256 = vmatpush1.bf16.msra.mxu0 %v220
    %257 = vmatprep.subr.bf16.mxu0 0
    %258 = vmatpush1.bf16.msra.mxu0 %v251
    %259 = vmatprep.subr.bf16.mxu0 0
    %260 = vmatpush1.bf16.msra.mxu0 0
    %261 = vmatprep.subr.bf16.mxu0 0
    %262 = vmatpush1.bf16.msra.mxu0 0
    %263 = vmatprep.subr.bf16.mxu0 0
    %264 = vmatpush1.bf16.msra.mxu0 0
    %265 = vmatprep.subr.bf16.mxu0 0
    %266 = vmatpush1.bf16.msra.mxu0 0
    %267 = vmatprep.subr.bf16.mxu0 0
    %268 = vmatpush1.bf16.msra.mxu0 0
    %269 = vmatprep.subr.bf16.mxu0 0
    %270 = vmatpush1.bf16.msra.mxu0 0
    %271 = vmatprep.subr.bf16.mxu0 0
    %272 = vmatpush1.bf16.msra.mxu0 0
    %273 = vmatprep.subr.bf16.mxu0 0
    %274 = vmatpush1.bf16.msra.mxu0 0
    %275 = vmatprep.subr.bf16.mxu0 0
    %276 = vmatpush1.bf16.msra.mxu0 0
    %277 = vmatprep.subr.bf16.mxu0 0
    %278 = vmatpush1.bf16.msra.mxu0 0
    %279 = vmatprep.subr.bf16.mxu0 0
    %280 = vmatpush1.bf16.msra.mxu0 0
    %281 = vmatprep.subr.bf16.mxu0 0
    %282 = vmatpush1.bf16.msra.mxu0 0
    %283 = vmatprep.subr.bf16.mxu0 0
    %284 = vmatpush1.bf16.msra.mxu0 0
    %285 = vmatprep.mubr.bf16.mxu0 0
    %286 = vmatmul.mubr.bf16.gmra.mrb[0].mxu0 %v226
    %v287 = vpop.f32.mrb[0].mxu0
    %v288 = vadd.f32 %v144, %v287
    %v289 = vpop.f32.mrb[0].mxu0
    %v290 = vpop.f32.mrb[0].mxu0
    %v291 = vadd.f32 %v144, %v290
    %v292 = vpop.f32.mrb[0].mxu0
    %293 = vmatprep.mubr.bf16.mxu0 0
    %294 = vmatmul.mubr.bf16.gmra.mrb[0].mxu0 %v229
    %v295 = vpop.f32.mrb[0].mxu0
    %v296 = vadd.f32 %v144, %v295
    %v297 = vpop.f32.mrb[0].mxu0
    %v298 = vpop.f32.mrb[0].mxu0
    %v299 = vadd.f32 %v144, %v298
    %v300 = vpop.f32.mrb[0].mxu0
    %301 = vmatprep.mubr.bf16.mxu0 0
    %302 = vmatmul.mubr.bf16.gmra.mrb[0].mxu0 %v232
    %v303 = vpop.f32.mrb[0].mxu0
    %v304 = vadd.f32 %v144, %v303
    %v305 = vpop.f32.mrb[0].mxu0
    %v306 = vpop.f32.mrb[0].mxu0
    %v307 = vadd.f32 %v144, %v306
    %v308 = vpop.f32.mrb[0].mxu0
    %309 = vmatprep.mubr.bf16.mxu0 0
    %310 = vmatmul.mubr.bf16.gmra.mrb[0].mxu0 %v235
    %v311 = vpop.f32.mrb[0].mxu0
    %v312 = vadd.f32 %v144, %v311
    %v313 = vpop.f32.mrb[0].mxu0
    %v314 = vpop.f32.mrb[0].mxu0
    %v315 = vadd.f32 %v144, %v314
    %v316 = vpop.f32.mrb[0].mxu0
    %317 = vmatprep.mubr.bf16.mxu0 0
    %318 = vmatmul.mubr.bf16.gmra.mrb[0].mxu0 %v238
    %v319 = vpop.f32.mrb[0].mxu0
    %v320 = vadd.f32 %v144, %v319
    %v321 = vpop.f32.mrb[0].mxu0
    %v322 = vpop.f32.mrb[0].mxu0
    %v323 = vadd.f32 %v144, %v322
    %v324 = vpop.f32.mrb[0].mxu0
    %325 = vmatprep.mubr.bf16.mxu0 0
    %326 = vmatmul.mubr.bf16.gmra.mrb[0].mxu0 %v241
    %v327 = vpop.f32.mrb[0].mxu0
    %v328 = vadd.f32 %v144, %v327
    %v329 = vpop.f32.mrb[0].mxu0
    %v330 = vpop.f32.mrb[0].mxu0
    %v331 = vadd.f32 %v144, %v330
    %v332 = vpop.f32.mrb[0].mxu0
    %333 = vmatprep.mubr.bf16.mxu0 0
    %334 = vmatmul.mubr.bf16.gmra.mrb[0].mxu0 %v244
    %v335 = vpop.f32.mrb[0].mxu0
    %v336 = vadd.f32 %v144, %v335
    %v337 = vpop.f32.mrb[0].mxu0
    %v338 = vpop.f32.mrb[0].mxu0
    %v339 = vadd.f32 %v144, %v338
    %v340 = vpop.f32.mrb[0].mxu0
    %341 = vmatprep.mubr.bf16.mxu0 0
    %342 = vmatmul.mubr.bf16.gmra.mrb[0].mxu0 %v247
    %v343 = vpop.f32.mrb[0].mxu0
    %v344 = vadd.f32 %v144, %v343
    %v345 = vpop.f32.mrb[0].mxu0
    %v346 = vpop.f32.mrb[0].mxu0
    %v347 = vadd.f32 %v144, %v346
    %v348 = vpop.f32.mrb[0].mxu0
    %349 = vdwg.mxu0
    %vm350 = vcmp.gt.f32.partialorder %v288, 0.0
    %vm351 = vcmp.gt.f32.partialorder %v291, 0.0
    %vm352 = vcmp.gt.f32.partialorder %v296, 0.0
    %vm353 = vcmp.gt.f32.partialorder %v299, 0.0
    %vm354 = vcmp.gt.f32.partialorder %v304, 0.0
    %vm355 = vcmp.gt.f32.partialorder %v307, 0.0
    %vm356 = vcmp.gt.f32.partialorder %v312, 0.0
    %vm357 = vcmp.gt.f32.partialorder %v315, 0.0
    %vm358 = vcmp.gt.f32.partialorder %v320, 0.0
    %vm359 = vcmp.gt.f32.partialorder %v323, 0.0
    %vm360 = vcmp.gt.f32.partialorder %v328, 0.0
    %vm361 = vcmp.gt.f32.partialorder %v331, 0.0
    %vm362 = vcmp.gt.f32.partialorder %v336, 0.0
    %vm363 = vcmp.gt.f32.partialorder %v339, 0.0
    %vm364 = vcmp.gt.f32.partialorder %v344, 0.0
    %vm365 = vcmp.gt.f32.partialorder %v347, 0.0
    %v366 = vmin.f32 %v288, 0.0
    %v367 = vmin.f32 %v291, 0.0
    %v368 = vmin.f32 %v296, 0.0
    %v369 = vmin.f32 %v299, 0.0
    %v370 = vmin.f32 %v304, 0.0
    %v371 = vmin.f32 %v307, 0.0
    %v372 = vmin.f32 %v312, 0.0
    %v373 = vmin.f32 %v315, 0.0
    %v374 = vmin.f32 %v320, 0.0
    %v375 = vmin.f32 %v323, 0.0
    %v376 = vmin.f32 %v328, 0.0
    %v377 = vmin.f32 %v331, 0.0
    %v378 = vmin.f32 %v336, 0.0
    %v379 = vmin.f32 %v339, 0.0
    %v380 = vmin.f32 %v344, 0.0
    %v381 = vmin.f32 %v347, 0.0
    %v382 = vmul.f32 %v366, 1.442695
    %v383 = vpow.pop %v382
    %v384 = vmul.f32 %v367, 1.442695
    %v385 = vpow.pop %v384
    %v386 = vmul.f32 %v368, 1.442695
    %v387 = vpow.pop %v386
    %v388 = vmul.f32 %v369, 1.442695
    %v389 = vpow.pop %v388
    %v390 = vmul.f32 %v370, 1.442695
    %v391 = vpow.pop %v390
    %v392 = vmul.f32 %v371, 1.442695
    %v393 = vpow.pop %v392
    %v394 = vmul.f32 %v372, 1.442695
    %v395 = vpow.pop %v394
    %v396 = vmul.f32 %v373, 1.442695
    %v397 = vpow.pop %v396
    %v398 = vmul.f32 %v374, 1.442695
    %v399 = vpow.pop %v398
    %v400 = vmul.f32 %v375, 1.442695
    %v401 = vpow.pop %v400
    %v402 = vmul.f32 %v376, 1.442695
    %v403 = vpow.pop %v402
    %v404 = vmul.f32 %v377, 1.442695
    %v405 = vpow.pop %v404
    %v406 = vmul.f32 %v378, 1.442695
    %v407 = vpow.pop %v406
    %v408 = vmul.f32 %v379, 1.442695
    %v409 = vpow.pop %v408
    %v410 = vmul.f32 %v380, 1.442695
    %v411 = vpow.pop %v410
    %v412 = vmul.f32 %v381, 1.442695
    %v413 = vpow.pop %v412
    %v414 = vsub.f32 %v383, 1.0
    %v415 = vsub.f32 %v385, 1.0
    %v416 = vsub.f32 %v387, 1.0
    %v417 = vsub.f32 %v389, 1.0
    %v418 = vsub.f32 %v391, 1.0
    %v419 = vsub.f32 %v393, 1.0
    %v420 = vsub.f32 %v395, 1.0
    %v421 = vsub.f32 %v397, 1.0
    %v422 = vsub.f32 %v399, 1.0
    %v423 = vsub.f32 %v401, 1.0
    %v424 = vsub.f32 %v403, 1.0
    %v425 = vsub.f32 %v405, 1.0
    %v426 = vsub.f32 %v407, 1.0
    %v427 = vsub.f32 %v409, 1.0
    %v428 = vsub.f32 %v411, 1.0
    %v429 = vsub.f32 %v413, 1.0
    %v430 = vsel %vm350, %v288, %v414
    %v431 = vsel %vm351, %v291, %v415
    %v432 = vsel %vm352, %v296, %v416
    %v433 = vsel %vm353, %v299, %v417
    %v434 = vsel %vm354, %v304, %v418
    %v435 = vsel %vm355, %v307, %v419
    %v436 = vsel %vm356, %v312, %v420
    %v437 = vsel %vm357, %v315, %v421
    %v438 = vsel %vm358, %v320, %v422
    %v439 = vsel %vm359, %v323, %v423
    %v440 = vsel %vm360, %v328, %v424
    %v441 = vsel %vm361, %v331, %v425
    %v442 = vsel %vm362, %v336, %v426
    %v443 = vsel %vm363, %v339, %v427
    %v444 = vsel %vm364, %v344, %v428
    %v445 = vsel %vm365, %v347, %v429
    %v446 = vrot.slane %v430, 7
    %v447 = vrot.slane %v431, 7
    %v448 = vrot.slane %v432, 7
    %v449 = vrot.slane %v433, 7
    %v450 = vrot.slane %v434, 7
    %v451 = vrot.slane %v435, 7
    %v452 = vrot.slane %v436, 7
    %v453 = vrot.slane %v437, 7
    %v454 = vrot.slane %v438, 7
    %v455 = vrot.slane %v439, 7
    %v456 = vrot.slane %v440, 7
    %v457 = vrot.slane %v441, 7
    %v458 = vrot.slane %v442, 7
    %v459 = vrot.slane %v443, 7
    %v460 = vrot.slane %v444, 7
    %v461 = vrot.slane %v445, 7
    %v462 = vlaneseq
    %v463 = vshrl.u32 %v462, 7
    %vm464 = vcmp.lt.s32.totalorder %v463, 1
    %v465 = vsel %vm464, %v460, %v461
    %v466 = vsel %vm464, %v459, %v460
    %v467 = vsel %vm464, %v458, %v459
    %v468 = vsel %vm464, %v457, %v458
    %v469 = vsel %vm464, %v456, %v457
    %v470 = vsel %vm464, %v455, %v456
    %v471 = vsel %vm464, %v454, %v455
    %v472 = vsel %vm464, %v453, %v454
    %v473 = vsel %vm464, %v452, %v453
    %v474 = vsel %vm464, %v451, %v452
    %v475 = vsel %vm464, %v450, %v451
    %v476 = vsel %vm464, %v449, %v450
    %v477 = vsel %vm464, %v448, %v449
    %v478 = vsel %vm464, %v447, %v448
    %v479 = vsel %vm464, %v446, %v447
    %v480 = vsel %vm464, %v461, %v446
    %v481 = vrot.slane %v430, 1
    %v482 = vrot.slane %v431, 1
    %v483 = vrot.slane %v432, 1
    %v484 = vrot.slane %v433, 1
    %v485 = vrot.slane %v434, 1
    %v486 = vrot.slane %v435, 1
    %v487 = vrot.slane %v436, 1
    %v488 = vrot.slane %v437, 1
    %v489 = vrot.slane %v438, 1
    %v490 = vrot.slane %v439, 1
    %v491 = vrot.slane %v440, 1
    %v492 = vrot.slane %v441, 1
    %v493 = vrot.slane %v442, 1
    %v494 = vrot.slane %v443, 1
    %v495 = vrot.slane %v444, 1
    %v496 = vrot.slane %v445, 1
    %vm497 = vcmp.lt.s32.totalorder %v463, 7
    %v498 = vsel %vm497, %v495, %v496
    %v499 = vsel %vm497, %v494, %v495
    %v500 = vsel %vm497, %v493, %v494
    %v501 = vsel %vm497, %v492, %v493
    %v502 = vsel %vm497, %v491, %v492
    %v503 = vsel %vm497, %v490, %v491
    %v504 = vsel %vm497, %v489, %v490
    %v505 = vsel %vm497, %v488, %v489
    %v506 = vsel %vm497, %v487, %v488
    %v507 = vsel %vm497, %v486, %v487
    %v508 = vsel %vm497, %v485, %v486
    %v509 = vsel %vm497, %v484, %v485
    %v510 = vsel %vm497, %v483, %v484
    %v511 = vsel %vm497, %v482, %v483
    %v512 = vsel %vm497, %v481, %v482
    %v513 = vsel %vm497, %v496, %v481
    %530 = vrot.lane.b32.xlu0 %v445, 32
    %v531 = vpop.permute.xlu0 %530
    %532 = vrot.lane.b32.xlu0 %v430, 32
    %v533 = vpop.permute.xlu0 %532
    %534 = vrot.lane.b32.xlu0 %v431, 32
    %v535 = vpop.permute.xlu0 %534
    %536 = vrot.lane.b32.xlu0 %v432, 32
    %v537 = vpop.permute.xlu0 %536
    %538 = vrot.lane.b32.xlu0 %v433, 32
    %v539 = vpop.permute.xlu0 %538
    %540 = vrot.lane.b32.xlu0 %v434, 32
    %v541 = vpop.permute.xlu0 %540
    %542 = vrot.lane.b32.xlu0 %v435, 32
    %v543 = vpop.permute.xlu0 %542
    %544 = vrot.lane.b32.xlu0 %v436, 32
    %v545 = vpop.permute.xlu0 %544
    %546 = vrot.lane.b32.xlu0 %v437, 32
    %v547 = vpop.permute.xlu0 %546
    %548 = vrot.lane.b32.xlu0 %v438, 32
    %v549 = vpop.permute.xlu0 %548
    %550 = vrot.lane.b32.xlu0 %v439, 32
    %v551 = vpop.permute.xlu0 %550
    %552 = vrot.lane.b32.xlu0 %v440, 32
    %v553 = vpop.permute.xlu0 %552
    %554 = vrot.lane.b32.xlu0 %v441, 32
    %v555 = vpop.permute.xlu0 %554
    %556 = vrot.lane.b32.xlu0 %v442, 32
    %v557 = vpop.permute.xlu0 %556
    %558 = vrot.lane.b32.xlu0 %v443, 32
    %v559 = vpop.permute.xlu0 %558
    %560 = vrot.lane.b32.xlu0 %v444, 32
    %v561 = vpop.permute.xlu0 %560
    %594 = vrot.lane.b32.xlu0 %v513, 64
    %v595 = vpop.permute.xlu0 %594
    %596 = vrot.lane.b32.xlu0 %v512, 64
    %v597 = vpop.permute.xlu0 %596
    %598 = vrot.lane.b32.xlu0 %v511, 64
    %v599 = vpop.permute.xlu0 %598
    %600 = vrot.lane.b32.xlu0 %v510, 64
    %v601 = vpop.permute.xlu0 %600
    %602 = vrot.lane.b32.xlu0 %v509, 64
    %v603 = vpop.permute.xlu0 %602
    %604 = vrot.lane.b32.xlu0 %v508, 64
    %v605 = vpop.permute.xlu0 %604
    %606 = vrot.lane.b32.xlu0 %v507, 64
    %v607 = vpop.permute.xlu0 %606
    %608 = vrot.lane.b32.xlu0 %v506, 64
    %v609 = vpop.permute.xlu0 %608
    %610 = vrot.lane.b32.xlu0 %v505, 64
    %v611 = vpop.permute.xlu0 %610
    %612 = vrot.lane.b32.xlu0 %v504, 64
    %v613 = vpop.permute.xlu0 %612
    %614 = vrot.lane.b32.xlu0 %v503, 64
    %v615 = vpop.permute.xlu0 %614
    %616 = vrot.lane.b32.xlu0 %v502, 64
    %v617 = vpop.permute.xlu0 %616
    %618 = vrot.lane.b32.xlu0 %v501, 64
    %v619 = vpop.permute.xlu0 %618
    %620 = vrot.lane.b32.xlu0 %v500, 64
    %v621 = vpop.permute.xlu0 %620
    %622 = vrot.lane.b32.xlu0 %v499, 64
    %v623 = vpop.permute.xlu0 %622
    %624 = vrot.lane.b32.xlu0 %v498, 64
    %v625 = vpop.permute.xlu0 %624
    %658 = vrot.lane.b32.xlu0 %v480, 96
    %v659 = vpop.permute.xlu0 %658
    %660 = vrot.lane.b32.xlu0 %v479, 96
    %v661 = vpop.permute.xlu0 %660
    %662 = vrot.lane.b32.xlu0 %v478, 96
    %v663 = vpop.permute.xlu0 %662
    %664 = vrot.lane.b32.xlu0 %v477, 96
    %v665 = vpop.permute.xlu0 %664
    %666 = vrot.lane.b32.xlu0 %v476, 96
    %v667 = vpop.permute.xlu0 %666
    %668 = vrot.lane.b32.xlu0 %v475, 96
    %v669 = vpop.permute.xlu0 %668
    %670 = vrot.lane.b32.xlu0 %v474, 96
    %v671 = vpop.permute.xlu0 %670
    %672 = vrot.lane.b32.xlu0 %v473, 96
    %v673 = vpop.permute.xlu0 %672
    %674 = vrot.lane.b32.xlu0 %v472, 96
    %v675 = vpop.permute.xlu0 %674
    %676 = vrot.lane.b32.xlu0 %v471, 96
    %v677 = vpop.permute.xlu0 %676
    %678 = vrot.lane.b32.xlu0 %v470, 96
    %v679 = vpop.permute.xlu0 %678
    %680 = vrot.lane.b32.xlu0 %v469, 96
    %v681 = vpop.permute.xlu0 %680
    %682 = vrot.lane.b32.xlu0 %v468, 96
    %v683 = vpop.permute.xlu0 %682
    %684 = vrot.lane.b32.xlu0 %v467, 96
    %v685 = vpop.permute.xlu0 %684
    %686 = vrot.lane.b32.xlu0 %v466, 96
    %v687 = vpop.permute.xlu0 %686
    %688 = vrot.lane.b32.xlu0 %v465, 96
    %v689 = vpop.permute.xlu0 %688
    %706 = vrot.lane.b32.xlu0 %v512, 32
    %v707 = vpop.permute.xlu0 %706
    %708 = vrot.lane.b32.xlu0 %v511, 32
    %v709 = vpop.permute.xlu0 %708
    %710 = vrot.lane.b32.xlu0 %v510, 32
    %v711 = vpop.permute.xlu0 %710
    %712 = vrot.lane.b32.xlu0 %v509, 32
    %v713 = vpop.permute.xlu0 %712
    %714 = vrot.lane.b32.xlu0 %v508, 32
    %v715 = vpop.permute.xlu0 %714
    %716 = vrot.lane.b32.xlu0 %v507, 32
    %v717 = vpop.permute.xlu0 %716
    %718 = vrot.lane.b32.xlu0 %v506, 32
    %v719 = vpop.permute.xlu0 %718
    %720 = vrot.lane.b32.xlu0 %v505, 32
    %v721 = vpop.permute.xlu0 %720
    %722 = vrot.lane.b32.xlu0 %v504, 32
    %v723 = vpop.permute.xlu0 %722
    %724 = vrot.lane.b32.xlu0 %v503, 32
    %v725 = vpop.permute.xlu0 %724
    %726 = vrot.lane.b32.xlu0 %v502, 32
    %v727 = vpop.permute.xlu0 %726
    %728 = vrot.lane.b32.xlu0 %v501, 32
    %v729 = vpop.permute.xlu0 %728
    %730 = vrot.lane.b32.xlu0 %v500, 32
    %v731 = vpop.permute.xlu0 %730
    %732 = vrot.lane.b32.xlu0 %v499, 32
    %v733 = vpop.permute.xlu0 %732
    %734 = vrot.lane.b32.xlu0 %v498, 32
    %v735 = vpop.permute.xlu0 %734
    %736 = vrot.lane.b32.xlu0 %v513, 32
    %v737 = vpop.permute.xlu0 %736
    %754 = vrot.lane.b32.xlu0 %v479, 64
    %v755 = vpop.permute.xlu0 %754
    %756 = vrot.lane.b32.xlu0 %v478, 64
    %v757 = vpop.permute.xlu0 %756
    %758 = vrot.lane.b32.xlu0 %v477, 64
    %v759 = vpop.permute.xlu0 %758
    %760 = vrot.lane.b32.xlu0 %v476, 64
    %v761 = vpop.permute.xlu0 %760
    %762 = vrot.lane.b32.xlu0 %v475, 64
    %v763 = vpop.permute.xlu0 %762
    %764 = vrot.lane.b32.xlu0 %v474, 64
    %v765 = vpop.permute.xlu0 %764
    %766 = vrot.lane.b32.xlu0 %v473, 64
    %v767 = vpop.permute.xlu0 %766
    %768 = vrot.lane.b32.xlu0 %v472, 64
    %v769 = vpop.permute.xlu0 %768
    %770 = vrot.lane.b32.xlu0 %v471, 64
    %v771 = vpop.permute.xlu0 %770
    %772 = vrot.lane.b32.xlu0 %v470, 64
    %v773 = vpop.permute.xlu0 %772
    %774 = vrot.lane.b32.xlu0 %v469, 64
    %v775 = vpop.permute.xlu0 %774
    %776 = vrot.lane.b32.xlu0 %v468, 64
    %v777 = vpop.permute.xlu0 %776
    %778 = vrot.lane.b32.xlu0 %v467, 64
    %v779 = vpop.permute.xlu0 %778
    %780 = vrot.lane.b32.xlu0 %v466, 64
    %v781 = vpop.permute.xlu0 %780
    %782 = vrot.lane.b32.xlu0 %v465, 64
    %v783 = vpop.permute.xlu0 %782
    %784 = vrot.lane.b32.xlu0 %v480, 64
    %v785 = vpop.permute.xlu0 %784
    %802 = vrot.lane.b32.xlu0 %v431, 96
    %v803 = vpop.permute.xlu0 %802
    %804 = vrot.lane.b32.xlu0 %v432, 96
    %v805 = vpop.permute.xlu0 %804
    %806 = vrot.lane.b32.xlu0 %v433, 96
    %v807 = vpop.permute.xlu0 %806
    %808 = vrot.lane.b32.xlu0 %v434, 96
    %v809 = vpop.permute.xlu0 %808
    %810 = vrot.lane.b32.xlu0 %v435, 96
    %v811 = vpop.permute.xlu0 %810
    %812 = vrot.lane.b32.xlu0 %v436, 96
    %v813 = vpop.permute.xlu0 %812
    %814 = vrot.lane.b32.xlu0 %v437, 96
    %v815 = vpop.permute.xlu0 %814
    %816 = vrot.lane.b32.xlu0 %v438, 96
    %v817 = vpop.permute.xlu0 %816
    %818 = vrot.lane.b32.xlu0 %v439, 96
    %v819 = vpop.permute.xlu0 %818
    %820 = vrot.lane.b32.xlu0 %v440, 96
    %v821 = vpop.permute.xlu0 %820
    %822 = vrot.lane.b32.xlu0 %v441, 96
    %v823 = vpop.permute.xlu0 %822
    %824 = vrot.lane.b32.xlu0 %v442, 96
    %v825 = vpop.permute.xlu0 %824
    %826 = vrot.lane.b32.xlu0 %v443, 96
    %v827 = vpop.permute.xlu0 %826
    %828 = vrot.lane.b32.xlu0 %v444, 96
    %v829 = vpop.permute.xlu0 %828
    %830 = vrot.lane.b32.xlu0 %v445, 96
    %v831 = vpop.permute.xlu0 %830
    %832 = vrot.lane.b32.xlu0 %v430, 96
    %v833 = vpop.permute.xlu0 %832
    %vm850 = vcmask 261120
    %v851 = vsel %vm850, %v465, %v531
    %v852 = vsel %vm850, %v480, %v533
    %v853 = vsel %vm850, %v479, %v535
    %v854 = vsel %vm850, %v478, %v537
    %v855 = vsel %vm850, %v477, %v539
    %v856 = vsel %vm850, %v476, %v541
    %v857 = vsel %vm850, %v475, %v543
    %v858 = vsel %vm850, %v474, %v545
    %v859 = vsel %vm850, %v473, %v547
    %v860 = vsel %vm850, %v472, %v549
    %v861 = vsel %vm850, %v471, %v551
    %v862 = vsel %vm850, %v470, %v553
    %v863 = vsel %vm850, %v469, %v555
    %v864 = vsel %vm850, %v468, %v557
    %v865 = vsel %vm850, %v467, %v559
    %v866 = vsel %vm850, %v466, %v561
    %vm867 = vcmask 523264
    %v868 = vsel %vm867, %v851, %v595
    %v869 = vsel %vm867, %v852, %v597
    %v870 = vsel %vm867, %v853, %v599
    %v871 = vsel %vm867, %v854, %v601
    %v872 = vsel %vm867, %v855, %v603
    %v873 = vsel %vm867, %v856, %v605
    %v874 = vsel %vm867, %v857, %v607
    %v875 = vsel %vm867, %v858, %v609
    %v876 = vsel %vm867, %v859, %v611
    %v877 = vsel %vm867, %v860, %v613
    %v878 = vsel %vm867, %v861, %v615
    %v879 = vsel %vm867, %v862, %v617
    %v880 = vsel %vm867, %v863, %v619
    %v881 = vsel %vm867, %v864, %v621
    %v882 = vsel %vm867, %v865, %v623
    %v883 = vsel %vm867, %v866, %v625
    %vm884 = vcmask 785408
    %v885 = vsel %vm884, %v868, %v659
    %v886 = vsel %vm884, %v869, %v661
    %v887 = vsel %vm884, %v870, %v663
    %v888 = vsel %vm884, %v871, %v665
    %v889 = vsel %vm884, %v872, %v667
    %v890 = vsel %vm884, %v873, %v669
    %v891 = vsel %vm884, %v874, %v671
    %v892 = vsel %vm884, %v875, %v673
    %v893 = vsel %vm884, %v876, %v675
    %v894 = vsel %vm884, %v877, %v677
    %v895 = vsel %vm884, %v878, %v679
    %v896 = vsel %vm884, %v879, %v681
    %v897 = vsel %vm884, %v880, %v683
    %v898 = vsel %vm884, %v881, %v685
    %v899 = vsel %vm884, %v882, %v687
    %v900 = vsel %vm884, %v883, %v689
    %v901 = vsel %vm850, %v430, %v707
    %v902 = vsel %vm850, %v431, %v709
    %v903 = vsel %vm850, %v432, %v711
    %v904 = vsel %vm850, %v433, %v713
    %v905 = vsel %vm850, %v434, %v715
    %v906 = vsel %vm850, %v435, %v717
    %v907 = vsel %vm850, %v436, %v719
    %v908 = vsel %vm850, %v437, %v721
    %v909 = vsel %vm850, %v438, %v723
    %v910 = vsel %vm850, %v439, %v725
    %v911 = vsel %vm850, %v440, %v727
    %v912 = vsel %vm850, %v441, %v729
    %v913 = vsel %vm850, %v442, %v731
    %v914 = vsel %vm850, %v443, %v733
    %v915 = vsel %vm850, %v444, %v735
    %v916 = vsel %vm850, %v445, %v737
    %v917 = vsel %vm867, %v901, %v755
    %v918 = vsel %vm867, %v902, %v757
    %v919 = vsel %vm867, %v903, %v759
    %v920 = vsel %vm867, %v904, %v761
    %v921 = vsel %vm867, %v905, %v763
    %v922 = vsel %vm867, %v906, %v765
    %v923 = vsel %vm867, %v907, %v767
    %v924 = vsel %vm867, %v908, %v769
    %v925 = vsel %vm867, %v909, %v771
    %v926 = vsel %vm867, %v910, %v773
    %v927 = vsel %vm867, %v911, %v775
    %v928 = vsel %vm867, %v912, %v777
    %v929 = vsel %vm867, %v913, %v779
    %v930 = vsel %vm867, %v914, %v781
    %v931 = vsel %vm867, %v915, %v783
    %v932 = vsel %vm867, %v916, %v785
    %v933 = vsel %vm884, %v917, %v803
    %v934 = vsel %vm884, %v918, %v805
    %v935 = vsel %vm884, %v919, %v807
    %v936 = vsel %vm884, %v920, %v809
    %v937 = vsel %vm884, %v921, %v811
    %v938 = vsel %vm884, %v922, %v813
    %v939 = vsel %vm884, %v923, %v815
    %v940 = vsel %vm884, %v924, %v817
    %v941 = vsel %vm884, %v925, %v819
    %v942 = vsel %vm884, %v926, %v821
    %v943 = vsel %vm884, %v927, %v823
    %v944 = vsel %vm884, %v928, %v825
    %v945 = vsel %vm884, %v929, %v827
    %v946 = vsel %vm884, %v930, %v829
    %v947 = vsel %vm884, %v931, %v831
    %v948 = vsel %vm884, %v932, %v833
    %v949 = vld [vmem:[%s4] sm:$0xff]
    %v950 = vld [vmem:[%s4 + $0x8] sm:$0xff]
    %v951 = vld [vmem:[%s4 + $0x10] sm:$0xff]
    %v952 = vld [vmem:[%s4 + $0x18] sm:$0xff]
    %v953 = vld [vmem:[%s4 + $0x20] sm:$0xff]
    %v954 = vld [vmem:[%s4 + $0x28] sm:$0xff]
    %v955 = vld [vmem:[%s4 + $0x30] sm:$0xff]
    %v956 = vld [vmem:[%s4 + $0x38] sm:$0xff]
    %v957 = vld [vmem:[%s4 + $0x40] sm:$0xff]
    %v958 = vld [vmem:[%s4 + $0x48] sm:$0xff]
    %v959 = vld [vmem:[%s4 + $0x50] sm:$0xff]
    %v960 = vld [vmem:[%s4 + $0x58] sm:$0xff]
    %v961 = vld [vmem:[%s4 + $0x60] sm:$0xff]
    %v962 = vld [vmem:[%s4 + $0x68] sm:$0xff]
    %v963 = vld [vmem:[%s4 + $0x70] sm:$0xff]
    %v964 = vld [vmem:[%s4 + $0x78] sm:$0xff]
    %v965 = vld [vmem:[%s4 + $0x80] sm:$0xff]
    %v966 = vld [vmem:[%s4 + $0x88] sm:$0xff]
    %v967 = vld [vmem:[%s4 + $0x90] sm:$0xff]
    %v968 = vld [vmem:[%s4 + $0x98] sm:$0xff]
    %v969 = vld [vmem:[%s4 + $0xa0] sm:$0xff]
    %v970 = vld [vmem:[%s4 + $0xa8] sm:$0xff]
    %v971 = vld [vmem:[%s4 + $0xb0] sm:$0xff]
    %v972 = vld [vmem:[%s4 + $0xb8] sm:$0xff]
    %v973 = vld [vmem:[%s4 + $0xc0] sm:$0xff]
    %v974 = vld [vmem:[%s4 + $0xc8] sm:$0xff]
    %v975 = vld [vmem:[%s4 + $0xd0] sm:$0xff]
    %v976 = vld [vmem:[%s4 + $0xd8] sm:$0xff]
    %v977 = vld [vmem:[%s4 + $0xe0] sm:$0xff]
    %v978 = vld [vmem:[%s4 + $0xe8] sm:$0xff]
    %v979 = vld [vmem:[%s4 + $0xf0] sm:$0xff]
    %v980 = vld [vmem:[%s4 + $0xf8] sm:$0xff]
    %v981 = vld [vmem:[%s4 + $0x100] sm:$0xff]
    %v982 = vld [vmem:[%s4 + $0x108] sm:$0xff]
    %v983 = vld [vmem:[%s4 + $0x110] sm:$0xff]
    %v984 = vld [vmem:[%s4 + $0x118] sm:$0xff]
    %v985 = vld [vmem:[%s4 + $0x120] sm:$0xff]
    %v986 = vld [vmem:[%s4 + $0x128] sm:$0xff]
    %v987 = vld [vmem:[%s4 + $0x130] sm:$0xff]
    %v988 = vld [vmem:[%s4 + $0x138] sm:$0xff]
    %v989 = vld [vmem:[%s4 + $0x140] sm:$0xff]
    %v990 = vld [vmem:[%s4 + $0x148] sm:$0xff]
    %v991 = vld [vmem:[%s4 + $0x150] sm:$0xff]
    %v992 = vld [vmem:[%s4 + $0x158] sm:$0xff]
    %v993 = vld [vmem:[%s4 + $0x160] sm:$0xff]
    %v994 = vld [vmem:[%s4 + $0x168] sm:$0xff]
    %v995 = vld [vmem:[%s4 + $0x170] sm:$0xff]
    %v996 = vld [vmem:[%s4 + $0x178] sm:$0xff]
    %v997 = vmul.f32 %v885, %v949
    %v998 = vmul.f32 %v933, %v950
    %v999 = vmul.f32 %v511, %v951
    %v1000 = vmul.f32 %v886, %v952
    %v1001 = vmul.f32 %v934, %v953
    %v1002 = vmul.f32 %v510, %v954
    %v1003 = vmul.f32 %v887, %v955
    %v1004 = vmul.f32 %v935, %v956
    %v1005 = vmul.f32 %v509, %v957
    %v1006 = vmul.f32 %v888, %v958
    %v1007 = vmul.f32 %v936, %v959
    %v1008 = vmul.f32 %v508, %v960
    %v1009 = vmul.f32 %v889, %v961
    %v1010 = vmul.f32 %v937, %v962
    %v1011 = vmul.f32 %v507, %v963
    %v1012 = vmul.f32 %v890, %v964
    %v1013 = vmul.f32 %v938, %v965
    %v1014 = vmul.f32 %v506, %v966
    %v1015 = vmul.f32 %v891, %v967
    %v1016 = vmul.f32 %v939, %v968
    %v1017 = vmul.f32 %v505, %v969
    %v1018 = vmul.f32 %v892, %v970
    %v1019 = vmul.f32 %v940, %v971
    %v1020 = vmul.f32 %v504, %v972
    %v1021 = vmul.f32 %v893, %v973
    %v1022 = vmul.f32 %v941, %v974
    %v1023 = vmul.f32 %v503, %v975
    %v1024 = vmul.f32 %v894, %v976
    %v1025 = vmul.f32 %v942, %v977
    %v1026 = vmul.f32 %v502, %v978
    %v1027 = vmul.f32 %v895, %v979
    %v1028 = vmul.f32 %v943, %v980
    %v1029 = vmul.f32 %v501, %v981
    %v1030 = vmul.f32 %v896, %v982
    %v1031 = vmul.f32 %v944, %v983
    %v1032 = vmul.f32 %v500, %v984
    %v1033 = vmul.f32 %v897, %v985
    %v1034 = vmul.f32 %v945, %v986
    %v1035 = vmul.f32 %v499, %v987
    %v1036 = vmul.f32 %v898, %v988
    %v1037 = vmul.f32 %v946, %v989
    %v1038 = vmul.f32 %v498, %v990
    %v1039 = vmul.f32 %v899, %v991
    %v1040 = vmul.f32 %v947, %v992
    %v1041 = vmul.f32 %v513, %v993
    %v1042 = vmul.f32 %v900, %v994
    %v1043 = vmul.f32 %v948, %v995
    %v1044 = vmul.f32 %v512, %v996
    %v1045 = vld [vmem:[%s3] sm:$0xf]
    %v1046 = vld [vmem:[%s3 + $0x4] sm:$0xf]
    %v1047 = vld [vmem:[%s3 + $0x8] sm:$0xf]
    %v1048 = vld [vmem:[%s3 + $0xc] sm:$0xf]
    %v1049 = vld [vmem:[%s3 + $0x10] sm:$0xf]
    %v1050 = vld [vmem:[%s3 + $0x14] sm:$0xf]
    %v1051 = vld [vmem:[%s3 + $0x18] sm:$0xf]
    %v1052 = vld [vmem:[%s3 + $0x1c] sm:$0xf]
    %v1053 = vld [vmem:[%s3 + $0x20] sm:$0xf]
    %v1054 = vld [vmem:[%s3 + $0x24] sm:$0xf]
    %v1055 = vld [vmem:[%s3 + $0x28] sm:$0xf]
    %v1056 = vld [vmem:[%s3 + $0x2c] sm:$0xf]
    %v1057 = vld [vmem:[%s3 + $0x30] sm:$0xf]
    %v1058 = vld [vmem:[%s3 + $0x34] sm:$0xf]
    %v1059 = vld [vmem:[%s3 + $0x38] sm:$0xf]
    %v1060 = vld [vmem:[%s3 + $0x3c] sm:$0xf]
    %v1061 = vld [vmem:[%s3 + $0x40] sm:$0xf]
    %v1062 = vld [vmem:[%s3 + $0x44] sm:$0xf]
    %v1063 = vld [vmem:[%s3 + $0x48] sm:$0xf]
    %v1064 = vld [vmem:[%s3 + $0x4c] sm:$0xf]
    %v1065 = vld [vmem:[%s3 + $0x50] sm:$0xf]
    %v1066 = vld [vmem:[%s3 + $0x54] sm:$0xf]
    %v1067 = vld [vmem:[%s3 + $0x58] sm:$0xf]
    %v1068 = vld [vmem:[%s3 + $0x5c] sm:$0xf]
    %v1069 = vld [vmem:[%s3 + $0x60] sm:$0xf]
    %v1070 = vld [vmem:[%s3 + $0x64] sm:$0xf]
    %v1071 = vld [vmem:[%s3 + $0x68] sm:$0xf]
    %v1072 = vld [vmem:[%s3 + $0x6c] sm:$0xf]
    %v1073 = vld [vmem:[%s3 + $0x70] sm:$0xf]
    %v1074 = vld [vmem:[%s3 + $0x74] sm:$0xf]
    %v1075 = vld [vmem:[%s3 + $0x78] sm:$0xf]
    %v1076 = vld [vmem:[%s3 + $0x7c] sm:$0xf]
    %v1077 = vld [vmem:[%s3 + $0x80] sm:$0xf]
    %v1078 = vld [vmem:[%s3 + $0x84] sm:$0xf]
    %v1079 = vld [vmem:[%s3 + $0x88] sm:$0xf]
    %v1080 = vld [vmem:[%s3 + $0x8c] sm:$0xf]
    %v1081 = vpack.c.bf16 %v1000, %v997
    %v1082 = vpack.c.bf16 %v1001, %v998
    %v1083 = vpack.c.bf16 %v1002, %v999
    %v1084 = vpack.c.bf16 %v1006, %v1003
    %v1085 = vpack.c.bf16 %v1007, %v1004
    %v1086 = vpack.c.bf16 %v1008, %v1005
    %v1087 = vpack.c.bf16 %v1012, %v1009
    %v1088 = vpack.c.bf16 %v1013, %v1010
    %v1089 = vpack.c.bf16 %v1014, %v1011
    %v1090 = vpack.c.bf16 %v1018, %v1015
    %v1091 = vpack.c.bf16 %v1019, %v1016
    %v1092 = vpack.c.bf16 %v1020, %v1017
    %v1093 = vpack.c.bf16 %v1024, %v1021
    %v1094 = vpack.c.bf16 %v1025, %v1022
    %v1095 = vpack.c.bf16 %v1026, %v1023
    %v1096 = vpack.c.bf16 %v1030, %v1027
    %v1097 = vpack.c.bf16 %v1031, %v1028
    %v1098 = vpack.c.bf16 %v1032, %v1029
    %v1099 = vpack.c.bf16 %v1036, %v1033
    %v1100 = vpack.c.bf16 %v1037, %v1034
    %v1101 = vpack.c.bf16 %v1038, %v1035
    %v1102 = vpack.c.bf16 %v1042, %v1039
    %v1103 = vpack.c.bf16 %v1043, %v1040
    %v1104 = vpack.c.bf16 %v1044, %v1041
    %v1141 = vunpack.c.l.b16 %v1045
    %v1142 = vunpack.c.l.b16 %v1046
    %v1143 = vunpack.c.l.b16 %v1047
    %v1144 = vunpack.c.l.b16 %v1048
    %v1145 = vunpack.c.l.b16 %v1049
    %v1146 = vunpack.c.l.b16 %v1050
    %v1147 = vunpack.c.l.b16 %v1051
    %v1148 = vunpack.c.l.b16 %v1052
    %v1149 = vunpack.c.l.b16 %v1053
    %v1150 = vunpack.c.l.b16 %v1054
    %v1151 = vunpack.c.l.b16 %v1055
    %v1152 = vunpack.c.l.b16 %v1056
    %v1153 = vunpack.c.l.b16 %v1057
    %v1154 = vunpack.c.l.b16 %v1058
    %v1155 = vunpack.c.l.b16 %v1059
    %v1156 = vunpack.c.l.b16 %v1060
    %v1157 = vunpack.c.l.b16 %v1061
    %v1158 = vunpack.c.l.b16 %v1062
    %v1159 = vunpack.c.l.b16 %v1063
    %v1160 = vunpack.c.l.b16 %v1064
    %v1161 = vunpack.c.l.b16 %v1065
    %v1162 = vunpack.c.l.b16 %v1066
    %v1163 = vunpack.c.l.b16 %v1067
    %v1164 = vunpack.c.l.b16 %v1068
    %v1165 = vunpack.c.l.b16 %v1069
    %v1166 = vunpack.c.l.b16 %v1070
    %v1167 = vunpack.c.l.b16 %v1071
    %v1168 = vunpack.c.l.b16 %v1072
    %v1169 = vunpack.c.l.b16 %v1073
    %v1170 = vunpack.c.l.b16 %v1074
    %v1171 = vunpack.c.l.b16 %v1075
    %v1172 = vunpack.c.l.b16 %v1076
    %v1173 = vunpack.c.l.b16 %v1077
    %v1174 = vunpack.c.l.b16 %v1078
    %v1175 = vunpack.c.l.b16 %v1079
    %v1176 = vunpack.c.l.b16 %v1080
    %v1177 = vpack.c.b16 %v1142, %v1141
    %v1178 = vpack.c.b16 %v1144, %v1143
    %v1179 = vpack.c.b16 %v1146, %v1145
    %v1180 = vpack.c.b16 %v1148, %v1147
    %v1181 = vpack.c.b16 %v1150, %v1149
    %v1182 = vpack.c.b16 %v1152, %v1151
    %v1183 = vpack.c.b16 %v1154, %v1153
    %v1184 = vpack.c.b16 %v1156, %v1155
    %v1185 = vpack.c.b16 %v1158, %v1157
    %v1186 = vpack.c.b16 %v1160, %v1159
    %v1187 = vpack.c.b16 %v1162, %v1161
    %v1188 = vpack.c.b16 %v1164, %v1163
    %v1189 = vpack.c.b16 %v1166, %v1165
    %v1190 = vpack.c.b16 %v1168, %v1167
    %v1191 = vpack.c.b16 %v1170, %v1169
    %v1192 = vpack.c.b16 %v1172, %v1171
    %v1193 = vpack.c.b16 %v1174, %v1173
    %v1194 = vpack.c.b16 %v1176, %v1175
    %v1214 = vsel %vm850, %v1083, 0
    %v1217 = vsel %vm850, %v1086, 0
    %v1220 = vsel %vm850, %v1089, 0
    %v1223 = vsel %vm850, %v1092, 0
    %v1226 = vsel %vm850, %v1095, 0
    %v1229 = vsel %vm850, %v1098, 0
    %v1232 = vsel %vm850, %v1101, 0
    %v1235 = vsel %vm850, %v1104, 0
    %1237 = vmatprep.subr.bf16.mxu0 0
    %1238 = vmatpush1.bf16.msra.mxu0 %v1177
    %1239 = vmatprep.subr.bf16.mxu0 0
    %1240 = vmatpush1.bf16.msra.mxu0 %v1178
    %1241 = vmatprep.subr.bf16.mxu0 0
    %1242 = vmatpush1.bf16.msra.mxu0 %v1179
    %1243 = vmatprep.subr.bf16.mxu0 0
    %1244 = vmatpush1.bf16.msra.mxu0 %v1180
    %1245 = vmatprep.subr.bf16.mxu0 0
    %1246 = vmatpush1.bf16.msra.mxu0 %v1181
    %1247 = vmatprep.subr.bf16.mxu0 0
    %1248 = vmatpush1.bf16.msra.mxu0 %v1182
    %1249 = vmatprep.subr.bf16.mxu0 0
    %1250 = vmatpush1.bf16.msra.mxu0 %v1183
    %1251 = vmatprep.subr.bf16.mxu0 0
    %1252 = vmatpush1.bf16.msra.mxu0 %v1184
    %1253 = vmatprep.subr.bf16.mxu0 0
    %1254 = vmatpush1.bf16.msra.mxu0 %v1185
    %1255 = vmatprep.subr.bf16.mxu0 0
    %1256 = vmatpush1.bf16.msra.mxu0 %v1186
    %1257 = vmatprep.subr.bf16.mxu0 0
    %1258 = vmatpush1.bf16.msra.mxu0 %v1187
    %1259 = vmatprep.subr.bf16.mxu0 0
    %1260 = vmatpush1.bf16.msra.mxu0 %v1188
    %1261 = vmatprep.subr.bf16.mxu0 0
    %1262 = vmatpush1.bf16.msra.mxu0 %v1189
    %1263 = vmatprep.subr.bf16.mxu0 0
    %1264 = vmatpush1.bf16.msra.mxu0 %v1190
    %1265 = vmatprep.subr.bf16.mxu0 0
    %1266 = vmatpush1.bf16.msra.mxu0 %v1191
    %1267 = vmatprep.subr.bf16.mxu0 0
    %1268 = vmatpush1.bf16.msra.mxu0 %v1192
    %1269 = vmatprep.mubr.bf16.mxu0 %v1082
    %1270 = vmatmul.mubr.bf16.gmra.mrb[0].mxu0 %v1081
    %v1271 = vpop.f32.mrb[0].mxu0
    %v1272 = vadd.f32 %v145, %v1271
    %v1273 = vpop.f32.mrb[0].mxu0
    %v1274 = vpop.f32.mrb[0].mxu0
    %v1275 = vadd.f32 %v145, %v1274
    %v1276 = vpop.f32.mrb[0].mxu0
    %1277 = vmatprep.mubr.bf16.mxu0 %v1085
    %1278 = vmatmul.mubr.bf16.gmra.mrb[0].mxu0 %v1084
    %v1279 = vpop.f32.mrb[0].mxu0
    %v1280 = vadd.f32 %v145, %v1279
    %v1281 = vpop.f32.mrb[0].mxu0
    %v1282 = vpop.f32.mrb[0].mxu0
    %v1283 = vadd.f32 %v145, %v1282
    %v1284 = vpop.f32.mrb[0].mxu0
    %1285 = vmatprep.mubr.bf16.mxu0 %v1088
    %1286 = vmatmul.mubr.bf16.gmra.mrb[0].mxu0 %v1087
    %v1287 = vpop.f32.mrb[0].mxu0
    %v1288 = vadd.f32 %v145, %v1287
    %v1289 = vpop.f32.mrb[0].mxu0
    %v1290 = vpop.f32.mrb[0].mxu0
    %v1291 = vadd.f32 %v145, %v1290
    %v1292 = vpop.f32.mrb[0].mxu0
    %1293 = vmatprep.mubr.bf16.mxu0 %v1091
    %1294 = vmatmul.mubr.bf16.gmra.mrb[0].mxu0 %v1090
    %v1295 = vpop.f32.mrb[0].mxu0
    %v1296 = vadd.f32 %v145, %v1295
    %v1297 = vpop.f32.mrb[0].mxu0
    %v1298 = vpop.f32.mrb[0].mxu0
    %v1299 = vadd.f32 %v145, %v1298
    %v1300 = vpop.f32.mrb[0].mxu0
    %1301 = vmatprep.mubr.bf16.mxu0 %v1094
    %1302 = vmatmul.mubr.bf16.gmra.mrb[0].mxu0 %v1093
    %v1303 = vpop.f32.mrb[0].mxu0
    %v1304 = vadd.f32 %v145, %v1303
    %v1305 = vpop.f32.mrb[0].mxu0
    %v1306 = vpop.f32.mrb[0].mxu0
    %v1307 = vadd.f32 %v145, %v1306
    %v1308 = vpop.f32.mrb[0].mxu0
    %1309 = vmatprep.mubr.bf16.mxu0 %v1097
    %1310 = vmatmul.mubr.bf16.gmra.mrb[0].mxu0 %v1096
    %v1311 = vpop.f32.mrb[0].mxu0
    %v1312 = vadd.f32 %v145, %v1311
    %v1313 = vpop.f32.mrb[0].mxu0
    %v1314 = vpop.f32.mrb[0].mxu0
    %v1315 = vadd.f32 %v145, %v1314
    %v1316 = vpop.f32.mrb[0].mxu0
    %1317 = vmatprep.mubr.bf16.mxu0 %v1100
    %1318 = vmatmul.mubr.bf16.gmra.mrb[0].mxu0 %v1099
    %v1319 = vpop.f32.mrb[0].mxu0
    %v1320 = vadd.f32 %v145, %v1319
    %v1321 = vpop.f32.mrb[0].mxu0
    %v1322 = vpop.f32.mrb[0].mxu0
    %v1323 = vadd.f32 %v145, %v1322
    %v1324 = vpop.f32.mrb[0].mxu0
    %1325 = vmatprep.mubr.bf16.mxu0 %v1103
    %1326 = vmatmul.mubr.bf16.gmra.mrb[0].mxu0 %v1102
    %v1327 = vpop.f32.mrb[0].mxu0
    %v1328 = vadd.f32 %v145, %v1327
    %v1329 = vpop.f32.mrb[0].mxu0
    %v1330 = vpop.f32.mrb[0].mxu0
    %v1331 = vadd.f32 %v145, %v1330
    %v1332 = vpop.f32.mrb[0].mxu0
    %1333 = vdwg.mxu0
    %1334 = vmatprep.subr.bf16.mxu0 0
    %1335 = vmatpush1.bf16.msra.mxu0 %v1193
    %1336 = vmatprep.subr.bf16.mxu0 0
    %1337 = vmatpush1.bf16.msra.mxu0 %v1194
    %1338 = vmatprep.subr.bf16.mxu0 0
    %1339 = vmatpush1.bf16.msra.mxu0 0
    %1340 = vmatprep.subr.bf16.mxu0 0
    %1341 = vmatpush1.bf16.msra.mxu0 0
    %1342 = vmatprep.subr.bf16.mxu0 0
    %1343 = vmatpush1.bf16.msra.mxu0 0
    %1344 = vmatprep.subr.bf16.mxu0 0
    %1345 = vmatpush1.bf16.msra.mxu0 0
    %1346 = vmatprep.subr.bf16.mxu0 0
    %1347 = vmatpush1.bf16.msra.mxu0 0
    %1348 = vmatprep.subr.bf16.mxu0 0
    %1349 = vmatpush1.bf16.msra.mxu0 0
    %1350 = vmatprep.subr.bf16.mxu0 0
    %1351 = vmatpush1.bf16.msra.mxu0 0
    %1352 = vmatprep.subr.bf16.mxu0 0
    %1353 = vmatpush1.bf16.msra.mxu0 0
    %1354 = vmatprep.subr.bf16.mxu0 0
    %1355 = vmatpush1.bf16.msra.mxu0 0
    %1356 = vmatprep.subr.bf16.mxu0 0
    %1357 = vmatpush1.bf16.msra.mxu0 0
    %1358 = vmatprep.subr.bf16.mxu0 0
    %1359 = vmatpush1.bf16.msra.mxu0 0
    %1360 = vmatprep.subr.bf16.mxu0 0
    %1361 = vmatpush1.bf16.msra.mxu0 0
    %1362 = vmatprep.subr.bf16.mxu0 0
    %1363 = vmatpush1.bf16.msra.mxu0 0
    %1364 = vmatprep.subr.bf16.mxu0 0
    %1365 = vmatpush1.bf16.msra.mxu0 0
    %1366 = vmatprep.mubr.bf16.mxu0 0
    %1367 = vmatmul.mubr.bf16.gmra.mrb[0].mxu0 %v1214
    %v1368 = vpop.f32.mrb[0].mxu0
    %v1369 = vadd.f32 %v1272, %v1368
    %v1370 = vpop.f32.mrb[0].mxu0
    %v1371 = vpop.f32.mrb[0].mxu0
    %v1372 = vadd.f32 %v1275, %v1371
    %v1373 = vpop.f32.mrb[0].mxu0
    %1374 = vmatprep.mubr.bf16.mxu0 0
    %1375 = vmatmul.mubr.bf16.gmra.mrb[0].mxu0 %v1217
    %v1376 = vpop.f32.mrb[0].mxu0
    %v1377 = vadd.f32 %v1280, %v1376
    %v1378 = vpop.f32.mrb[0].mxu0
    %v1379 = vpop.f32.mrb[0].mxu0
    %v1380 = vadd.f32 %v1283, %v1379
    %v1381 = vpop.f32.mrb[0].mxu0
    %1382 = vmatprep.mubr.bf16.mxu0 0
    %1383 = vmatmul.mubr.bf16.gmra.mrb[0].mxu0 %v1220
    %v1384 = vpop.f32.mrb[0].mxu0
    %v1385 = vadd.f32 %v1288, %v1384
    %v1386 = vpop.f32.mrb[0].mxu0
    %v1387 = vpop.f32.mrb[0].mxu0
    %v1388 = vadd.f32 %v1291, %v1387
    %v1389 = vpop.f32.mrb[0].mxu0
    %1390 = vmatprep.mubr.bf16.mxu0 0
    %1391 = vmatmul.mubr.bf16.gmra.mrb[0].mxu0 %v1223
    %v1392 = vpop.f32.mrb[0].mxu0
    %v1393 = vadd.f32 %v1296, %v1392
    %v1394 = vpop.f32.mrb[0].mxu0
    %v1395 = vpop.f32.mrb[0].mxu0
    %v1396 = vadd.f32 %v1299, %v1395
    %v1397 = vpop.f32.mrb[0].mxu0
    %1398 = vmatprep.mubr.bf16.mxu0 0
    %1399 = vmatmul.mubr.bf16.gmra.mrb[0].mxu0 %v1226
    %v1400 = vpop.f32.mrb[0].mxu0
    %v1401 = vadd.f32 %v1304, %v1400
    %v1402 = vpop.f32.mrb[0].mxu0
    %v1403 = vpop.f32.mrb[0].mxu0
    %v1404 = vadd.f32 %v1307, %v1403
    %v1405 = vpop.f32.mrb[0].mxu0
    %1406 = vmatprep.mubr.bf16.mxu0 0
    %1407 = vmatmul.mubr.bf16.gmra.mrb[0].mxu0 %v1229
    %v1408 = vpop.f32.mrb[0].mxu0
    %v1409 = vadd.f32 %v1312, %v1408
    %v1410 = vpop.f32.mrb[0].mxu0
    %v1411 = vpop.f32.mrb[0].mxu0
    %v1412 = vadd.f32 %v1315, %v1411
    %v1413 = vpop.f32.mrb[0].mxu0
    %1414 = vmatprep.mubr.bf16.mxu0 0
    %1415 = vmatmul.mubr.bf16.gmra.mrb[0].mxu0 %v1232
    %v1416 = vpop.f32.mrb[0].mxu0
    %v1417 = vadd.f32 %v1320, %v1416
    %v1418 = vpop.f32.mrb[0].mxu0
    %v1419 = vpop.f32.mrb[0].mxu0
    %v1420 = vadd.f32 %v1323, %v1419
    %v1421 = vpop.f32.mrb[0].mxu0
    %1422 = vmatprep.mubr.bf16.mxu0 0
    %1423 = vmatmul.mubr.bf16.gmra.mrb[0].mxu0 %v1235
    %v1424 = vpop.f32.mrb[0].mxu0
    %v1425 = vadd.f32 %v1328, %v1424
    %v1426 = vpop.f32.mrb[0].mxu0
    %v1427 = vpop.f32.mrb[0].mxu0
    %v1428 = vadd.f32 %v1331, %v1427
    %v1429 = vpop.f32.mrb[0].mxu0
    %1430 = vdwg.mxu0
    %vm1431 = vcmp.gt.f32.partialorder %v1369, 0.0
    %vm1432 = vcmp.gt.f32.partialorder %v1372, 0.0
    %vm1433 = vcmp.gt.f32.partialorder %v1377, 0.0
    %vm1434 = vcmp.gt.f32.partialorder %v1380, 0.0
    %vm1435 = vcmp.gt.f32.partialorder %v1385, 0.0
    %vm1436 = vcmp.gt.f32.partialorder %v1388, 0.0
    %vm1437 = vcmp.gt.f32.partialorder %v1393, 0.0
    %vm1438 = vcmp.gt.f32.partialorder %v1396, 0.0
    %vm1439 = vcmp.gt.f32.partialorder %v1401, 0.0
    %vm1440 = vcmp.gt.f32.partialorder %v1404, 0.0
    %vm1441 = vcmp.gt.f32.partialorder %v1409, 0.0
    %vm1442 = vcmp.gt.f32.partialorder %v1412, 0.0
    %vm1443 = vcmp.gt.f32.partialorder %v1417, 0.0
    %vm1444 = vcmp.gt.f32.partialorder %v1420, 0.0
    %vm1445 = vcmp.gt.f32.partialorder %v1425, 0.0
    %vm1446 = vcmp.gt.f32.partialorder %v1428, 0.0
    %v1447 = vmin.f32 %v1369, 0.0
    %v1448 = vmin.f32 %v1372, 0.0
    %v1449 = vmin.f32 %v1377, 0.0
    %v1450 = vmin.f32 %v1380, 0.0
    %v1451 = vmin.f32 %v1385, 0.0
    %v1452 = vmin.f32 %v1388, 0.0
    %v1453 = vmin.f32 %v1393, 0.0
    %v1454 = vmin.f32 %v1396, 0.0
    %v1455 = vmin.f32 %v1401, 0.0
    %v1456 = vmin.f32 %v1404, 0.0
    %v1457 = vmin.f32 %v1409, 0.0
    %v1458 = vmin.f32 %v1412, 0.0
    %v1459 = vmin.f32 %v1417, 0.0
    %v1460 = vmin.f32 %v1420, 0.0
    %v1461 = vmin.f32 %v1425, 0.0
    %v1462 = vmin.f32 %v1428, 0.0
    %v1463 = vmul.f32 %v1447, 1.442695
    %v1464 = vpow.pop %v1463
    %v1465 = vmul.f32 %v1448, 1.442695
    %v1466 = vpow.pop %v1465
    %v1467 = vmul.f32 %v1449, 1.442695
    %v1468 = vpow.pop %v1467
    %v1469 = vmul.f32 %v1450, 1.442695
    %v1470 = vpow.pop %v1469
    %v1471 = vmul.f32 %v1451, 1.442695
    %v1472 = vpow.pop %v1471
    %v1473 = vmul.f32 %v1452, 1.442695
    %v1474 = vpow.pop %v1473
    %v1475 = vmul.f32 %v1453, 1.442695
    %v1476 = vpow.pop %v1475
    %v1477 = vmul.f32 %v1454, 1.442695
    %v1478 = vpow.pop %v1477
    %v1479 = vmul.f32 %v1455, 1.442695
    %v1480 = vpow.pop %v1479
    %v1481 = vmul.f32 %v1456, 1.442695
    %v1482 = vpow.pop %v1481
    %v1483 = vmul.f32 %v1457, 1.442695
    %v1484 = vpow.pop %v1483
    %v1485 = vmul.f32 %v1458, 1.442695
    %v1486 = vpow.pop %v1485
    %v1487 = vmul.f32 %v1459, 1.442695
    %v1488 = vpow.pop %v1487
    %v1489 = vmul.f32 %v1460, 1.442695
    %v1490 = vpow.pop %v1489
    %v1491 = vmul.f32 %v1461, 1.442695
    %v1492 = vpow.pop %v1491
    %v1493 = vmul.f32 %v1462, 1.442695
    %v1494 = vpow.pop %v1493
    %v1495 = vsub.f32 %v1464, 1.0
    %v1496 = vsub.f32 %v1466, 1.0
    %v1497 = vsub.f32 %v1468, 1.0
    %v1498 = vsub.f32 %v1470, 1.0
    %v1499 = vsub.f32 %v1472, 1.0
    %v1500 = vsub.f32 %v1474, 1.0
    %v1501 = vsub.f32 %v1476, 1.0
    %v1502 = vsub.f32 %v1478, 1.0
    %v1503 = vsub.f32 %v1480, 1.0
    %v1504 = vsub.f32 %v1482, 1.0
    %v1505 = vsub.f32 %v1484, 1.0
    %v1506 = vsub.f32 %v1486, 1.0
    %v1507 = vsub.f32 %v1488, 1.0
    %v1508 = vsub.f32 %v1490, 1.0
    %v1509 = vsub.f32 %v1492, 1.0
    %v1510 = vsub.f32 %v1494, 1.0
    %v1511 = vsel %vm1431, %v1369, %v1495
    %v1512 = vsel %vm1432, %v1372, %v1496
    %v1513 = vsel %vm1433, %v1377, %v1497
    %v1514 = vsel %vm1434, %v1380, %v1498
    %v1515 = vsel %vm1435, %v1385, %v1499
    %v1516 = vsel %vm1436, %v1388, %v1500
    %v1517 = vsel %vm1437, %v1393, %v1501
    %v1518 = vsel %vm1438, %v1396, %v1502
    %v1519 = vsel %vm1439, %v1401, %v1503
    %v1520 = vsel %vm1440, %v1404, %v1504
    %v1521 = vsel %vm1441, %v1409, %v1505
    %v1522 = vsel %vm1442, %v1412, %v1506
    %v1523 = vsel %vm1443, %v1417, %v1507
    %v1524 = vsel %vm1444, %v1420, %v1508
    %v1525 = vsel %vm1445, %v1425, %v1509
    %v1526 = vsel %vm1446, %v1428, %v1510
    %v1527 = vld [vmem:[#allocation4] sm:$0x1]
    %v1528 = vpack.c.bf16 %v1512, %v1511
    %v1529 = vpack.c.bf16 %v1514, %v1513
    %v1530 = vpack.c.bf16 %v1516, %v1515
    %v1531 = vpack.c.bf16 %v1518, %v1517
    %v1532 = vpack.c.bf16 %v1520, %v1519
    %v1533 = vpack.c.bf16 %v1522, %v1521
    %v1534 = vpack.c.bf16 %v1524, %v1523
    %v1535 = vpack.c.bf16 %v1526, %v1525
    %1536 = vmatprep.subr.bf16.mxu0 0
    %1537 = vmatpush1.bf16.msra.mxu0 %v1528
    %1538 = vmatprep.subr.bf16.mxu0 0
    %1539 = vmatpush1.bf16.msra.mxu0 %v1529
    %1540 = vmatprep.subr.bf16.mxu0 0
    %1541 = vmatpush1.bf16.msra.mxu0 %v1530
    %1542 = vmatprep.subr.bf16.mxu0 0
    %1543 = vmatpush1.bf16.msra.mxu0 %v1531
    %1544 = vmatprep.subr.bf16.mxu0 0
    %1545 = vmatpush1.bf16.msra.mxu0 %v1532
    %1546 = vmatprep.subr.bf16.mxu0 0
    %1547 = vmatpush1.bf16.msra.mxu0 %v1533
    %1548 = vmatprep.subr.bf16.mxu0 0
    %1549 = vmatpush1.bf16.msra.mxu0 %v1534
    %1550 = vmatprep.subr.bf16.mxu0 0
    %1551 = vmatpush1.bf16.msra.mxu0 %v1535
    %1552 = vmatprep.subr.bf16.mxu0 0
    %1553 = vmatpush1.bf16.msra.mxu0 0
    %1554 = vmatprep.subr.bf16.mxu0 0
    %1555 = vmatpush1.bf16.msra.mxu0 0
    %1556 = vmatprep.subr.bf16.mxu0 0
    %1557 = vmatpush1.bf16.msra.mxu0 0
    %1558 = vmatprep.subr.bf16.mxu0 0
    %1559 = vmatpush1.bf16.msra.mxu0 0
    %1560 = vmatprep.subr.bf16.mxu0 0
    %1561 = vmatpush1.bf16.msra.mxu0 0
    %1562 = vmatprep.subr.bf16.mxu0 0
    %1563 = vmatpush1.bf16.msra.mxu0 0
    %1564 = vmatprep.subr.bf16.mxu0 0
    %1565 = vmatpush1.bf16.msra.mxu0 0
    %1566 = vmatprep.subr.bf16.mxu0 0
    %1567 = vmatpush1.bf16.msra.mxu0 0
    %1568 = vmatprep.mubr.bf16.mxu0 0
    %1569 = vmatmul.mubr.bf16.gmra.mrb[0].mxu0 %v1527
    %v1570 = vpop.f32.mrb[0].mxu0
    %v1571 = vadd.f32 0.0, %v1570
    %v1572 = vpop.f32.mrb[0].mxu0
    %v1573 = vpop.f32.mrb[0].mxu0
    %v1574 = vpop.f32.mrb[0].mxu0
    %1575 = vdwg.mxu0
    %v1576 = vld [vmem:[%s6] sm:$0xf]
    %v1577 = vld [vmem:[%s6 + $0x4] sm:$0xf]
    %v1578 = vld [vmem:[%s6 + $0x8] sm:$0xf]
    %v1579 = vld [vmem:[%s6 + $0xc] sm:$0xf]
    %v1580 = vpack.c.bf16 %v1571, %v1571
    %v1585 = vunpack.c.l.b16 %v1576
    %v1586 = vunpack.c.l.b16 %v1577
    %v1587 = vunpack.c.l.b16 %v1578
    %v1588 = vunpack.c.l.b16 %v1579
    %v1589 = vpack.c.b16 %v1586, %v1585
    %v1590 = vpack.c.b16 %v1588, %v1587
    %v1594 = vsel %vm850, %v1580, 0
    %1596 = vmatprep.subr.bf16.mxu0 0
    %1597 = vmatpush1.bf16.msra.mxu0 %v1589
    %1598 = vmatprep.subr.bf16.mxu0 0
    %1599 = vmatpush1.bf16.msra.mxu0 %v1590
    %1600 = vmatprep.subr.bf16.mxu0 0
    %1601 = vmatpush1.bf16.msra.mxu0 0
    %1602 = vmatprep.subr.bf16.mxu0 0
    %1603 = vmatpush1.bf16.msra.mxu0 0
    %1604 = vmatprep.subr.bf16.mxu0 0
    %1605 = vmatpush1.bf16.msra.mxu0 0
    %1606 = vmatprep.subr.bf16.mxu0 0
    %1607 = vmatpush1.bf16.msra.mxu0 0
    %1608 = vmatprep.subr.bf16.mxu0 0
    %1609 = vmatpush1.bf16.msra.mxu0 0
    %1610 = vmatprep.subr.bf16.mxu0 0
    %1611 = vmatpush1.bf16.msra.mxu0 0
    %1612 = vmatprep.subr.bf16.mxu0 0
    %1613 = vmatpush1.bf16.msra.mxu0 0
    %1614 = vmatprep.subr.bf16.mxu0 0
    %1615 = vmatpush1.bf16.msra.mxu0 0
    %1616 = vmatprep.subr.bf16.mxu0 0
    %1617 = vmatpush1.bf16.msra.mxu0 0
    %1618 = vmatprep.subr.bf16.mxu0 0
    %1619 = vmatpush1.bf16.msra.mxu0 0
    %1620 = vmatprep.subr.bf16.mxu0 0
    %1621 = vmatpush1.bf16.msra.mxu0 0
    %1622 = vmatprep.subr.bf16.mxu0 0
    %1623 = vmatpush1.bf16.msra.mxu0 0
    %1624 = vmatprep.subr.bf16.mxu0 0
    %1625 = vmatpush1.bf16.msra.mxu0 0
    %1626 = vmatprep.subr.bf16.mxu0 0
    %1627 = vmatpush1.bf16.msra.mxu0 0
    %1628 = vmatprep.mubr.bf16.mxu0 0
    %1629 = vmatmul.mubr.bf16.gmra.mrb[0].mxu0 %v1594
    %v1630 = vpop.f32.mrb[0].mxu0
    %v1631 = vadd.f32 %v146, %v1630
    %v1632 = vpop.f32.mrb[0].mxu0
    %v1633 = vpop.f32.mrb[0].mxu0
    %v1634 = vpop.f32.mrb[0].mxu0
    %1635 = vdwg.mxu0
    %vm1636 = vcmp.gt.f32.partialorder %v1631, 0.0
    %v1637 = vmin.f32 %v1631, 0.0
    %v1638 = vmul.f32 %v1637, 1.442695
    %v1639 = vpow.pop %v1638
    %v1640 = vsub.f32 %v1639, 1.0
    %v1641 = vsel %vm1636, %v1631, %v1640
    %vm1642 = vcmask 123904
    %1643 = vst.msk [vmem:[%s13] sm:$0x3] %vm1642, %v1641
    %v1644 = vmul.f32 %v1641, 0.5
    %v1645 = vmul.f32 %v1644, 1.442695
    %v1646 = vpow.pop %v1645
    %v1647 = vld [vmem:[#allocation2] sm:$0x3]
    %1649 = vrot.lane.b32.xlu0 %v1647, 8
    %v1650 = vpop.permute.xlu0 %1649
    %v1652 = vmul.f32 %v1646, %v1650
    %1654 = vrot.lane.b32.xlu0 %v1652, 120
    %v1655 = vpop.permute.xlu0 %1654
    %v1657 = vadd.f32 %v1641, %v1655
    %v1658 = vld [vmem:[#allocation6] sm:$0xf]
    %v1659 = vpack.c.bf16 %v1657, %v1657
    %vm1660 = vcmask 64512
    %v1662 = vsel %vm1660, %v1659, 0
    %vm1664 = vcmask 1043456
    %v1666 = vsel %vm1664, %v1658, 0
    %1668 = vmatprep.subr.bf16.mxu0 0
    %1669 = vmatpush1.bf16.msra.mxu0 %v1666
    %1670 = vmatprep.subr.bf16.mxu0 0
    %1671 = vmatpush1.bf16.msra.mxu0 0
    %1672 = vmatprep.subr.bf16.mxu0 0
    %1673 = vmatpush1.bf16.msra.mxu0 0
    %1674 = vmatprep.subr.bf16.mxu0 0
    %1675 = vmatpush1.bf16.msra.mxu0 0
    %1676 = vmatprep.subr.bf16.mxu0 0
    %1677 = vmatpush1.bf16.msra.mxu0 0
    %1678 = vmatprep.subr.bf16.mxu0 0
    %1679 = vmatpush1.bf16.msra.mxu0 0
    %1680 = vmatprep.subr.bf16.mxu0 0
    %1681 = vmatpush1.bf16.msra.mxu0 0
    %1682 = vmatprep.subr.bf16.mxu0 0
    %1683 = vmatpush1.bf16.msra.mxu0 0
    %1684 = vmatprep.subr.bf16.mxu0 0
    %1685 = vmatpush1.bf16.msra.mxu0 0
    %1686 = vmatprep.subr.bf16.mxu0 0
    %1687 = vmatpush1.bf16.msra.mxu0 0
    %1688 = vmatprep.subr.bf16.mxu0 0
    %1689 = vmatpush1.bf16.msra.mxu0 0
    %1690 = vmatprep.subr.bf16.mxu0 0
    %1691 = vmatpush1.bf16.msra.mxu0 0
    %1692 = vmatprep.subr.bf16.mxu0 0
    %1693 = vmatpush1.bf16.msra.mxu0 0
    %1694 = vmatprep.subr.bf16.mxu0 0
    %1695 = vmatpush1.bf16.msra.mxu0 0
    %1696 = vmatprep.subr.bf16.mxu0 0
    %1697 = vmatpush1.bf16.msra.mxu0 0
    %1698 = vmatprep.subr.bf16.mxu0 0
    %1699 = vmatpush1.bf16.msra.mxu0 0
    %1700 = vmatprep.mubr.bf16.mxu0 0
    %1701 = vmatmul.mubr.bf16.gmra.mrb[0].mxu0 %v1662
    %v1702 = vpop.f32.mrb[0].mxu0
    %v1703 = vadd.f32 %v147, %v1702
    %v1704 = vpop.f32.mrb[0].mxu0
    %v1705 = vpop.f32.mrb[0].mxu0
    %v1706 = vpop.f32.mrb[0].mxu0
    %1707 = vdwg.mxu0
    %vm1708 = vcmp.gt.f32.partialorder %v1703, 0.0
    %v1709 = vmin.f32 %v1703, 0.0
    %v1710 = vmul.f32 %v1709, 1.442695
    %v1711 = vpow.pop %v1710
    %v1712 = vsub.f32 %v1711, 1.0
    %v1713 = vsel %vm1708, %v1703, %v1712
    %v1714 = vld [vmem:[#allocation7] sm:$0xff]
    %v1715 = vld [vmem:[#allocation7 + $0x8] sm:$0xff]
    %v1716 = vld [vmem:[#allocation7 + $0x10] sm:$0xff]
    %v1717 = vld [vmem:[#allocation7 + $0x18] sm:$0xff]
    %v1718 = vld [vmem:[#allocation7 + $0x20] sm:$0xff]
    %v1719 = vld [vmem:[#allocation7 + $0x28] sm:$0xff]
    %v1720 = vld [vmem:[#allocation7 + $0x30] sm:$0xff]
    %v1721 = vld [vmem:[#allocation7 + $0x38] sm:$0xff]
    %v1722 = vpack.c.bf16 %v1713, %v1713
    %v1724 = vlaneseq
    %v1725 = vshrl.u32 %v1724, 7
    %v1726 = vsub.s32 0, %v1725
    %v1727 = vrot.slane %v143, %v1726
    %v1728 = vlaneseq
    %v1729 = vshrl.u32 %v1728, 7
    %v1730 = vsub.s32 1, %v1729
    %v1731 = vrot.slane %v143, %v1730
    %v1732 = vlaneseq
    %v1733 = vshrl.u32 %v1732, 7
    %v1734 = vsub.s32 2, %v1733
    %v1735 = vrot.slane %v143, %v1734
    %v1736 = vlaneseq
    %v1737 = vshrl.u32 %v1736, 7
    %v1738 = vsub.s32 3, %v1737
    %v1739 = vrot.slane %v143, %v1738
    %v1752 = vunpack.c.l.b16 %v1714
    %v1753 = vunpack.c.h.b16 %v1714
    %v1754 = vunpack.c.l.b16 %v1715
    %v1755 = vunpack.c.h.b16 %v1715
    %v1756 = vunpack.c.l.b16 %v1716
    %v1757 = vunpack.c.h.b16 %v1716
    %v1758 = vunpack.c.l.b16 %v1717
    %v1759 = vunpack.c.h.b16 %v1717
    %v1760 = vunpack.c.l.b16 %v1718
    %v1761 = vunpack.c.h.b16 %v1718
    %v1762 = vunpack.c.l.b16 %v1719
    %v1763 = vunpack.c.h.b16 %v1719
    %v1764 = vunpack.c.l.b16 %v1720
    %v1765 = vunpack.c.h.b16 %v1720
    %v1766 = vunpack.c.l.b16 %v1721
    %v1767 = vunpack.c.h.b16 %v1721
    %v1768 = vpack.c.b16 %v1756, %v1752
    %v1769 = vpack.c.b16 %v1757, %v1753
    %v1770 = vpack.c.b16 %v1758, %v1754
    %v1771 = vpack.c.b16 %v1759, %v1755
    %v1772 = vpack.c.b16 %v1764, %v1760
    %v1773 = vpack.c.b16 %v1765, %v1761
    %v1774 = vpack.c.b16 %v1766, %v1762
    %v1775 = vpack.c.b16 %v1767, %v1763
    %v1785 = vsel %vm850, %v1722, 0
    %1787 = vmatprep.subr.bf16.mxu0 %v1769
    %1788 = vmatpush1.bf16.msra.mxu0 %v1768
    %1789 = vmatprep.subr.bf16.mxu0 %v1773
    %1790 = vmatpush1.bf16.msra.mxu0 %v1772
    %1791 = vmatprep.subr.bf16.mxu0 0
    %1792 = vmatpush1.bf16.msra.mxu0 0
    %1793 = vmatprep.subr.bf16.mxu0 0
    %1794 = vmatpush1.bf16.msra.mxu0 0
    %1795 = vmatprep.subr.bf16.mxu0 0
    %1796 = vmatpush1.bf16.msra.mxu0 0
    %1797 = vmatprep.subr.bf16.mxu0 0
    %1798 = vmatpush1.bf16.msra.mxu0 0
    %1799 = vmatprep.subr.bf16.mxu0 0
    %1800 = vmatpush1.bf16.msra.mxu0 0
    %1801 = vmatprep.subr.bf16.mxu0 0
    %1802 = vmatpush1.bf16.msra.mxu0 0
    %1803 = vmatprep.subr.bf16.mxu0 0
    %1804 = vmatpush1.bf16.msra.mxu0 0
    %1805 = vmatprep.subr.bf16.mxu0 0
    %1806 = vmatpush1.bf16.msra.mxu0 0
    %1807 = vmatprep.subr.bf16.mxu0 0
    %1808 = vmatpush1.bf16.msra.mxu0 0
    %1809 = vmatprep.subr.bf16.mxu0 0
    %1810 = vmatpush1.bf16.msra.mxu0 0
    %1811 = vmatprep.subr.bf16.mxu0 0
    %1812 = vmatpush1.bf16.msra.mxu0 0
    %1813 = vmatprep.subr.bf16.mxu0 0
    %1814 = vmatpush1.bf16.msra.mxu0 0
    %1815 = vmatprep.subr.bf16.mxu0 0
    %1816 = vmatpush1.bf16.msra.mxu0 0
    %1817 = vmatprep.subr.bf16.mxu0 0
    %1818 = vmatpush1.bf16.msra.mxu0 0
    %1819 = vmatprep.mubr.bf16.mxu0 0
    %1820 = vmatmul.mubr.bf16.gmra.mrb[0].mxu0 %v1785
    %v1821 = vpop.f32.mrb[0].mxu0
    %v1822 = vadd.f32 %v1727, %v1821
    %v1823 = vpop.f32.mrb[0].mxu0
    %v1824 = vadd.f32 %v1731, %v1823
    %v1825 = vpop.f32.mrb[0].mxu0
    %v1826 = vpop.f32.mrb[0].mxu0
    %1827 = vdwg.mxu0
    %1828 = vmatprep.subr.bf16.mxu0 %v1771
    %1829 = vmatpush1.bf16.msra.mxu0 %v1770
    %1830 = vmatprep.subr.bf16.mxu0 %v1775
    %1831 = vmatpush1.bf16.msra.mxu0 %v1774
    %1832 = vmatprep.subr.bf16.mxu0 0
    %1833 = vmatpush1.bf16.msra.mxu0 0
    %1834 = vmatprep.subr.bf16.mxu0 0
    %1835 = vmatpush1.bf16.msra.mxu0 0
    %1836 = vmatprep.subr.bf16.mxu0 0
    %1837 = vmatpush1.bf16.msra.mxu0 0
    %1838 = vmatprep.subr.bf16.mxu0 0
    %1839 = vmatpush1.bf16.msra.mxu0 0
    %1840 = vmatprep.subr.bf16.mxu0 0
    %1841 = vmatpush1.bf16.msra.mxu0 0
    %1842 = vmatprep.subr.bf16.mxu0 0
    %1843 = vmatpush1.bf16.msra.mxu0 0
    %1844 = vmatprep.subr.bf16.mxu0 0
    %1845 = vmatpush1.bf16.msra.mxu0 0
    %1846 = vmatprep.subr.bf16.mxu0 0
    %1847 = vmatpush1.bf16.msra.mxu0 0
    %1848 = vmatprep.subr.bf16.mxu0 0
    %1849 = vmatpush1.bf16.msra.mxu0 0
    %1850 = vmatprep.subr.bf16.mxu0 0
    %1851 = vmatpush1.bf16.msra.mxu0 0
    %1852 = vmatprep.subr.bf16.mxu0 0
    %1853 = vmatpush1.bf16.msra.mxu0 0
    %1854 = vmatprep.subr.bf16.mxu0 0
    %1855 = vmatpush1.bf16.msra.mxu0 0
    %1856 = vmatprep.subr.bf16.mxu0 0
    %1857 = vmatpush1.bf16.msra.mxu0 0
    %1858 = vmatprep.subr.bf16.mxu0 0
    %1859 = vmatpush1.bf16.msra.mxu0 0
    %1860 = vmatprep.mubr.bf16.mxu0 0
    %1861 = vmatmul.mubr.bf16.gmra.mrb[0].mxu0 %v1785
    %v1862 = vpop.f32.mrb[0].mxu0
    %v1863 = vadd.f32 %v1735, %v1862
    %v1864 = vpop.f32.mrb[0].mxu0
    %v1865 = vadd.f32 %v1739, %v1864
    %v1866 = vpop.f32.mrb[0].mxu0
    %v1867 = vpop.f32.mrb[0].mxu0
    %1868 = vdwg.mxu0
    %vm1869 = vcmp.gt.f32.partialorder %v1822, 0.0
    %vm1870 = vcmp.gt.f32.partialorder %v1824, 0.0
    %vm1871 = vcmp.gt.f32.partialorder %v1863, 0.0
    %vm1872 = vcmp.gt.f32.partialorder %v1865, 0.0
    %v1873 = vmin.f32 %v1822, 0.0
    %v1874 = vmin.f32 %v1824, 0.0
    %v1875 = vmin.f32 %v1863, 0.0
    %v1876 = vmin.f32 %v1865, 0.0
    %v1877 = vmul.f32 %v1873, 1.442695
    %v1878 = vpow.pop %v1877
    %v1879 = vmul.f32 %v1874, 1.442695
    %v1880 = vpow.pop %v1879
    %v1881 = vmul.f32 %v1875, 1.442695
    %v1882 = vpow.pop %v1881
    %v1883 = vmul.f32 %v1876, 1.442695
    %v1884 = vpow.pop %v1883
    %v1885 = vsub.f32 %v1878, 1.0
    %v1886 = vsub.f32 %v1880, 1.0
    %v1887 = vsub.f32 %v1882, 1.0
    %v1888 = vsub.f32 %v1884, 1.0
    %v1889 = vsel %vm1869, %v1822, %v1885
    %v1890 = vsel %vm1870, %v1824, %v1886
    %v1891 = vsel %vm1871, %v1863, %v1887
    %v1892 = vsel %vm1872, %v1865, %v1888
    %v1893 = vld [vmem:[#allocation9] sm:$0xff]
    %v1894 = vld [vmem:[#allocation9 + $0x8] sm:$0xff]
    %v1895 = vld [vmem:[#allocation9 + $0x10] sm:$0xff]
    %v1896 = vld [vmem:[#allocation9 + $0x18] sm:$0xff]
    %v1897 = vld [vmem:[#allocation9 + $0x20] sm:$0xff]
    %v1898 = vld [vmem:[#allocation9 + $0x28] sm:$0xff]
    %v1899 = vld [vmem:[#allocation9 + $0x30] sm:$0xff]
    %v1900 = vld [vmem:[#allocation9 + $0x38] sm:$0xff]
    %v1901 = vld [vmem:[#allocation9 + $0x40] sm:$0xff]
    %v1902 = vld [vmem:[#allocation9 + $0x48] sm:$0xff]
    %v1903 = vld [vmem:[#allocation9 + $0x50] sm:$0xff]
    %v1904 = vld [vmem:[#allocation9 + $0x58] sm:$0xff]
    %v1905 = vld [vmem:[#allocation9 + $0x60] sm:$0xff]
    %v1906 = vld [vmem:[#allocation9 + $0x68] sm:$0xff]
    %v1907 = vld [vmem:[#allocation9 + $0x70] sm:$0xff]
    %v1908 = vld [vmem:[#allocation9 + $0x78] sm:$0xff]
    %v1909 = vld [vmem:[#allocation9 + $0x80] sm:$0xff]
    %v1910 = vld [vmem:[#allocation9 + $0x88] sm:$0xff]
    %v1911 = vld [vmem:[#allocation9 + $0x90] sm:$0xff]
    %v1912 = vld [vmem:[#allocation9 + $0x98] sm:$0xff]
    %v1913 = vld [vmem:[#allocation9 + $0xa0] sm:$0xff]
    %v1914 = vld [vmem:[#allocation9 + $0xa8] sm:$0xff]
    %v1915 = vld [vmem:[#allocation9 + $0xb0] sm:$0xff]
    %v1916 = vld [vmem:[#allocation9 + $0xb8] sm:$0xff]
    %v1917 = vld [vmem:[#allocation9 + $0xc0] sm:$0xff]
    %v1918 = vld [vmem:[#allocation9 + $0xc8] sm:$0xff]
    %v1919 = vld [vmem:[#allocation9 + $0xd0] sm:$0xff]
    %v1920 = vld [vmem:[#allocation9 + $0xd8] sm:$0xff]
    %v1921 = vld [vmem:[#allocation9 + $0xe0] sm:$0xff]
    %v1922 = vld [vmem:[#allocation9 + $0xe8] sm:$0xff]
    %v1923 = vld [vmem:[#allocation9 + $0xf0] sm:$0xff]
    %v1924 = vld [vmem:[#allocation9 + $0xf8] sm:$0xff]
    %v1925 = vld [vmem:[#allocation9 + $0x100] sm:$0xff]
    %v1926 = vld [vmem:[#allocation9 + $0x108] sm:$0xff]
    %v1927 = vld [vmem:[#allocation9 + $0x110] sm:$0xff]
    %v1928 = vld [vmem:[#allocation9 + $0x118] sm:$0xff]
    %v1929 = vld [vmem:[#allocation9 + $0x120] sm:$0xff]
    %v1930 = vld [vmem:[#allocation9 + $0x128] sm:$0xff]
    %v1931 = vld [vmem:[#allocation9 + $0x130] sm:$0xff]
    %v1932 = vld [vmem:[#allocation9 + $0x138] sm:$0xff]
    %v1933 = vld [vmem:[#allocation9 + $0x140] sm:$0xff]
    %v1934 = vld [vmem:[#allocation9 + $0x148] sm:$0xff]
    %v1935 = vld [vmem:[#allocation9 + $0x150] sm:$0xff]
    %v1936 = vld [vmem:[#allocation9 + $0x158] sm:$0xff]
    %v1937 = vld [vmem:[#allocation9 + $0x160] sm:$0xff]
    %v1938 = vld [vmem:[#allocation9 + $0x168] sm:$0xff]
    %v1939 = vld [vmem:[#allocation9 + $0x170] sm:$0xff]
    %v1940 = vld [vmem:[#allocation9 + $0x178] sm:$0xff]
    %v1941 = vld [vmem:[#allocation9 + $0x180] sm:$0xff]
    %v1942 = vld [vmem:[#allocation9 + $0x188] sm:$0xff]
    %v1943 = vld [vmem:[#allocation9 + $0x190] sm:$0xff]
    %v1944 = vld [vmem:[#allocation9 + $0x198] sm:$0xff]
    %v1945 = vld [vmem:[#allocation9 + $0x1a0] sm:$0xff]
    %v1946 = vld [vmem:[#allocation9 + $0x1a8] sm:$0xff]
    %v1947 = vld [vmem:[#allocation9 + $0x1b0] sm:$0xff]
    %v1948 = vld [vmem:[#allocation9 + $0x1b8] sm:$0xff]
    %v1949 = vld [vmem:[#allocation9 + $0x1c0] sm:$0xff]
    %v1950 = vld [vmem:[#allocation9 + $0x1c8] sm:$0xff]
    %v1951 = vld [vmem:[#allocation9 + $0x1d0] sm:$0xff]
    %v1952 = vld [vmem:[#allocation9 + $0x1d8] sm:$0xff]
    %v1953 = vld [vmem:[#allocation9 + $0x1e0] sm:$0xff]
    %v1954 = vld [vmem:[#allocation9 + $0x1e8] sm:$0xff]
    %v1955 = vld [vmem:[#allocation9 + $0x1f0] sm:$0xff]
    %v1956 = vld [vmem:[#allocation9 + $0x1f8] sm:$0xff]
    %v1957 = vld [vmem:[#allocation9 + $0x200] sm:$0xff]
    %v1958 = vld [vmem:[#allocation9 + $0x208] sm:$0xff]
    %v1959 = vld [vmem:[#allocation9 + $0x210] sm:$0xff]
    %v1960 = vld [vmem:[#allocation9 + $0x218] sm:$0xff]
    %v1961 = vld [vmem:[#allocation9 + $0x220] sm:$0xff]
    %v1962 = vld [vmem:[#allocation9 + $0x228] sm:$0xff]
    %v1963 = vld [vmem:[#allocation9 + $0x230] sm:$0xff]
    %v1964 = vld [vmem:[#allocation9 + $0x238] sm:$0xff]
    %v1965 = vld [vmem:[#allocation9 + $0x240] sm:$0xff]
    %v1966 = vld [vmem:[#allocation9 + $0x248] sm:$0xff]
    %v1967 = vld [vmem:[#allocation9 + $0x250] sm:$0xff]
    %v1968 = vld [vmem:[#allocation9 + $0x258] sm:$0xff]
    %v1969 = vld [vmem:[#allocation9 + $0x260] sm:$0xff]
    %v1970 = vld [vmem:[#allocation9 + $0x268] sm:$0xff]
    %v1971 = vld [vmem:[#allocation9 + $0x270] sm:$0xff]
    %v1972 = vld [vmem:[#allocation9 + $0x278] sm:$0xff]
    %v1973 = vld [vmem:[#allocation9 + $0x280] sm:$0xff]
    %v1974 = vld [vmem:[#allocation9 + $0x288] sm:$0xff]
    %v1975 = vld [vmem:[#allocation9 + $0x290] sm:$0xff]
    %v1976 = vld [vmem:[#allocation9 + $0x298] sm:$0xff]
    %v1977 = vld [vmem:[#allocation9 + $0x2a0] sm:$0xff]
    %v1978 = vld [vmem:[#allocation9 + $0x2a8] sm:$0xff]
    %v1979 = vld [vmem:[#allocation9 + $0x2b0] sm:$0xff]
    %v1980 = vld [vmem:[#allocation9 + $0x2b8] sm:$0xff]
    %v1981 = vld [vmem:[#allocation9 + $0x2c0] sm:$0xff]
    %v1982 = vld [vmem:[#allocation9 + $0x2c8] sm:$0xff]
    %v1983 = vld [vmem:[#allocation9 + $0x2d0] sm:$0xff]
    %v1984 = vld [vmem:[#allocation9 + $0x2d8] sm:$0xff]
    %v1985 = vld [vmem:[#allocation9 + $0x2e0] sm:$0xff]
    %v1986 = vld [vmem:[#allocation9 + $0x2e8] sm:$0xff]
    %v1987 = vld [vmem:[#allocation9 + $0x2f0] sm:$0xff]
    %v1988 = vld [vmem:[#allocation9 + $0x2f8] sm:$0xff]
    %v1989 = vld [vmem:[#allocation9 + $0x300] sm:$0xff]
    %v1990 = vld [vmem:[#allocation9 + $0x308] sm:$0xff]
    %v1991 = vld [vmem:[#allocation9 + $0x310] sm:$0xff]
    %v1992 = vld [vmem:[#allocation9 + $0x318] sm:$0xff]
    %v1993 = vld [vmem:[#allocation9 + $0x320] sm:$0xff]
    %v1994 = vld [vmem:[#allocation9 + $0x328] sm:$0xff]
    %v1995 = vld [vmem:[#allocation9 + $0x330] sm:$0xff]
    %v1996 = vld [vmem:[#allocation9 + $0x338] sm:$0xff]
    %v1997 = vld [vmem:[#allocation9 + $0x340] sm:$0xff]
    %v1998 = vld [vmem:[#allocation9 + $0x348] sm:$0xff]
    %v1999 = vld [vmem:[#allocation9 + $0x350] sm:$0xff]
    %v2000 = vld [vmem:[#allocation9 + $0x358] sm:$0xff]
    %v2001 = vld [vmem:[#allocation9 + $0x360] sm:$0xff]
    %v2002 = vld [vmem:[#allocation9 + $0x368] sm:$0xff]
    %v2003 = vld [vmem:[#allocation9 + $0x370] sm:$0xff]
    %v2004 = vld [vmem:[#allocation9 + $0x378] sm:$0xff]
    %v2005 = vld [vmem:[#allocation9 + $0x380] sm:$0xff]
    %v2006 = vld [vmem:[#allocation9 + $0x388] sm:$0xff]
    %v2007 = vld [vmem:[#allocation9 + $0x390] sm:$0xff]
    %v2008 = vld [vmem:[#allocation9 + $0x398] sm:$0xff]
    %v2009 = vld [vmem:[#allocation9 + $0x3a0] sm:$0xff]
    %v2010 = vld [vmem:[#allocation9 + $0x3a8] sm:$0xff]
    %v2011 = vld [vmem:[#allocation9 + $0x3b0] sm:$0xff]
    %v2012 = vld [vmem:[#allocation9 + $0x3b8] sm:$0xff]
    %v2013 = vld [vmem:[#allocation9 + $0x3c0] sm:$0xff]
    %v2014 = vld [vmem:[#allocation9 + $0x3c8] sm:$0xff]
    %v2015 = vld [vmem:[#allocation9 + $0x3d0] sm:$0xff]
    %v2016 = vld [vmem:[#allocation9 + $0x3d8] sm:$0xff]
    %v2017 = vld [vmem:[#allocation9 + $0x3e0] sm:$0xff]
    %v2018 = vld [vmem:[#allocation9 + $0x3e8] sm:$0xff]
    %v2019 = vld [vmem:[#allocation9 + $0x3f0] sm:$0xff]
    %v2020 = vld [vmem:[#allocation9 + $0x3f8] sm:$0xff]
    %v2021 = vld [vmem:[#allocation9 + $0x400] sm:$0xff]
    %v2022 = vld [vmem:[#allocation9 + $0x408] sm:$0xff]
    %v2023 = vld [vmem:[#allocation9 + $0x410] sm:$0xff]
    %v2024 = vld [vmem:[#allocation9 + $0x418] sm:$0xff]
    %v2025 = vld [vmem:[#allocation9 + $0x420] sm:$0xff]
    %v2026 = vld [vmem:[#allocation9 + $0x428] sm:$0xff]
    %v2027 = vld [vmem:[#allocation9 + $0x430] sm:$0xff]
    %v2028 = vld [vmem:[#allocation9 + $0x438] sm:$0xff]
    %v2029 = vld [vmem:[#allocation9 + $0x440] sm:$0xff]
    %v2030 = vld [vmem:[#allocation9 + $0x448] sm:$0xff]
    %v2031 = vld [vmem:[#allocation9 + $0x450] sm:$0xff]
    %v2032 = vld [vmem:[#allocation9 + $0x458] sm:$0xff]
    %v2033 = vld [vmem:[#allocation9 + $0x460] sm:$0xff]
    %v2034 = vld [vmem:[#allocation9 + $0x468] sm:$0xff]
    %v2035 = vld [vmem:[#allocation9 + $0x470] sm:$0xff]
    %v2036 = vld [vmem:[#allocation9 + $0x478] sm:$0xff]
    %v2037 = vld [vmem:[#allocation9 + $0x480] sm:$0xff]
    %v2038 = vld [vmem:[#allocation9 + $0x488] sm:$0xff]
    %v2039 = vld [vmem:[#allocation9 + $0x490] sm:$0xff]
    %v2040 = vld [vmem:[#allocation9 + $0x498] sm:$0xff]
    %v2041 = vld [vmem:[#allocation9 + $0x4a0] sm:$0xff]
    %v2042 = vld [vmem:[#allocation9 + $0x4a8] sm:$0xff]
    %v2043 = vld [vmem:[#allocation9 + $0x4b0] sm:$0xff]
    %v2044 = vld [vmem:[#allocation9 + $0x4b8] sm:$0xff]
    %v2045 = vld [vmem:[#allocation9 + $0x4c0] sm:$0xff]
    %v2046 = vld [vmem:[#allocation9 + $0x4c8] sm:$0xff]
    %v2047 = vld [vmem:[#allocation9 + $0x4d0] sm:$0xff]
    %v2048 = vld [vmem:[#allocation9 + $0x4d8] sm:$0xff]
    %v2049 = vld [vmem:[#allocation9 + $0x4e0] sm:$0xff]
    %v2050 = vld [vmem:[#allocation9 + $0x4e8] sm:$0xff]
    %v2051 = vld [vmem:[#allocation9 + $0x4f0] sm:$0xff]
    %v2052 = vld [vmem:[#allocation9 + $0x4f8] sm:$0xff]
    %v2053 = vld [vmem:[#allocation9 + $0x500] sm:$0xff]
    %v2054 = vld [vmem:[#allocation9 + $0x508] sm:$0xff]
    %v2055 = vld [vmem:[#allocation9 + $0x510] sm:$0xff]
    %v2056 = vld [vmem:[#allocation9 + $0x518] sm:$0xff]
    %v2057 = vld [vmem:[#allocation9 + $0x520] sm:$0xff]
    %v2058 = vld [vmem:[#allocation9 + $0x528] sm:$0xff]
    %v2059 = vld [vmem:[#allocation9 + $0x530] sm:$0xff]
    %v2060 = vld [vmem:[#allocation9 + $0x538] sm:$0xff]
    %v2061 = vld [vmem:[#allocation9 + $0x540] sm:$0xff]
    %v2062 = vld [vmem:[#allocation9 + $0x548] sm:$0xff]
    %v2063 = vld [vmem:[#allocation9 + $0x550] sm:$0xff]
    %v2064 = vld [vmem:[#allocation9 + $0x558] sm:$0xff]
    %v2065 = vld [vmem:[#allocation9 + $0x560] sm:$0xff]
    %v2066 = vld [vmem:[#allocation9 + $0x568] sm:$0xff]
    %v2067 = vld [vmem:[#allocation9 + $0x570] sm:$0xff]
    %v2068 = vld [vmem:[#allocation9 + $0x578] sm:$0xff]
    %v2069 = vld [vmem:[#allocation9 + $0x580] sm:$0xff]
    %v2070 = vld [vmem:[#allocation9 + $0x588] sm:$0xff]
    %v2071 = vld [vmem:[#allocation9 + $0x590] sm:$0xff]
    %v2072 = vld [vmem:[#allocation9 + $0x598] sm:$0xff]
    %v2073 = vld [vmem:[#allocation9 + $0x5a0] sm:$0xff]
    %v2074 = vld [vmem:[#allocation9 + $0x5a8] sm:$0xff]
    %v2075 = vld [vmem:[#allocation9 + $0x5b0] sm:$0xff]
    %v2076 = vld [vmem:[#allocation9 + $0x5b8] sm:$0xff]
    %v2077 = vld [vmem:[#allocation9 + $0x5c0] sm:$0xff]
    %v2078 = vld [vmem:[#allocation9 + $0x5c8] sm:$0xff]
    %v2079 = vld [vmem:[#allocation9 + $0x5d0] sm:$0xff]
    %v2080 = vld [vmem:[#allocation9 + $0x5d8] sm:$0xff]
    %v2081 = vld [vmem:[#allocation9 + $0x5e0] sm:$0xff]
    %v2082 = vld [vmem:[#allocation9 + $0x5e8] sm:$0xff]
    %v2083 = vld [vmem:[#allocation9 + $0x5f0] sm:$0xff]
    %v2084 = vld [vmem:[#allocation9 + $0x5f8] sm:$0xff]
    %v2085 = vld [vmem:[#allocation9 + $0x600] sm:$0xff]
    %v2086 = vld [vmem:[#allocation9 + $0x608] sm:$0xff]
    %v2087 = vld [vmem:[#allocation9 + $0x610] sm:$0xff]
    %v2088 = vld [vmem:[#allocation9 + $0x618] sm:$0xff]
    %v2089 = vld [vmem:[#allocation9 + $0x620] sm:$0xff]
    %v2090 = vld [vmem:[#allocation9 + $0x628] sm:$0xff]
    %v2091 = vld [vmem:[#allocation9 + $0x630] sm:$0xff]
    %v2092 = vld [vmem:[#allocation9 + $0x638] sm:$0xff]
    %v2093 = vld [vmem:[#allocation9 + $0x640] sm:$0xff]
    %v2094 = vld [vmem:[#allocation9 + $0x648] sm:$0xff]
    %v2095 = vld [vmem:[#allocation9 + $0x650] sm:$0xff]
    %v2096 = vld [vmem:[#allocation9 + $0x658] sm:$0xff]
    %v2097 = vld [vmem:[#allocation9 + $0x660] sm:$0xff]
    %v2098 = vld [vmem:[#allocation9 + $0x668] sm:$0xff]
    %v2099 = vld [vmem:[#allocation9 + $0x670] sm:$0xff]
    %v2100 = vld [vmem:[#allocation9 + $0x678] sm:$0xff]
    %v2101 = vld [vmem:[#allocation9 + $0x680] sm:$0xff]
    %v2102 = vld [vmem:[#allocation9 + $0x688] sm:$0xff]
    %v2103 = vld [vmem:[#allocation9 + $0x690] sm:$0xff]
    %v2104 = vld [vmem:[#allocation9 + $0x698] sm:$0xff]
    %v2105 = vld [vmem:[#allocation9 + $0x6a0] sm:$0xff]
    %v2106 = vld [vmem:[#allocation9 + $0x6a8] sm:$0xff]
    %v2107 = vld [vmem:[#allocation9 + $0x6b0] sm:$0xff]
    %v2108 = vld [vmem:[#allocation9 + $0x6b8] sm:$0xff]
    %v2109 = vld [vmem:[#allocation9 + $0x6c0] sm:$0xff]
    %v2110 = vld [vmem:[#allocation9 + $0x6c8] sm:$0xff]
    %v2111 = vld [vmem:[#allocation9 + $0x6d0] sm:$0xff]
    %v2112 = vld [vmem:[#allocation9 + $0x6d8] sm:$0xff]
    %v2113 = vld [vmem:[#allocation9 + $0x6e0] sm:$0xff]
    %v2114 = vld [vmem:[#allocation9 + $0x6e8] sm:$0xff]
    %v2115 = vld [vmem:[#allocation9 + $0x6f0] sm:$0xff]
    %v2116 = vld [vmem:[#allocation9 + $0x6f8] sm:$0xff]
    %v2117 = vld [vmem:[#allocation9 + $0x700] sm:$0xff]
    %v2118 = vld [vmem:[#allocation9 + $0x708] sm:$0xff]
    %v2119 = vld [vmem:[#allocation9 + $0x710] sm:$0xff]
    %v2120 = vld [vmem:[#allocation9 + $0x718] sm:$0xff]
    %v2121 = vld [vmem:[#allocation9 + $0x720] sm:$0xff]
    %v2122 = vld [vmem:[#allocation9 + $0x728] sm:$0xff]
    %v2123 = vld [vmem:[#allocation9 + $0x730] sm:$0xff]
    %v2124 = vld [vmem:[#allocation9 + $0x738] sm:$0xff]
    %v2125 = vld [vmem:[#allocation9 + $0x740] sm:$0xff]
    %v2126 = vld [vmem:[#allocation9 + $0x748] sm:$0xff]
    %v2127 = vld [vmem:[#allocation9 + $0x750] sm:$0xff]
    %v2128 = vld [vmem:[#allocation9 + $0x758] sm:$0xff]
    %v2129 = vld [vmem:[#allocation9 + $0x760] sm:$0xff]
    %v2130 = vld [vmem:[#allocation9 + $0x768] sm:$0xff]
    %v2131 = vld [vmem:[#allocation9 + $0x770] sm:$0xff]
    %v2132 = vld [vmem:[#allocation9 + $0x778] sm:$0xff]
    %v2133 = vld [vmem:[#allocation9 + $0x780] sm:$0xff]
    %v2134 = vld [vmem:[#allocation9 + $0x788] sm:$0xff]
    %v2135 = vld [vmem:[#allocation9 + $0x790] sm:$0xff]
    %v2136 = vld [vmem:[#allocation9 + $0x798] sm:$0xff]
    %v2137 = vld [vmem:[#allocation9 + $0x7a0] sm:$0xff]
    %v2138 = vld [vmem:[#allocation9 + $0x7a8] sm:$0xff]
    %v2139 = vld [vmem:[#allocation9 + $0x7b0] sm:$0xff]
    %v2140 = vld [vmem:[#allocation9 + $0x7b8] sm:$0xff]
    %v2141 = vld [vmem:[#allocation9 + $0x7c0] sm:$0xff]
    %v2142 = vld [vmem:[#allocation9 + $0x7c8] sm:$0xff]
    %v2143 = vld [vmem:[#allocation9 + $0x7d0] sm:$0xff]
    %v2144 = vld [vmem:[#allocation9 + $0x7d8] sm:$0xff]
    %v2145 = vld [vmem:[#allocation9 + $0x7e0] sm:$0xff]
    %v2146 = vld [vmem:[#allocation9 + $0x7e8] sm:$0xff]
    %v2147 = vld [vmem:[#allocation9 + $0x7f0] sm:$0xff]
    %v2148 = vld [vmem:[#allocation9 + $0x7f8] sm:$0xff]
    %v2149 = vld [vmem:[#allocation9 + $0x800] sm:$0xff]
    %v2150 = vld [vmem:[#allocation9 + $0x808] sm:$0xff]
    %v2151 = vld [vmem:[#allocation9 + $0x810] sm:$0xff]
    %v2152 = vld [vmem:[#allocation9 + $0x818] sm:$0xff]
    %v2153 = vld [vmem:[#allocation9 + $0x820] sm:$0xff]
    %v2154 = vld [vmem:[#allocation9 + $0x828] sm:$0xff]
    %v2155 = vld [vmem:[#allocation9 + $0x830] sm:$0xff]
    %v2156 = vld [vmem:[#allocation9 + $0x838] sm:$0xff]
    %v2157 = vld [vmem:[#allocation9 + $0x840] sm:$0xff]
    %v2158 = vld [vmem:[#allocation9 + $0x848] sm:$0xff]
    %v2159 = vld [vmem:[#allocation9 + $0x850] sm:$0xff]
    %v2160 = vld [vmem:[#allocation9 + $0x858] sm:$0xff]
    %v2161 = vld [vmem:[#allocation9 + $0x860] sm:$0xff]
    %v2162 = vld [vmem:[#allocation9 + $0x868] sm:$0xff]
    %v2163 = vld [vmem:[#allocation9 + $0x870] sm:$0xff]
    %v2164 = vld [vmem:[#allocation9 + $0x878] sm:$0xff]
    %v2165 = vld [vmem:[#allocation9 + $0x880] sm:$0xff]
    %v2166 = vld [vmem:[#allocation9 + $0x888] sm:$0xff]
    %v2167 = vld [vmem:[#allocation9 + $0x890] sm:$0xff]
    %v2168 = vld [vmem:[#allocation9 + $0x898] sm:$0xff]
    %v2169 = vld [vmem:[#allocation9 + $0x8a0] sm:$0xff]
    %v2170 = vld [vmem:[#allocation9 + $0x8a8] sm:$0xff]
    %v2171 = vld [vmem:[#allocation9 + $0x8b0] sm:$0xff]
    %v2172 = vld [vmem:[#allocation9 + $0x8b8] sm:$0xff]
    %v2173 = vld [vmem:[#allocation9 + $0x8c0] sm:$0xff]
    %v2174 = vld [vmem:[#allocation9 + $0x8c8] sm:$0xff]
    %v2175 = vld [vmem:[#allocation9 + $0x8d0] sm:$0xff]
    %v2176 = vld [vmem:[#allocation9 + $0x8d8] sm:$0xff]
    %v2177 = vld [vmem:[#allocation9 + $0x8e0] sm:$0xff]
    %v2178 = vld [vmem:[#allocation9 + $0x8e8] sm:$0xff]
    %v2179 = vld [vmem:[#allocation9 + $0x8f0] sm:$0xff]
    %v2180 = vld [vmem:[#allocation9 + $0x8f8] sm:$0xff]
    %v2181 = vld [vmem:[#allocation9 + $0x900] sm:$0xff]
    %v2182 = vld [vmem:[#allocation9 + $0x908] sm:$0xff]
    %v2183 = vld [vmem:[#allocation9 + $0x910] sm:$0xff]
    %v2184 = vld [vmem:[#allocation9 + $0x918] sm:$0xff]
    %v2185 = vld [vmem:[#allocation9 + $0x920] sm:$0xff]
    %v2186 = vld [vmem:[#allocation9 + $0x928] sm:$0xff]
    %v2187 = vld [vmem:[#allocation9 + $0x930] sm:$0xff]
    %v2188 = vld [vmem:[#allocation9 + $0x938] sm:$0xff]
    %v2189 = vld [vmem:[#allocation9 + $0x940] sm:$0xff]
    %v2190 = vld [vmem:[#allocation9 + $0x948] sm:$0xff]
    %v2191 = vld [vmem:[#allocation9 + $0x950] sm:$0xff]
    %v2192 = vld [vmem:[#allocation9 + $0x958] sm:$0xff]
    %v2193 = vld [vmem:[#allocation9 + $0x960] sm:$0xff]
    %v2194 = vld [vmem:[#allocation9 + $0x968] sm:$0xff]
    %v2195 = vld [vmem:[#allocation9 + $0x970] sm:$0xff]
    %v2196 = vld [vmem:[#allocation9 + $0x978] sm:$0xff]
    %v2197 = vld [vmem:[#allocation9 + $0x980] sm:$0xff]
    %v2198 = vld [vmem:[#allocation9 + $0x988] sm:$0xff]
    %v2199 = vld [vmem:[#allocation9 + $0x990] sm:$0xff]
    %v2200 = vld [vmem:[#allocation9 + $0x998] sm:$0xff]
    %v2201 = vld [vmem:[#allocation9 + $0x9a0] sm:$0xff]
    %v2202 = vld [vmem:[#allocation9 + $0x9a8] sm:$0xff]
    %v2203 = vld [vmem:[#allocation9 + $0x9b0] sm:$0xff]
    %v2204 = vld [vmem:[#allocation9 + $0x9b8] sm:$0xff]
    %v2205 = vld [vmem:[#allocation9 + $0x9c0] sm:$0xff]
    %v2206 = vld [vmem:[#allocation9 + $0x9c8] sm:$0xff]
    %v2207 = vld [vmem:[#allocation9 + $0x9d0] sm:$0xff]
    %v2208 = vld [vmem:[#allocation9 + $0x9d8] sm:$0xff]
    %v2209 = vld [vmem:[#allocation9 + $0x9e0] sm:$0xff]
    %v2210 = vld [vmem:[#allocation9 + $0x9e8] sm:$0xff]
    %v2211 = vld [vmem:[#allocation9 + $0x9f0] sm:$0xff]
    %v2212 = vld [vmem:[#allocation9 + $0x9f8] sm:$0xff]
    %v2213 = vld [vmem:[#allocation9 + $0xa00] sm:$0xff]
    %v2214 = vld [vmem:[#allocation9 + $0xa08] sm:$0xff]
    %v2215 = vld [vmem:[#allocation9 + $0xa10] sm:$0xff]
    %v2216 = vld [vmem:[#allocation9 + $0xa18] sm:$0xff]
    %v2217 = vld [vmem:[#allocation9 + $0xa20] sm:$0xff]
    %v2218 = vld [vmem:[#allocation9 + $0xa28] sm:$0xff]
    %v2219 = vld [vmem:[#allocation9 + $0xa30] sm:$0xff]
    %v2220 = vld [vmem:[#allocation9 + $0xa38] sm:$0xff]
    %v2221 = vld [vmem:[#allocation9 + $0xa40] sm:$0xff]
    %v2222 = vld [vmem:[#allocation9 + $0xa48] sm:$0xff]
    %v2223 = vld [vmem:[#allocation9 + $0xa50] sm:$0xff]
    %v2224 = vld [vmem:[#allocation9 + $0xa58] sm:$0xff]
    %v2225 = vld [vmem:[#allocation9 + $0xa60] sm:$0xff]
    %v2226 = vld [vmem:[#allocation9 + $0xa68] sm:$0xff]
    %v2227 = vld [vmem:[#allocation9 + $0xa70] sm:$0xff]
    %v2228 = vld [vmem:[#allocation9 + $0xa78] sm:$0xff]
    %v2229 = vld [vmem:[#allocation9 + $0xa80] sm:$0xff]
    %v2230 = vld [vmem:[#allocation9 + $0xa88] sm:$0xff]
    %v2231 = vld [vmem:[#allocation9 + $0xa90] sm:$0xff]
    %v2232 = vld [vmem:[#allocation9 + $0xa98] sm:$0xff]
    %v2233 = vld [vmem:[#allocation9 + $0xaa0] sm:$0xff]
    %v2234 = vld [vmem:[#allocation9 + $0xaa8] sm:$0xff]
    %v2235 = vld [vmem:[#allocation9 + $0xab0] sm:$0xff]
    %v2236 = vld [vmem:[#allocation9 + $0xab8] sm:$0xff]
    %v2237 = vld [vmem:[#allocation9 + $0xac0] sm:$0xff]
    %v2238 = vld [vmem:[#allocation9 + $0xac8] sm:$0xff]
    %v2239 = vld [vmem:[#allocation9 + $0xad0] sm:$0xff]
    %v2240 = vld [vmem:[#allocation9 + $0xad8] sm:$0xff]
    %v2241 = vld [vmem:[#allocation9 + $0xae0] sm:$0xff]
    %v2242 = vld [vmem:[#allocation9 + $0xae8] sm:$0xff]
    %v2243 = vld [vmem:[#allocation9 + $0xaf0] sm:$0xff]
    %v2244 = vld [vmem:[#allocation9 + $0xaf8] sm:$0xff]
    %v2245 = vld [vmem:[#allocation9 + $0xb00] sm:$0xff]
    %v2246 = vld [vmem:[#allocation9 + $0xb08] sm:$0xff]
    %v2247 = vld [vmem:[#allocation9 + $0xb10] sm:$0xff]
    %v2248 = vld [vmem:[#allocation9 + $0xb18] sm:$0xff]
    %v2249 = vld [vmem:[#allocation9 + $0xb20] sm:$0xff]
    %v2250 = vld [vmem:[#allocation9 + $0xb28] sm:$0xff]
    %v2251 = vld [vmem:[#allocation9 + $0xb30] sm:$0xff]
    %v2252 = vld [vmem:[#allocation9 + $0xb38] sm:$0xff]
    %v2253 = vld [vmem:[#allocation9 + $0xb40] sm:$0xff]
    %v2254 = vld [vmem:[#allocation9 + $0xb48] sm:$0xff]
    %v2255 = vld [vmem:[#allocation9 + $0xb50] sm:$0xff]
    %v2256 = vld [vmem:[#allocation9 + $0xb58] sm:$0xff]
    %v2257 = vld [vmem:[#allocation9 + $0xb60] sm:$0xff]
    %v2258 = vld [vmem:[#allocation9 + $0xb68] sm:$0xff]
    %v2259 = vld [vmem:[#allocation9 + $0xb70] sm:$0xff]
    %v2260 = vld [vmem:[#allocation9 + $0xb78] sm:$0xff]
    %v2261 = vld [vmem:[#allocation9 + $0xb80] sm:$0xff]
    %v2262 = vld [vmem:[#allocation9 + $0xb88] sm:$0xff]
    %v2263 = vld [vmem:[#allocation9 + $0xb90] sm:$0xff]
    %v2264 = vld [vmem:[#allocation9 + $0xb98] sm:$0xff]
    %v2265 = vld [vmem:[#allocation9 + $0xba0] sm:$0xff]
    %v2266 = vld [vmem:[#allocation9 + $0xba8] sm:$0xff]
    %v2267 = vld [vmem:[#allocation9 + $0xbb0] sm:$0xff]
    %v2268 = vld [vmem:[#allocation9 + $0xbb8] sm:$0xff]
    %v2269 = vld [vmem:[#allocation9 + $0xbc0] sm:$0xff]
    %v2270 = vld [vmem:[#allocation9 + $0xbc8] sm:$0xff]
    %v2271 = vld [vmem:[#allocation9 + $0xbd0] sm:$0xff]
    %v2272 = vld [vmem:[#allocation9 + $0xbd8] sm:$0xff]
    %v2273 = vld [vmem:[#allocation9 + $0xbe0] sm:$0xff]
    %v2274 = vld [vmem:[#allocation9 + $0xbe8] sm:$0xff]
    %v2275 = vld [vmem:[#allocation9 + $0xbf0] sm:$0xff]
    %v2276 = vld [vmem:[#allocation9 + $0xbf8] sm:$0xff]
    %v2277 = vld [vmem:[#allocation9 + $0xc00] sm:$0xff]
    %v2278 = vld [vmem:[#allocation9 + $0xc08] sm:$0xff]
    %v2279 = vld [vmem:[#allocation9 + $0xc10] sm:$0xff]
    %v2280 = vld [vmem:[#allocation9 + $0xc18] sm:$0xff]
    %v2281 = vld [vmem:[#allocation9 + $0xc20] sm:$0xff]
    %v2282 = vld [vmem:[#allocation9 + $0xc28] sm:$0xff]
    %v2283 = vld [vmem:[#allocation9 + $0xc30] sm:$0xff]
    %v2284 = vld [vmem:[#allocation9 + $0xc38] sm:$0xff]
    %v2285 = vld [vmem:[#allocation9 + $0xc40] sm:$0xff]
    %v2286 = vld [vmem:[#allocation9 + $0xc48] sm:$0xff]
    %v2287 = vld [vmem:[#allocation9 + $0xc50] sm:$0xff]
    %v2288 = vld [vmem:[#allocation9 + $0xc58] sm:$0xff]
    %v2289 = vld [vmem:[#allocation9 + $0xc60] sm:$0xff]
    %v2290 = vld [vmem:[#allocation9 + $0xc68] sm:$0xff]
    %v2291 = vld [vmem:[#allocation9 + $0xc70] sm:$0xff]
    %v2292 = vld [vmem:[#allocation9 + $0xc78] sm:$0xff]
    %v2293 = vld [vmem:[#allocation9 + $0xc80] sm:$0xff]
    %v2294 = vld [vmem:[#allocation9 + $0xc88] sm:$0xff]
    %v2295 = vld [vmem:[#allocation9 + $0xc90] sm:$0xff]
    %v2296 = vld [vmem:[#allocation9 + $0xc98] sm:$0xff]
    %v2297 = vld [vmem:[#allocation9 + $0xca0] sm:$0xff]
    %v2298 = vld [vmem:[#allocation9 + $0xca8] sm:$0xff]
    %v2299 = vld [vmem:[#allocation9 + $0xcb0] sm:$0xff]
    %v2300 = vld [vmem:[#allocation9 + $0xcb8] sm:$0xff]
    %v2301 = vld [vmem:[#allocation9 + $0xcc0] sm:$0xff]
    %v2302 = vld [vmem:[#allocation9 + $0xcc8] sm:$0xff]
    %v2303 = vld [vmem:[#allocation9 + $0xcd0] sm:$0xff]
    %v2304 = vld [vmem:[#allocation9 + $0xcd8] sm:$0xff]
    %v2305 = vld [vmem:[#allocation9 + $0xce0] sm:$0xff]
    %v2306 = vld [vmem:[#allocation9 + $0xce8] sm:$0xff]
    %v2307 = vld [vmem:[#allocation9 + $0xcf0] sm:$0xff]
    %v2308 = vld [vmem:[#allocation9 + $0xcf8] sm:$0xff]
    %v2309 = vld [vmem:[#allocation9 + $0xd00] sm:$0xff]
    %v2310 = vld [vmem:[#allocation9 + $0xd08] sm:$0xff]
    %v2311 = vld [vmem:[#allocation9 + $0xd10] sm:$0xff]
    %v2312 = vld [vmem:[#allocation9 + $0xd18] sm:$0xff]
    %v2313 = vld [vmem:[#allocation9 + $0xd20] sm:$0xff]
    %v2314 = vld [vmem:[#allocation9 + $0xd28] sm:$0xff]
    %v2315 = vld [vmem:[#allocation9 + $0xd30] sm:$0xff]
    %v2316 = vld [vmem:[#allocation9 + $0xd38] sm:$0xff]
    %v2317 = vld [vmem:[#allocation9 + $0xd40] sm:$0xff]
    %v2318 = vld [vmem:[#allocation9 + $0xd48] sm:$0xff]
    %v2319 = vld [vmem:[#allocation9 + $0xd50] sm:$0xff]
    %v2320 = vld [vmem:[#allocation9 + $0xd58] sm:$0xff]
    %v2321 = vld [vmem:[#allocation9 + $0xd60] sm:$0xff]
    %v2322 = vld [vmem:[#allocation9 + $0xd68] sm:$0xff]
    %v2323 = vld [vmem:[#allocation9 + $0xd70] sm:$0xff]
    %v2324 = vld [vmem:[#allocation9 + $0xd78] sm:$0xff]
    %v2325 = vld [vmem:[#allocation9 + $0xd80] sm:$0xff]
    %v2326 = vld [vmem:[#allocation9 + $0xd88] sm:$0xff]
    %v2327 = vld [vmem:[#allocation9 + $0xd90] sm:$0xff]
    %v2328 = vld [vmem:[#allocation9 + $0xd98] sm:$0xff]
    %v2329 = vld [vmem:[#allocation9 + $0xda0] sm:$0xff]
    %v2330 = vld [vmem:[#allocation9 + $0xda8] sm:$0xff]
    %v2331 = vld [vmem:[#allocation9 + $0xdb0] sm:$0xff]
    %v2332 = vld [vmem:[#allocation9 + $0xdb8] sm:$0xff]
    %v2333 = vld [vmem:[#allocation9 + $0xdc0] sm:$0xff]
    %v2334 = vld [vmem:[#allocation9 + $0xdc8] sm:$0xff]
    %v2335 = vld [vmem:[#allocation9 + $0xdd0] sm:$0xff]
    %v2336 = vld [vmem:[#allocation9 + $0xdd8] sm:$0xff]
    %v2337 = vld [vmem:[#allocation9 + $0xde0] sm:$0xff]
    %v2338 = vld [vmem:[#allocation9 + $0xde8] sm:$0xff]
    %v2339 = vld [vmem:[#allocation9 + $0xdf0] sm:$0xff]
    %v2340 = vld [vmem:[#allocation9 + $0xdf8] sm:$0xff]
    %v2341 = vld [vmem:[#allocation9 + $0xe00] sm:$0xff]
    %v2342 = vld [vmem:[#allocation9 + $0xe08] sm:$0xff]
    %v2343 = vld [vmem:[#allocation9 + $0xe10] sm:$0xff]
    %v2344 = vld [vmem:[#allocation9 + $0xe18] sm:$0xff]
    %v2345 = vld [vmem:[#allocation9 + $0xe20] sm:$0xff]
    %v2346 = vld [vmem:[#allocation9 + $0xe28] sm:$0xff]
    %v2347 = vld [vmem:[#allocation9 + $0xe30] sm:$0xff]
    %v2348 = vld [vmem:[#allocation9 + $0xe38] sm:$0xff]
    %v2349 = vld [vmem:[#allocation9 + $0xe40] sm:$0xff]
    %v2350 = vld [vmem:[#allocation9 + $0xe48] sm:$0xff]
    %v2351 = vld [vmem:[#allocation9 + $0xe50] sm:$0xff]
    %v2352 = vld [vmem:[#allocation9 + $0xe58] sm:$0xff]
    %v2353 = vld [vmem:[#allocation9 + $0xe60] sm:$0xff]
    %v2354 = vld [vmem:[#allocation9 + $0xe68] sm:$0xff]
    %v2355 = vld [vmem:[#allocation9 + $0xe70] sm:$0xff]
    %v2356 = vld [vmem:[#allocation9 + $0xe78] sm:$0xff]
    %v2357 = vld [vmem:[#allocation9 + $0xe80] sm:$0xff]
    %v2358 = vld [vmem:[#allocation9 + $0xe88] sm:$0xff]
    %v2359 = vld [vmem:[#allocation9 + $0xe90] sm:$0xff]
    %v2360 = vld [vmem:[#allocation9 + $0xe98] sm:$0xff]
    %v2361 = vld [vmem:[#allocation9 + $0xea0] sm:$0xff]
    %v2362 = vld [vmem:[#allocation9 + $0xea8] sm:$0xff]
    %v2363 = vld [vmem:[#allocation9 + $0xeb0] sm:$0xff]
    %v2364 = vld [vmem:[#allocation9 + $0xeb8] sm:$0xff]
    %v2365 = vld [vmem:[#allocation9 + $0xec0] sm:$0xff]
    %v2366 = vld [vmem:[#allocation9 + $0xec8] sm:$0xff]
    %v2367 = vld [vmem:[#allocation9 + $0xed0] sm:$0xff]
    %v2368 = vld [vmem:[#allocation9 + $0xed8] sm:$0xff]
    %v2369 = vld [vmem:[#allocation9 + $0xee0] sm:$0xff]
    %v2370 = vld [vmem:[#allocation9 + $0xee8] sm:$0xff]
    %v2371 = vld [vmem:[#allocation9 + $0xef0] sm:$0xff]
    %v2372 = vld [vmem:[#allocation9 + $0xef8] sm:$0xff]
    %v2373 = vld [vmem:[#allocation9 + $0xf00] sm:$0xff]
    %v2374 = vld [vmem:[#allocation9 + $0xf08] sm:$0xff]
    %v2375 = vld [vmem:[#allocation9 + $0xf10] sm:$0xff]
    %v2376 = vld [vmem:[#allocation9 + $0xf18] sm:$0xff]
    %v2377 = vld [vmem:[#allocation9 + $0xf20] sm:$0xff]
    %v2378 = vld [vmem:[#allocation9 + $0xf28] sm:$0xff]
    %v2379 = vld [vmem:[#allocation9 + $0xf30] sm:$0xff]
    %v2380 = vld [vmem:[#allocation9 + $0xf38] sm:$0xff]
    %v2381 = vld [vmem:[#allocation9 + $0xf40] sm:$0xff]
    %v2382 = vld [vmem:[#allocation9 + $0xf48] sm:$0xff]
    %v2383 = vld [vmem:[#allocation9 + $0xf50] sm:$0xff]
    %v2384 = vld [vmem:[#allocation9 + $0xf58] sm:$0xff]
    %v2385 = vld [vmem:[#allocation9 + $0xf60] sm:$0xff]
    %v2386 = vld [vmem:[#allocation9 + $0xf68] sm:$0xff]
    %v2387 = vld [vmem:[#allocation9 + $0xf70] sm:$0xff]
    %v2388 = vld [vmem:[#allocation9 + $0xf78] sm:$0xff]
    %v2389 = vld [vmem:[#allocation9 + $0xf80] sm:$0xff]
    %v2390 = vld [vmem:[#allocation9 + $0xf88] sm:$0xff]
    %v2391 = vld [vmem:[#allocation9 + $0xf90] sm:$0xff]
    %v2392 = vld [vmem:[#allocation9 + $0xf98] sm:$0xff]
    %v2393 = vld [vmem:[#allocation9 + $0xfa0] sm:$0xff]
    %v2394 = vld [vmem:[#allocation9 + $0xfa8] sm:$0xff]
    %v2395 = vld [vmem:[#allocation9 + $0xfb0] sm:$0xff]
    %v2396 = vld [vmem:[#allocation9 + $0xfb8] sm:$0xff]
    %v2397 = vld [vmem:[#allocation9 + $0xfc0] sm:$0xff]
    %v2398 = vld [vmem:[#allocation9 + $0xfc8] sm:$0xff]
    %v2399 = vld [vmem:[#allocation9 + $0xfd0] sm:$0xff]
    %v2400 = vld [vmem:[#allocation9 + $0xfd8] sm:$0xff]
    %v2401 = vld [vmem:[#allocation9 + $0xfe0] sm:$0xff]
    %v2402 = vld [vmem:[#allocation9 + $0xfe8] sm:$0xff]
    %v2403 = vld [vmem:[#allocation9 + $0xff0] sm:$0xff]
    %v2404 = vld [vmem:[#allocation9 + $0xff8] sm:$0xff]
    %v2405 = vpack.c.bf16 %v1889, %v1889
    %v2406 = vpack.c.bf16 %v1890, %v1890
    %v2407 = vpack.c.bf16 %v1891, %v1891
    %v2408 = vpack.c.bf16 %v1892, %v1892
    %v2411 = vlaneseq
    %v2412 = vshrl.u32 %v2411, 7
    %v2413 = vsub.s32 0, %v2412
    %v2414 = vrot.slane %v133, %v2413
    %v2415 = vlaneseq
    %v2416 = vshrl.u32 %v2415, 7
    %v2417 = vsub.s32 1, %v2416
    %v2418 = vrot.slane %v133, %v2417
    %v2419 = vlaneseq
    %v2420 = vshrl.u32 %v2419, 7
    %v2421 = vsub.s32 2, %v2420
    %v2422 = vrot.slane %v133, %v2421
    %v2423 = vlaneseq
    %v2424 = vshrl.u32 %v2423, 7
    %v2425 = vsub.s32 3, %v2424
    %v2426 = vrot.slane %v133, %v2425
    %v2427 = vlaneseq
    %v2428 = vshrl.u32 %v2427, 7
    %v2429 = vsub.s32 4, %v2428
    %v2430 = vrot.slane %v133, %v2429
    %v2431 = vlaneseq
    %v2432 = vshrl.u32 %v2431, 7
    %v2433 = vsub.s32 5, %v2432
    %v2434 = vrot.slane %v133, %v2433
    %v2435 = vlaneseq
    %v2436 = vshrl.u32 %v2435, 7
    %v2437 = vsub.s32 6, %v2436
    %v2438 = vrot.slane %v133, %v2437
    %v2439 = vlaneseq
    %v2440 = vshrl.u32 %v2439, 7
    %v2441 = vsub.s32 7, %v2440
    %v2442 = vrot.slane %v133, %v2441
    %v2443 = vlaneseq
    %v2444 = vshrl.u32 %v2443, 7
    %v2445 = vsub.s32 0, %v2444
    %v2446 = vrot.slane %v137, %v2445
    %v2447 = vlaneseq
    %v2448 = vshrl.u32 %v2447, 7
    %v2449 = vsub.s32 1, %v2448
    %v2450 = vrot.slane %v137, %v2449
    %v2451 = vlaneseq
    %v2452 = vshrl.u32 %v2451, 7
    %v2453 = vsub.s32 2, %v2452
    %v2454 = vrot.slane %v137, %v2453
    %v2455 = vlaneseq
    %v2456 = vshrl.u32 %v2455, 7
    %v2457 = vsub.s32 3, %v2456
    %v2458 = vrot.slane %v137, %v2457
    %v2459 = vlaneseq
    %v2460 = vshrl.u32 %v2459, 7
    %v2461 = vsub.s32 4, %v2460
    %v2462 = vrot.slane %v137, %v2461
    %v2463 = vlaneseq
    %v2464 = vshrl.u32 %v2463, 7
    %v2465 = vsub.s32 5, %v2464
    %v2466 = vrot.slane %v137, %v2465
    %v2467 = vlaneseq
    %v2468 = vshrl.u32 %v2467, 7
    %v2469 = vsub.s32 6, %v2468
    %v2470 = vrot.slane %v137, %v2469
    %v2471 = vlaneseq
    %v2472 = vshrl.u32 %v2471, 7
    %v2473 = vsub.s32 7, %v2472
    %v2474 = vrot.slane %v137, %v2473
    %v3003 = vunpack.c.l.b16 %v1893
    %v3004 = vunpack.c.h.b16 %v1893
    %v3005 = vunpack.c.l.b16 %v1894
    %v3006 = vunpack.c.h.b16 %v1894
    %v3007 = vunpack.c.l.b16 %v1895
    %v3008 = vunpack.c.h.b16 %v1895
    %v3009 = vunpack.c.l.b16 %v1896
    %v3010 = vunpack.c.h.b16 %v1896
    %v3011 = vunpack.c.l.b16 %v1897
    %v3012 = vunpack.c.h.b16 %v1897
    %v3013 = vunpack.c.l.b16 %v1898
    %v3014 = vunpack.c.h.b16 %v1898
    %v3015 = vunpack.c.l.b16 %v1899
    %v3016 = vunpack.c.h.b16 %v1899
    %v3017 = vunpack.c.l.b16 %v1900
    %v3018 = vunpack.c.h.b16 %v1900
    %v3019 = vunpack.c.l.b16 %v1901
    %v3020 = vunpack.c.h.b16 %v1901
    %v3021 = vunpack.c.l.b16 %v1902
    %v3022 = vunpack.c.h.b16 %v1902
    %v3023 = vunpack.c.l.b16 %v1903
    %v3024 = vunpack.c.h.b16 %v1903
    %v3025 = vunpack.c.l.b16 %v1904
    %v3026 = vunpack.c.h.b16 %v1904
    %v3027 = vunpack.c.l.b16 %v1905
    %v3028 = vunpack.c.h.b16 %v1905
    %v3029 = vunpack.c.l.b16 %v1906
    %v3030 = vunpack.c.h.b16 %v1906
    %v3031 = vunpack.c.l.b16 %v1907
    %v3032 = vunpack.c.h.b16 %v1907
    %v3033 = vunpack.c.l.b16 %v1908
    %v3034 = vunpack.c.h.b16 %v1908
    %v3035 = vunpack.c.l.b16 %v1909
    %v3036 = vunpack.c.h.b16 %v1909
    %v3037 = vunpack.c.l.b16 %v1910
    %v3038 = vunpack.c.h.b16 %v1910
    %v3039 = vunpack.c.l.b16 %v1911
    %v3040 = vunpack.c.h.b16 %v1911
    %v3041 = vunpack.c.l.b16 %v1912
    %v3042 = vunpack.c.h.b16 %v1912
    %v3043 = vunpack.c.l.b16 %v1913
    %v3044 = vunpack.c.h.b16 %v1913
    %v3045 = vunpack.c.l.b16 %v1914
    %v3046 = vunpack.c.h.b16 %v1914
    %v3047 = vunpack.c.l.b16 %v1915
    %v3048 = vunpack.c.h.b16 %v1915
    %v3049 = vunpack.c.l.b16 %v1916
    %v3050 = vunpack.c.h.b16 %v1916
    %v3051 = vunpack.c.l.b16 %v1917
    %v3052 = vunpack.c.h.b16 %v1917
    %v3053 = vunpack.c.l.b16 %v1918
    %v3054 = vunpack.c.h.b16 %v1918
    %v3055 = vunpack.c.l.b16 %v1919
    %v3056 = vunpack.c.h.b16 %v1919
    %v3057 = vunpack.c.l.b16 %v1920
    %v3058 = vunpack.c.h.b16 %v1920
    %v3059 = vunpack.c.l.b16 %v1921
    %v3060 = vunpack.c.h.b16 %v1921
    %v3061 = vunpack.c.l.b16 %v1922
    %v3062 = vunpack.c.h.b16 %v1922
    %v3063 = vunpack.c.l.b16 %v1923
    %v3064 = vunpack.c.h.b16 %v1923
    %v3065 = vunpack.c.l.b16 %v1924
    %v3066 = vunpack.c.h.b16 %v1924
    %v3067 = vunpack.c.l.b16 %v1925
    %v3068 = vunpack.c.h.b16 %v1925
    %v3069 = vunpack.c.l.b16 %v1926
    %v3070 = vunpack.c.h.b16 %v1926
    %v3071 = vunpack.c.l.b16 %v1927
    %v3072 = vunpack.c.h.b16 %v1927
    %v3073 = vunpack.c.l.b16 %v1928
    %v3074 = vunpack.c.h.b16 %v1928
    %v3075 = vunpack.c.l.b16 %v1929
    %v3076 = vunpack.c.h.b16 %v1929
    %v3077 = vunpack.c.l.b16 %v1930
    %v3078 = vunpack.c.h.b16 %v1930
    %v3079 = vunpack.c.l.b16 %v1931
    %v3080 = vunpack.c.h.b16 %v1931
    %v3081 = vunpack.c.l.b16 %v1932
    %v3082 = vunpack.c.h.b16 %v1932
    %v3083 = vunpack.c.l.b16 %v1933
    %v3084 = vunpack.c.h.b16 %v1933
    %v3085 = vunpack.c.l.b16 %v1934
    %v3086 = vunpack.c.h.b16 %v1934
    %v3087 = vunpack.c.l.b16 %v1935
    %v3088 = vunpack.c.h.b16 %v1935
    %v3089 = vunpack.c.l.b16 %v1936
    %v3090 = vunpack.c.h.b16 %v1936
    %v3091 = vunpack.c.l.b16 %v1937
    %v3092 = vunpack.c.h.b16 %v1937
    %v3093 = vunpack.c.l.b16 %v1938
    %v3094 = vunpack.c.h.b16 %v1938
    %v3095 = vunpack.c.l.b16 %v1939
    %v3096 = vunpack.c.h.b16 %v1939
    %v3097 = vunpack.c.l.b16 %v1940
    %v3098 = vunpack.c.h.b16 %v1940
    %v3099 = vunpack.c.l.b16 %v1941
    %v3100 = vunpack.c.h.b16 %v1941
    %v3101 = vunpack.c.l.b16 %v1942
    %v3102 = vunpack.c.h.b16 %v1942
    %v3103 = vunpack.c.l.b16 %v1943
    %v3104 = vunpack.c.h.b16 %v1943
    %v3105 = vunpack.c.l.b16 %v1944
    %v3106 = vunpack.c.h.b16 %v1944
    %v3107 = vunpack.c.l.b16 %v1945
    %v3108 = vunpack.c.h.b16 %v1945
    %v3109 = vunpack.c.l.b16 %v1946
    %v3110 = vunpack.c.h.b16 %v1946
    %v3111 = vunpack.c.l.b16 %v1947
    %v3112 = vunpack.c.h.b16 %v1947
    %v3113 = vunpack.c.l.b16 %v1948
    %v3114 = vunpack.c.h.b16 %v1948
    %v3115 = vunpack.c.l.b16 %v1949
    %v3116 = vunpack.c.h.b16 %v1949
    %v3117 = vunpack.c.l.b16 %v1950
    %v3118 = vunpack.c.h.b16 %v1950
    %v3119 = vunpack.c.l.b16 %v1951
    %v3120 = vunpack.c.h.b16 %v1951
    %v3121 = vunpack.c.l.b16 %v1952
    %v3122 = vunpack.c.h.b16 %v1952
    %v3123 = vunpack.c.l.b16 %v1953
    %v3124 = vunpack.c.h.b16 %v1953
    %v3125 = vunpack.c.l.b16 %v1954
    %v3126 = vunpack.c.h.b16 %v1954
    %v3127 = vunpack.c.l.b16 %v1955
    %v3128 = vunpack.c.h.b16 %v1955
    %v3129 = vunpack.c.l.b16 %v1956
    %v3130 = vunpack.c.h.b16 %v1956
    %v3131 = vunpack.c.l.b16 %v1957
    %v3132 = vunpack.c.h.b16 %v1957
    %v3133 = vunpack.c.l.b16 %v1958
    %v3134 = vunpack.c.h.b16 %v1958
    %v3135 = vunpack.c.l.b16 %v1959
    %v3136 = vunpack.c.h.b16 %v1959
    %v3137 = vunpack.c.l.b16 %v1960
    %v3138 = vunpack.c.h.b16 %v1960
    %v3139 = vunpack.c.l.b16 %v1961
    %v3140 = vunpack.c.h.b16 %v1961
    %v3141 = vunpack.c.l.b16 %v1962
    %v3142 = vunpack.c.h.b16 %v1962
    %v3143 = vunpack.c.l.b16 %v1963
    %v3144 = vunpack.c.h.b16 %v1963
    %v3145 = vunpack.c.l.b16 %v1964
    %v3146 = vunpack.c.h.b16 %v1964
    %v3147 = vunpack.c.l.b16 %v1965
    %v3148 = vunpack.c.h.b16 %v1965
    %v3149 = vunpack.c.l.b16 %v1966
    %v3150 = vunpack.c.h.b16 %v1966
    %v3151 = vunpack.c.l.b16 %v1967
    %v3152 = vunpack.c.h.b16 %v1967
    %v3153 = vunpack.c.l.b16 %v1968
    %v3154 = vunpack.c.h.b16 %v1968
    %v3155 = vunpack.c.l.b16 %v1969
    %v3156 = vunpack.c.h.b16 %v1969
    %v3157 = vunpack.c.l.b16 %v1970
    %v3158 = vunpack.c.h.b16 %v1970
    %v3159 = vunpack.c.l.b16 %v1971
    %v3160 = vunpack.c.h.b16 %v1971
    %v3161 = vunpack.c.l.b16 %v1972
    %v3162 = vunpack.c.h.b16 %v1972
    %v3163 = vunpack.c.l.b16 %v1973
    %v3164 = vunpack.c.h.b16 %v1973
    %v3165 = vunpack.c.l.b16 %v1974
    %v3166 = vunpack.c.h.b16 %v1974
    %v3167 = vunpack.c.l.b16 %v1975
    %v3168 = vunpack.c.h.b16 %v1975
    %v3169 = vunpack.c.l.b16 %v1976
    %v3170 = vunpack.c.h.b16 %v1976
    %v3171 = vunpack.c.l.b16 %v1977
    %v3172 = vunpack.c.h.b16 %v1977
    %v3173 = vunpack.c.l.b16 %v1978
    %v3174 = vunpack.c.h.b16 %v1978
    %v3175 = vunpack.c.l.b16 %v1979
    %v3176 = vunpack.c.h.b16 %v1979
    %v3177 = vunpack.c.l.b16 %v1980
    %v3178 = vunpack.c.h.b16 %v1980
    %v3179 = vunpack.c.l.b16 %v1981
    %v3180 = vunpack.c.h.b16 %v1981
    %v3181 = vunpack.c.l.b16 %v1982
    %v3182 = vunpack.c.h.b16 %v1982
    %v3183 = vunpack.c.l.b16 %v1983
    %v3184 = vunpack.c.h.b16 %v1983
    %v3185 = vunpack.c.l.b16 %v1984
    %v3186 = vunpack.c.h.b16 %v1984
    %v3187 = vunpack.c.l.b16 %v1985
    %v3188 = vunpack.c.h.b16 %v1985
    %v3189 = vunpack.c.l.b16 %v1986
    %v3190 = vunpack.c.h.b16 %v1986
    %v3191 = vunpack.c.l.b16 %v1987
    %v3192 = vunpack.c.h.b16 %v1987
    %v3193 = vunpack.c.l.b16 %v1988
    %v3194 = vunpack.c.h.b16 %v1988
    %v3195 = vunpack.c.l.b16 %v1989
    %v3196 = vunpack.c.h.b16 %v1989
    %v3197 = vunpack.c.l.b16 %v1990
    %v3198 = vunpack.c.h.b16 %v1990
    %v3199 = vunpack.c.l.b16 %v1991
    %v3200 = vunpack.c.h.b16 %v1991
    %v3201 = vunpack.c.l.b16 %v1992
    %v3202 = vunpack.c.h.b16 %v1992
    %v3203 = vunpack.c.l.b16 %v1993
    %v3204 = vunpack.c.h.b16 %v1993
    %v3205 = vunpack.c.l.b16 %v1994
    %v3206 = vunpack.c.h.b16 %v1994
    %v3207 = vunpack.c.l.b16 %v1995
    %v3208 = vunpack.c.h.b16 %v1995
    %v3209 = vunpack.c.l.b16 %v1996
    %v3210 = vunpack.c.h.b16 %v1996
    %v3211 = vunpack.c.l.b16 %v1997
    %v3212 = vunpack.c.h.b16 %v1997
    %v3213 = vunpack.c.l.b16 %v1998
    %v3214 = vunpack.c.h.b16 %v1998
    %v3215 = vunpack.c.l.b16 %v1999
    %v3216 = vunpack.c.h.b16 %v1999
    %v3217 = vunpack.c.l.b16 %v2000
    %v3218 = vunpack.c.h.b16 %v2000
    %v3219 = vunpack.c.l.b16 %v2001
    %v3220 = vunpack.c.h.b16 %v2001
    %v3221 = vunpack.c.l.b16 %v2002
    %v3222 = vunpack.c.h.b16 %v2002
    %v3223 = vunpack.c.l.b16 %v2003
    %v3224 = vunpack.c.h.b16 %v2003
    %v3225 = vunpack.c.l.b16 %v2004
    %v3226 = vunpack.c.h.b16 %v2004
    %v3227 = vunpack.c.l.b16 %v2005
    %v3228 = vunpack.c.h.b16 %v2005
    %v3229 = vunpack.c.l.b16 %v2006
    %v3230 = vunpack.c.h.b16 %v2006
    %v3231 = vunpack.c.l.b16 %v2007
    %v3232 = vunpack.c.h.b16 %v2007
    %v3233 = vunpack.c.l.b16 %v2008
    %v3234 = vunpack.c.h.b16 %v2008
    %v3235 = vunpack.c.l.b16 %v2009
    %v3236 = vunpack.c.h.b16 %v2009
    %v3237 = vunpack.c.l.b16 %v2010
    %v3238 = vunpack.c.h.b16 %v2010
    %v3239 = vunpack.c.l.b16 %v2011
    %v3240 = vunpack.c.h.b16 %v2011
    %v3241 = vunpack.c.l.b16 %v2012
    %v3242 = vunpack.c.h.b16 %v2012
    %v3243 = vunpack.c.l.b16 %v2013
    %v3244 = vunpack.c.h.b16 %v2013
    %v3245 = vunpack.c.l.b16 %v2014
    %v3246 = vunpack.c.h.b16 %v2014
    %v3247 = vunpack.c.l.b16 %v2015
    %v3248 = vunpack.c.h.b16 %v2015
    %v3249 = vunpack.c.l.b16 %v2016
    %v3250 = vunpack.c.h.b16 %v2016
    %v3251 = vunpack.c.l.b16 %v2017
    %v3252 = vunpack.c.h.b16 %v2017
    %v3253 = vunpack.c.l.b16 %v2018
    %v3254 = vunpack.c.h.b16 %v2018
    %v3255 = vunpack.c.l.b16 %v2019
    %v3256 = vunpack.c.h.b16 %v2019
    %v3257 = vunpack.c.l.b16 %v2020
    %v3258 = vunpack.c.h.b16 %v2020
    %v3259 = vunpack.c.l.b16 %v2021
    %v3260 = vunpack.c.h.b16 %v2021
    %v3261 = vunpack.c.l.b16 %v2022
    %v3262 = vunpack.c.h.b16 %v2022
    %v3263 = vunpack.c.l.b16 %v2023
    %v3264 = vunpack.c.h.b16 %v2023
    %v3265 = vunpack.c.l.b16 %v2024
    %v3266 = vunpack.c.h.b16 %v2024
    %v3267 = vunpack.c.l.b16 %v2025
    %v3268 = vunpack.c.h.b16 %v2025
    %v3269 = vunpack.c.l.b16 %v2026
    %v3270 = vunpack.c.h.b16 %v2026
    %v3271 = vunpack.c.l.b16 %v2027
    %v3272 = vunpack.c.h.b16 %v2027
    %v3273 = vunpack.c.l.b16 %v2028
    %v3274 = vunpack.c.h.b16 %v2028
    %v3275 = vunpack.c.l.b16 %v2029
    %v3276 = vunpack.c.h.b16 %v2029
    %v3277 = vunpack.c.l.b16 %v2030
    %v3278 = vunpack.c.h.b16 %v2030
    %v3279 = vunpack.c.l.b16 %v2031
    %v3280 = vunpack.c.h.b16 %v2031
    %v3281 = vunpack.c.l.b16 %v2032
    %v3282 = vunpack.c.h.b16 %v2032
    %v3283 = vunpack.c.l.b16 %v2033
    %v3284 = vunpack.c.h.b16 %v2033
    %v3285 = vunpack.c.l.b16 %v2034
    %v3286 = vunpack.c.h.b16 %v2034
    %v3287 = vunpack.c.l.b16 %v2035
    %v3288 = vunpack.c.h.b16 %v2035
    %v3289 = vunpack.c.l.b16 %v2036
    %v3290 = vunpack.c.h.b16 %v2036
    %v3291 = vunpack.c.l.b16 %v2037
    %v3292 = vunpack.c.h.b16 %v2037
    %v3293 = vunpack.c.l.b16 %v2038
    %v3294 = vunpack.c.h.b16 %v2038
    %v3295 = vunpack.c.l.b16 %v2039
    %v3296 = vunpack.c.h.b16 %v2039
    %v3297 = vunpack.c.l.b16 %v2040
    %v3298 = vunpack.c.h.b16 %v2040
    %v3299 = vunpack.c.l.b16 %v2041
    %v3300 = vunpack.c.h.b16 %v2041
    %v3301 = vunpack.c.l.b16 %v2042
    %v3302 = vunpack.c.h.b16 %v2042
    %v3303 = vunpack.c.l.b16 %v2043
    %v3304 = vunpack.c.h.b16 %v2043
    %v3305 = vunpack.c.l.b16 %v2044
    %v3306 = vunpack.c.h.b16 %v2044
    %v3307 = vunpack.c.l.b16 %v2045
    %v3308 = vunpack.c.h.b16 %v2045
    %v3309 = vunpack.c.l.b16 %v2046
    %v3310 = vunpack.c.h.b16 %v2046
    %v3311 = vunpack.c.l.b16 %v2047
    %v3312 = vunpack.c.h.b16 %v2047
    %v3313 = vunpack.c.l.b16 %v2048
    %v3314 = vunpack.c.h.b16 %v2048
    %v3315 = vunpack.c.l.b16 %v2049
    %v3316 = vunpack.c.h.b16 %v2049
    %v3317 = vunpack.c.l.b16 %v2050
    %v3318 = vunpack.c.h.b16 %v2050
    %v3319 = vunpack.c.l.b16 %v2051
    %v3320 = vunpack.c.h.b16 %v2051
    %v3321 = vunpack.c.l.b16 %v2052
    %v3322 = vunpack.c.h.b16 %v2052
    %v3323 = vunpack.c.l.b16 %v2053
    %v3324 = vunpack.c.h.b16 %v2053
    %v3325 = vunpack.c.l.b16 %v2054
    %v3326 = vunpack.c.h.b16 %v2054
    %v3327 = vunpack.c.l.b16 %v2055
    %v3328 = vunpack.c.h.b16 %v2055
    %v3329 = vunpack.c.l.b16 %v2056
    %v3330 = vunpack.c.h.b16 %v2056
    %v3331 = vunpack.c.l.b16 %v2057
    %v3332 = vunpack.c.h.b16 %v2057
    %v3333 = vunpack.c.l.b16 %v2058
    %v3334 = vunpack.c.h.b16 %v2058
    %v3335 = vunpack.c.l.b16 %v2059
    %v3336 = vunpack.c.h.b16 %v2059
    %v3337 = vunpack.c.l.b16 %v2060
    %v3338 = vunpack.c.h.b16 %v2060
    %v3339 = vunpack.c.l.b16 %v2061
    %v3340 = vunpack.c.h.b16 %v2061
    %v3341 = vunpack.c.l.b16 %v2062
    %v3342 = vunpack.c.h.b16 %v2062
    %v3343 = vunpack.c.l.b16 %v2063
    %v3344 = vunpack.c.h.b16 %v2063
    %v3345 = vunpack.c.l.b16 %v2064
    %v3346 = vunpack.c.h.b16 %v2064
    %v3347 = vunpack.c.l.b16 %v2065
    %v3348 = vunpack.c.h.b16 %v2065
    %v3349 = vunpack.c.l.b16 %v2066
    %v3350 = vunpack.c.h.b16 %v2066
    %v3351 = vunpack.c.l.b16 %v2067
    %v3352 = vunpack.c.h.b16 %v2067
    %v3353 = vunpack.c.l.b16 %v2068
    %v3354 = vunpack.c.h.b16 %v2068
    %v3355 = vunpack.c.l.b16 %v2069
    %v3356 = vunpack.c.h.b16 %v2069
    %v3357 = vunpack.c.l.b16 %v2070
    %v3358 = vunpack.c.h.b16 %v2070
    %v3359 = vunpack.c.l.b16 %v2071
    %v3360 = vunpack.c.h.b16 %v2071
    %v3361 = vunpack.c.l.b16 %v2072
    %v3362 = vunpack.c.h.b16 %v2072
    %v3363 = vunpack.c.l.b16 %v2073
    %v3364 = vunpack.c.h.b16 %v2073
    %v3365 = vunpack.c.l.b16 %v2074
    %v3366 = vunpack.c.h.b16 %v2074
    %v3367 = vunpack.c.l.b16 %v2075
    %v3368 = vunpack.c.h.b16 %v2075
    %v3369 = vunpack.c.l.b16 %v2076
    %v3370 = vunpack.c.h.b16 %v2076
    %v3371 = vunpack.c.l.b16 %v2077
    %v3372 = vunpack.c.h.b16 %v2077
    %v3373 = vunpack.c.l.b16 %v2078
    %v3374 = vunpack.c.h.b16 %v2078
    %v3375 = vunpack.c.l.b16 %v2079
    %v3376 = vunpack.c.h.b16 %v2079
    %v3377 = vunpack.c.l.b16 %v2080
    %v3378 = vunpack.c.h.b16 %v2080
    %v3379 = vunpack.c.l.b16 %v2081
    %v3380 = vunpack.c.h.b16 %v2081
    %v3381 = vunpack.c.l.b16 %v2082
    %v3382 = vunpack.c.h.b16 %v2082
    %v3383 = vunpack.c.l.b16 %v2083
    %v3384 = vunpack.c.h.b16 %v2083
    %v3385 = vunpack.c.l.b16 %v2084
    %v3386 = vunpack.c.h.b16 %v2084
    %v3387 = vunpack.c.l.b16 %v2085
    %v3388 = vunpack.c.h.b16 %v2085
    %v3389 = vunpack.c.l.b16 %v2086
    %v3390 = vunpack.c.h.b16 %v2086
    %v3391 = vunpack.c.l.b16 %v2087
    %v3392 = vunpack.c.h.b16 %v2087
    %v3393 = vunpack.c.l.b16 %v2088
    %v3394 = vunpack.c.h.b16 %v2088
    %v3395 = vunpack.c.l.b16 %v2089
    %v3396 = vunpack.c.h.b16 %v2089
    %v3397 = vunpack.c.l.b16 %v2090
    %v3398 = vunpack.c.h.b16 %v2090
    %v3399 = vunpack.c.l.b16 %v2091
    %v3400 = vunpack.c.h.b16 %v2091
    %v3401 = vunpack.c.l.b16 %v2092
    %v3402 = vunpack.c.h.b16 %v2092
    %v3403 = vunpack.c.l.b16 %v2093
    %v3404 = vunpack.c.h.b16 %v2093
    %v3405 = vunpack.c.l.b16 %v2094
    %v3406 = vunpack.c.h.b16 %v2094
    %v3407 = vunpack.c.l.b16 %v2095
    %v3408 = vunpack.c.h.b16 %v2095
    %v3409 = vunpack.c.l.b16 %v2096
    %v3410 = vunpack.c.h.b16 %v2096
    %v3411 = vunpack.c.l.b16 %v2097
    %v3412 = vunpack.c.h.b16 %v2097
    %v3413 = vunpack.c.l.b16 %v2098
    %v3414 = vunpack.c.h.b16 %v2098
    %v3415 = vunpack.c.l.b16 %v2099
    %v3416 = vunpack.c.h.b16 %v2099
    %v3417 = vunpack.c.l.b16 %v2100
    %v3418 = vunpack.c.h.b16 %v2100
    %v3419 = vunpack.c.l.b16 %v2101
    %v3420 = vunpack.c.h.b16 %v2101
    %v3421 = vunpack.c.l.b16 %v2102
    %v3422 = vunpack.c.h.b16 %v2102
    %v3423 = vunpack.c.l.b16 %v2103
    %v3424 = vunpack.c.h.b16 %v2103
    %v3425 = vunpack.c.l.b16 %v2104
    %v3426 = vunpack.c.h.b16 %v2104
    %v3427 = vunpack.c.l.b16 %v2105
    %v3428 = vunpack.c.h.b16 %v2105
    %v3429 = vunpack.c.l.b16 %v2106
    %v3430 = vunpack.c.h.b16 %v2106
    %v3431 = vunpack.c.l.b16 %v2107
    %v3432 = vunpack.c.h.b16 %v2107
    %v3433 = vunpack.c.l.b16 %v2108
    %v3434 = vunpack.c.h.b16 %v2108
    %v3435 = vunpack.c.l.b16 %v2109
    %v3436 = vunpack.c.h.b16 %v2109
    %v3437 = vunpack.c.l.b16 %v2110
    %v3438 = vunpack.c.h.b16 %v2110
    %v3439 = vunpack.c.l.b16 %v2111
    %v3440 = vunpack.c.h.b16 %v2111
    %v3441 = vunpack.c.l.b16 %v2112
    %v3442 = vunpack.c.h.b16 %v2112
    %v3443 = vunpack.c.l.b16 %v2113
    %v3444 = vunpack.c.h.b16 %v2113
    %v3445 = vunpack.c.l.b16 %v2114
    %v3446 = vunpack.c.h.b16 %v2114
    %v3447 = vunpack.c.l.b16 %v2115
    %v3448 = vunpack.c.h.b16 %v2115
    %v3449 = vunpack.c.l.b16 %v2116
    %v3450 = vunpack.c.h.b16 %v2116
    %v3451 = vunpack.c.l.b16 %v2117
    %v3452 = vunpack.c.h.b16 %v2117
    %v3453 = vunpack.c.l.b16 %v2118
    %v3454 = vunpack.c.h.b16 %v2118
    %v3455 = vunpack.c.l.b16 %v2119
    %v3456 = vunpack.c.h.b16 %v2119
    %v3457 = vunpack.c.l.b16 %v2120
    %v3458 = vunpack.c.h.b16 %v2120
    %v3459 = vunpack.c.l.b16 %v2121
    %v3460 = vunpack.c.h.b16 %v2121
    %v3461 = vunpack.c.l.b16 %v2122
    %v3462 = vunpack.c.h.b16 %v2122
    %v3463 = vunpack.c.l.b16 %v2123
    %v3464 = vunpack.c.h.b16 %v2123
    %v3465 = vunpack.c.l.b16 %v2124
    %v3466 = vunpack.c.h.b16 %v2124
    %v3467 = vunpack.c.l.b16 %v2125
    %v3468 = vunpack.c.h.b16 %v2125
    %v3469 = vunpack.c.l.b16 %v2126
    %v3470 = vunpack.c.h.b16 %v2126
    %v3471 = vunpack.c.l.b16 %v2127
    %v3472 = vunpack.c.h.b16 %v2127
    %v3473 = vunpack.c.l.b16 %v2128
    %v3474 = vunpack.c.h.b16 %v2128
    %v3475 = vunpack.c.l.b16 %v2129
    %v3476 = vunpack.c.h.b16 %v2129
    %v3477 = vunpack.c.l.b16 %v2130
    %v3478 = vunpack.c.h.b16 %v2130
    %v3479 = vunpack.c.l.b16 %v2131
    %v3480 = vunpack.c.h.b16 %v2131
    %v3481 = vunpack.c.l.b16 %v2132
    %v3482 = vunpack.c.h.b16 %v2132
    %v3483 = vunpack.c.l.b16 %v2133
    %v3484 = vunpack.c.h.b16 %v2133
    %v3485 = vunpack.c.l.b16 %v2134
    %v3486 = vunpack.c.h.b16 %v2134
    %v3487 = vunpack.c.l.b16 %v2135
    %v3488 = vunpack.c.h.b16 %v2135
    %v3489 = vunpack.c.l.b16 %v2136
    %v3490 = vunpack.c.h.b16 %v2136
    %v3491 = vunpack.c.l.b16 %v2137
    %v3492 = vunpack.c.h.b16 %v2137
    %v3493 = vunpack.c.l.b16 %v2138
    %v3494 = vunpack.c.h.b16 %v2138
    %v3495 = vunpack.c.l.b16 %v2139
    %v3496 = vunpack.c.h.b16 %v2139
    %v3497 = vunpack.c.l.b16 %v2140
    %v3498 = vunpack.c.h.b16 %v2140
    %v3499 = vunpack.c.l.b16 %v2141
    %v3500 = vunpack.c.h.b16 %v2141
    %v3501 = vunpack.c.l.b16 %v2142
    %v3502 = vunpack.c.h.b16 %v2142
    %v3503 = vunpack.c.l.b16 %v2143
    %v3504 = vunpack.c.h.b16 %v2143
    %v3505 = vunpack.c.l.b16 %v2144
    %v3506 = vunpack.c.h.b16 %v2144
    %v3507 = vunpack.c.l.b16 %v2145
    %v3508 = vunpack.c.h.b16 %v2145
    %v3509 = vunpack.c.l.b16 %v2146
    %v3510 = vunpack.c.h.b16 %v2146
    %v3511 = vunpack.c.l.b16 %v2147
    %v3512 = vunpack.c.h.b16 %v2147
    %v3513 = vunpack.c.l.b16 %v2148
    %v3514 = vunpack.c.h.b16 %v2148
    %v3515 = vunpack.c.l.b16 %v2149
    %v3516 = vunpack.c.h.b16 %v2149
    %v3517 = vunpack.c.l.b16 %v2150
    %v3518 = vunpack.c.h.b16 %v2150
    %v3519 = vunpack.c.l.b16 %v2151
    %v3520 = vunpack.c.h.b16 %v2151
    %v3521 = vunpack.c.l.b16 %v2152
    %v3522 = vunpack.c.h.b16 %v2152
    %v3523 = vunpack.c.l.b16 %v2153
    %v3524 = vunpack.c.h.b16 %v2153
    %v3525 = vunpack.c.l.b16 %v2154
    %v3526 = vunpack.c.h.b16 %v2154
    %v3527 = vunpack.c.l.b16 %v2155
    %v3528 = vunpack.c.h.b16 %v2155
    %v3529 = vunpack.c.l.b16 %v2156
    %v3530 = vunpack.c.h.b16 %v2156
    %v3531 = vunpack.c.l.b16 %v2157
    %v3532 = vunpack.c.h.b16 %v2157
    %v3533 = vunpack.c.l.b16 %v2158
    %v3534 = vunpack.c.h.b16 %v2158
    %v3535 = vunpack.c.l.b16 %v2159
    %v3536 = vunpack.c.h.b16 %v2159
    %v3537 = vunpack.c.l.b16 %v2160
    %v3538 = vunpack.c.h.b16 %v2160
    %v3539 = vunpack.c.l.b16 %v2161
    %v3540 = vunpack.c.h.b16 %v2161
    %v3541 = vunpack.c.l.b16 %v2162
    %v3542 = vunpack.c.h.b16 %v2162
    %v3543 = vunpack.c.l.b16 %v2163
    %v3544 = vunpack.c.h.b16 %v2163
    %v3545 = vunpack.c.l.b16 %v2164
    %v3546 = vunpack.c.h.b16 %v2164
    %v3547 = vunpack.c.l.b16 %v2165
    %v3548 = vunpack.c.h.b16 %v2165
    %v3549 = vunpack.c.l.b16 %v2166
    %v3550 = vunpack.c.h.b16 %v2166
    %v3551 = vunpack.c.l.b16 %v2167
    %v3552 = vunpack.c.h.b16 %v2167
    %v3553 = vunpack.c.l.b16 %v2168
    %v3554 = vunpack.c.h.b16 %v2168
    %v3555 = vunpack.c.l.b16 %v2169
    %v3556 = vunpack.c.h.b16 %v2169
    %v3557 = vunpack.c.l.b16 %v2170
    %v3558 = vunpack.c.h.b16 %v2170
    %v3559 = vunpack.c.l.b16 %v2171
    %v3560 = vunpack.c.h.b16 %v2171
    %v3561 = vunpack.c.l.b16 %v2172
    %v3562 = vunpack.c.h.b16 %v2172
    %v3563 = vunpack.c.l.b16 %v2173
    %v3564 = vunpack.c.h.b16 %v2173
    %v3565 = vunpack.c.l.b16 %v2174
    %v3566 = vunpack.c.h.b16 %v2174
    %v3567 = vunpack.c.l.b16 %v2175
    %v3568 = vunpack.c.h.b16 %v2175
    %v3569 = vunpack.c.l.b16 %v2176
    %v3570 = vunpack.c.h.b16 %v2176
    %v3571 = vunpack.c.l.b16 %v2177
    %v3572 = vunpack.c.h.b16 %v2177
    %v3573 = vunpack.c.l.b16 %v2178
    %v3574 = vunpack.c.h.b16 %v2178
    %v3575 = vunpack.c.l.b16 %v2179
    %v3576 = vunpack.c.h.b16 %v2179
    %v3577 = vunpack.c.l.b16 %v2180
    %v3578 = vunpack.c.h.b16 %v2180
    %v3579 = vunpack.c.l.b16 %v2181
    %v3580 = vunpack.c.h.b16 %v2181
    %v3581 = vunpack.c.l.b16 %v2182
    %v3582 = vunpack.c.h.b16 %v2182
    %v3583 = vunpack.c.l.b16 %v2183
    %v3584 = vunpack.c.h.b16 %v2183
    %v3585 = vunpack.c.l.b16 %v2184
    %v3586 = vunpack.c.h.b16 %v2184
    %v3587 = vunpack.c.l.b16 %v2185
    %v3588 = vunpack.c.h.b16 %v2185
    %v3589 = vunpack.c.l.b16 %v2186
    %v3590 = vunpack.c.h.b16 %v2186
    %v3591 = vunpack.c.l.b16 %v2187
    %v3592 = vunpack.c.h.b16 %v2187
    %v3593 = vunpack.c.l.b16 %v2188
    %v3594 = vunpack.c.h.b16 %v2188
    %v3595 = vunpack.c.l.b16 %v2189
    %v3596 = vunpack.c.h.b16 %v2189
    %v3597 = vunpack.c.l.b16 %v2190
    %v3598 = vunpack.c.h.b16 %v2190
    %v3599 = vunpack.c.l.b16 %v2191
    %v3600 = vunpack.c.h.b16 %v2191
    %v3601 = vunpack.c.l.b16 %v2192
    %v3602 = vunpack.c.h.b16 %v2192
    %v3603 = vunpack.c.l.b16 %v2193
    %v3604 = vunpack.c.h.b16 %v2193
    %v3605 = vunpack.c.l.b16 %v2194
    %v3606 = vunpack.c.h.b16 %v2194
    %v3607 = vunpack.c.l.b16 %v2195
    %v3608 = vunpack.c.h.b16 %v2195
    %v3609 = vunpack.c.l.b16 %v2196
    %v3610 = vunpack.c.h.b16 %v2196
    %v3611 = vunpack.c.l.b16 %v2197
    %v3612 = vunpack.c.h.b16 %v2197
    %v3613 = vunpack.c.l.b16 %v2198
    %v3614 = vunpack.c.h.b16 %v2198
    %v3615 = vunpack.c.l.b16 %v2199
    %v3616 = vunpack.c.h.b16 %v2199
    %v3617 = vunpack.c.l.b16 %v2200
    %v3618 = vunpack.c.h.b16 %v2200
    %v3619 = vunpack.c.l.b16 %v2201
    %v3620 = vunpack.c.h.b16 %v2201
    %v3621 = vunpack.c.l.b16 %v2202
    %v3622 = vunpack.c.h.b16 %v2202
    %v3623 = vunpack.c.l.b16 %v2203
    %v3624 = vunpack.c.h.b16 %v2203
    %v3625 = vunpack.c.l.b16 %v2204
    %v3626 = vunpack.c.h.b16 %v2204
    %v3627 = vunpack.c.l.b16 %v2205
    %v3628 = vunpack.c.h.b16 %v2205
    %v3629 = vunpack.c.l.b16 %v2206
    %v3630 = vunpack.c.h.b16 %v2206
    %v3631 = vunpack.c.l.b16 %v2207
    %v3632 = vunpack.c.h.b16 %v2207
    %v3633 = vunpack.c.l.b16 %v2208
    %v3634 = vunpack.c.h.b16 %v2208
    %v3635 = vunpack.c.l.b16 %v2209
    %v3636 = vunpack.c.h.b16 %v2209
    %v3637 = vunpack.c.l.b16 %v2210
    %v3638 = vunpack.c.h.b16 %v2210
    %v3639 = vunpack.c.l.b16 %v2211
    %v3640 = vunpack.c.h.b16 %v2211
    %v3641 = vunpack.c.l.b16 %v2212
    %v3642 = vunpack.c.h.b16 %v2212
    %v3643 = vunpack.c.l.b16 %v2213
    %v3644 = vunpack.c.h.b16 %v2213
    %v3645 = vunpack.c.l.b16 %v2214
    %v3646 = vunpack.c.h.b16 %v2214
    %v3647 = vunpack.c.l.b16 %v2215
    %v3648 = vunpack.c.h.b16 %v2215
    %v3649 = vunpack.c.l.b16 %v2216
    %v3650 = vunpack.c.h.b16 %v2216
    %v3651 = vunpack.c.l.b16 %v2217
    %v3652 = vunpack.c.h.b16 %v2217
    %v3653 = vunpack.c.l.b16 %v2218
    %v3654 = vunpack.c.h.b16 %v2218
    %v3655 = vunpack.c.l.b16 %v2219
    %v3656 = vunpack.c.h.b16 %v2219
    %v3657 = vunpack.c.l.b16 %v2220
    %v3658 = vunpack.c.h.b16 %v2220
    %v3659 = vunpack.c.l.b16 %v2221
    %v3660 = vunpack.c.h.b16 %v2221
    %v3661 = vunpack.c.l.b16 %v2222
    %v3662 = vunpack.c.h.b16 %v2222
    %v3663 = vunpack.c.l.b16 %v2223
    %v3664 = vunpack.c.h.b16 %v2223
    %v3665 = vunpack.c.l.b16 %v2224
    %v3666 = vunpack.c.h.b16 %v2224
    %v3667 = vunpack.c.l.b16 %v2225
    %v3668 = vunpack.c.h.b16 %v2225
    %v3669 = vunpack.c.l.b16 %v2226
    %v3670 = vunpack.c.h.b16 %v2226
    %v3671 = vunpack.c.l.b16 %v2227
    %v3672 = vunpack.c.h.b16 %v2227
    %v3673 = vunpack.c.l.b16 %v2228
    %v3674 = vunpack.c.h.b16 %v2228
    %v3675 = vunpack.c.l.b16 %v2229
    %v3676 = vunpack.c.h.b16 %v2229
    %v3677 = vunpack.c.l.b16 %v2230
    %v3678 = vunpack.c.h.b16 %v2230
    %v3679 = vunpack.c.l.b16 %v2231
    %v3680 = vunpack.c.h.b16 %v2231
    %v3681 = vunpack.c.l.b16 %v2232
    %v3682 = vunpack.c.h.b16 %v2232
    %v3683 = vunpack.c.l.b16 %v2233
    %v3684 = vunpack.c.h.b16 %v2233
    %v3685 = vunpack.c.l.b16 %v2234
    %v3686 = vunpack.c.h.b16 %v2234
    %v3687 = vunpack.c.l.b16 %v2235
    %v3688 = vunpack.c.h.b16 %v2235
    %v3689 = vunpack.c.l.b16 %v2236
    %v3690 = vunpack.c.h.b16 %v2236
    %v3691 = vunpack.c.l.b16 %v2237
    %v3692 = vunpack.c.h.b16 %v2237
    %v3693 = vunpack.c.l.b16 %v2238
    %v3694 = vunpack.c.h.b16 %v2238
    %v3695 = vunpack.c.l.b16 %v2239
    %v3696 = vunpack.c.h.b16 %v2239
    %v3697 = vunpack.c.l.b16 %v2240
    %v3698 = vunpack.c.h.b16 %v2240
    %v3699 = vunpack.c.l.b16 %v2241
    %v3700 = vunpack.c.h.b16 %v2241
    %v3701 = vunpack.c.l.b16 %v2242
    %v3702 = vunpack.c.h.b16 %v2242
    %v3703 = vunpack.c.l.b16 %v2243
    %v3704 = vunpack.c.h.b16 %v2243
    %v3705 = vunpack.c.l.b16 %v2244
    %v3706 = vunpack.c.h.b16 %v2244
    %v3707 = vunpack.c.l.b16 %v2245
    %v3708 = vunpack.c.h.b16 %v2245
    %v3709 = vunpack.c.l.b16 %v2246
    %v3710 = vunpack.c.h.b16 %v2246
    %v3711 = vunpack.c.l.b16 %v2247
    %v3712 = vunpack.c.h.b16 %v2247
    %v3713 = vunpack.c.l.b16 %v2248
    %v3714 = vunpack.c.h.b16 %v2248
    %v3715 = vunpack.c.l.b16 %v2249
    %v3716 = vunpack.c.h.b16 %v2249
    %v3717 = vunpack.c.l.b16 %v2250
    %v3718 = vunpack.c.h.b16 %v2250
    %v3719 = vunpack.c.l.b16 %v2251
    %v3720 = vunpack.c.h.b16 %v2251
    %v3721 = vunpack.c.l.b16 %v2252
    %v3722 = vunpack.c.h.b16 %v2252
    %v3723 = vunpack.c.l.b16 %v2253
    %v3724 = vunpack.c.h.b16 %v2253
    %v3725 = vunpack.c.l.b16 %v2254
    %v3726 = vunpack.c.h.b16 %v2254
    %v3727 = vunpack.c.l.b16 %v2255
    %v3728 = vunpack.c.h.b16 %v2255
    %v3729 = vunpack.c.l.b16 %v2256
    %v3730 = vunpack.c.h.b16 %v2256
    %v3731 = vunpack.c.l.b16 %v2257
    %v3732 = vunpack.c.h.b16 %v2257
    %v3733 = vunpack.c.l.b16 %v2258
    %v3734 = vunpack.c.h.b16 %v2258
    %v3735 = vunpack.c.l.b16 %v2259
    %v3736 = vunpack.c.h.b16 %v2259
    %v3737 = vunpack.c.l.b16 %v2260
    %v3738 = vunpack.c.h.b16 %v2260
    %v3739 = vunpack.c.l.b16 %v2261
    %v3740 = vunpack.c.h.b16 %v2261
    %v3741 = vunpack.c.l.b16 %v2262
    %v3742 = vunpack.c.h.b16 %v2262
    %v3743 = vunpack.c.l.b16 %v2263
    %v3744 = vunpack.c.h.b16 %v2263
    %v3745 = vunpack.c.l.b16 %v2264
    %v3746 = vunpack.c.h.b16 %v2264
    %v3747 = vunpack.c.l.b16 %v2265
    %v3748 = vunpack.c.h.b16 %v2265
    %v3749 = vunpack.c.l.b16 %v2266
    %v3750 = vunpack.c.h.b16 %v2266
    %v3751 = vunpack.c.l.b16 %v2267
    %v3752 = vunpack.c.h.b16 %v2267
    %v3753 = vunpack.c.l.b16 %v2268
    %v3754 = vunpack.c.h.b16 %v2268
    %v3755 = vunpack.c.l.b16 %v2269
    %v3756 = vunpack.c.h.b16 %v2269
    %v3757 = vunpack.c.l.b16 %v2270
    %v3758 = vunpack.c.h.b16 %v2270
    %v3759 = vunpack.c.l.b16 %v2271
    %v3760 = vunpack.c.h.b16 %v2271
    %v3761 = vunpack.c.l.b16 %v2272
    %v3762 = vunpack.c.h.b16 %v2272
    %v3763 = vunpack.c.l.b16 %v2273
    %v3764 = vunpack.c.h.b16 %v2273
    %v3765 = vunpack.c.l.b16 %v2274
    %v3766 = vunpack.c.h.b16 %v2274
    %v3767 = vunpack.c.l.b16 %v2275
    %v3768 = vunpack.c.h.b16 %v2275
    %v3769 = vunpack.c.l.b16 %v2276
    %v3770 = vunpack.c.h.b16 %v2276
    %v3771 = vunpack.c.l.b16 %v2277
    %v3772 = vunpack.c.h.b16 %v2277
    %v3773 = vunpack.c.l.b16 %v2278
    %v3774 = vunpack.c.h.b16 %v2278
    %v3775 = vunpack.c.l.b16 %v2279
    %v3776 = vunpack.c.h.b16 %v2279
    %v3777 = vunpack.c.l.b16 %v2280
    %v3778 = vunpack.c.h.b16 %v2280
    %v3779 = vunpack.c.l.b16 %v2281
    %v3780 = vunpack.c.h.b16 %v2281
    %v3781 = vunpack.c.l.b16 %v2282
    %v3782 = vunpack.c.h.b16 %v2282
    %v3783 = vunpack.c.l.b16 %v2283
    %v3784 = vunpack.c.h.b16 %v2283
    %v3785 = vunpack.c.l.b16 %v2284
    %v3786 = vunpack.c.h.b16 %v2284
    %v3787 = vunpack.c.l.b16 %v2285
    %v3788 = vunpack.c.h.b16 %v2285
    %v3789 = vunpack.c.l.b16 %v2286
    %v3790 = vunpack.c.h.b16 %v2286
    %v3791 = vunpack.c.l.b16 %v2287
    %v3792 = vunpack.c.h.b16 %v2287
    %v3793 = vunpack.c.l.b16 %v2288
    %v3794 = vunpack.c.h.b16 %v2288
    %v3795 = vunpack.c.l.b16 %v2289
    %v3796 = vunpack.c.h.b16 %v2289
    %v3797 = vunpack.c.l.b16 %v2290
    %v3798 = vunpack.c.h.b16 %v2290
    %v3799 = vunpack.c.l.b16 %v2291
    %v3800 = vunpack.c.h.b16 %v2291
    %v3801 = vunpack.c.l.b16 %v2292
    %v3802 = vunpack.c.h.b16 %v2292
    %v3803 = vunpack.c.l.b16 %v2293
    %v3804 = vunpack.c.h.b16 %v2293
    %v3805 = vunpack.c.l.b16 %v2294
    %v3806 = vunpack.c.h.b16 %v2294
    %v3807 = vunpack.c.l.b16 %v2295
    %v3808 = vunpack.c.h.b16 %v2295
    %v3809 = vunpack.c.l.b16 %v2296
    %v3810 = vunpack.c.h.b16 %v2296
    %v3811 = vunpack.c.l.b16 %v2297
    %v3812 = vunpack.c.h.b16 %v2297
    %v3813 = vunpack.c.l.b16 %v2298
    %v3814 = vunpack.c.h.b16 %v2298
    %v3815 = vunpack.c.l.b16 %v2299
    %v3816 = vunpack.c.h.b16 %v2299
    %v3817 = vunpack.c.l.b16 %v2300
    %v3818 = vunpack.c.h.b16 %v2300
    %v3819 = vunpack.c.l.b16 %v2301
    %v3820 = vunpack.c.h.b16 %v2301
    %v3821 = vunpack.c.l.b16 %v2302
    %v3822 = vunpack.c.h.b16 %v2302
    %v3823 = vunpack.c.l.b16 %v2303
    %v3824 = vunpack.c.h.b16 %v2303
    %v3825 = vunpack.c.l.b16 %v2304
    %v3826 = vunpack.c.h.b16 %v2304
    %v3827 = vunpack.c.l.b16 %v2305
    %v3828 = vunpack.c.h.b16 %v2305
    %v3829 = vunpack.c.l.b16 %v2306
    %v3830 = vunpack.c.h.b16 %v2306
    %v3831 = vunpack.c.l.b16 %v2307
    %v3832 = vunpack.c.h.b16 %v2307
    %v3833 = vunpack.c.l.b16 %v2308
    %v3834 = vunpack.c.h.b16 %v2308
    %v3835 = vunpack.c.l.b16 %v2309
    %v3836 = vunpack.c.h.b16 %v2309
    %v3837 = vunpack.c.l.b16 %v2310
    %v3838 = vunpack.c.h.b16 %v2310
    %v3839 = vunpack.c.l.b16 %v2311
    %v3840 = vunpack.c.h.b16 %v2311
    %v3841 = vunpack.c.l.b16 %v2312
    %v3842 = vunpack.c.h.b16 %v2312
    %v3843 = vunpack.c.l.b16 %v2313
    %v3844 = vunpack.c.h.b16 %v2313
    %v3845 = vunpack.c.l.b16 %v2314
    %v3846 = vunpack.c.h.b16 %v2314
    %v3847 = vunpack.c.l.b16 %v2315
    %v3848 = vunpack.c.h.b16 %v2315
    %v3849 = vunpack.c.l.b16 %v2316
    %v3850 = vunpack.c.h.b16 %v2316
    %v3851 = vunpack.c.l.b16 %v2317
    %v3852 = vunpack.c.h.b16 %v2317
    %v3853 = vunpack.c.l.b16 %v2318
    %v3854 = vunpack.c.h.b16 %v2318
    %v3855 = vunpack.c.l.b16 %v2319
    %v3856 = vunpack.c.h.b16 %v2319
    %v3857 = vunpack.c.l.b16 %v2320
    %v3858 = vunpack.c.h.b16 %v2320
    %v3859 = vunpack.c.l.b16 %v2321
    %v3860 = vunpack.c.h.b16 %v2321
    %v3861 = vunpack.c.l.b16 %v2322
    %v3862 = vunpack.c.h.b16 %v2322
    %v3863 = vunpack.c.l.b16 %v2323
    %v3864 = vunpack.c.h.b16 %v2323
    %v3865 = vunpack.c.l.b16 %v2324
    %v3866 = vunpack.c.h.b16 %v2324
    %v3867 = vunpack.c.l.b16 %v2325
    %v3868 = vunpack.c.h.b16 %v2325
    %v3869 = vunpack.c.l.b16 %v2326
    %v3870 = vunpack.c.h.b16 %v2326
    %v3871 = vunpack.c.l.b16 %v2327
    %v3872 = vunpack.c.h.b16 %v2327
    %v3873 = vunpack.c.l.b16 %v2328
    %v3874 = vunpack.c.h.b16 %v2328
    %v3875 = vunpack.c.l.b16 %v2329
    %v3876 = vunpack.c.h.b16 %v2329
    %v3877 = vunpack.c.l.b16 %v2330
    %v3878 = vunpack.c.h.b16 %v2330
    %v3879 = vunpack.c.l.b16 %v2331
    %v3880 = vunpack.c.h.b16 %v2331
    %v3881 = vunpack.c.l.b16 %v2332
    %v3882 = vunpack.c.h.b16 %v2332
    %v3883 = vunpack.c.l.b16 %v2333
    %v3884 = vunpack.c.h.b16 %v2333
    %v3885 = vunpack.c.l.b16 %v2334
    %v3886 = vunpack.c.h.b16 %v2334
    %v3887 = vunpack.c.l.b16 %v2335
    %v3888 = vunpack.c.h.b16 %v2335
    %v3889 = vunpack.c.l.b16 %v2336
    %v3890 = vunpack.c.h.b16 %v2336
    %v3891 = vunpack.c.l.b16 %v2337
    %v3892 = vunpack.c.h.b16 %v2337
    %v3893 = vunpack.c.l.b16 %v2338
    %v3894 = vunpack.c.h.b16 %v2338
    %v3895 = vunpack.c.l.b16 %v2339
    %v3896 = vunpack.c.h.b16 %v2339
    %v3897 = vunpack.c.l.b16 %v2340
    %v3898 = vunpack.c.h.b16 %v2340
    %v3899 = vunpack.c.l.b16 %v2341
    %v3900 = vunpack.c.h.b16 %v2341
    %v3901 = vunpack.c.l.b16 %v2342
    %v3902 = vunpack.c.h.b16 %v2342
    %v3903 = vunpack.c.l.b16 %v2343
    %v3904 = vunpack.c.h.b16 %v2343
    %v3905 = vunpack.c.l.b16 %v2344
    %v3906 = vunpack.c.h.b16 %v2344
    %v3907 = vunpack.c.l.b16 %v2345
    %v3908 = vunpack.c.h.b16 %v2345
    %v3909 = vunpack.c.l.b16 %v2346
    %v3910 = vunpack.c.h.b16 %v2346
    %v3911 = vunpack.c.l.b16 %v2347
    %v3912 = vunpack.c.h.b16 %v2347
    %v3913 = vunpack.c.l.b16 %v2348
    %v3914 = vunpack.c.h.b16 %v2348
    %v3915 = vunpack.c.l.b16 %v2349
    %v3916 = vunpack.c.h.b16 %v2349
    %v3917 = vunpack.c.l.b16 %v2350
    %v3918 = vunpack.c.h.b16 %v2350
    %v3919 = vunpack.c.l.b16 %v2351
    %v3920 = vunpack.c.h.b16 %v2351
    %v3921 = vunpack.c.l.b16 %v2352
    %v3922 = vunpack.c.h.b16 %v2352
    %v3923 = vunpack.c.l.b16 %v2353
    %v3924 = vunpack.c.h.b16 %v2353
    %v3925 = vunpack.c.l.b16 %v2354
    %v3926 = vunpack.c.h.b16 %v2354
    %v3927 = vunpack.c.l.b16 %v2355
    %v3928 = vunpack.c.h.b16 %v2355
    %v3929 = vunpack.c.l.b16 %v2356
    %v3930 = vunpack.c.h.b16 %v2356
    %v3931 = vunpack.c.l.b16 %v2357
    %v3932 = vunpack.c.h.b16 %v2357
    %v3933 = vunpack.c.l.b16 %v2358
    %v3934 = vunpack.c.h.b16 %v2358
    %v3935 = vunpack.c.l.b16 %v2359
    %v3936 = vunpack.c.h.b16 %v2359
    %v3937 = vunpack.c.l.b16 %v2360
    %v3938 = vunpack.c.h.b16 %v2360
    %v3939 = vunpack.c.l.b16 %v2361
    %v3940 = vunpack.c.h.b16 %v2361
    %v3941 = vunpack.c.l.b16 %v2362
    %v3942 = vunpack.c.h.b16 %v2362
    %v3943 = vunpack.c.l.b16 %v2363
    %v3944 = vunpack.c.h.b16 %v2363
    %v3945 = vunpack.c.l.b16 %v2364
    %v3946 = vunpack.c.h.b16 %v2364
    %v3947 = vunpack.c.l.b16 %v2365
    %v3948 = vunpack.c.h.b16 %v2365
    %v3949 = vunpack.c.l.b16 %v2366
    %v3950 = vunpack.c.h.b16 %v2366
    %v3951 = vunpack.c.l.b16 %v2367
    %v3952 = vunpack.c.h.b16 %v2367
    %v3953 = vunpack.c.l.b16 %v2368
    %v3954 = vunpack.c.h.b16 %v2368
    %v3955 = vunpack.c.l.b16 %v2369
    %v3956 = vunpack.c.h.b16 %v2369
    %v3957 = vunpack.c.l.b16 %v2370
    %v3958 = vunpack.c.h.b16 %v2370
    %v3959 = vunpack.c.l.b16 %v2371
    %v3960 = vunpack.c.h.b16 %v2371
    %v3961 = vunpack.c.l.b16 %v2372
    %v3962 = vunpack.c.h.b16 %v2372
    %v3963 = vunpack.c.l.b16 %v2373
    %v3964 = vunpack.c.h.b16 %v2373
    %v3965 = vunpack.c.l.b16 %v2374
    %v3966 = vunpack.c.h.b16 %v2374
    %v3967 = vunpack.c.l.b16 %v2375
    %v3968 = vunpack.c.h.b16 %v2375
    %v3969 = vunpack.c.l.b16 %v2376
    %v3970 = vunpack.c.h.b16 %v2376
    %v3971 = vunpack.c.l.b16 %v2377
    %v3972 = vunpack.c.h.b16 %v2377
    %v3973 = vunpack.c.l.b16 %v2378
    %v3974 = vunpack.c.h.b16 %v2378
    %v3975 = vunpack.c.l.b16 %v2379
    %v3976 = vunpack.c.h.b16 %v2379
    %v3977 = vunpack.c.l.b16 %v2380
    %v3978 = vunpack.c.h.b16 %v2380
    %v3979 = vunpack.c.l.b16 %v2381
    %v3980 = vunpack.c.h.b16 %v2381
    %v3981 = vunpack.c.l.b16 %v2382
    %v3982 = vunpack.c.h.b16 %v2382
    %v3983 = vunpack.c.l.b16 %v2383
    %v3984 = vunpack.c.h.b16 %v2383
    %v3985 = vunpack.c.l.b16 %v2384
    %v3986 = vunpack.c.h.b16 %v2384
    %v3987 = vunpack.c.l.b16 %v2385
    %v3988 = vunpack.c.h.b16 %v2385
    %v3989 = vunpack.c.l.b16 %v2386
    %v3990 = vunpack.c.h.b16 %v2386
    %v3991 = vunpack.c.l.b16 %v2387
    %v3992 = vunpack.c.h.b16 %v2387
    %v3993 = vunpack.c.l.b16 %v2388
    %v3994 = vunpack.c.h.b16 %v2388
    %v3995 = vunpack.c.l.b16 %v2389
    %v3996 = vunpack.c.h.b16 %v2389
    %v3997 = vunpack.c.l.b16 %v2390
    %v3998 = vunpack.c.h.b16 %v2390
    %v3999 = vunpack.c.l.b16 %v2391
    %v4000 = vunpack.c.h.b16 %v2391
    %v4001 = vunpack.c.l.b16 %v2392
    %v4002 = vunpack.c.h.b16 %v2392
    %v4003 = vunpack.c.l.b16 %v2393
    %v4004 = vunpack.c.h.b16 %v2393
    %v4005 = vunpack.c.l.b16 %v2394
    %v4006 = vunpack.c.h.b16 %v2394
    %v4007 = vunpack.c.l.b16 %v2395
    %v4008 = vunpack.c.h.b16 %v2395
    %v4009 = vunpack.c.l.b16 %v2396
    %v4010 = vunpack.c.h.b16 %v2396
    %v4011 = vunpack.c.l.b16 %v2397
    %v4012 = vunpack.c.h.b16 %v2397
    %v4013 = vunpack.c.l.b16 %v2398
    %v4014 = vunpack.c.h.b16 %v2398
    %v4015 = vunpack.c.l.b16 %v2399
    %v4016 = vunpack.c.h.b16 %v2399
    %v4017 = vunpack.c.l.b16 %v2400
    %v4018 = vunpack.c.h.b16 %v2400
    %v4019 = vunpack.c.l.b16 %v2401
    %v4020 = vunpack.c.h.b16 %v2401
    %v4021 = vunpack.c.l.b16 %v2402
    %v4022 = vunpack.c.h.b16 %v2402
    %v4023 = vunpack.c.l.b16 %v2403
    %v4024 = vunpack.c.h.b16 %v2403
    %v4025 = vunpack.c.l.b16 %v2404
    %v4026 = vunpack.c.h.b16 %v2404
    %v4027 = vpack.c.b16 %v3019, %v3003
    %v4028 = vpack.c.b16 %v3020, %v3004
    %v4029 = vpack.c.b16 %v3021, %v3005
    %v4030 = vpack.c.b16 %v3022, %v3006
    %v4031 = vpack.c.b16 %v3023, %v3007
    %v4032 = vpack.c.b16 %v3024, %v3008
    %v4033 = vpack.c.b16 %v3025, %v3009
    %v4034 = vpack.c.b16 %v3026, %v3010
    %v4035 = vpack.c.b16 %v3027, %v3011
    %v4036 = vpack.c.b16 %v3028, %v3012
    %v4037 = vpack.c.b16 %v3029, %v3013
    %v4038 = vpack.c.b16 %v3030, %v3014
    %v4039 = vpack.c.b16 %v3031, %v3015
    %v4040 = vpack.c.b16 %v3032, %v3016
    %v4041 = vpack.c.b16 %v3033, %v3017
    %v4042 = vpack.c.b16 %v3034, %v3018
    %v4043 = vpack.c.b16 %v3051, %v3035
    %v4044 = vpack.c.b16 %v3052, %v3036
    %v4045 = vpack.c.b16 %v3053, %v3037
    %v4046 = vpack.c.b16 %v3054, %v3038
    %v4047 = vpack.c.b16 %v3055, %v3039
    %v4048 = vpack.c.b16 %v3056, %v3040
    %v4049 = vpack.c.b16 %v3057, %v3041
    %v4050 = vpack.c.b16 %v3058, %v3042
    %v4051 = vpack.c.b16 %v3059, %v3043
    %v4052 = vpack.c.b16 %v3060, %v3044
    %v4053 = vpack.c.b16 %v3061, %v3045
    %v4054 = vpack.c.b16 %v3062, %v3046
    %v4055 = vpack.c.b16 %v3063, %v3047
    %v4056 = vpack.c.b16 %v3064, %v3048
    %v4057 = vpack.c.b16 %v3065, %v3049
    %v4058 = vpack.c.b16 %v3066, %v3050
    %v4059 = vpack.c.b16 %v3083, %v3067
    %v4060 = vpack.c.b16 %v3084, %v3068
    %v4061 = vpack.c.b16 %v3085, %v3069
    %v4062 = vpack.c.b16 %v3086, %v3070
    %v4063 = vpack.c.b16 %v3087, %v3071
    %v4064 = vpack.c.b16 %v3088, %v3072
    %v4065 = vpack.c.b16 %v3089, %v3073
    %v4066 = vpack.c.b16 %v3090, %v3074
    %v4067 = vpack.c.b16 %v3091, %v3075
    %v4068 = vpack.c.b16 %v3092, %v3076
    %v4069 = vpack.c.b16 %v3093, %v3077
    %v4070 = vpack.c.b16 %v3094, %v3078
    %v4071 = vpack.c.b16 %v3095, %v3079
    %v4072 = vpack.c.b16 %v3096, %v3080
    %v4073 = vpack.c.b16 %v3097, %v3081
    %v4074 = vpack.c.b16 %v3098, %v3082
    %v4075 = vpack.c.b16 %v3115, %v3099
    %v4076 = vpack.c.b16 %v3116, %v3100
    %v4077 = vpack.c.b16 %v3117, %v3101
    %v4078 = vpack.c.b16 %v3118, %v3102
    %v4079 = vpack.c.b16 %v3119, %v3103
    %v4080 = vpack.c.b16 %v3120, %v3104
    %v4081 = vpack.c.b16 %v3121, %v3105
    %v4082 = vpack.c.b16 %v3122, %v3106
    %v4083 = vpack.c.b16 %v3123, %v3107
    %v4084 = vpack.c.b16 %v3124, %v3108
    %v4085 = vpack.c.b16 %v3125, %v3109
    %v4086 = vpack.c.b16 %v3126, %v3110
    %v4087 = vpack.c.b16 %v3127, %v3111
    %v4088 = vpack.c.b16 %v3128, %v3112
    %v4089 = vpack.c.b16 %v3129, %v3113
    %v4090 = vpack.c.b16 %v3130, %v3114
    %v4091 = vpack.c.b16 %v3147, %v3131
    %v4092 = vpack.c.b16 %v3148, %v3132
    %v4093 = vpack.c.b16 %v3149, %v3133
    %v4094 = vpack.c.b16 %v3150, %v3134
    %v4095 = vpack.c.b16 %v3151, %v3135
    %v4096 = vpack.c.b16 %v3152, %v3136
    %v4097 = vpack.c.b16 %v3153, %v3137
    %v4098 = vpack.c.b16 %v3154, %v3138
    %v4099 = vpack.c.b16 %v3155, %v3139
    %v4100 = vpack.c.b16 %v3156, %v3140
    %v4101 = vpack.c.b16 %v3157, %v3141
    %v4102 = vpack.c.b16 %v3158, %v3142
    %v4103 = vpack.c.b16 %v3159, %v3143
    %v4104 = vpack.c.b16 %v3160, %v3144
    %v4105 = vpack.c.b16 %v3161, %v3145
    %v4106 = vpack.c.b16 %v3162, %v3146
    %v4107 = vpack.c.b16 %v3179, %v3163
    %v4108 = vpack.c.b16 %v3180, %v3164
    %v4109 = vpack.c.b16 %v3181, %v3165
    %v4110 = vpack.c.b16 %v3182, %v3166
    %v4111 = vpack.c.b16 %v3183, %v3167
    %v4112 = vpack.c.b16 %v3184, %v3168
    %v4113 = vpack.c.b16 %v3185, %v3169
    %v4114 = vpack.c.b16 %v3186, %v3170
    %v4115 = vpack.c.b16 %v3187, %v3171
    %v4116 = vpack.c.b16 %v3188, %v3172
    %v4117 = vpack.c.b16 %v3189, %v3173
    %v4118 = vpack.c.b16 %v3190, %v3174
    %v4119 = vpack.c.b16 %v3191, %v3175
    %v4120 = vpack.c.b16 %v3192, %v3176
    %v4121 = vpack.c.b16 %v3193, %v3177
    %v4122 = vpack.c.b16 %v3194, %v3178
    %v4123 = vpack.c.b16 %v3211, %v3195
    %v4124 = vpack.c.b16 %v3212, %v3196
    %v4125 = vpack.c.b16 %v3213, %v3197
    %v4126 = vpack.c.b16 %v3214, %v3198
    %v4127 = vpack.c.b16 %v3215, %v3199
    %v4128 = vpack.c.b16 %v3216, %v3200
    %v4129 = vpack.c.b16 %v3217, %v3201
    %v4130 = vpack.c.b16 %v3218, %v3202
    %v4131 = vpack.c.b16 %v3219, %v3203
    %v4132 = vpack.c.b16 %v3220, %v3204
    %v4133 = vpack.c.b16 %v3221, %v3205
    %v4134 = vpack.c.b16 %v3222, %v3206
    %v4135 = vpack.c.b16 %v3223, %v3207
    %v4136 = vpack.c.b16 %v3224, %v3208
    %v4137 = vpack.c.b16 %v3225, %v3209
    %v4138 = vpack.c.b16 %v3226, %v3210
    %v4139 = vpack.c.b16 %v3243, %v3227
    %v4140 = vpack.c.b16 %v3244, %v3228
    %v4141 = vpack.c.b16 %v3245, %v3229
    %v4142 = vpack.c.b16 %v3246, %v3230
    %v4143 = vpack.c.b16 %v3247, %v3231
    %v4144 = vpack.c.b16 %v3248, %v3232
    %v4145 = vpack.c.b16 %v3249, %v3233
    %v4146 = vpack.c.b16 %v3250, %v3234
    %v4147 = vpack.c.b16 %v3251, %v3235
    %v4148 = vpack.c.b16 %v3252, %v3236
    %v4149 = vpack.c.b16 %v3253, %v3237
    %v4150 = vpack.c.b16 %v3254, %v3238
    %v4151 = vpack.c.b16 %v3255, %v3239
    %v4152 = vpack.c.b16 %v3256, %v3240
    %v4153 = vpack.c.b16 %v3257, %v3241
    %v4154 = vpack.c.b16 %v3258, %v3242
    %v4155 = vpack.c.b16 %v3275, %v3259
    %v4156 = vpack.c.b16 %v3276, %v3260
    %v4157 = vpack.c.b16 %v3277, %v3261
    %v4158 = vpack.c.b16 %v3278, %v3262
    %v4159 = vpack.c.b16 %v3279, %v3263
    %v4160 = vpack.c.b16 %v3280, %v3264
    %v4161 = vpack.c.b16 %v3281, %v3265
    %v4162 = vpack.c.b16 %v3282, %v3266
    %v4163 = vpack.c.b16 %v3283, %v3267
    %v4164 = vpack.c.b16 %v3284, %v3268
    %v4165 = vpack.c.b16 %v3285, %v3269
    %v4166 = vpack.c.b16 %v3286, %v3270
    %v4167 = vpack.c.b16 %v3287, %v3271
    %v4168 = vpack.c.b16 %v3288, %v3272
    %v4169 = vpack.c.b16 %v3289, %v3273
    %v4170 = vpack.c.b16 %v3290, %v3274
    %v4171 = vpack.c.b16 %v3307, %v3291
    %v4172 = vpack.c.b16 %v3308, %v3292
    %v4173 = vpack.c.b16 %v3309, %v3293
    %v4174 = vpack.c.b16 %v3310, %v3294
    %v4175 = vpack.c.b16 %v3311, %v3295
    %v4176 = vpack.c.b16 %v3312, %v3296
    %v4177 = vpack.c.b16 %v3313, %v3297
    %v4178 = vpack.c.b16 %v3314, %v3298
    %v4179 = vpack.c.b16 %v3315, %v3299
    %v4180 = vpack.c.b16 %v3316, %v3300
    %v4181 = vpack.c.b16 %v3317, %v3301
    %v4182 = vpack.c.b16 %v3318, %v3302
    %v4183 = vpack.c.b16 %v3319, %v3303
    %v4184 = vpack.c.b16 %v3320, %v3304
    %v4185 = vpack.c.b16 %v3321, %v3305
    %v4186 = vpack.c.b16 %v3322, %v3306
    %v4187 = vpack.c.b16 %v3339, %v3323
    %v4188 = vpack.c.b16 %v3340, %v3324
    %v4189 = vpack.c.b16 %v3341, %v3325
    %v4190 = vpack.c.b16 %v3342, %v3326
    %v4191 = vpack.c.b16 %v3343, %v3327
    %v4192 = vpack.c.b16 %v3344, %v3328
    %v4193 = vpack.c.b16 %v3345, %v3329
    %v4194 = vpack.c.b16 %v3346, %v3330
    %v4195 = vpack.c.b16 %v3347, %v3331
    %v4196 = vpack.c.b16 %v3348, %v3332
    %v4197 = vpack.c.b16 %v3349, %v3333
    %v4198 = vpack.c.b16 %v3350, %v3334
    %v4199 = vpack.c.b16 %v3351, %v3335
    %v4200 = vpack.c.b16 %v3352, %v3336
    %v4201 = vpack.c.b16 %v3353, %v3337
    %v4202 = vpack.c.b16 %v3354, %v3338
    %v4203 = vpack.c.b16 %v3371, %v3355
    %v4204 = vpack.c.b16 %v3372, %v3356
    %v4205 = vpack.c.b16 %v3373, %v3357
    %v4206 = vpack.c.b16 %v3374, %v3358
    %v4207 = vpack.c.b16 %v3375, %v3359
    %v4208 = vpack.c.b16 %v3376, %v3360
    %v4209 = vpack.c.b16 %v3377, %v3361
    %v4210 = vpack.c.b16 %v3378, %v3362
    %v4211 = vpack.c.b16 %v3379, %v3363
    %v4212 = vpack.c.b16 %v3380, %v3364
    %v4213 = vpack.c.b16 %v3381, %v3365
    %v4214 = vpack.c.b16 %v3382, %v3366
    %v4215 = vpack.c.b16 %v3383, %v3367
    %v4216 = vpack.c.b16 %v3384, %v3368
    %v4217 = vpack.c.b16 %v3385, %v3369
    %v4218 = vpack.c.b16 %v3386, %v3370
    %v4219 = vpack.c.b16 %v3403, %v3387
    %v4220 = vpack.c.b16 %v3404, %v3388
    %v4221 = vpack.c.b16 %v3405, %v3389
    %v4222 = vpack.c.b16 %v3406, %v3390
    %v4223 = vpack.c.b16 %v3407, %v3391
    %v4224 = vpack.c.b16 %v3408, %v3392
    %v4225 = vpack.c.b16 %v3409, %v3393
    %v4226 = vpack.c.b16 %v3410, %v3394
    %v4227 = vpack.c.b16 %v3411, %v3395
    %v4228 = vpack.c.b16 %v3412, %v3396
    %v4229 = vpack.c.b16 %v3413, %v3397
    %v4230 = vpack.c.b16 %v3414, %v3398
    %v4231 = vpack.c.b16 %v3415, %v3399
    %v4232 = vpack.c.b16 %v3416, %v3400
    %v4233 = vpack.c.b16 %v3417, %v3401
    %v4234 = vpack.c.b16 %v3418, %v3402
    %v4235 = vpack.c.b16 %v3435, %v3419
    %v4236 = vpack.c.b16 %v3436, %v3420
    %v4237 = vpack.c.b16 %v3437, %v3421
    %v4238 = vpack.c.b16 %v3438, %v3422
    %v4239 = vpack.c.b16 %v3439, %v3423
    %v4240 = vpack.c.b16 %v3440, %v3424
    %v4241 = vpack.c.b16 %v3441, %v3425
    %v4242 = vpack.c.b16 %v3442, %v3426
    %v4243 = vpack.c.b16 %v3443, %v3427
    %v4244 = vpack.c.b16 %v3444, %v3428
    %v4245 = vpack.c.b16 %v3445, %v3429
    %v4246 = vpack.c.b16 %v3446, %v3430
    %v4247 = vpack.c.b16 %v3447, %v3431
    %v4248 = vpack.c.b16 %v3448, %v3432
    %v4249 = vpack.c.b16 %v3449, %v3433
    %v4250 = vpack.c.b16 %v3450, %v3434
    %v4251 = vpack.c.b16 %v3467, %v3451
    %v4252 = vpack.c.b16 %v3468, %v3452
    %v4253 = vpack.c.b16 %v3469, %v3453
    %v4254 = vpack.c.b16 %v3470, %v3454
    %v4255 = vpack.c.b16 %v3471, %v3455
    %v4256 = vpack.c.b16 %v3472, %v3456
    %v4257 = vpack.c.b16 %v3473, %v3457
    %v4258 = vpack.c.b16 %v3474, %v3458
    %v4259 = vpack.c.b16 %v3475, %v3459
    %v4260 = vpack.c.b16 %v3476, %v3460
    %v4261 = vpack.c.b16 %v3477, %v3461
    %v4262 = vpack.c.b16 %v3478, %v3462
    %v4263 = vpack.c.b16 %v3479, %v3463
    %v4264 = vpack.c.b16 %v3480, %v3464
    %v4265 = vpack.c.b16 %v3481, %v3465
    %v4266 = vpack.c.b16 %v3482, %v3466
    %v4267 = vpack.c.b16 %v3499, %v3483
    %v4268 = vpack.c.b16 %v3500, %v3484
    %v4269 = vpack.c.b16 %v3501, %v3485
    %v4270 = vpack.c.b16 %v3502, %v3486
    %v4271 = vpack.c.b16 %v3503, %v3487
    %v4272 = vpack.c.b16 %v3504, %v3488
    %v4273 = vpack.c.b16 %v3505, %v3489
    %v4274 = vpack.c.b16 %v3506, %v3490
    %v4275 = vpack.c.b16 %v3507, %v3491
    %v4276 = vpack.c.b16 %v3508, %v3492
    %v4277 = vpack.c.b16 %v3509, %v3493
    %v4278 = vpack.c.b16 %v3510, %v3494
    %v4279 = vpack.c.b16 %v3511, %v3495
    %v4280 = vpack.c.b16 %v3512, %v3496
    %v4281 = vpack.c.b16 %v3513, %v3497
    %v4282 = vpack.c.b16 %v3514, %v3498
    %v4283 = vpack.c.b16 %v3531, %v3515
    %v4284 = vpack.c.b16 %v3532, %v3516
    %v4285 = vpack.c.b16 %v3533, %v3517
    %v4286 = vpack.c.b16 %v3534, %v3518
    %v4287 = vpack.c.b16 %v3535, %v3519
    %v4288 = vpack.c.b16 %v3536, %v3520
    %v4289 = vpack.c.b16 %v3537, %v3521
    %v4290 = vpack.c.b16 %v3538, %v3522
    %v4291 = vpack.c.b16 %v3539, %v3523
    %v4292 = vpack.c.b16 %v3540, %v3524
    %v4293 = vpack.c.b16 %v3541, %v3525
    %v4294 = vpack.c.b16 %v3542, %v3526
    %v4295 = vpack.c.b16 %v3543, %v3527
    %v4296 = vpack.c.b16 %v3544, %v3528
    %v4297 = vpack.c.b16 %v3545, %v3529
    %v4298 = vpack.c.b16 %v3546, %v3530
    %v4299 = vpack.c.b16 %v3563, %v3547
    %v4300 = vpack.c.b16 %v3564, %v3548
    %v4301 = vpack.c.b16 %v3565, %v3549
    %v4302 = vpack.c.b16 %v3566, %v3550
    %v4303 = vpack.c.b16 %v3567, %v3551
    %v4304 = vpack.c.b16 %v3568, %v3552
    %v4305 = vpack.c.b16 %v3569, %v3553
    %v4306 = vpack.c.b16 %v3570, %v3554
    %v4307 = vpack.c.b16 %v3571, %v3555
    %v4308 = vpack.c.b16 %v3572, %v3556
    %v4309 = vpack.c.b16 %v3573, %v3557
    %v4310 = vpack.c.b16 %v3574, %v3558
    %v4311 = vpack.c.b16 %v3575, %v3559
    %v4312 = vpack.c.b16 %v3576, %v3560
    %v4313 = vpack.c.b16 %v3577, %v3561
    %v4314 = vpack.c.b16 %v3578, %v3562
    %v4315 = vpack.c.b16 %v3595, %v3579
    %v4316 = vpack.c.b16 %v3596, %v3580
    %v4317 = vpack.c.b16 %v3597, %v3581
    %v4318 = vpack.c.b16 %v3598, %v3582
    %v4319 = vpack.c.b16 %v3599, %v3583
    %v4320 = vpack.c.b16 %v3600, %v3584
    %v4321 = vpack.c.b16 %v3601, %v3585
    %v4322 = vpack.c.b16 %v3602, %v3586
    %v4323 = vpack.c.b16 %v3603, %v3587
    %v4324 = vpack.c.b16 %v3604, %v3588
    %v4325 = vpack.c.b16 %v3605, %v3589
    %v4326 = vpack.c.b16 %v3606, %v3590
    %v4327 = vpack.c.b16 %v3607, %v3591
    %v4328 = vpack.c.b16 %v3608, %v3592
    %v4329 = vpack.c.b16 %v3609, %v3593
    %v4330 = vpack.c.b16 %v3610, %v3594
    %v4331 = vpack.c.b16 %v3627, %v3611
    %v4332 = vpack.c.b16 %v3628, %v3612
    %v4333 = vpack.c.b16 %v3629, %v3613
    %v4334 = vpack.c.b16 %v3630, %v3614
    %v4335 = vpack.c.b16 %v3631, %v3615
    %v4336 = vpack.c.b16 %v3632, %v3616
    %v4337 = vpack.c.b16 %v3633, %v3617
    %v4338 = vpack.c.b16 %v3634, %v3618
    %v4339 = vpack.c.b16 %v3635, %v3619
    %v4340 = vpack.c.b16 %v3636, %v3620
    %v4341 = vpack.c.b16 %v3637, %v3621
    %v4342 = vpack.c.b16 %v3638, %v3622
    %v4343 = vpack.c.b16 %v3639, %v3623
    %v4344 = vpack.c.b16 %v3640, %v3624
    %v4345 = vpack.c.b16 %v3641, %v3625
    %v4346 = vpack.c.b16 %v3642, %v3626
    %v4347 = vpack.c.b16 %v3659, %v3643
    %v4348 = vpack.c.b16 %v3660, %v3644
    %v4349 = vpack.c.b16 %v3661, %v3645
    %v4350 = vpack.c.b16 %v3662, %v3646
    %v4351 = vpack.c.b16 %v3663, %v3647
    %v4352 = vpack.c.b16 %v3664, %v3648
    %v4353 = vpack.c.b16 %v3665, %v3649
    %v4354 = vpack.c.b16 %v3666, %v3650
    %v4355 = vpack.c.b16 %v3667, %v3651
    %v4356 = vpack.c.b16 %v3668, %v3652
    %v4357 = vpack.c.b16 %v3669, %v3653
    %v4358 = vpack.c.b16 %v3670, %v3654
    %v4359 = vpack.c.b16 %v3671, %v3655
    %v4360 = vpack.c.b16 %v3672, %v3656
    %v4361 = vpack.c.b16 %v3673, %v3657
    %v4362 = vpack.c.b16 %v3674, %v3658
    %v4363 = vpack.c.b16 %v3691, %v3675
    %v4364 = vpack.c.b16 %v3692, %v3676
    %v4365 = vpack.c.b16 %v3693, %v3677
    %v4366 = vpack.c.b16 %v3694, %v3678
    %v4367 = vpack.c.b16 %v3695, %v3679
    %v4368 = vpack.c.b16 %v3696, %v3680
    %v4369 = vpack.c.b16 %v3697, %v3681
    %v4370 = vpack.c.b16 %v3698, %v3682
    %v4371 = vpack.c.b16 %v3699, %v3683
    %v4372 = vpack.c.b16 %v3700, %v3684
    %v4373 = vpack.c.b16 %v3701, %v3685
    %v4374 = vpack.c.b16 %v3702, %v3686
    %v4375 = vpack.c.b16 %v3703, %v3687
    %v4376 = vpack.c.b16 %v3704, %v3688
    %v4377 = vpack.c.b16 %v3705, %v3689
    %v4378 = vpack.c.b16 %v3706, %v3690
    %v4379 = vpack.c.b16 %v3723, %v3707
    %v4380 = vpack.c.b16 %v3724, %v3708
    %v4381 = vpack.c.b16 %v3725, %v3709
    %v4382 = vpack.c.b16 %v3726, %v3710
    %v4383 = vpack.c.b16 %v3727, %v3711
    %v4384 = vpack.c.b16 %v3728, %v3712
    %v4385 = vpack.c.b16 %v3729, %v3713
    %v4386 = vpack.c.b16 %v3730, %v3714
    %v4387 = vpack.c.b16 %v3731, %v3715
    %v4388 = vpack.c.b16 %v3732, %v3716
    %v4389 = vpack.c.b16 %v3733, %v3717
    %v4390 = vpack.c.b16 %v3734, %v3718
    %v4391 = vpack.c.b16 %v3735, %v3719
    %v4392 = vpack.c.b16 %v3736, %v3720
    %v4393 = vpack.c.b16 %v3737, %v3721
    %v4394 = vpack.c.b16 %v3738, %v3722
    %v4395 = vpack.c.b16 %v3755, %v3739
    %v4396 = vpack.c.b16 %v3756, %v3740
    %v4397 = vpack.c.b16 %v3757, %v3741
    %v4398 = vpack.c.b16 %v3758, %v3742
    %v4399 = vpack.c.b16 %v3759, %v3743
    %v4400 = vpack.c.b16 %v3760, %v3744
    %v4401 = vpack.c.b16 %v3761, %v3745
    %v4402 = vpack.c.b16 %v3762, %v3746
    %v4403 = vpack.c.b16 %v3763, %v3747
    %v4404 = vpack.c.b16 %v3764, %v3748
    %v4405 = vpack.c.b16 %v3765, %v3749
    %v4406 = vpack.c.b16 %v3766, %v3750
    %v4407 = vpack.c.b16 %v3767, %v3751
    %v4408 = vpack.c.b16 %v3768, %v3752
    %v4409 = vpack.c.b16 %v3769, %v3753
    %v4410 = vpack.c.b16 %v3770, %v3754
    %v4411 = vpack.c.b16 %v3787, %v3771
    %v4412 = vpack.c.b16 %v3788, %v3772
    %v4413 = vpack.c.b16 %v3789, %v3773
    %v4414 = vpack.c.b16 %v3790, %v3774
    %v4415 = vpack.c.b16 %v3791, %v3775
    %v4416 = vpack.c.b16 %v3792, %v3776
    %v4417 = vpack.c.b16 %v3793, %v3777
    %v4418 = vpack.c.b16 %v3794, %v3778
    %v4419 = vpack.c.b16 %v3795, %v3779
    %v4420 = vpack.c.b16 %v3796, %v3780
    %v4421 = vpack.c.b16 %v3797, %v3781
    %v4422 = vpack.c.b16 %v3798, %v3782
    %v4423 = vpack.c.b16 %v3799, %v3783
    %v4424 = vpack.c.b16 %v3800, %v3784
    %v4425 = vpack.c.b16 %v3801, %v3785
    %v4426 = vpack.c.b16 %v3802, %v3786
    %v4427 = vpack.c.b16 %v3819, %v3803
    %v4428 = vpack.c.b16 %v3820, %v3804
    %v4429 = vpack.c.b16 %v3821, %v3805
    %v4430 = vpack.c.b16 %v3822, %v3806
    %v4431 = vpack.c.b16 %v3823, %v3807
    %v4432 = vpack.c.b16 %v3824, %v3808
    %v4433 = vpack.c.b16 %v3825, %v3809
    %v4434 = vpack.c.b16 %v3826, %v3810
    %v4435 = vpack.c.b16 %v3827, %v3811
    %v4436 = vpack.c.b16 %v3828, %v3812
    %v4437 = vpack.c.b16 %v3829, %v3813
    %v4438 = vpack.c.b16 %v3830, %v3814
    %v4439 = vpack.c.b16 %v3831, %v3815
    %v4440 = vpack.c.b16 %v3832, %v3816
    %v4441 = vpack.c.b16 %v3833, %v3817
    %v4442 = vpack.c.b16 %v3834, %v3818
    %v4443 = vpack.c.b16 %v3851, %v3835
    %v4444 = vpack.c.b16 %v3852, %v3836
    %v4445 = vpack.c.b16 %v3853, %v3837
    %v4446 = vpack.c.b16 %v3854, %v3838
    %v4447 = vpack.c.b16 %v3855, %v3839
    %v4448 = vpack.c.b16 %v3856, %v3840
    %v4449 = vpack.c.b16 %v3857, %v3841
    %v4450 = vpack.c.b16 %v3858, %v3842
    %v4451 = vpack.c.b16 %v3859, %v3843
    %v4452 = vpack.c.b16 %v3860, %v3844
    %v4453 = vpack.c.b16 %v3861, %v3845
    %v4454 = vpack.c.b16 %v3862, %v3846
    %v4455 = vpack.c.b16 %v3863, %v3847
    %v4456 = vpack.c.b16 %v3864, %v3848
    %v4457 = vpack.c.b16 %v3865, %v3849
    %v4458 = vpack.c.b16 %v3866, %v3850
    %v4459 = vpack.c.b16 %v3883, %v3867
    %v4460 = vpack.c.b16 %v3884, %v3868
    %v4461 = vpack.c.b16 %v3885, %v3869
    %v4462 = vpack.c.b16 %v3886, %v3870
    %v4463 = vpack.c.b16 %v3887, %v3871
    %v4464 = vpack.c.b16 %v3888, %v3872
    %v4465 = vpack.c.b16 %v3889, %v3873
    %v4466 = vpack.c.b16 %v3890, %v3874
    %v4467 = vpack.c.b16 %v3891, %v3875
    %v4468 = vpack.c.b16 %v3892, %v3876
    %v4469 = vpack.c.b16 %v3893, %v3877
    %v4470 = vpack.c.b16 %v3894, %v3878
    %v4471 = vpack.c.b16 %v3895, %v3879
    %v4472 = vpack.c.b16 %v3896, %v3880
    %v4473 = vpack.c.b16 %v3897, %v3881
    %v4474 = vpack.c.b16 %v3898, %v3882
    %v4475 = vpack.c.b16 %v3915, %v3899
    %v4476 = vpack.c.b16 %v3916, %v3900
    %v4477 = vpack.c.b16 %v3917, %v3901
    %v4478 = vpack.c.b16 %v3918, %v3902
    %v4479 = vpack.c.b16 %v3919, %v3903
    %v4480 = vpack.c.b16 %v3920, %v3904
    %v4481 = vpack.c.b16 %v3921, %v3905
    %v4482 = vpack.c.b16 %v3922, %v3906
    %v4483 = vpack.c.b16 %v3923, %v3907
    %v4484 = vpack.c.b16 %v3924, %v3908
    %v4485 = vpack.c.b16 %v3925, %v3909
    %v4486 = vpack.c.b16 %v3926, %v3910
    %v4487 = vpack.c.b16 %v3927, %v3911
    %v4488 = vpack.c.b16 %v3928, %v3912
    %v4489 = vpack.c.b16 %v3929, %v3913
    %v4490 = vpack.c.b16 %v3930, %v3914
    %v4491 = vpack.c.b16 %v3947, %v3931
    %v4492 = vpack.c.b16 %v3948, %v3932
    %v4493 = vpack.c.b16 %v3949, %v3933
    %v4494 = vpack.c.b16 %v3950, %v3934
    %v4495 = vpack.c.b16 %v3951, %v3935
    %v4496 = vpack.c.b16 %v3952, %v3936
    %v4497 = vpack.c.b16 %v3953, %v3937
    %v4498 = vpack.c.b16 %v3954, %v3938
    %v4499 = vpack.c.b16 %v3955, %v3939
    %v4500 = vpack.c.b16 %v3956, %v3940
    %v4501 = vpack.c.b16 %v3957, %v3941
    %v4502 = vpack.c.b16 %v3958, %v3942
    %v4503 = vpack.c.b16 %v3959, %v3943
    %v4504 = vpack.c.b16 %v3960, %v3944
    %v4505 = vpack.c.b16 %v3961, %v3945
    %v4506 = vpack.c.b16 %v3962, %v3946
    %v4507 = vpack.c.b16 %v3979, %v3963
    %v4508 = vpack.c.b16 %v3980, %v3964
    %v4509 = vpack.c.b16 %v3981, %v3965
    %v4510 = vpack.c.b16 %v3982, %v3966
    %v4511 = vpack.c.b16 %v3983, %v3967
    %v4512 = vpack.c.b16 %v3984, %v3968
    %v4513 = vpack.c.b16 %v3985, %v3969
    %v4514 = vpack.c.b16 %v3986, %v3970
    %v4515 = vpack.c.b16 %v3987, %v3971
    %v4516 = vpack.c.b16 %v3988, %v3972
    %v4517 = vpack.c.b16 %v3989, %v3973
    %v4518 = vpack.c.b16 %v3990, %v3974
    %v4519 = vpack.c.b16 %v3991, %v3975
    %v4520 = vpack.c.b16 %v3992, %v3976
    %v4521 = vpack.c.b16 %v3993, %v3977
    %v4522 = vpack.c.b16 %v3994, %v3978
    %v4523 = vpack.c.b16 %v4011, %v3995
    %v4524 = vpack.c.b16 %v4012, %v3996
    %v4525 = vpack.c.b16 %v4013, %v3997
    %v4526 = vpack.c.b16 %v4014, %v3998
    %v4527 = vpack.c.b16 %v4015, %v3999
    %v4528 = vpack.c.b16 %v4016, %v4000
    %v4529 = vpack.c.b16 %v4017, %v4001
    %v4530 = vpack.c.b16 %v4018, %v4002
    %v4531 = vpack.c.b16 %v4019, %v4003
    %v4532 = vpack.c.b16 %v4020, %v4004
    %v4533 = vpack.c.b16 %v4021, %v4005
    %v4534 = vpack.c.b16 %v4022, %v4006
    %v4535 = vpack.c.b16 %v4023, %v4007
    %v4536 = vpack.c.b16 %v4024, %v4008
    %v4537 = vpack.c.b16 %v4025, %v4009
    %v4538 = vpack.c.b16 %v4026, %v4010
    %5051 = vmatprep.subr.bf16.mxu0 %v4028
    %5052 = vmatpush1.bf16.msra.mxu0 %v4027
    %5053 = vmatprep.subr.bf16.mxu0 %v4044
    %5054 = vmatpush1.bf16.msra.mxu0 %v4043
    %5055 = vmatprep.subr.bf16.mxu0 %v4060
    %5056 = vmatpush1.bf16.msra.mxu0 %v4059
    %5057 = vmatprep.subr.bf16.mxu0 %v4076
    %5058 = vmatpush1.bf16.msra.mxu0 %v4075
    %5059 = vmatprep.subr.bf16.mxu0 %v4092
    %5060 = vmatpush1.bf16.msra.mxu0 %v4091
    %5061 = vmatprep.subr.bf16.mxu0 %v4108
    %5062 = vmatpush1.bf16.msra.mxu0 %v4107
    %5063 = vmatprep.subr.bf16.mxu0 %v4124
    %5064 = vmatpush1.bf16.msra.mxu0 %v4123
    %5065 = vmatprep.subr.bf16.mxu0 %v4140
    %5066 = vmatpush1.bf16.msra.mxu0 %v4139
    %5067 = vmatprep.subr.bf16.mxu0 %v4156
    %5068 = vmatpush1.bf16.msra.mxu0 %v4155
    %5069 = vmatprep.subr.bf16.mxu0 %v4172
    %5070 = vmatpush1.bf16.msra.mxu0 %v4171
    %5071 = vmatprep.subr.bf16.mxu0 %v4188
    %5072 = vmatpush1.bf16.msra.mxu0 %v4187
    %5073 = vmatprep.subr.bf16.mxu0 %v4204
    %5074 = vmatpush1.bf16.msra.mxu0 %v4203
    %5075 = vmatprep.subr.bf16.mxu0 %v4220
    %5076 = vmatpush1.bf16.msra.mxu0 %v4219
    %5077 = vmatprep.subr.bf16.mxu0 %v4236
    %5078 = vmatpush1.bf16.msra.mxu0 %v4235
    %5079 = vmatprep.subr.bf16.mxu0 %v4252
    %5080 = vmatpush1.bf16.msra.mxu0 %v4251
    %5081 = vmatprep.subr.bf16.mxu0 %v4268
    %5082 = vmatpush1.bf16.msra.mxu0 %v4267
    %5083 = vmatprep.mubr.bf16.mxu0 %v2406
    %5084 = vmatmul.mubr.bf16.gmra.mrb[0].mxu0 %v2405
    %v5085 = vpop.f32.mrb[0].mxu0
    %v5086 = vadd.f32 %v2414, %v5085
    %v5087 = vpop.f32.mrb[0].mxu0
    %v5088 = vadd.f32 %v2418, %v5087
    %v5089 = vpop.f32.mrb[0].mxu0
    %v5090 = vpop.f32.mrb[0].mxu0
    %5091 = vdwg.mxu0
    %5092 = vmatprep.subr.bf16.mxu0 %v4284
    %5093 = vmatpush1.bf16.msra.mxu0 %v4283
    %5094 = vmatprep.subr.bf16.mxu0 %v4300
    %5095 = vmatpush1.bf16.msra.mxu0 %v4299
    %5096 = vmatprep.subr.bf16.mxu0 %v4316
    %5097 = vmatpush1.bf16.msra.mxu0 %v4315
    %5098 = vmatprep.subr.bf16.mxu0 %v4332
    %5099 = vmatpush1.bf16.msra.mxu0 %v4331
    %5100 = vmatprep.subr.bf16.mxu0 %v4348
    %5101 = vmatpush1.bf16.msra.mxu0 %v4347
    %5102 = vmatprep.subr.bf16.mxu0 %v4364
    %5103 = vmatpush1.bf16.msra.mxu0 %v4363
    %5104 = vmatprep.subr.bf16.mxu0 %v4380
    %5105 = vmatpush1.bf16.msra.mxu0 %v4379
    %5106 = vmatprep.subr.bf16.mxu0 %v4396
    %5107 = vmatpush1.bf16.msra.mxu0 %v4395
    %5108 = vmatprep.subr.bf16.mxu0 %v4412
    %5109 = vmatpush1.bf16.msra.mxu0 %v4411
    %5110 = vmatprep.subr.bf16.mxu0 %v4428
    %5111 = vmatpush1.bf16.msra.mxu0 %v4427
    %5112 = vmatprep.subr.bf16.mxu0 %v4444
    %5113 = vmatpush1.bf16.msra.mxu0 %v4443
    %5114 = vmatprep.subr.bf16.mxu0 %v4460
    %5115 = vmatpush1.bf16.msra.mxu0 %v4459
    %5116 = vmatprep.subr.bf16.mxu0 %v4476
    %5117 = vmatpush1.bf16.msra.mxu0 %v4475
    %5118 = vmatprep.subr.bf16.mxu0 %v4492
    %5119 = vmatpush1.bf16.msra.mxu0 %v4491
    %5120 = vmatprep.subr.bf16.mxu0 %v4508
    %5121 = vmatpush1.bf16.msra.mxu0 %v4507
    %5122 = vmatprep.subr.bf16.mxu0 %v4524
    %5123 = vmatpush1.bf16.msra.mxu0 %v4523
    %5124 = vmatprep.mubr.bf16.mxu0 %v2408
    %5125 = vmatmul.mubr.bf16.gmra.mrb[0].mxu0 %v2407
    %v5126 = vpop.f32.mrb[0].mxu0
    %v5127 = vadd.f32 %v5086, %v5126
    %v5128 = vpop.f32.mrb[0].mxu0
    %v5129 = vadd.f32 %v5088, %v5128
    %v5130 = vpop.f32.mrb[0].mxu0
    %v5131 = vpop.f32.mrb[0].mxu0
    %5132 = vdwg.mxu0
    %5133 = vmatprep.subr.bf16.mxu0 %v4030
    %5134 = vmatpush1.bf16.msra.mxu0 %v4029
    %5135 = vmatprep.subr.bf16.mxu0 %v4046
    %5136 = vmatpush1.bf16.msra.mxu0 %v4045
    %5137 = vmatprep.subr.bf16.mxu0 %v4062
    %5138 = vmatpush1.bf16.msra.mxu0 %v4061
    %5139 = vmatprep.subr.bf16.mxu0 %v4078
    %5140 = vmatpush1.bf16.msra.mxu0 %v4077
    %5141 = vmatprep.subr.bf16.mxu0 %v4094
    %5142 = vmatpush1.bf16.msra.mxu0 %v4093
    %5143 = vmatprep.subr.bf16.mxu0 %v4110
    %5144 = vmatpush1.bf16.msra.mxu0 %v4109
    %5145 = vmatprep.subr.bf16.mxu0 %v4126
    %5146 = vmatpush1.bf16.msra.mxu0 %v4125
    %5147 = vmatprep.subr.bf16.mxu0 %v4142
    %5148 = vmatpush1.bf16.msra.mxu0 %v4141
    %5149 = vmatprep.subr.bf16.mxu0 %v4158
    %5150 = vmatpush1.bf16.msra.mxu0 %v4157
    %5151 = vmatprep.subr.bf16.mxu0 %v4174
    %5152 = vmatpush1.bf16.msra.mxu0 %v4173
    %5153 = vmatprep.subr.bf16.mxu0 %v4190
    %5154 = vmatpush1.bf16.msra.mxu0 %v4189
    %5155 = vmatprep.subr.bf16.mxu0 %v4206
    %5156 = vmatpush1.bf16.msra.mxu0 %v4205
    %5157 = vmatprep.subr.bf16.mxu0 %v4222
    %5158 = vmatpush1.bf16.msra.mxu0 %v4221
    %5159 = vmatprep.subr.bf16.mxu0 %v4238
    %5160 = vmatpush1.bf16.msra.mxu0 %v4237
    %5161 = vmatprep.subr.bf16.mxu0 %v4254
    %5162 = vmatpush1.bf16.msra.mxu0 %v4253
    %5163 = vmatprep.subr.bf16.mxu0 %v4270
    %5164 = vmatpush1.bf16.msra.mxu0 %v4269
    %5165 = vmatprep.mubr.bf16.mxu0 %v2406
    %5166 = vmatmul.mubr.bf16.gmra.mrb[0].mxu0 %v2405
    %v5167 = vpop.f32.mrb[0].mxu0
    %v5168 = vadd.f32 %v2422, %v5167
    %v5169 = vpop.f32.mrb[0].mxu0
    %v5170 = vadd.f32 %v2426, %v5169
    %v5171 = vpop.f32.mrb[0].mxu0
    %v5172 = vpop.f32.mrb[0].mxu0
    %5173 = vdwg.mxu0
    %5174 = vmatprep.subr.bf16.mxu0 %v4286
    %5175 = vmatpush1.bf16.msra.mxu0 %v4285
    %5176 = vmatprep.subr.bf16.mxu0 %v4302
    %5177 = vmatpush1.bf16.msra.mxu0 %v4301
    %5178 = vmatprep.subr.bf16.mxu0 %v4318
    %5179 = vmatpush1.bf16.msra.mxu0 %v4317
    %5180 = vmatprep.subr.bf16.mxu0 %v4334
    %5181 = vmatpush1.bf16.msra.mxu0 %v4333
    %5182 = vmatprep.subr.bf16.mxu0 %v4350
    %5183 = vmatpush1.bf16.msra.mxu0 %v4349
    %5184 = vmatprep.subr.bf16.mxu0 %v4366
    %5185 = vmatpush1.bf16.msra.mxu0 %v4365
    %5186 = vmatprep.subr.bf16.mxu0 %v4382
    %5187 = vmatpush1.bf16.msra.mxu0 %v4381
    %5188 = vmatprep.subr.bf16.mxu0 %v4398
    %5189 = vmatpush1.bf16.msra.mxu0 %v4397
    %5190 = vmatprep.subr.bf16.mxu0 %v4414
    %5191 = vmatpush1.bf16.msra.mxu0 %v4413
    %5192 = vmatprep.subr.bf16.mxu0 %v4430
    %5193 = vmatpush1.bf16.msra.mxu0 %v4429
    %5194 = vmatprep.subr.bf16.mxu0 %v4446
    %5195 = vmatpush1.bf16.msra.mxu0 %v4445
    %5196 = vmatprep.subr.bf16.mxu0 %v4462
    %5197 = vmatpush1.bf16.msra.mxu0 %v4461
    %5198 = vmatprep.subr.bf16.mxu0 %v4478
    %5199 = vmatpush1.bf16.msra.mxu0 %v4477
    %5200 = vmatprep.subr.bf16.mxu0 %v4494
    %5201 = vmatpush1.bf16.msra.mxu0 %v4493
    %5202 = vmatprep.subr.bf16.mxu0 %v4510
    %5203 = vmatpush1.bf16.msra.mxu0 %v4509
    %5204 = vmatprep.subr.bf16.mxu0 %v4526
    %5205 = vmatpush1.bf16.msra.mxu0 %v4525
    %5206 = vmatprep.mubr.bf16.mxu0 %v2408
    %5207 = vmatmul.mubr.bf16.gmra.mrb[0].mxu0 %v2407
    %v5208 = vpop.f32.mrb[0].mxu0
    %v5209 = vadd.f32 %v5168, %v5208
    %v5210 = vpop.f32.mrb[0].mxu0
    %v5211 = vadd.f32 %v5170, %v5210
    %v5212 = vpop.f32.mrb[0].mxu0
    %v5213 = vpop.f32.mrb[0].mxu0
    %5214 = vdwg.mxu0
    %5215 = vmatprep.subr.bf16.mxu0 %v4032
    %5216 = vmatpush1.bf16.msra.mxu0 %v4031
    %5217 = vmatprep.subr.bf16.mxu0 %v4048
    %5218 = vmatpush1.bf16.msra.mxu0 %v4047
    %5219 = vmatprep.subr.bf16.mxu0 %v4064
    %5220 = vmatpush1.bf16.msra.mxu0 %v4063
    %5221 = vmatprep.subr.bf16.mxu0 %v4080
    %5222 = vmatpush1.bf16.msra.mxu0 %v4079
    %5223 = vmatprep.subr.bf16.mxu0 %v4096
    %5224 = vmatpush1.bf16.msra.mxu0 %v4095
    %5225 = vmatprep.subr.bf16.mxu0 %v4112
    %5226 = vmatpush1.bf16.msra.mxu0 %v4111
    %5227 = vmatprep.subr.bf16.mxu0 %v4128
    %5228 = vmatpush1.bf16.msra.mxu0 %v4127
    %5229 = vmatprep.subr.bf16.mxu0 %v4144
    %5230 = vmatpush1.bf16.msra.mxu0 %v4143
    %5231 = vmatprep.subr.bf16.mxu0 %v4160
    %5232 = vmatpush1.bf16.msra.mxu0 %v4159
    %5233 = vmatprep.subr.bf16.mxu0 %v4176
    %5234 = vmatpush1.bf16.msra.mxu0 %v4175
    %5235 = vmatprep.subr.bf16.mxu0 %v4192
    %5236 = vmatpush1.bf16.msra.mxu0 %v4191
    %5237 = vmatprep.subr.bf16.mxu0 %v4208
    %5238 = vmatpush1.bf16.msra.mxu0 %v4207
    %5239 = vmatprep.subr.bf16.mxu0 %v4224
    %5240 = vmatpush1.bf16.msra.mxu0 %v4223
    %5241 = vmatprep.subr.bf16.mxu0 %v4240
    %5242 = vmatpush1.bf16.msra.mxu0 %v4239
    %5243 = vmatprep.subr.bf16.mxu0 %v4256
    %5244 = vmatpush1.bf16.msra.mxu0 %v4255
    %5245 = vmatprep.subr.bf16.mxu0 %v4272
    %5246 = vmatpush1.bf16.msra.mxu0 %v4271
    %5247 = vmatprep.mubr.bf16.mxu0 %v2406
    %5248 = vmatmul.mubr.bf16.gmra.mrb[0].mxu0 %v2405
    %v5249 = vpop.f32.mrb[0].mxu0
    %v5250 = vadd.f32 %v2430, %v5249
    %v5251 = vpop.f32.mrb[0].mxu0
    %v5252 = vadd.f32 %v2434, %v5251
    %v5253 = vpop.f32.mrb[0].mxu0
    %v5254 = vpop.f32.mrb[0].mxu0
    %5255 = vdwg.mxu0
    %5256 = vmatprep.subr.bf16.mxu0 %v4288
    %5257 = vmatpush1.bf16.msra.mxu0 %v4287
    %5258 = vmatprep.subr.bf16.mxu0 %v4304
    %5259 = vmatpush1.bf16.msra.mxu0 %v4303
    %5260 = vmatprep.subr.bf16.mxu0 %v4320
    %5261 = vmatpush1.bf16.msra.mxu0 %v4319
    %5262 = vmatprep.subr.bf16.mxu0 %v4336
    %5263 = vmatpush1.bf16.msra.mxu0 %v4335
    %5264 = vmatprep.subr.bf16.mxu0 %v4352
    %5265 = vmatpush1.bf16.msra.mxu0 %v4351
    %5266 = vmatprep.subr.bf16.mxu0 %v4368
    %5267 = vmatpush1.bf16.msra.mxu0 %v4367
    %5268 = vmatprep.subr.bf16.mxu0 %v4384
    %5269 = vmatpush1.bf16.msra.mxu0 %v4383
    %5270 = vmatprep.subr.bf16.mxu0 %v4400
    %5271 = vmatpush1.bf16.msra.mxu0 %v4399
    %5272 = vmatprep.subr.bf16.mxu0 %v4416
    %5273 = vmatpush1.bf16.msra.mxu0 %v4415
    %5274 = vmatprep.subr.bf16.mxu0 %v4432
    %5275 = vmatpush1.bf16.msra.mxu0 %v4431
    %5276 = vmatprep.subr.bf16.mxu0 %v4448
    %5277 = vmatpush1.bf16.msra.mxu0 %v4447
    %5278 = vmatprep.subr.bf16.mxu0 %v4464
    %5279 = vmatpush1.bf16.msra.mxu0 %v4463
    %5280 = vmatprep.subr.bf16.mxu0 %v4480
    %5281 = vmatpush1.bf16.msra.mxu0 %v4479
    %5282 = vmatprep.subr.bf16.mxu0 %v4496
    %5283 = vmatpush1.bf16.msra.mxu0 %v4495
    %5284 = vmatprep.subr.bf16.mxu0 %v4512
    %5285 = vmatpush1.bf16.msra.mxu0 %v4511
    %5286 = vmatprep.subr.bf16.mxu0 %v4528
    %5287 = vmatpush1.bf16.msra.mxu0 %v4527
    %5288 = vmatprep.mubr.bf16.mxu0 %v2408
    %5289 = vmatmul.mubr.bf16.gmra.mrb[0].mxu0 %v2407
    %v5290 = vpop.f32.mrb[0].mxu0
    %v5291 = vadd.f32 %v5250, %v5290
    %v5292 = vpop.f32.mrb[0].mxu0
    %v5293 = vadd.f32 %v5252, %v5292
    %v5294 = vpop.f32.mrb[0].mxu0
    %v5295 = vpop.f32.mrb[0].mxu0
    %5296 = vdwg.mxu0
    %5297 = vmatprep.subr.bf16.mxu0 %v4034
    %5298 = vmatpush1.bf16.msra.mxu0 %v4033
    %5299 = vmatprep.subr.bf16.mxu0 %v4050
    %5300 = vmatpush1.bf16.msra.mxu0 %v4049
    %5301 = vmatprep.subr.bf16.mxu0 %v4066
    %5302 = vmatpush1.bf16.msra.mxu0 %v4065
    %5303 = vmatprep.subr.bf16.mxu0 %v4082
    %5304 = vmatpush1.bf16.msra.mxu0 %v4081
    %5305 = vmatprep.subr.bf16.mxu0 %v4098
    %5306 = vmatpush1.bf16.msra.mxu0 %v4097
    %5307 = vmatprep.subr.bf16.mxu0 %v4114
    %5308 = vmatpush1.bf16.msra.mxu0 %v4113
    %5309 = vmatprep.subr.bf16.mxu0 %v4130
    %5310 = vmatpush1.bf16.msra.mxu0 %v4129
    %5311 = vmatprep.subr.bf16.mxu0 %v4146
    %5312 = vmatpush1.bf16.msra.mxu0 %v4145
    %5313 = vmatprep.subr.bf16.mxu0 %v4162
    %5314 = vmatpush1.bf16.msra.mxu0 %v4161
    %5315 = vmatprep.subr.bf16.mxu0 %v4178
    %5316 = vmatpush1.bf16.msra.mxu0 %v4177
    %5317 = vmatprep.subr.bf16.mxu0 %v4194
    %5318 = vmatpush1.bf16.msra.mxu0 %v4193
    %5319 = vmatprep.subr.bf16.mxu0 %v4210
    %5320 = vmatpush1.bf16.msra.mxu0 %v4209
    %5321 = vmatprep.subr.bf16.mxu0 %v4226
    %5322 = vmatpush1.bf16.msra.mxu0 %v4225
    %5323 = vmatprep.subr.bf16.mxu0 %v4242
    %5324 = vmatpush1.bf16.msra.mxu0 %v4241
    %5325 = vmatprep.subr.bf16.mxu0 %v4258
    %5326 = vmatpush1.bf16.msra.mxu0 %v4257
    %5327 = vmatprep.subr.bf16.mxu0 %v4274
    %5328 = vmatpush1.bf16.msra.mxu0 %v4273
    %5329 = vmatprep.mubr.bf16.mxu0 %v2406
    %5330 = vmatmul.mubr.bf16.gmra.mrb[0].mxu0 %v2405
    %v5331 = vpop.f32.mrb[0].mxu0
    %v5332 = vadd.f32 %v2438, %v5331
    %v5333 = vpop.f32.mrb[0].mxu0
    %v5334 = vadd.f32 %v2442, %v5333
    %v5335 = vpop.f32.mrb[0].mxu0
    %v5336 = vpop.f32.mrb[0].mxu0
    %5337 = vdwg.mxu0
    %5338 = vmatprep.subr.bf16.mxu0 %v4290
    %5339 = vmatpush1.bf16.msra.mxu0 %v4289
    %5340 = vmatprep.subr.bf16.mxu0 %v4306
    %5341 = vmatpush1.bf16.msra.mxu0 %v4305
    %5342 = vmatprep.subr.bf16.mxu0 %v4322
    %5343 = vmatpush1.bf16.msra.mxu0 %v4321
    %5344 = vmatprep.subr.bf16.mxu0 %v4338
    %5345 = vmatpush1.bf16.msra.mxu0 %v4337
    %5346 = vmatprep.subr.bf16.mxu0 %v4354
    %5347 = vmatpush1.bf16.msra.mxu0 %v4353
    %5348 = vmatprep.subr.bf16.mxu0 %v4370
    %5349 = vmatpush1.bf16.msra.mxu0 %v4369
    %5350 = vmatprep.subr.bf16.mxu0 %v4386
    %5351 = vmatpush1.bf16.msra.mxu0 %v4385
    %5352 = vmatprep.subr.bf16.mxu0 %v4402
    %5353 = vmatpush1.bf16.msra.mxu0 %v4401
    %5354 = vmatprep.subr.bf16.mxu0 %v4418
    %5355 = vmatpush1.bf16.msra.mxu0 %v4417
    %5356 = vmatprep.subr.bf16.mxu0 %v4434
    %5357 = vmatpush1.bf16.msra.mxu0 %v4433
    %5358 = vmatprep.subr.bf16.mxu0 %v4450
    %5359 = vmatpush1.bf16.msra.mxu0 %v4449
    %5360 = vmatprep.subr.bf16.mxu0 %v4466
    %5361 = vmatpush1.bf16.msra.mxu0 %v4465
    %5362 = vmatprep.subr.bf16.mxu0 %v4482
    %5363 = vmatpush1.bf16.msra.mxu0 %v4481
    %5364 = vmatprep.subr.bf16.mxu0 %v4498
    %5365 = vmatpush1.bf16.msra.mxu0 %v4497
    %5366 = vmatprep.subr.bf16.mxu0 %v4514
    %5367 = vmatpush1.bf16.msra.mxu0 %v4513
    %5368 = vmatprep.subr.bf16.mxu0 %v4530
    %5369 = vmatpush1.bf16.msra.mxu0 %v4529
    %5370 = vmatprep.mubr.bf16.mxu0 %v2408
    %5371 = vmatmul.mubr.bf16.gmra.mrb[0].mxu0 %v2407
    %v5372 = vpop.f32.mrb[0].mxu0
    %v5373 = vadd.f32 %v5332, %v5372
    %v5374 = vpop.f32.mrb[0].mxu0
    %v5375 = vadd.f32 %v5334, %v5374
    %v5376 = vpop.f32.mrb[0].mxu0
    %v5377 = vpop.f32.mrb[0].mxu0
    %5378 = vdwg.mxu0
    %5379 = vmatprep.subr.bf16.mxu0 %v4036
    %5380 = vmatpush1.bf16.msra.mxu0 %v4035
    %5381 = vmatprep.subr.bf16.mxu0 %v4052
    %5382 = vmatpush1.bf16.msra.mxu0 %v4051
    %5383 = vmatprep.subr.bf16.mxu0 %v4068
    %5384 = vmatpush1.bf16.msra.mxu0 %v4067
    %5385 = vmatprep.subr.bf16.mxu0 %v4084
    %5386 = vmatpush1.bf16.msra.mxu0 %v4083
    %5387 = vmatprep.subr.bf16.mxu0 %v4100
    %5388 = vmatpush1.bf16.msra.mxu0 %v4099
    %5389 = vmatprep.subr.bf16.mxu0 %v4116
    %5390 = vmatpush1.bf16.msra.mxu0 %v4115
    %5391 = vmatprep.subr.bf16.mxu0 %v4132
    %5392 = vmatpush1.bf16.msra.mxu0 %v4131
    %5393 = vmatprep.subr.bf16.mxu0 %v4148
    %5394 = vmatpush1.bf16.msra.mxu0 %v4147
    %5395 = vmatprep.subr.bf16.mxu0 %v4164
    %5396 = vmatpush1.bf16.msra.mxu0 %v4163
    %5397 = vmatprep.subr.bf16.mxu0 %v4180
    %5398 = vmatpush1.bf16.msra.mxu0 %v4179
    %5399 = vmatprep.subr.bf16.mxu0 %v4196
    %5400 = vmatpush1.bf16.msra.mxu0 %v4195
    %5401 = vmatprep.subr.bf16.mxu0 %v4212
    %5402 = vmatpush1.bf16.msra.mxu0 %v4211
    %5403 = vmatprep.subr.bf16.mxu0 %v4228
    %5404 = vmatpush1.bf16.msra.mxu0 %v4227
    %5405 = vmatprep.subr.bf16.mxu0 %v4244
    %5406 = vmatpush1.bf16.msra.mxu0 %v4243
    %5407 = vmatprep.subr.bf16.mxu0 %v4260
    %5408 = vmatpush1.bf16.msra.mxu0 %v4259
    %5409 = vmatprep.subr.bf16.mxu0 %v4276
    %5410 = vmatpush1.bf16.msra.mxu0 %v4275
    %5411 = vmatprep.mubr.bf16.mxu0 %v2406
    %5412 = vmatmul.mubr.bf16.gmra.mrb[0].mxu0 %v2405
    %v5413 = vpop.f32.mrb[0].mxu0
    %v5414 = vadd.f32 %v2446, %v5413
    %v5415 = vpop.f32.mrb[0].mxu0
    %v5416 = vadd.f32 %v2450, %v5415
    %v5417 = vpop.f32.mrb[0].mxu0
    %v5418 = vpop.f32.mrb[0].mxu0
    %5419 = vdwg.mxu0
    %5420 = vmatprep.subr.bf16.mxu0 %v4292
    %5421 = vmatpush1.bf16.msra.mxu0 %v4291
    %5422 = vmatprep.subr.bf16.mxu0 %v4308
    %5423 = vmatpush1.bf16.msra.mxu0 %v4307
    %5424 = vmatprep.subr.bf16.mxu0 %v4324
    %5425 = vmatpush1.bf16.msra.mxu0 %v4323
    %5426 = vmatprep.subr.bf16.mxu0 %v4340
    %5427 = vmatpush1.bf16.msra.mxu0 %v4339
    %5428 = vmatprep.subr.bf16.mxu0 %v4356
    %5429 = vmatpush1.bf16.msra.mxu0 %v4355
    %5430 = vmatprep.subr.bf16.mxu0 %v4372
    %5431 = vmatpush1.bf16.msra.mxu0 %v4371
    %5432 = vmatprep.subr.bf16.mxu0 %v4388
    %5433 = vmatpush1.bf16.msra.mxu0 %v4387
    %5434 = vmatprep.subr.bf16.mxu0 %v4404
    %5435 = vmatpush1.bf16.msra.mxu0 %v4403
    %5436 = vmatprep.subr.bf16.mxu0 %v4420
    %5437 = vmatpush1.bf16.msra.mxu0 %v4419
    %5438 = vmatprep.subr.bf16.mxu0 %v4436
    %5439 = vmatpush1.bf16.msra.mxu0 %v4435
    %5440 = vmatprep.subr.bf16.mxu0 %v4452
    %5441 = vmatpush1.bf16.msra.mxu0 %v4451
    %5442 = vmatprep.subr.bf16.mxu0 %v4468
    %5443 = vmatpush1.bf16.msra.mxu0 %v4467
    %5444 = vmatprep.subr.bf16.mxu0 %v4484
    %5445 = vmatpush1.bf16.msra.mxu0 %v4483
    %5446 = vmatprep.subr.bf16.mxu0 %v4500
    %5447 = vmatpush1.bf16.msra.mxu0 %v4499
    %5448 = vmatprep.subr.bf16.mxu0 %v4516
    %5449 = vmatpush1.bf16.msra.mxu0 %v4515
    %5450 = vmatprep.subr.bf16.mxu0 %v4532
    %5451 = vmatpush1.bf16.msra.mxu0 %v4531
    %5452 = vmatprep.mubr.bf16.mxu0 %v2408
    %5453 = vmatmul.mubr.bf16.gmra.mrb[0].mxu0 %v2407
    %v5454 = vpop.f32.mrb[0].mxu0
    %v5455 = vadd.f32 %v5414, %v5454
    %v5456 = vpop.f32.mrb[0].mxu0
    %v5457 = vadd.f32 %v5416, %v5456
    %v5458 = vpop.f32.mrb[0].mxu0
    %v5459 = vpop.f32.mrb[0].mxu0
    %5460 = vdwg.mxu0
    %5461 = vmatprep.subr.bf16.mxu0 %v4038
    %5462 = vmatpush1.bf16.msra.mxu0 %v4037
    %5463 = vmatprep.subr.bf16.mxu0 %v4054
    %5464 = vmatpush1.bf16.msra.mxu0 %v4053
    %5465 = vmatprep.subr.bf16.mxu0 %v4070
    %5466 = vmatpush1.bf16.msra.mxu0 %v4069
    %5467 = vmatprep.subr.bf16.mxu0 %v4086
    %5468 = vmatpush1.bf16.msra.mxu0 %v4085
    %5469 = vmatprep.subr.bf16.mxu0 %v4102
    %5470 = vmatpush1.bf16.msra.mxu0 %v4101
    %5471 = vmatprep.subr.bf16.mxu0 %v4118
    %5472 = vmatpush1.bf16.msra.mxu0 %v4117
    %5473 = vmatprep.subr.bf16.mxu0 %v4134
    %5474 = vmatpush1.bf16.msra.mxu0 %v4133
    %5475 = vmatprep.subr.bf16.mxu0 %v4150
    %5476 = vmatpush1.bf16.msra.mxu0 %v4149
    %5477 = vmatprep.subr.bf16.mxu0 %v4166
    %5478 = vmatpush1.bf16.msra.mxu0 %v4165
    %5479 = vmatprep.subr.bf16.mxu0 %v4182
    %5480 = vmatpush1.bf16.msra.mxu0 %v4181
    %5481 = vmatprep.subr.bf16.mxu0 %v4198
    %5482 = vmatpush1.bf16.msra.mxu0 %v4197
    %5483 = vmatprep.subr.bf16.mxu0 %v4214
    %5484 = vmatpush1.bf16.msra.mxu0 %v4213
    %5485 = vmatprep.subr.bf16.mxu0 %v4230
    %5486 = vmatpush1.bf16.msra.mxu0 %v4229
    %5487 = vmatprep.subr.bf16.mxu0 %v4246
    %5488 = vmatpush1.bf16.msra.mxu0 %v4245
    %5489 = vmatprep.subr.bf16.mxu0 %v4262
    %5490 = vmatpush1.bf16.msra.mxu0 %v4261
    %5491 = vmatprep.subr.bf16.mxu0 %v4278
    %5492 = vmatpush1.bf16.msra.mxu0 %v4277
    %5493 = vmatprep.mubr.bf16.mxu0 %v2406
    %5494 = vmatmul.mubr.bf16.gmra.mrb[0].mxu0 %v2405
    %v5495 = vpop.f32.mrb[0].mxu0
    %v5496 = vadd.f32 %v2454, %v5495
    %v5497 = vpop.f32.mrb[0].mxu0
    %v5498 = vadd.f32 %v2458, %v5497
    %v5499 = vpop.f32.mrb[0].mxu0
    %v5500 = vpop.f32.mrb[0].mxu0
    %5501 = vdwg.mxu0
    %5502 = vmatprep.subr.bf16.mxu0 %v4294
    %5503 = vmatpush1.bf16.msra.mxu0 %v4293
    %5504 = vmatprep.subr.bf16.mxu0 %v4310
    %5505 = vmatpush1.bf16.msra.mxu0 %v4309
    %5506 = vmatprep.subr.bf16.mxu0 %v4326
    %5507 = vmatpush1.bf16.msra.mxu0 %v4325
    %5508 = vmatprep.subr.bf16.mxu0 %v4342
    %5509 = vmatpush1.bf16.msra.mxu0 %v4341
    %5510 = vmatprep.subr.bf16.mxu0 %v4358
    %5511 = vmatpush1.bf16.msra.mxu0 %v4357
    %5512 = vmatprep.subr.bf16.mxu0 %v4374
    %5513 = vmatpush1.bf16.msra.mxu0 %v4373
    %5514 = vmatprep.subr.bf16.mxu0 %v4390
    %5515 = vmatpush1.bf16.msra.mxu0 %v4389
    %5516 = vmatprep.subr.bf16.mxu0 %v4406
    %5517 = vmatpush1.bf16.msra.mxu0 %v4405
    %5518 = vmatprep.subr.bf16.mxu0 %v4422
    %5519 = vmatpush1.bf16.msra.mxu0 %v4421
    %5520 = vmatprep.subr.bf16.mxu0 %v4438
    %5521 = vmatpush1.bf16.msra.mxu0 %v4437
    %5522 = vmatprep.subr.bf16.mxu0 %v4454
    %5523 = vmatpush1.bf16.msra.mxu0 %v4453
    %5524 = vmatprep.subr.bf16.mxu0 %v4470
    %5525 = vmatpush1.bf16.msra.mxu0 %v4469
    %5526 = vmatprep.subr.bf16.mxu0 %v4486
    %5527 = vmatpush1.bf16.msra.mxu0 %v4485
    %5528 = vmatprep.subr.bf16.mxu0 %v4502
    %5529 = vmatpush1.bf16.msra.mxu0 %v4501
    %5530 = vmatprep.subr.bf16.mxu0 %v4518
    %5531 = vmatpush1.bf16.msra.mxu0 %v4517
    %5532 = vmatprep.subr.bf16.mxu0 %v4534
    %5533 = vmatpush1.bf16.msra.mxu0 %v4533
    %5534 = vmatprep.mubr.bf16.mxu0 %v2408
    %5535 = vmatmul.mubr.bf16.gmra.mrb[0].mxu0 %v2407
    %v5536 = vpop.f32.mrb[0].mxu0
    %v5537 = vadd.f32 %v5496, %v5536
    %v5538 = vpop.f32.mrb[0].mxu0
    %v5539 = vadd.f32 %v5498, %v5538
    %v5540 = vpop.f32.mrb[0].mxu0
    %v5541 = vpop.f32.mrb[0].mxu0
    %5542 = vdwg.mxu0
    %5543 = vmatprep.subr.bf16.mxu0 %v4040
    %5544 = vmatpush1.bf16.msra.mxu0 %v4039
    %5545 = vmatprep.subr.bf16.mxu0 %v4056
    %5546 = vmatpush1.bf16.msra.mxu0 %v4055
    %5547 = vmatprep.subr.bf16.mxu0 %v4072
    %5548 = vmatpush1.bf16.msra.mxu0 %v4071
    %5549 = vmatprep.subr.bf16.mxu0 %v4088
    %5550 = vmatpush1.bf16.msra.mxu0 %v4087
    %5551 = vmatprep.subr.bf16.mxu0 %v4104
    %5552 = vmatpush1.bf16.msra.mxu0 %v4103
    %5553 = vmatprep.subr.bf16.mxu0 %v4120
    %5554 = vmatpush1.bf16.msra.mxu0 %v4119
    %5555 = vmatprep.subr.bf16.mxu0 %v4136
    %5556 = vmatpush1.bf16.msra.mxu0 %v4135
    %5557 = vmatprep.subr.bf16.mxu0 %v4152
    %5558 = vmatpush1.bf16.msra.mxu0 %v4151
    %5559 = vmatprep.subr.bf16.mxu0 %v4168
    %5560 = vmatpush1.bf16.msra.mxu0 %v4167
    %5561 = vmatprep.subr.bf16.mxu0 %v4184
    %5562 = vmatpush1.bf16.msra.mxu0 %v4183
    %5563 = vmatprep.subr.bf16.mxu0 %v4200
    %5564 = vmatpush1.bf16.msra.mxu0 %v4199
    %5565 = vmatprep.subr.bf16.mxu0 %v4216
    %5566 = vmatpush1.bf16.msra.mxu0 %v4215
    %5567 = vmatprep.subr.bf16.mxu0 %v4232
    %5568 = vmatpush1.bf16.msra.mxu0 %v4231
    %5569 = vmatprep.subr.bf16.mxu0 %v4248
    %5570 = vmatpush1.bf16.msra.mxu0 %v4247
    %5571 = vmatprep.subr.bf16.mxu0 %v4264
    %5572 = vmatpush1.bf16.msra.mxu0 %v4263
    %5573 = vmatprep.subr.bf16.mxu0 %v4280
    %5574 = vmatpush1.bf16.msra.mxu0 %v4279
    %5575 = vmatprep.mubr.bf16.mxu0 %v2406
    %5576 = vmatmul.mubr.bf16.gmra.mrb[0].mxu0 %v2405
    %v5577 = vpop.f32.mrb[0].mxu0
    %v5578 = vadd.f32 %v2462, %v5577
    %v5579 = vpop.f32.mrb[0].mxu0
    %v5580 = vadd.f32 %v2466, %v5579
    %v5581 = vpop.f32.mrb[0].mxu0
    %v5582 = vpop.f32.mrb[0].mxu0
    %5583 = vdwg.mxu0
    %5584 = vmatprep.subr.bf16.mxu0 %v4296
    %5585 = vmatpush1.bf16.msra.mxu0 %v4295
    %5586 = vmatprep.subr.bf16.mxu0 %v4312
    %5587 = vmatpush1.bf16.msra.mxu0 %v4311
    %5588 = vmatprep.subr.bf16.mxu0 %v4328
    %5589 = vmatpush1.bf16.msra.mxu0 %v4327
    %5590 = vmatprep.subr.bf16.mxu0 %v4344
    %5591 = vmatpush1.bf16.msra.mxu0 %v4343
    %5592 = vmatprep.subr.bf16.mxu0 %v4360
    %5593 = vmatpush1.bf16.msra.mxu0 %v4359
    %5594 = vmatprep.subr.bf16.mxu0 %v4376
    %5595 = vmatpush1.bf16.msra.mxu0 %v4375
    %5596 = vmatprep.subr.bf16.mxu0 %v4392
    %5597 = vmatpush1.bf16.msra.mxu0 %v4391
    %5598 = vmatprep.subr.bf16.mxu0 %v4408
    %5599 = vmatpush1.bf16.msra.mxu0 %v4407
    %5600 = vmatprep.subr.bf16.mxu0 %v4424
    %5601 = vmatpush1.bf16.msra.mxu0 %v4423
    %5602 = vmatprep.subr.bf16.mxu0 %v4440
    %5603 = vmatpush1.bf16.msra.mxu0 %v4439
    %5604 = vmatprep.subr.bf16.mxu0 %v4456
    %5605 = vmatpush1.bf16.msra.mxu0 %v4455
    %5606 = vmatprep.subr.bf16.mxu0 %v4472
    %5607 = vmatpush1.bf16.msra.mxu0 %v4471
    %5608 = vmatprep.subr.bf16.mxu0 %v4488
    %5609 = vmatpush1.bf16.msra.mxu0 %v4487
    %5610 = vmatprep.subr.bf16.mxu0 %v4504
    %5611 = vmatpush1.bf16.msra.mxu0 %v4503
    %5612 = vmatprep.subr.bf16.mxu0 %v4520
    %5613 = vmatpush1.bf16.msra.mxu0 %v4519
    %5614 = vmatprep.subr.bf16.mxu0 %v4536
    %5615 = vmatpush1.bf16.msra.mxu0 %v4535
    %5616 = vmatprep.mubr.bf16.mxu0 %v2408
    %5617 = vmatmul.mubr.bf16.gmra.mrb[0].mxu0 %v2407
    %v5618 = vpop.f32.mrb[0].mxu0
    %v5619 = vadd.f32 %v5578, %v5618
    %v5620 = vpop.f32.mrb[0].mxu0
    %v5621 = vadd.f32 %v5580, %v5620
    %v5622 = vpop.f32.mrb[0].mxu0
    %v5623 = vpop.f32.mrb[0].mxu0
    %5624 = vdwg.mxu0
    %5625 = vmatprep.subr.bf16.mxu0 %v4042
    %5626 = vmatpush1.bf16.msra.mxu0 %v4041
    %5627 = vmatprep.subr.bf16.mxu0 %v4058
    %5628 = vmatpush1.bf16.msra.mxu0 %v4057
    %5629 = vmatprep.subr.bf16.mxu0 %v4074
    %5630 = vmatpush1.bf16.msra.mxu0 %v4073
    %5631 = vmatprep.subr.bf16.mxu0 %v4090
    %5632 = vmatpush1.bf16.msra.mxu0 %v4089
    %5633 = vmatprep.subr.bf16.mxu0 %v4106
    %5634 = vmatpush1.bf16.msra.mxu0 %v4105
    %5635 = vmatprep.subr.bf16.mxu0 %v4122
    %5636 = vmatpush1.bf16.msra.mxu0 %v4121
    %5637 = vmatprep.subr.bf16.mxu0 %v4138
    %5638 = vmatpush1.bf16.msra.mxu0 %v4137
    %5639 = vmatprep.subr.bf16.mxu0 %v4154
    %5640 = vmatpush1.bf16.msra.mxu0 %v4153
    %5641 = vmatprep.subr.bf16.mxu0 %v4170
    %5642 = vmatpush1.bf16.msra.mxu0 %v4169
    %5643 = vmatprep.subr.bf16.mxu0 %v4186
    %5644 = vmatpush1.bf16.msra.mxu0 %v4185
    %5645 = vmatprep.subr.bf16.mxu0 %v4202
    %5646 = vmatpush1.bf16.msra.mxu0 %v4201
    %5647 = vmatprep.subr.bf16.mxu0 %v4218
    %5648 = vmatpush1.bf16.msra.mxu0 %v4217
    %5649 = vmatprep.subr.bf16.mxu0 %v4234
    %5650 = vmatpush1.bf16.msra.mxu0 %v4233
    %5651 = vmatprep.subr.bf16.mxu0 %v4250
    %5652 = vmatpush1.bf16.msra.mxu0 %v4249
    %5653 = vmatprep.subr.bf16.mxu0 %v4266
    %5654 = vmatpush1.bf16.msra.mxu0 %v4265
    %5655 = vmatprep.subr.bf16.mxu0 %v4282
    %5656 = vmatpush1.bf16.msra.mxu0 %v4281
    %5657 = vmatprep.mubr.bf16.mxu0 %v2406
    %5658 = vmatmul.mubr.bf16.gmra.mrb[0].mxu0 %v2405
    %v5659 = vpop.f32.mrb[0].mxu0
    %v5660 = vadd.f32 %v2470, %v5659
    %v5661 = vpop.f32.mrb[0].mxu0
    %v5662 = vadd.f32 %v2474, %v5661
    %v5663 = vpop.f32.mrb[0].mxu0
    %v5664 = vpop.f32.mrb[0].mxu0
    %5665 = vdwg.mxu0
    %5666 = vmatprep.subr.bf16.mxu0 %v4298
    %5667 = vmatpush1.bf16.msra.mxu0 %v4297
    %5668 = vmatprep.subr.bf16.mxu0 %v4314
    %5669 = vmatpush1.bf16.msra.mxu0 %v4313
    %5670 = vmatprep.subr.bf16.mxu0 %v4330
    %5671 = vmatpush1.bf16.msra.mxu0 %v4329
    %5672 = vmatprep.subr.bf16.mxu0 %v4346
    %5673 = vmatpush1.bf16.msra.mxu0 %v4345
    %5674 = vmatprep.subr.bf16.mxu0 %v4362
    %5675 = vmatpush1.bf16.msra.mxu0 %v4361
    %5676 = vmatprep.subr.bf16.mxu0 %v4378
    %5677 = vmatpush1.bf16.msra.mxu0 %v4377
    %5678 = vmatprep.subr.bf16.mxu0 %v4394
    %5679 = vmatpush1.bf16.msra.mxu0 %v4393
    %5680 = vmatprep.subr.bf16.mxu0 %v4410
    %5681 = vmatpush1.bf16.msra.mxu0 %v4409
    %5682 = vmatprep.subr.bf16.mxu0 %v4426
    %5683 = vmatpush1.bf16.msra.mxu0 %v4425
    %5684 = vmatprep.subr.bf16.mxu0 %v4442
    %5685 = vmatpush1.bf16.msra.mxu0 %v4441
    %5686 = vmatprep.subr.bf16.mxu0 %v4458
    %5687 = vmatpush1.bf16.msra.mxu0 %v4457
    %5688 = vmatprep.subr.bf16.mxu0 %v4474
    %5689 = vmatpush1.bf16.msra.mxu0 %v4473
    %5690 = vmatprep.subr.bf16.mxu0 %v4490
    %5691 = vmatpush1.bf16.msra.mxu0 %v4489
    %5692 = vmatprep.subr.bf16.mxu0 %v4506
    %5693 = vmatpush1.bf16.msra.mxu0 %v4505
    %5694 = vmatprep.subr.bf16.mxu0 %v4522
    %5695 = vmatpush1.bf16.msra.mxu0 %v4521
    %5696 = vmatprep.subr.bf16.mxu0 %v4538
    %5697 = vmatpush1.bf16.msra.mxu0 %v4537
    %5698 = vmatprep.mubr.bf16.mxu0 %v2408
    %5699 = vmatmul.mubr.bf16.gmra.mrb[0].mxu0 %v2407
    %v5700 = vpop.f32.mrb[0].mxu0
    %v5701 = vadd.f32 %v5660, %v5700
    %v5702 = vpop.f32.mrb[0].mxu0
    %v5703 = vadd.f32 %v5662, %v5702
    %v5704 = vpop.f32.mrb[0].mxu0
    %v5705 = vpop.f32.mrb[0].mxu0
    %5706 = vdwg.mxu0
    %vm5707 = vcmp.gt.f32.partialorder %v5127, 0.0
    %vm5708 = vcmp.gt.f32.partialorder %v5129, 0.0
    %vm5709 = vcmp.gt.f32.partialorder %v5209, 0.0
    %vm5710 = vcmp.gt.f32.partialorder %v5211, 0.0
    %vm5711 = vcmp.gt.f32.partialorder %v5291, 0.0
    %vm5712 = vcmp.gt.f32.partialorder %v5293, 0.0
    %vm5713 = vcmp.gt.f32.partialorder %v5373, 0.0
    %vm5714 = vcmp.gt.f32.partialorder %v5375, 0.0
    %vm5715 = vcmp.gt.f32.partialorder %v5455, 0.0
    %vm5716 = vcmp.gt.f32.partialorder %v5457, 0.0
    %vm5717 = vcmp.gt.f32.partialorder %v5537, 0.0
    %vm5718 = vcmp.gt.f32.partialorder %v5539, 0.0
    %vm5719 = vcmp.gt.f32.partialorder %v5619, 0.0
    %vm5720 = vcmp.gt.f32.partialorder %v5621, 0.0
    %vm5721 = vcmp.gt.f32.partialorder %v5701, 0.0
    %vm5722 = vcmp.gt.f32.partialorder %v5703, 0.0
    %v5723 = vmin.f32 %v5127, 0.0
    %v5724 = vmin.f32 %v5129, 0.0
    %v5725 = vmin.f32 %v5209, 0.0
    %v5726 = vmin.f32 %v5211, 0.0
    %v5727 = vmin.f32 %v5291, 0.0
    %v5728 = vmin.f32 %v5293, 0.0
    %v5729 = vmin.f32 %v5373, 0.0
    %v5730 = vmin.f32 %v5375, 0.0
    %v5731 = vmin.f32 %v5455, 0.0
    %v5732 = vmin.f32 %v5457, 0.0
    %v5733 = vmin.f32 %v5537, 0.0
    %v5734 = vmin.f32 %v5539, 0.0
    %v5735 = vmin.f32 %v5619, 0.0
    %v5736 = vmin.f32 %v5621, 0.0
    %v5737 = vmin.f32 %v5701, 0.0
    %v5738 = vmin.f32 %v5703, 0.0
    %v5739 = vmul.f32 %v5723, 1.442695
    %v5740 = vpow.pop %v5739
    %v5741 = vmul.f32 %v5724, 1.442695
    %v5742 = vpow.pop %v5741
    %v5743 = vmul.f32 %v5725, 1.442695
    %v5744 = vpow.pop %v5743
    %v5745 = vmul.f32 %v5726, 1.442695
    %v5746 = vpow.pop %v5745
    %v5747 = vmul.f32 %v5727, 1.442695
    %v5748 = vpow.pop %v5747
    %v5749 = vmul.f32 %v5728, 1.442695
    %v5750 = vpow.pop %v5749
    %v5751 = vmul.f32 %v5729, 1.442695
    %v5752 = vpow.pop %v5751
    %v5753 = vmul.f32 %v5730, 1.442695
    %v5754 = vpow.pop %v5753
    %v5755 = vmul.f32 %v5731, 1.442695
    %v5756 = vpow.pop %v5755
    %v5757 = vmul.f32 %v5732, 1.442695
    %v5758 = vpow.pop %v5757
    %v5759 = vmul.f32 %v5733, 1.442695
    %v5760 = vpow.pop %v5759
    %v5761 = vmul.f32 %v5734, 1.442695
    %v5762 = vpow.pop %v5761
    %v5763 = vmul.f32 %v5735, 1.442695
    %v5764 = vpow.pop %v5763
    %v5765 = vmul.f32 %v5736, 1.442695
    %v5766 = vpow.pop %v5765
    %v5767 = vmul.f32 %v5737, 1.442695
    %v5768 = vpow.pop %v5767
    %v5769 = vmul.f32 %v5738, 1.442695
    %v5770 = vpow.pop %v5769
    %v5771 = vsub.f32 %v5740, 1.0
    %v5772 = vsub.f32 %v5742, 1.0
    %v5773 = vsub.f32 %v5744, 1.0
    %v5774 = vsub.f32 %v5746, 1.0
    %v5775 = vsub.f32 %v5748, 1.0
    %v5776 = vsub.f32 %v5750, 1.0
    %v5777 = vsub.f32 %v5752, 1.0
    %v5778 = vsub.f32 %v5754, 1.0
    %v5779 = vsub.f32 %v5756, 1.0
    %v5780 = vsub.f32 %v5758, 1.0
    %v5781 = vsub.f32 %v5760, 1.0
    %v5782 = vsub.f32 %v5762, 1.0
    %v5783 = vsub.f32 %v5764, 1.0
    %v5784 = vsub.f32 %v5766, 1.0
    %v5785 = vsub.f32 %v5768, 1.0
    %v5786 = vsub.f32 %v5770, 1.0
    %v5787 = vsel %vm5707, %v5127, %v5771
    %v5788 = vsel %vm5708, %v5129, %v5772
    %v5789 = vsel %vm5709, %v5209, %v5773
    %v5790 = vsel %vm5710, %v5211, %v5774
    %v5791 = vsel %vm5711, %v5291, %v5775
    %v5792 = vsel %vm5712, %v5293, %v5776
    %v5793 = vsel %vm5713, %v5373, %v5777
    %v5794 = vsel %vm5714, %v5375, %v5778
    %v5795 = vsel %vm5715, %v5455, %v5779
    %v5796 = vsel %vm5716, %v5457, %v5780
    %v5797 = vsel %vm5717, %v5537, %v5781
    %v5798 = vsel %vm5718, %v5539, %v5782
    %v5799 = vsel %vm5719, %v5619, %v5783
    %v5800 = vsel %vm5720, %v5621, %v5784
    %v5801 = vsel %vm5721, %v5701, %v5785
    %v5802 = vsel %vm5722, %v5703, %v5786
    %v5803 = vld [vmem:[#allocation10] sm:$0xff]
    %v5804 = vld [vmem:[#allocation10 + $0x8] sm:$0xff]
    %v5805 = vld [vmem:[#allocation10 + $0x10] sm:$0xff]
    %v5806 = vld [vmem:[#allocation10 + $0x18] sm:$0xff]
    %v5807 = vld [vmem:[#allocation10 + $0x20] sm:$0xff]
    %v5808 = vld [vmem:[#allocation10 + $0x28] sm:$0xff]
    %v5809 = vld [vmem:[#allocation10 + $0x30] sm:$0xff]
    %v5810 = vld [vmem:[#allocation10 + $0x38] sm:$0xff]
    %v5811 = vld [vmem:[#allocation10 + $0x40] sm:$0xff]
    %v5812 = vld [vmem:[#allocation10 + $0x48] sm:$0xff]
    %v5813 = vld [vmem:[#allocation10 + $0x50] sm:$0xff]
    %v5814 = vld [vmem:[#allocation10 + $0x58] sm:$0xff]
    %v5815 = vld [vmem:[#allocation10 + $0x60] sm:$0xff]
    %v5816 = vld [vmem:[#allocation10 + $0x68] sm:$0xff]
    %v5817 = vld [vmem:[#allocation10 + $0x70] sm:$0xff]
    %v5818 = vld [vmem:[#allocation10 + $0x78] sm:$0xff]
    %v5819 = vld [vmem:[#allocation10 + $0x80] sm:$0xff]
    %v5820 = vld [vmem:[#allocation10 + $0x88] sm:$0xff]
    %v5821 = vld [vmem:[#allocation10 + $0x90] sm:$0xff]
    %v5822 = vld [vmem:[#allocation10 + $0x98] sm:$0xff]
    %v5823 = vld [vmem:[#allocation10 + $0xa0] sm:$0xff]
    %v5824 = vld [vmem:[#allocation10 + $0xa8] sm:$0xff]
    %v5825 = vld [vmem:[#allocation10 + $0xb0] sm:$0xff]
    %v5826 = vld [vmem:[#allocation10 + $0xb8] sm:$0xff]
    %v5827 = vld [vmem:[#allocation10 + $0xc0] sm:$0xff]
    %v5828 = vld [vmem:[#allocation10 + $0xc8] sm:$0xff]
    %v5829 = vld [vmem:[#allocation10 + $0xd0] sm:$0xff]
    %v5830 = vld [vmem:[#allocation10 + $0xd8] sm:$0xff]
    %v5831 = vld [vmem:[#allocation10 + $0xe0] sm:$0xff]
    %v5832 = vld [vmem:[#allocation10 + $0xe8] sm:$0xff]
    %v5833 = vld [vmem:[#allocation10 + $0xf0] sm:$0xff]
    %v5834 = vld [vmem:[#allocation10 + $0xf8] sm:$0xff]
    %v5835 = vld [vmem:[#allocation10 + $0x100] sm:$0xff]
    %v5836 = vld [vmem:[#allocation10 + $0x108] sm:$0xff]
    %v5837 = vld [vmem:[#allocation10 + $0x110] sm:$0xff]
    %v5838 = vld [vmem:[#allocation10 + $0x118] sm:$0xff]
    %v5839 = vld [vmem:[#allocation10 + $0x120] sm:$0xff]
    %v5840 = vld [vmem:[#allocation10 + $0x128] sm:$0xff]
    %v5841 = vld [vmem:[#allocation10 + $0x130] sm:$0xff]
    %v5842 = vld [vmem:[#allocation10 + $0x138] sm:$0xff]
    %v5843 = vld [vmem:[#allocation10 + $0x140] sm:$0xff]
    %v5844 = vld [vmem:[#allocation10 + $0x148] sm:$0xff]
    %v5845 = vld [vmem:[#allocation10 + $0x150] sm:$0xff]
    %v5846 = vld [vmem:[#allocation10 + $0x158] sm:$0xff]
    %v5847 = vld [vmem:[#allocation10 + $0x160] sm:$0xff]
    %v5848 = vld [vmem:[#allocation10 + $0x168] sm:$0xff]
    %v5849 = vld [vmem:[#allocation10 + $0x170] sm:$0xff]
    %v5850 = vld [vmem:[#allocation10 + $0x178] sm:$0xff]
    %v5851 = vld [vmem:[#allocation10 + $0x180] sm:$0xff]
    %v5852 = vld [vmem:[#allocation10 + $0x188] sm:$0xff]
    %v5853 = vld [vmem:[#allocation10 + $0x190] sm:$0xff]
    %v5854 = vld [vmem:[#allocation10 + $0x198] sm:$0xff]
    %v5855 = vld [vmem:[#allocation10 + $0x1a0] sm:$0xff]
    %v5856 = vld [vmem:[#allocation10 + $0x1a8] sm:$0xff]
    %v5857 = vld [vmem:[#allocation10 + $0x1b0] sm:$0xff]
    %v5858 = vld [vmem:[#allocation10 + $0x1b8] sm:$0xff]
    %v5859 = vld [vmem:[#allocation10 + $0x1c0] sm:$0xff]
    %v5860 = vld [vmem:[#allocation10 + $0x1c8] sm:$0xff]
    %v5861 = vld [vmem:[#allocation10 + $0x1d0] sm:$0xff]
    %v5862 = vld [vmem:[#allocation10 + $0x1d8] sm:$0xff]
    %v5863 = vld [vmem:[#allocation10 + $0x1e0] sm:$0xff]
    %v5864 = vld [vmem:[#allocation10 + $0x1e8] sm:$0xff]
    %v5865 = vld [vmem:[#allocation10 + $0x1f0] sm:$0xff]
    %v5866 = vld [vmem:[#allocation10 + $0x1f8] sm:$0xff]
    %v5867 = vld [vmem:[#allocation10 + $0x200] sm:$0xff]
    %v5868 = vld [vmem:[#allocation10 + $0x208] sm:$0xff]
    %v5869 = vld [vmem:[#allocation10 + $0x210] sm:$0xff]
    %v5870 = vld [vmem:[#allocation10 + $0x218] sm:$0xff]
    %v5871 = vld [vmem:[#allocation10 + $0x220] sm:$0xff]
    %v5872 = vld [vmem:[#allocation10 + $0x228] sm:$0xff]
    %v5873 = vld [vmem:[#allocation10 + $0x230] sm:$0xff]
    %v5874 = vld [vmem:[#allocation10 + $0x238] sm:$0xff]
    %v5875 = vld [vmem:[#allocation10 + $0x240] sm:$0xff]
    %v5876 = vld [vmem:[#allocation10 + $0x248] sm:$0xff]
    %v5877 = vld [vmem:[#allocation10 + $0x250] sm:$0xff]
    %v5878 = vld [vmem:[#allocation10 + $0x258] sm:$0xff]
    %v5879 = vld [vmem:[#allocation10 + $0x260] sm:$0xff]
    %v5880 = vld [vmem:[#allocation10 + $0x268] sm:$0xff]
    %v5881 = vld [vmem:[#allocation10 + $0x270] sm:$0xff]
    %v5882 = vld [vmem:[#allocation10 + $0x278] sm:$0xff]
    %v5883 = vld [vmem:[#allocation10 + $0x280] sm:$0xff]
    %v5884 = vld [vmem:[#allocation10 + $0x288] sm:$0xff]
    %v5885 = vld [vmem:[#allocation10 + $0x290] sm:$0xff]
    %v5886 = vld [vmem:[#allocation10 + $0x298] sm:$0xff]
    %v5887 = vld [vmem:[#allocation10 + $0x2a0] sm:$0xff]
    %v5888 = vld [vmem:[#allocation10 + $0x2a8] sm:$0xff]
    %v5889 = vld [vmem:[#allocation10 + $0x2b0] sm:$0xff]
    %v5890 = vld [vmem:[#allocation10 + $0x2b8] sm:$0xff]
    %v5891 = vld [vmem:[#allocation10 + $0x2c0] sm:$0xff]
    %v5892 = vld [vmem:[#allocation10 + $0x2c8] sm:$0xff]
    %v5893 = vld [vmem:[#allocation10 + $0x2d0] sm:$0xff]
    %v5894 = vld [vmem:[#allocation10 + $0x2d8] sm:$0xff]
    %v5895 = vld [vmem:[#allocation10 + $0x2e0] sm:$0xff]
    %v5896 = vld [vmem:[#allocation10 + $0x2e8] sm:$0xff]
    %v5897 = vld [vmem:[#allocation10 + $0x2f0] sm:$0xff]
    %v5898 = vld [vmem:[#allocation10 + $0x2f8] sm:$0xff]
    %v5899 = vld [vmem:[#allocation10 + $0x300] sm:$0xff]
    %v5900 = vld [vmem:[#allocation10 + $0x308] sm:$0xff]
    %v5901 = vld [vmem:[#allocation10 + $0x310] sm:$0xff]
    %v5902 = vld [vmem:[#allocation10 + $0x318] sm:$0xff]
    %v5903 = vld [vmem:[#allocation10 + $0x320] sm:$0xff]
    %v5904 = vld [vmem:[#allocation10 + $0x328] sm:$0xff]
    %v5905 = vld [vmem:[#allocation10 + $0x330] sm:$0xff]
    %v5906 = vld [vmem:[#allocation10 + $0x338] sm:$0xff]
    %v5907 = vld [vmem:[#allocation10 + $0x340] sm:$0xff]
    %v5908 = vld [vmem:[#allocation10 + $0x348] sm:$0xff]
    %v5909 = vld [vmem:[#allocation10 + $0x350] sm:$0xff]
    %v5910 = vld [vmem:[#allocation10 + $0x358] sm:$0xff]
    %v5911 = vld [vmem:[#allocation10 + $0x360] sm:$0xff]
    %v5912 = vld [vmem:[#allocation10 + $0x368] sm:$0xff]
    %v5913 = vld [vmem:[#allocation10 + $0x370] sm:$0xff]
    %v5914 = vld [vmem:[#allocation10 + $0x378] sm:$0xff]
    %v5915 = vld [vmem:[#allocation10 + $0x380] sm:$0xff]
    %v5916 = vld [vmem:[#allocation10 + $0x388] sm:$0xff]
    %v5917 = vld [vmem:[#allocation10 + $0x390] sm:$0xff]
    %v5918 = vld [vmem:[#allocation10 + $0x398] sm:$0xff]
    %v5919 = vld [vmem:[#allocation10 + $0x3a0] sm:$0xff]
    %v5920 = vld [vmem:[#allocation10 + $0x3a8] sm:$0xff]
    %v5921 = vld [vmem:[#allocation10 + $0x3b0] sm:$0xff]
    %v5922 = vld [vmem:[#allocation10 + $0x3b8] sm:$0xff]
    %v5923 = vld [vmem:[#allocation10 + $0x3c0] sm:$0xff]
    %v5924 = vld [vmem:[#allocation10 + $0x3c8] sm:$0xff]
    %v5925 = vld [vmem:[#allocation10 + $0x3d0] sm:$0xff]
    %v5926 = vld [vmem:[#allocation10 + $0x3d8] sm:$0xff]
    %v5927 = vld [vmem:[#allocation10 + $0x3e0] sm:$0xff]
    %v5928 = vld [vmem:[#allocation10 + $0x3e8] sm:$0xff]
    %v5929 = vld [vmem:[#allocation10 + $0x3f0] sm:$0xff]
    %v5930 = vld [vmem:[#allocation10 + $0x3f8] sm:$0xff]
    %v5931 = vld [vmem:[#allocation10 + $0x400] sm:$0xff]
    %v5932 = vld [vmem:[#allocation10 + $0x408] sm:$0xff]
    %v5933 = vld [vmem:[#allocation10 + $0x410] sm:$0xff]
    %v5934 = vld [vmem:[#allocation10 + $0x418] sm:$0xff]
    %v5935 = vld [vmem:[#allocation10 + $0x420] sm:$0xff]
    %v5936 = vld [vmem:[#allocation10 + $0x428] sm:$0xff]
    %v5937 = vld [vmem:[#allocation10 + $0x430] sm:$0xff]
    %v5938 = vld [vmem:[#allocation10 + $0x438] sm:$0xff]
    %v5939 = vld [vmem:[#allocation10 + $0x440] sm:$0xff]
    %v5940 = vld [vmem:[#allocation10 + $0x448] sm:$0xff]
    %v5941 = vld [vmem:[#allocation10 + $0x450] sm:$0xff]
    %v5942 = vld [vmem:[#allocation10 + $0x458] sm:$0xff]
    %v5943 = vld [vmem:[#allocation10 + $0x460] sm:$0xff]
    %v5944 = vld [vmem:[#allocation10 + $0x468] sm:$0xff]
    %v5945 = vld [vmem:[#allocation10 + $0x470] sm:$0xff]
    %v5946 = vld [vmem:[#allocation10 + $0x478] sm:$0xff]
    %v5947 = vld [vmem:[#allocation10 + $0x480] sm:$0xff]
    %v5948 = vld [vmem:[#allocation10 + $0x488] sm:$0xff]
    %v5949 = vld [vmem:[#allocation10 + $0x490] sm:$0xff]
    %v5950 = vld [vmem:[#allocation10 + $0x498] sm:$0xff]
    %v5951 = vld [vmem:[#allocation10 + $0x4a0] sm:$0xff]
    %v5952 = vld [vmem:[#allocation10 + $0x4a8] sm:$0xff]
    %v5953 = vld [vmem:[#allocation10 + $0x4b0] sm:$0xff]
    %v5954 = vld [vmem:[#allocation10 + $0x4b8] sm:$0xff]
    %v5955 = vld [vmem:[#allocation10 + $0x4c0] sm:$0xff]
    %v5956 = vld [vmem:[#allocation10 + $0x4c8] sm:$0xff]
    %v5957 = vld [vmem:[#allocation10 + $0x4d0] sm:$0xff]
    %v5958 = vld [vmem:[#allocation10 + $0x4d8] sm:$0xff]
    %v5959 = vld [vmem:[#allocation10 + $0x4e0] sm:$0xff]
    %v5960 = vld [vmem:[#allocation10 + $0x4e8] sm:$0xff]
    %v5961 = vld [vmem:[#allocation10 + $0x4f0] sm:$0xff]
    %v5962 = vld [vmem:[#allocation10 + $0x4f8] sm:$0xff]
    %v5963 = vld [vmem:[#allocation10 + $0x500] sm:$0xff]
    %v5964 = vld [vmem:[#allocation10 + $0x508] sm:$0xff]
    %v5965 = vld [vmem:[#allocation10 + $0x510] sm:$0xff]
    %v5966 = vld [vmem:[#allocation10 + $0x518] sm:$0xff]
    %v5967 = vld [vmem:[#allocation10 + $0x520] sm:$0xff]
    %v5968 = vld [vmem:[#allocation10 + $0x528] sm:$0xff]
    %v5969 = vld [vmem:[#allocation10 + $0x530] sm:$0xff]
    %v5970 = vld [vmem:[#allocation10 + $0x538] sm:$0xff]
    %v5971 = vld [vmem:[#allocation10 + $0x540] sm:$0xff]
    %v5972 = vld [vmem:[#allocation10 + $0x548] sm:$0xff]
    %v5973 = vld [vmem:[#allocation10 + $0x550] sm:$0xff]
    %v5974 = vld [vmem:[#allocation10 + $0x558] sm:$0xff]
    %v5975 = vld [vmem:[#allocation10 + $0x560] sm:$0xff]
    %v5976 = vld [vmem:[#allocation10 + $0x568] sm:$0xff]
    %v5977 = vld [vmem:[#allocation10 + $0x570] sm:$0xff]
    %v5978 = vld [vmem:[#allocation10 + $0x578] sm:$0xff]
    %v5979 = vld [vmem:[#allocation10 + $0x580] sm:$0xff]
    %v5980 = vld [vmem:[#allocation10 + $0x588] sm:$0xff]
    %v5981 = vld [vmem:[#allocation10 + $0x590] sm:$0xff]
    %v5982 = vld [vmem:[#allocation10 + $0x598] sm:$0xff]
    %v5983 = vld [vmem:[#allocation10 + $0x5a0] sm:$0xff]
    %v5984 = vld [vmem:[#allocation10 + $0x5a8] sm:$0xff]
    %v5985 = vld [vmem:[#allocation10 + $0x5b0] sm:$0xff]
    %v5986 = vld [vmem:[#allocation10 + $0x5b8] sm:$0xff]
    %v5987 = vld [vmem:[#allocation10 + $0x5c0] sm:$0xff]
    %v5988 = vld [vmem:[#allocation10 + $0x5c8] sm:$0xff]
    %v5989 = vld [vmem:[#allocation10 + $0x5d0] sm:$0xff]
    %v5990 = vld [vmem:[#allocation10 + $0x5d8] sm:$0xff]
    %v5991 = vld [vmem:[#allocation10 + $0x5e0] sm:$0xff]
    %v5992 = vld [vmem:[#allocation10 + $0x5e8] sm:$0xff]
    %v5993 = vld [vmem:[#allocation10 + $0x5f0] sm:$0xff]
    %v5994 = vld [vmem:[#allocation10 + $0x5f8] sm:$0xff]
    %v5995 = vld [vmem:[#allocation10 + $0x600] sm:$0xff]
    %v5996 = vld [vmem:[#allocation10 + $0x608] sm:$0xff]
    %v5997 = vld [vmem:[#allocation10 + $0x610] sm:$0xff]
    %v5998 = vld [vmem:[#allocation10 + $0x618] sm:$0xff]
    %v5999 = vld [vmem:[#allocation10 + $0x620] sm:$0xff]
    %v6000 = vld [vmem:[#allocation10 + $0x628] sm:$0xff]
    %v6001 = vld [vmem:[#allocation10 + $0x630] sm:$0xff]
    %v6002 = vld [vmem:[#allocation10 + $0x638] sm:$0xff]
    %v6003 = vld [vmem:[#allocation10 + $0x640] sm:$0xff]
    %v6004 = vld [vmem:[#allocation10 + $0x648] sm:$0xff]
    %v6005 = vld [vmem:[#allocation10 + $0x650] sm:$0xff]
    %v6006 = vld [vmem:[#allocation10 + $0x658] sm:$0xff]
    %v6007 = vld [vmem:[#allocation10 + $0x660] sm:$0xff]
    %v6008 = vld [vmem:[#allocation10 + $0x668] sm:$0xff]
    %v6009 = vld [vmem:[#allocation10 + $0x670] sm:$0xff]
    %v6010 = vld [vmem:[#allocation10 + $0x678] sm:$0xff]
    %v6011 = vld [vmem:[#allocation10 + $0x680] sm:$0xff]
    %v6012 = vld [vmem:[#allocation10 + $0x688] sm:$0xff]
    %v6013 = vld [vmem:[#allocation10 + $0x690] sm:$0xff]
    %v6014 = vld [vmem:[#allocation10 + $0x698] sm:$0xff]
    %v6015 = vld [vmem:[#allocation10 + $0x6a0] sm:$0xff]
    %v6016 = vld [vmem:[#allocation10 + $0x6a8] sm:$0xff]
    %v6017 = vld [vmem:[#allocation10 + $0x6b0] sm:$0xff]
    %v6018 = vld [vmem:[#allocation10 + $0x6b8] sm:$0xff]
    %v6019 = vld [vmem:[#allocation10 + $0x6c0] sm:$0xff]
    %v6020 = vld [vmem:[#allocation10 + $0x6c8] sm:$0xff]
    %v6021 = vld [vmem:[#allocation10 + $0x6d0] sm:$0xff]
    %v6022 = vld [vmem:[#allocation10 + $0x6d8] sm:$0xff]
    %v6023 = vld [vmem:[#allocation10 + $0x6e0] sm:$0xff]
    %v6024 = vld [vmem:[#allocation10 + $0x6e8] sm:$0xff]
    %v6025 = vld [vmem:[#allocation10 + $0x6f0] sm:$0xff]
    %v6026 = vld [vmem:[#allocation10 + $0x6f8] sm:$0xff]
    %v6027 = vld [vmem:[#allocation10 + $0x700] sm:$0xff]
    %v6028 = vld [vmem:[#allocation10 + $0x708] sm:$0xff]
    %v6029 = vld [vmem:[#allocation10 + $0x710] sm:$0xff]
    %v6030 = vld [vmem:[#allocation10 + $0x718] sm:$0xff]
    %v6031 = vld [vmem:[#allocation10 + $0x720] sm:$0xff]
    %v6032 = vld [vmem:[#allocation10 + $0x728] sm:$0xff]
    %v6033 = vld [vmem:[#allocation10 + $0x730] sm:$0xff]
    %v6034 = vld [vmem:[#allocation10 + $0x738] sm:$0xff]
    %v6035 = vld [vmem:[#allocation10 + $0x740] sm:$0xff]
    %v6036 = vld [vmem:[#allocation10 + $0x748] sm:$0xff]
    %v6037 = vld [vmem:[#allocation10 + $0x750] sm:$0xff]
    %v6038 = vld [vmem:[#allocation10 + $0x758] sm:$0xff]
    %v6039 = vld [vmem:[#allocation10 + $0x760] sm:$0xff]
    %v6040 = vld [vmem:[#allocation10 + $0x768] sm:$0xff]
    %v6041 = vld [vmem:[#allocation10 + $0x770] sm:$0xff]
    %v6042 = vld [vmem:[#allocation10 + $0x778] sm:$0xff]
    %v6043 = vld [vmem:[#allocation10 + $0x780] sm:$0xff]
    %v6044 = vld [vmem:[#allocation10 + $0x788] sm:$0xff]
    %v6045 = vld [vmem:[#allocation10 + $0x790] sm:$0xff]
    %v6046 = vld [vmem:[#allocation10 + $0x798] sm:$0xff]
    %v6047 = vld [vmem:[#allocation10 + $0x7a0] sm:$0xff]
    %v6048 = vld [vmem:[#allocation10 + $0x7a8] sm:$0xff]
    %v6049 = vld [vmem:[#allocation10 + $0x7b0] sm:$0xff]
    %v6050 = vld [vmem:[#allocation10 + $0x7b8] sm:$0xff]
    %v6051 = vld [vmem:[#allocation10 + $0x7c0] sm:$0xff]
    %v6052 = vld [vmem:[#allocation10 + $0x7c8] sm:$0xff]
    %v6053 = vld [vmem:[#allocation10 + $0x7d0] sm:$0xff]
    %v6054 = vld [vmem:[#allocation10 + $0x7d8] sm:$0xff]
    %v6055 = vld [vmem:[#allocation10 + $0x7e0] sm:$0xff]
    %v6056 = vld [vmem:[#allocation10 + $0x7e8] sm:$0xff]
    %v6057 = vld [vmem:[#allocation10 + $0x7f0] sm:$0xff]
    %v6058 = vld [vmem:[#allocation10 + $0x7f8] sm:$0xff]
    %v6059 = vld [vmem:[#allocation10 + $0x800] sm:$0xff]
    %v6060 = vld [vmem:[#allocation10 + $0x808] sm:$0xff]
    %v6061 = vld [vmem:[#allocation10 + $0x810] sm:$0xff]
    %v6062 = vld [vmem:[#allocation10 + $0x818] sm:$0xff]
    %v6063 = vld [vmem:[#allocation10 + $0x820] sm:$0xff]
    %v6064 = vld [vmem:[#allocation10 + $0x828] sm:$0xff]
    %v6065 = vld [vmem:[#allocation10 + $0x830] sm:$0xff]
    %v6066 = vld [vmem:[#allocation10 + $0x838] sm:$0xff]
    %v6067 = vld [vmem:[#allocation10 + $0x840] sm:$0xff]
    %v6068 = vld [vmem:[#allocation10 + $0x848] sm:$0xff]
    %v6069 = vld [vmem:[#allocation10 + $0x850] sm:$0xff]
    %v6070 = vld [vmem:[#allocation10 + $0x858] sm:$0xff]
    %v6071 = vld [vmem:[#allocation10 + $0x860] sm:$0xff]
    %v6072 = vld [vmem:[#allocation10 + $0x868] sm:$0xff]
    %v6073 = vld [vmem:[#allocation10 + $0x870] sm:$0xff]
    %v6074 = vld [vmem:[#allocation10 + $0x878] sm:$0xff]
    %v6075 = vld [vmem:[#allocation10 + $0x880] sm:$0xff]
    %v6076 = vld [vmem:[#allocation10 + $0x888] sm:$0xff]
    %v6077 = vld [vmem:[#allocation10 + $0x890] sm:$0xff]
    %v6078 = vld [vmem:[#allocation10 + $0x898] sm:$0xff]
    %v6079 = vld [vmem:[#allocation10 + $0x8a0] sm:$0xff]
    %v6080 = vld [vmem:[#allocation10 + $0x8a8] sm:$0xff]
    %v6081 = vld [vmem:[#allocation10 + $0x8b0] sm:$0xff]
    %v6082 = vld [vmem:[#allocation10 + $0x8b8] sm:$0xff]
    %v6083 = vld [vmem:[#allocation10 + $0x8c0] sm:$0xff]
    %v6084 = vld [vmem:[#allocation10 + $0x8c8] sm:$0xff]
    %v6085 = vld [vmem:[#allocation10 + $0x8d0] sm:$0xff]
    %v6086 = vld [vmem:[#allocation10 + $0x8d8] sm:$0xff]
    %v6087 = vld [vmem:[#allocation10 + $0x8e0] sm:$0xff]
    %v6088 = vld [vmem:[#allocation10 + $0x8e8] sm:$0xff]
    %v6089 = vld [vmem:[#allocation10 + $0x8f0] sm:$0xff]
    %v6090 = vld [vmem:[#allocation10 + $0x8f8] sm:$0xff]
    %v6091 = vld [vmem:[#allocation10 + $0x900] sm:$0xff]
    %v6092 = vld [vmem:[#allocation10 + $0x908] sm:$0xff]
    %v6093 = vld [vmem:[#allocation10 + $0x910] sm:$0xff]
    %v6094 = vld [vmem:[#allocation10 + $0x918] sm:$0xff]
    %v6095 = vld [vmem:[#allocation10 + $0x920] sm:$0xff]
    %v6096 = vld [vmem:[#allocation10 + $0x928] sm:$0xff]
    %v6097 = vld [vmem:[#allocation10 + $0x930] sm:$0xff]
    %v6098 = vld [vmem:[#allocation10 + $0x938] sm:$0xff]
    %v6099 = vld [vmem:[#allocation10 + $0x940] sm:$0xff]
    %v6100 = vld [vmem:[#allocation10 + $0x948] sm:$0xff]
    %v6101 = vld [vmem:[#allocation10 + $0x950] sm:$0xff]
    %v6102 = vld [vmem:[#allocation10 + $0x958] sm:$0xff]
    %v6103 = vld [vmem:[#allocation10 + $0x960] sm:$0xff]
    %v6104 = vld [vmem:[#allocation10 + $0x968] sm:$0xff]
    %v6105 = vld [vmem:[#allocation10 + $0x970] sm:$0xff]
    %v6106 = vld [vmem:[#allocation10 + $0x978] sm:$0xff]
    %v6107 = vld [vmem:[#allocation10 + $0x980] sm:$0xff]
    %v6108 = vld [vmem:[#allocation10 + $0x988] sm:$0xff]
    %v6109 = vld [vmem:[#allocation10 + $0x990] sm:$0xff]
    %v6110 = vld [vmem:[#allocation10 + $0x998] sm:$0xff]
    %v6111 = vld [vmem:[#allocation10 + $0x9a0] sm:$0xff]
    %v6112 = vld [vmem:[#allocation10 + $0x9a8] sm:$0xff]
    %v6113 = vld [vmem:[#allocation10 + $0x9b0] sm:$0xff]
    %v6114 = vld [vmem:[#allocation10 + $0x9b8] sm:$0xff]
    %v6115 = vld [vmem:[#allocation10 + $0x9c0] sm:$0xff]
    %v6116 = vld [vmem:[#allocation10 + $0x9c8] sm:$0xff]
    %v6117 = vld [vmem:[#allocation10 + $0x9d0] sm:$0xff]
    %v6118 = vld [vmem:[#allocation10 + $0x9d8] sm:$0xff]
    %v6119 = vld [vmem:[#allocation10 + $0x9e0] sm:$0xff]
    %v6120 = vld [vmem:[#allocation10 + $0x9e8] sm:$0xff]
    %v6121 = vld [vmem:[#allocation10 + $0x9f0] sm:$0xff]
    %v6122 = vld [vmem:[#allocation10 + $0x9f8] sm:$0xff]
    %v6123 = vld [vmem:[#allocation10 + $0xa00] sm:$0xff]
    %v6124 = vld [vmem:[#allocation10 + $0xa08] sm:$0xff]
    %v6125 = vld [vmem:[#allocation10 + $0xa10] sm:$0xff]
    %v6126 = vld [vmem:[#allocation10 + $0xa18] sm:$0xff]
    %v6127 = vld [vmem:[#allocation10 + $0xa20] sm:$0xff]
    %v6128 = vld [vmem:[#allocation10 + $0xa28] sm:$0xff]
    %v6129 = vld [vmem:[#allocation10 + $0xa30] sm:$0xff]
    %v6130 = vld [vmem:[#allocation10 + $0xa38] sm:$0xff]
    %v6131 = vld [vmem:[#allocation10 + $0xa40] sm:$0xff]
    %v6132 = vld [vmem:[#allocation10 + $0xa48] sm:$0xff]
    %v6133 = vld [vmem:[#allocation10 + $0xa50] sm:$0xff]
    %v6134 = vld [vmem:[#allocation10 + $0xa58] sm:$0xff]
    %v6135 = vld [vmem:[#allocation10 + $0xa60] sm:$0xff]
    %v6136 = vld [vmem:[#allocation10 + $0xa68] sm:$0xff]
    %v6137 = vld [vmem:[#allocation10 + $0xa70] sm:$0xff]
    %v6138 = vld [vmem:[#allocation10 + $0xa78] sm:$0xff]
    %v6139 = vld [vmem:[#allocation10 + $0xa80] sm:$0xff]
    %v6140 = vld [vmem:[#allocation10 + $0xa88] sm:$0xff]
    %v6141 = vld [vmem:[#allocation10 + $0xa90] sm:$0xff]
    %v6142 = vld [vmem:[#allocation10 + $0xa98] sm:$0xff]
    %v6143 = vld [vmem:[#allocation10 + $0xaa0] sm:$0xff]
    %v6144 = vld [vmem:[#allocation10 + $0xaa8] sm:$0xff]
    %v6145 = vld [vmem:[#allocation10 + $0xab0] sm:$0xff]
    %v6146 = vld [vmem:[#allocation10 + $0xab8] sm:$0xff]
    %v6147 = vld [vmem:[#allocation10 + $0xac0] sm:$0xff]
    %v6148 = vld [vmem:[#allocation10 + $0xac8] sm:$0xff]
    %v6149 = vld [vmem:[#allocation10 + $0xad0] sm:$0xff]
    %v6150 = vld [vmem:[#allocation10 + $0xad8] sm:$0xff]
    %v6151 = vld [vmem:[#allocation10 + $0xae0] sm:$0xff]
    %v6152 = vld [vmem:[#allocation10 + $0xae8] sm:$0xff]
    %v6153 = vld [vmem:[#allocation10 + $0xaf0] sm:$0xff]
    %v6154 = vld [vmem:[#allocation10 + $0xaf8] sm:$0xff]
    %v6155 = vld [vmem:[#allocation10 + $0xb00] sm:$0xff]
    %v6156 = vld [vmem:[#allocation10 + $0xb08] sm:$0xff]
    %v6157 = vld [vmem:[#allocation10 + $0xb10] sm:$0xff]
    %v6158 = vld [vmem:[#allocation10 + $0xb18] sm:$0xff]
    %v6159 = vld [vmem:[#allocation10 + $0xb20] sm:$0xff]
    %v6160 = vld [vmem:[#allocation10 + $0xb28] sm:$0xff]
    %v6161 = vld [vmem:[#allocation10 + $0xb30] sm:$0xff]
    %v6162 = vld [vmem:[#allocation10 + $0xb38] sm:$0xff]
    %v6163 = vld [vmem:[#allocation10 + $0xb40] sm:$0xff]
    %v6164 = vld [vmem:[#allocation10 + $0xb48] sm:$0xff]
    %v6165 = vld [vmem:[#allocation10 + $0xb50] sm:$0xff]
    %v6166 = vld [vmem:[#allocation10 + $0xb58] sm:$0xff]
    %v6167 = vld [vmem:[#allocation10 + $0xb60] sm:$0xff]
    %v6168 = vld [vmem:[#allocation10 + $0xb68] sm:$0xff]
    %v6169 = vld [vmem:[#allocation10 + $0xb70] sm:$0xff]
    %v6170 = vld [vmem:[#allocation10 + $0xb78] sm:$0xff]
    %v6171 = vld [vmem:[#allocation10 + $0xb80] sm:$0xff]
    %v6172 = vld [vmem:[#allocation10 + $0xb88] sm:$0xff]
    %v6173 = vld [vmem:[#allocation10 + $0xb90] sm:$0xff]
    %v6174 = vld [vmem:[#allocation10 + $0xb98] sm:$0xff]
    %v6175 = vld [vmem:[#allocation10 + $0xba0] sm:$0xff]
    %v6176 = vld [vmem:[#allocation10 + $0xba8] sm:$0xff]
    %v6177 = vld [vmem:[#allocation10 + $0xbb0] sm:$0xff]
    %v6178 = vld [vmem:[#allocation10 + $0xbb8] sm:$0xff]
    %v6179 = vld [vmem:[#allocation10 + $0xbc0] sm:$0xff]
    %v6180 = vld [vmem:[#allocation10 + $0xbc8] sm:$0xff]
    %v6181 = vld [vmem:[#allocation10 + $0xbd0] sm:$0xff]
    %v6182 = vld [vmem:[#allocation10 + $0xbd8] sm:$0xff]
    %v6183 = vld [vmem:[#allocation10 + $0xbe0] sm:$0xff]
    %v6184 = vld [vmem:[#allocation10 + $0xbe8] sm:$0xff]
    %v6185 = vld [vmem:[#allocation10 + $0xbf0] sm:$0xff]
    %v6186 = vld [vmem:[#allocation10 + $0xbf8] sm:$0xff]
    %v6187 = vld [vmem:[#allocation10 + $0xc00] sm:$0xff]
    %v6188 = vld [vmem:[#allocation10 + $0xc08] sm:$0xff]
    %v6189 = vld [vmem:[#allocation10 + $0xc10] sm:$0xff]
    %v6190 = vld [vmem:[#allocation10 + $0xc18] sm:$0xff]
    %v6191 = vld [vmem:[#allocation10 + $0xc20] sm:$0xff]
    %v6192 = vld [vmem:[#allocation10 + $0xc28] sm:$0xff]
    %v6193 = vld [vmem:[#allocation10 + $0xc30] sm:$0xff]
    %v6194 = vld [vmem:[#allocation10 + $0xc38] sm:$0xff]
    %v6195 = vld [vmem:[#allocation10 + $0xc40] sm:$0xff]
    %v6196 = vld [vmem:[#allocation10 + $0xc48] sm:$0xff]
    %v6197 = vld [vmem:[#allocation10 + $0xc50] sm:$0xff]
    %v6198 = vld [vmem:[#allocation10 + $0xc58] sm:$0xff]
    %v6199 = vld [vmem:[#allocation10 + $0xc60] sm:$0xff]
    %v6200 = vld [vmem:[#allocation10 + $0xc68] sm:$0xff]
    %v6201 = vld [vmem:[#allocation10 + $0xc70] sm:$0xff]
    %v6202 = vld [vmem:[#allocation10 + $0xc78] sm:$0xff]
    %v6203 = vld [vmem:[#allocation10 + $0xc80] sm:$0xff]
    %v6204 = vld [vmem:[#allocation10 + $0xc88] sm:$0xff]
    %v6205 = vld [vmem:[#allocation10 + $0xc90] sm:$0xff]
    %v6206 = vld [vmem:[#allocation10 + $0xc98] sm:$0xff]
    %v6207 = vld [vmem:[#allocation10 + $0xca0] sm:$0xff]
    %v6208 = vld [vmem:[#allocation10 + $0xca8] sm:$0xff]
    %v6209 = vld [vmem:[#allocation10 + $0xcb0] sm:$0xff]
    %v6210 = vld [vmem:[#allocation10 + $0xcb8] sm:$0xff]
    %v6211 = vld [vmem:[#allocation10 + $0xcc0] sm:$0xff]
    %v6212 = vld [vmem:[#allocation10 + $0xcc8] sm:$0xff]
    %v6213 = vld [vmem:[#allocation10 + $0xcd0] sm:$0xff]
    %v6214 = vld [vmem:[#allocation10 + $0xcd8] sm:$0xff]
    %v6215 = vld [vmem:[#allocation10 + $0xce0] sm:$0xff]
    %v6216 = vld [vmem:[#allocation10 + $0xce8] sm:$0xff]
    %v6217 = vld [vmem:[#allocation10 + $0xcf0] sm:$0xff]
    %v6218 = vld [vmem:[#allocation10 + $0xcf8] sm:$0xff]
    %v6219 = vld [vmem:[#allocation10 + $0xd00] sm:$0xff]
    %v6220 = vld [vmem:[#allocation10 + $0xd08] sm:$0xff]
    %v6221 = vld [vmem:[#allocation10 + $0xd10] sm:$0xff]
    %v6222 = vld [vmem:[#allocation10 + $0xd18] sm:$0xff]
    %v6223 = vld [vmem:[#allocation10 + $0xd20] sm:$0xff]
    %v6224 = vld [vmem:[#allocation10 + $0xd28] sm:$0xff]
    %v6225 = vld [vmem:[#allocation10 + $0xd30] sm:$0xff]
    %v6226 = vld [vmem:[#allocation10 + $0xd38] sm:$0xff]
    %v6227 = vld [vmem:[#allocation10 + $0xd40] sm:$0xff]
    %v6228 = vld [vmem:[#allocation10 + $0xd48] sm:$0xff]
    %v6229 = vld [vmem:[#allocation10 + $0xd50] sm:$0xff]
    %v6230 = vld [vmem:[#allocation10 + $0xd58] sm:$0xff]
    %v6231 = vld [vmem:[#allocation10 + $0xd60] sm:$0xff]
    %v6232 = vld [vmem:[#allocation10 + $0xd68] sm:$0xff]
    %v6233 = vld [vmem:[#allocation10 + $0xd70] sm:$0xff]
    %v6234 = vld [vmem:[#allocation10 + $0xd78] sm:$0xff]
    %v6235 = vld [vmem:[#allocation10 + $0xd80] sm:$0xff]
    %v6236 = vld [vmem:[#allocation10 + $0xd88] sm:$0xff]
    %v6237 = vld [vmem:[#allocation10 + $0xd90] sm:$0xff]
    %v6238 = vld [vmem:[#allocation10 + $0xd98] sm:$0xff]
    %v6239 = vld [vmem:[#allocation10 + $0xda0] sm:$0xff]
    %v6240 = vld [vmem:[#allocation10 + $0xda8] sm:$0xff]
    %v6241 = vld [vmem:[#allocation10 + $0xdb0] sm:$0xff]
    %v6242 = vld [vmem:[#allocation10 + $0xdb8] sm:$0xff]
    %v6243 = vld [vmem:[#allocation10 + $0xdc0] sm:$0xff]
    %v6244 = vld [vmem:[#allocation10 + $0xdc8] sm:$0xff]
    %v6245 = vld [vmem:[#allocation10 + $0xdd0] sm:$0xff]
    %v6246 = vld [vmem:[#allocation10 + $0xdd8] sm:$0xff]
    %v6247 = vld [vmem:[#allocation10 + $0xde0] sm:$0xff]
    %v6248 = vld [vmem:[#allocation10 + $0xde8] sm:$0xff]
    %v6249 = vld [vmem:[#allocation10 + $0xdf0] sm:$0xff]
    %v6250 = vld [vmem:[#allocation10 + $0xdf8] sm:$0xff]
    %v6251 = vld [vmem:[#allocation10 + $0xe00] sm:$0xff]
    %v6252 = vld [vmem:[#allocation10 + $0xe08] sm:$0xff]
    %v6253 = vld [vmem:[#allocation10 + $0xe10] sm:$0xff]
    %v6254 = vld [vmem:[#allocation10 + $0xe18] sm:$0xff]
    %v6255 = vld [vmem:[#allocation10 + $0xe20] sm:$0xff]
    %v6256 = vld [vmem:[#allocation10 + $0xe28] sm:$0xff]
    %v6257 = vld [vmem:[#allocation10 + $0xe30] sm:$0xff]
    %v6258 = vld [vmem:[#allocation10 + $0xe38] sm:$0xff]
    %v6259 = vld [vmem:[#allocation10 + $0xe40] sm:$0xff]
    %v6260 = vld [vmem:[#allocation10 + $0xe48] sm:$0xff]
    %v6261 = vld [vmem:[#allocation10 + $0xe50] sm:$0xff]
    %v6262 = vld [vmem:[#allocation10 + $0xe58] sm:$0xff]
    %v6263 = vld [vmem:[#allocation10 + $0xe60] sm:$0xff]
    %v6264 = vld [vmem:[#allocation10 + $0xe68] sm:$0xff]
    %v6265 = vld [vmem:[#allocation10 + $0xe70] sm:$0xff]
    %v6266 = vld [vmem:[#allocation10 + $0xe78] sm:$0xff]
    %v6267 = vld [vmem:[#allocation10 + $0xe80] sm:$0xff]
    %v6268 = vld [vmem:[#allocation10 + $0xe88] sm:$0xff]
    %v6269 = vld [vmem:[#allocation10 + $0xe90] sm:$0xff]
    %v6270 = vld [vmem:[#allocation10 + $0xe98] sm:$0xff]
    %v6271 = vld [vmem:[#allocation10 + $0xea0] sm:$0xff]
    %v6272 = vld [vmem:[#allocation10 + $0xea8] sm:$0xff]
    %v6273 = vld [vmem:[#allocation10 + $0xeb0] sm:$0xff]
    %v6274 = vld [vmem:[#allocation10 + $0xeb8] sm:$0xff]
    %v6275 = vld [vmem:[#allocation10 + $0xec0] sm:$0xff]
    %v6276 = vld [vmem:[#allocation10 + $0xec8] sm:$0xff]
    %v6277 = vld [vmem:[#allocation10 + $0xed0] sm:$0xff]
    %v6278 = vld [vmem:[#allocation10 + $0xed8] sm:$0xff]
    %v6279 = vld [vmem:[#allocation10 + $0xee0] sm:$0xff]
    %v6280 = vld [vmem:[#allocation10 + $0xee8] sm:$0xff]
    %v6281 = vld [vmem:[#allocation10 + $0xef0] sm:$0xff]
    %v6282 = vld [vmem:[#allocation10 + $0xef8] sm:$0xff]
    %v6283 = vld [vmem:[#allocation10 + $0xf00] sm:$0xff]
    %v6284 = vld [vmem:[#allocation10 + $0xf08] sm:$0xff]
    %v6285 = vld [vmem:[#allocation10 + $0xf10] sm:$0xff]
    %v6286 = vld [vmem:[#allocation10 + $0xf18] sm:$0xff]
    %v6287 = vld [vmem:[#allocation10 + $0xf20] sm:$0xff]
    %v6288 = vld [vmem:[#allocation10 + $0xf28] sm:$0xff]
    %v6289 = vld [vmem:[#allocation10 + $0xf30] sm:$0xff]
    %v6290 = vld [vmem:[#allocation10 + $0xf38] sm:$0xff]
    %v6291 = vld [vmem:[#allocation10 + $0xf40] sm:$0xff]
    %v6292 = vld [vmem:[#allocation10 + $0xf48] sm:$0xff]
    %v6293 = vld [vmem:[#allocation10 + $0xf50] sm:$0xff]
    %v6294 = vld [vmem:[#allocation10 + $0xf58] sm:$0xff]
    %v6295 = vld [vmem:[#allocation10 + $0xf60] sm:$0xff]
    %v6296 = vld [vmem:[#allocation10 + $0xf68] sm:$0xff]
    %v6297 = vld [vmem:[#allocation10 + $0xf70] sm:$0xff]
    %v6298 = vld [vmem:[#allocation10 + $0xf78] sm:$0xff]
    %v6299 = vld [vmem:[#allocation10 + $0xf80] sm:$0xff]
    %v6300 = vld [vmem:[#allocation10 + $0xf88] sm:$0xff]
    %v6301 = vld [vmem:[#allocation10 + $0xf90] sm:$0xff]
    %v6302 = vld [vmem:[#allocation10 + $0xf98] sm:$0xff]
    %v6303 = vld [vmem:[#allocation10 + $0xfa0] sm:$0xff]
    %v6304 = vld [vmem:[#allocation10 + $0xfa8] sm:$0xff]
    %v6305 = vld [vmem:[#allocation10 + $0xfb0] sm:$0xff]
    %v6306 = vld [vmem:[#allocation10 + $0xfb8] sm:$0xff]
    %v6307 = vld [vmem:[#allocation10 + $0xfc0] sm:$0xff]
    %v6308 = vld [vmem:[#allocation10 + $0xfc8] sm:$0xff]
    %v6309 = vld [vmem:[#allocation10 + $0xfd0] sm:$0xff]
    %v6310 = vld [vmem:[#allocation10 + $0xfd8] sm:$0xff]
    %v6311 = vld [vmem:[#allocation10 + $0xfe0] sm:$0xff]
    %v6312 = vld [vmem:[#allocation10 + $0xfe8] sm:$0xff]
    %v6313 = vld [vmem:[#allocation10 + $0xff0] sm:$0xff]
    %v6314 = vld [vmem:[#allocation10 + $0xff8] sm:$0xff]
    %v6315 = vld [vmem:[#allocation10 + $0x1000] sm:$0xff]
    %v6316 = vld [vmem:[#allocation10 + $0x1008] sm:$0xff]
    %v6317 = vld [vmem:[#allocation10 + $0x1010] sm:$0xff]
    %v6318 = vld [vmem:[#allocation10 + $0x1018] sm:$0xff]
    %v6319 = vld [vmem:[#allocation10 + $0x1020] sm:$0xff]
    %v6320 = vld [vmem:[#allocation10 + $0x1028] sm:$0xff]
    %v6321 = vld [vmem:[#allocation10 + $0x1030] sm:$0xff]
    %v6322 = vld [vmem:[#allocation10 + $0x1038] sm:$0xff]
    %v6323 = vld [vmem:[#allocation10 + $0x1040] sm:$0xff]
    %v6324 = vld [vmem:[#allocation10 + $0x1048] sm:$0xff]
    %v6325 = vld [vmem:[#allocation10 + $0x1050] sm:$0xff]
    %v6326 = vld [vmem:[#allocation10 + $0x1058] sm:$0xff]
    %v6327 = vld [vmem:[#allocation10 + $0x1060] sm:$0xff]
    %v6328 = vld [vmem:[#allocation10 + $0x1068] sm:$0xff]
    %v6329 = vld [vmem:[#allocation10 + $0x1070] sm:$0xff]
    %v6330 = vld [vmem:[#allocation10 + $0x1078] sm:$0xff]
    %v6331 = vld [vmem:[#allocation10 + $0x1080] sm:$0xff]
    %v6332 = vld [vmem:[#allocation10 + $0x1088] sm:$0xff]
    %v6333 = vld [vmem:[#allocation10 + $0x1090] sm:$0xff]
    %v6334 = vld [vmem:[#allocation10 + $0x1098] sm:$0xff]
    %v6335 = vld [vmem:[#allocation10 + $0x10a0] sm:$0xff]
    %v6336 = vld [vmem:[#allocation10 + $0x10a8] sm:$0xff]
    %v6337 = vld [vmem:[#allocation10 + $0x10b0] sm:$0xff]
    %v6338 = vld [vmem:[#allocation10 + $0x10b8] sm:$0xff]
    %v6339 = vld [vmem:[#allocation10 + $0x10c0] sm:$0xff]
    %v6340 = vld [vmem:[#allocation10 + $0x10c8] sm:$0xff]
    %v6341 = vld [vmem:[#allocation10 + $0x10d0] sm:$0xff]
    %v6342 = vld [vmem:[#allocation10 + $0x10d8] sm:$0xff]
    %v6343 = vld [vmem:[#allocation10 + $0x10e0] sm:$0xff]
    %v6344 = vld [vmem:[#allocation10 + $0x10e8] sm:$0xff]
    %v6345 = vld [vmem:[#allocation10 + $0x10f0] sm:$0xff]
    %v6346 = vld [vmem:[#allocation10 + $0x10f8] sm:$0xff]
    %v6347 = vld [vmem:[#allocation10 + $0x1100] sm:$0xff]
    %v6348 = vld [vmem:[#allocation10 + $0x1108] sm:$0xff]
    %v6349 = vld [vmem:[#allocation10 + $0x1110] sm:$0xff]
    %v6350 = vld [vmem:[#allocation10 + $0x1118] sm:$0xff]
    %v6351 = vld [vmem:[#allocation10 + $0x1120] sm:$0xff]
    %v6352 = vld [vmem:[#allocation10 + $0x1128] sm:$0xff]
    %v6353 = vld [vmem:[#allocation10 + $0x1130] sm:$0xff]
    %v6354 = vld [vmem:[#allocation10 + $0x1138] sm:$0xff]
    %v6355 = vld [vmem:[#allocation10 + $0x1140] sm:$0xff]
    %v6356 = vld [vmem:[#allocation10 + $0x1148] sm:$0xff]
    %v6357 = vld [vmem:[#allocation10 + $0x1150] sm:$0xff]
    %v6358 = vld [vmem:[#allocation10 + $0x1158] sm:$0xff]
    %v6359 = vld [vmem:[#allocation10 + $0x1160] sm:$0xff]
    %v6360 = vld [vmem:[#allocation10 + $0x1168] sm:$0xff]
    %v6361 = vld [vmem:[#allocation10 + $0x1170] sm:$0xff]
    %v6362 = vld [vmem:[#allocation10 + $0x1178] sm:$0xff]
    %v6363 = vld [vmem:[#allocation10 + $0x1180] sm:$0xff]
    %v6364 = vld [vmem:[#allocation10 + $0x1188] sm:$0xff]
    %v6365 = vld [vmem:[#allocation10 + $0x1190] sm:$0xff]
    %v6366 = vld [vmem:[#allocation10 + $0x1198] sm:$0xff]
    %v6367 = vld [vmem:[#allocation10 + $0x11a0] sm:$0xff]
    %v6368 = vld [vmem:[#allocation10 + $0x11a8] sm:$0xff]
    %v6369 = vld [vmem:[#allocation10 + $0x11b0] sm:$0xff]
    %v6370 = vld [vmem:[#allocation10 + $0x11b8] sm:$0xff]
    %v6371 = vld [vmem:[#allocation10 + $0x11c0] sm:$0xff]
    %v6372 = vld [vmem:[#allocation10 + $0x11c8] sm:$0xff]
    %v6373 = vld [vmem:[#allocation10 + $0x11d0] sm:$0xff]
    %v6374 = vld [vmem:[#allocation10 + $0x11d8] sm:$0xff]
    %v6375 = vld [vmem:[#allocation10 + $0x11e0] sm:$0xff]
    %v6376 = vld [vmem:[#allocation10 + $0x11e8] sm:$0xff]
    %v6377 = vld [vmem:[#allocation10 + $0x11f0] sm:$0xff]
    %v6378 = vld [vmem:[#allocation10 + $0x11f8] sm:$0xff]
    %v6379 = vld [vmem:[#allocation10 + $0x1200] sm:$0xff]
    %v6380 = vld [vmem:[#allocation10 + $0x1208] sm:$0xff]
    %v6381 = vld [vmem:[#allocation10 + $0x1210] sm:$0xff]
    %v6382 = vld [vmem:[#allocation10 + $0x1218] sm:$0xff]
    %v6383 = vld [vmem:[#allocation10 + $0x1220] sm:$0xff]
    %v6384 = vld [vmem:[#allocation10 + $0x1228] sm:$0xff]
    %v6385 = vld [vmem:[#allocation10 + $0x1230] sm:$0xff]
    %v6386 = vld [vmem:[#allocation10 + $0x1238] sm:$0xff]
    %v6387 = vld [vmem:[#allocation10 + $0x1240] sm:$0xff]
    %v6388 = vld [vmem:[#allocation10 + $0x1248] sm:$0xff]
    %v6389 = vld [vmem:[#allocation10 + $0x1250] sm:$0xff]
    %v6390 = vld [vmem:[#allocation10 + $0x1258] sm:$0xff]
    %v6391 = vld [vmem:[#allocation10 + $0x1260] sm:$0xff]
    %v6392 = vld [vmem:[#allocation10 + $0x1268] sm:$0xff]
    %v6393 = vld [vmem:[#allocation10 + $0x1270] sm:$0xff]
    %v6394 = vld [vmem:[#allocation10 + $0x1278] sm:$0xff]
    %v6395 = vld [vmem:[#allocation10 + $0x1280] sm:$0xff]
    %v6396 = vld [vmem:[#allocation10 + $0x1288] sm:$0xff]
    %v6397 = vld [vmem:[#allocation10 + $0x1290] sm:$0xff]
    %v6398 = vld [vmem:[#allocation10 + $0x1298] sm:$0xff]
    %v6399 = vld [vmem:[#allocation10 + $0x12a0] sm:$0xff]
    %v6400 = vld [vmem:[#allocation10 + $0x12a8] sm:$0xff]
    %v6401 = vld [vmem:[#allocation10 + $0x12b0] sm:$0xff]
    %v6402 = vld [vmem:[#allocation10 + $0x12b8] sm:$0xff]
    %v6403 = vld [vmem:[#allocation10 + $0x12c0] sm:$0xff]
    %v6404 = vld [vmem:[#allocation10 + $0x12c8] sm:$0xff]
    %v6405 = vld [vmem:[#allocation10 + $0x12d0] sm:$0xff]
    %v6406 = vld [vmem:[#allocation10 + $0x12d8] sm:$0xff]
    %v6407 = vld [vmem:[#allocation10 + $0x12e0] sm:$0xff]
    %v6408 = vld [vmem:[#allocation10 + $0x12e8] sm:$0xff]
    %v6409 = vld [vmem:[#allocation10 + $0x12f0] sm:$0xff]
    %v6410 = vld [vmem:[#allocation10 + $0x12f8] sm:$0xff]
    %v6411 = vld [vmem:[#allocation10 + $0x1300] sm:$0xff]
    %v6412 = vld [vmem:[#allocation10 + $0x1308] sm:$0xff]
    %v6413 = vld [vmem:[#allocation10 + $0x1310] sm:$0xff]
    %v6414 = vld [vmem:[#allocation10 + $0x1318] sm:$0xff]
    %v6415 = vld [vmem:[#allocation10 + $0x1320] sm:$0xff]
    %v6416 = vld [vmem:[#allocation10 + $0x1328] sm:$0xff]
    %v6417 = vld [vmem:[#allocation10 + $0x1330] sm:$0xff]
    %v6418 = vld [vmem:[#allocation10 + $0x1338] sm:$0xff]
    %v6419 = vld [vmem:[#allocation10 + $0x1340] sm:$0xff]
    %v6420 = vld [vmem:[#allocation10 + $0x1348] sm:$0xff]
    %v6421 = vld [vmem:[#allocation10 + $0x1350] sm:$0xff]
    %v6422 = vld [vmem:[#allocation10 + $0x1358] sm:$0xff]
    %v6423 = vld [vmem:[#allocation10 + $0x1360] sm:$0xff]
    %v6424 = vld [vmem:[#allocation10 + $0x1368] sm:$0xff]
    %v6425 = vld [vmem:[#allocation10 + $0x1370] sm:$0xff]
    %v6426 = vld [vmem:[#allocation10 + $0x1378] sm:$0xff]
    %v6427 = vld [vmem:[#allocation10 + $0x1380] sm:$0xff]
    %v6428 = vld [vmem:[#allocation10 + $0x1388] sm:$0xff]
    %v6429 = vld [vmem:[#allocation10 + $0x1390] sm:$0xff]
    %v6430 = vld [vmem:[#allocation10 + $0x1398] sm:$0xff]
    %v6431 = vld [vmem:[#allocation10 + $0x13a0] sm:$0xff]
    %v6432 = vld [vmem:[#allocation10 + $0x13a8] sm:$0xff]
    %v6433 = vld [vmem:[#allocation10 + $0x13b0] sm:$0xff]
    %v6434 = vld [vmem:[#allocation10 + $0x13b8] sm:$0xff]
    %v6435 = vld [vmem:[#allocation10 + $0x13c0] sm:$0xff]
    %v6436 = vld [vmem:[#allocation10 + $0x13c8] sm:$0xff]
    %v6437 = vld [vmem:[#allocation10 + $0x13d0] sm:$0xff]
    %v6438 = vld [vmem:[#allocation10 + $0x13d8] sm:$0xff]
    %v6439 = vld [vmem:[#allocation10 + $0x13e0] sm:$0xff]
    %v6440 = vld [vmem:[#allocation10 + $0x13e8] sm:$0xff]
    %v6441 = vld [vmem:[#allocation10 + $0x13f0] sm:$0xff]
    %v6442 = vld [vmem:[#allocation10 + $0x13f8] sm:$0xff]
    %v6443 = vld [vmem:[#allocation10 + $0x1400] sm:$0xff]
    %v6444 = vld [vmem:[#allocation10 + $0x1408] sm:$0xff]
    %v6445 = vld [vmem:[#allocation10 + $0x1410] sm:$0xff]
    %v6446 = vld [vmem:[#allocation10 + $0x1418] sm:$0xff]
    %v6447 = vld [vmem:[#allocation10 + $0x1420] sm:$0xff]
    %v6448 = vld [vmem:[#allocation10 + $0x1428] sm:$0xff]
    %v6449 = vld [vmem:[#allocation10 + $0x1430] sm:$0xff]
    %v6450 = vld [vmem:[#allocation10 + $0x1438] sm:$0xff]
    %v6451 = vld [vmem:[#allocation10 + $0x1440] sm:$0xff]
    %v6452 = vld [vmem:[#allocation10 + $0x1448] sm:$0xff]
    %v6453 = vld [vmem:[#allocation10 + $0x1450] sm:$0xff]
    %v6454 = vld [vmem:[#allocation10 + $0x1458] sm:$0xff]
    %v6455 = vld [vmem:[#allocation10 + $0x1460] sm:$0xff]
    %v6456 = vld [vmem:[#allocation10 + $0x1468] sm:$0xff]
    %v6457 = vld [vmem:[#allocation10 + $0x1470] sm:$0xff]
    %v6458 = vld [vmem:[#allocation10 + $0x1478] sm:$0xff]
    %v6459 = vld [vmem:[#allocation10 + $0x1480] sm:$0xff]
    %v6460 = vld [vmem:[#allocation10 + $0x1488] sm:$0xff]
    %v6461 = vld [vmem:[#allocation10 + $0x1490] sm:$0xff]
    %v6462 = vld [vmem:[#allocation10 + $0x1498] sm:$0xff]
    %v6463 = vld [vmem:[#allocation10 + $0x14a0] sm:$0xff]
    %v6464 = vld [vmem:[#allocation10 + $0x14a8] sm:$0xff]
    %v6465 = vld [vmem:[#allocation10 + $0x14b0] sm:$0xff]
    %v6466 = vld [vmem:[#allocation10 + $0x14b8] sm:$0xff]
    %v6467 = vld [vmem:[#allocation10 + $0x14c0] sm:$0xff]
    %v6468 = vld [vmem:[#allocation10 + $0x14c8] sm:$0xff]
    %v6469 = vld [vmem:[#allocation10 + $0x14d0] sm:$0xff]
    %v6470 = vld [vmem:[#allocation10 + $0x14d8] sm:$0xff]
    %v6471 = vld [vmem:[#allocation10 + $0x14e0] sm:$0xff]
    %v6472 = vld [vmem:[#allocation10 + $0x14e8] sm:$0xff]
    %v6473 = vld [vmem:[#allocation10 + $0x14f0] sm:$0xff]
    %v6474 = vld [vmem:[#allocation10 + $0x14f8] sm:$0xff]
    %v6475 = vld [vmem:[#allocation10 + $0x1500] sm:$0xff]
    %v6476 = vld [vmem:[#allocation10 + $0x1508] sm:$0xff]
    %v6477 = vld [vmem:[#allocation10 + $0x1510] sm:$0xff]
    %v6478 = vld [vmem:[#allocation10 + $0x1518] sm:$0xff]
    %v6479 = vld [vmem:[#allocation10 + $0x1520] sm:$0xff]
    %v6480 = vld [vmem:[#allocation10 + $0x1528] sm:$0xff]
    %v6481 = vld [vmem:[#allocation10 + $0x1530] sm:$0xff]
    %v6482 = vld [vmem:[#allocation10 + $0x1538] sm:$0xff]
    %v6483 = vld [vmem:[#allocation10 + $0x1540] sm:$0xff]
    %v6484 = vld [vmem:[#allocation10 + $0x1548] sm:$0xff]
    %v6485 = vld [vmem:[#allocation10 + $0x1550] sm:$0xff]
    %v6486 = vld [vmem:[#allocation10 + $0x1558] sm:$0xff]
    %v6487 = vld [vmem:[#allocation10 + $0x1560] sm:$0xff]
    %v6488 = vld [vmem:[#allocation10 + $0x1568] sm:$0xff]
    %v6489 = vld [vmem:[#allocation10 + $0x1570] sm:$0xff]
    %v6490 = vld [vmem:[#allocation10 + $0x1578] sm:$0xff]
    %v6491 = vld [vmem:[#allocation10 + $0x1580] sm:$0xff]
    %v6492 = vld [vmem:[#allocation10 + $0x1588] sm:$0xff]
    %v6493 = vld [vmem:[#allocation10 + $0x1590] sm:$0xff]
    %v6494 = vld [vmem:[#allocation10 + $0x1598] sm:$0xff]
    %v6495 = vld [vmem:[#allocation10 + $0x15a0] sm:$0xff]
    %v6496 = vld [vmem:[#allocation10 + $0x15a8] sm:$0xff]
    %v6497 = vld [vmem:[#allocation10 + $0x15b0] sm:$0xff]
    %v6498 = vld [vmem:[#allocation10 + $0x15b8] sm:$0xff]
    %v6499 = vld [vmem:[#allocation10 + $0x15c0] sm:$0xff]
    %v6500 = vld [vmem:[#allocation10 + $0x15c8] sm:$0xff]
    %v6501 = vld [vmem:[#allocation10 + $0x15d0] sm:$0xff]
    %v6502 = vld [vmem:[#allocation10 + $0x15d8] sm:$0xff]
    %v6503 = vld [vmem:[#allocation10 + $0x15e0] sm:$0xff]
    %v6504 = vld [vmem:[#allocation10 + $0x15e8] sm:$0xff]
    %v6505 = vld [vmem:[#allocation10 + $0x15f0] sm:$0xff]
    %v6506 = vld [vmem:[#allocation10 + $0x15f8] sm:$0xff]
    %v6507 = vld [vmem:[#allocation10 + $0x1600] sm:$0xff]
    %v6508 = vld [vmem:[#allocation10 + $0x1608] sm:$0xff]
    %v6509 = vld [vmem:[#allocation10 + $0x1610] sm:$0xff]
    %v6510 = vld [vmem:[#allocation10 + $0x1618] sm:$0xff]
    %v6511 = vld [vmem:[#allocation10 + $0x1620] sm:$0xff]
    %v6512 = vld [vmem:[#allocation10 + $0x1628] sm:$0xff]
    %v6513 = vld [vmem:[#allocation10 + $0x1630] sm:$0xff]
    %v6514 = vld [vmem:[#allocation10 + $0x1638] sm:$0xff]
    %v6515 = vld [vmem:[#allocation10 + $0x1640] sm:$0xff]
    %v6516 = vld [vmem:[#allocation10 + $0x1648] sm:$0xff]
    %v6517 = vld [vmem:[#allocation10 + $0x1650] sm:$0xff]
    %v6518 = vld [vmem:[#allocation10 + $0x1658] sm:$0xff]
    %v6519 = vld [vmem:[#allocation10 + $0x1660] sm:$0xff]
    %v6520 = vld [vmem:[#allocation10 + $0x1668] sm:$0xff]
    %v6521 = vld [vmem:[#allocation10 + $0x1670] sm:$0xff]
    %v6522 = vld [vmem:[#allocation10 + $0x1678] sm:$0xff]
    %v6523 = vld [vmem:[#allocation10 + $0x1680] sm:$0xff]
    %v6524 = vld [vmem:[#allocation10 + $0x1688] sm:$0xff]
    %v6525 = vld [vmem:[#allocation10 + $0x1690] sm:$0xff]
    %v6526 = vld [vmem:[#allocation10 + $0x1698] sm:$0xff]
    %v6527 = vld [vmem:[#allocation10 + $0x16a0] sm:$0xff]
    %v6528 = vld [vmem:[#allocation10 + $0x16a8] sm:$0xff]
    %v6529 = vld [vmem:[#allocation10 + $0x16b0] sm:$0xff]
    %v6530 = vld [vmem:[#allocation10 + $0x16b8] sm:$0xff]
    %v6531 = vld [vmem:[#allocation10 + $0x16c0] sm:$0xff]
    %v6532 = vld [vmem:[#allocation10 + $0x16c8] sm:$0xff]
    %v6533 = vld [vmem:[#allocation10 + $0x16d0] sm:$0xff]
    %v6534 = vld [vmem:[#allocation10 + $0x16d8] sm:$0xff]
    %v6535 = vld [vmem:[#allocation10 + $0x16e0] sm:$0xff]
    %v6536 = vld [vmem:[#allocation10 + $0x16e8] sm:$0xff]
    %v6537 = vld [vmem:[#allocation10 + $0x16f0] sm:$0xff]
    %v6538 = vld [vmem:[#allocation10 + $0x16f8] sm:$0xff]
    %v6539 = vld [vmem:[#allocation10 + $0x1700] sm:$0xff]
    %v6540 = vld [vmem:[#allocation10 + $0x1708] sm:$0xff]
    %v6541 = vld [vmem:[#allocation10 + $0x1710] sm:$0xff]
    %v6542 = vld [vmem:[#allocation10 + $0x1718] sm:$0xff]
    %v6543 = vld [vmem:[#allocation10 + $0x1720] sm:$0xff]
    %v6544 = vld [vmem:[#allocation10 + $0x1728] sm:$0xff]
    %v6545 = vld [vmem:[#allocation10 + $0x1730] sm:$0xff]
    %v6546 = vld [vmem:[#allocation10 + $0x1738] sm:$0xff]
    %v6547 = vld [vmem:[#allocation10 + $0x1740] sm:$0xff]
    %v6548 = vld [vmem:[#allocation10 + $0x1748] sm:$0xff]
    %v6549 = vld [vmem:[#allocation10 + $0x1750] sm:$0xff]
    %v6550 = vld [vmem:[#allocation10 + $0x1758] sm:$0xff]
    %v6551 = vld [vmem:[#allocation10 + $0x1760] sm:$0xff]
    %v6552 = vld [vmem:[#allocation10 + $0x1768] sm:$0xff]
    %v6553 = vld [vmem:[#allocation10 + $0x1770] sm:$0xff]
    %v6554 = vld [vmem:[#allocation10 + $0x1778] sm:$0xff]
    %v6555 = vld [vmem:[#allocation10 + $0x1780] sm:$0xff]
    %v6556 = vld [vmem:[#allocation10 + $0x1788] sm:$0xff]
    %v6557 = vld [vmem:[#allocation10 + $0x1790] sm:$0xff]
    %v6558 = vld [vmem:[#allocation10 + $0x1798] sm:$0xff]
    %v6559 = vld [vmem:[#allocation10 + $0x17a0] sm:$0xff]
    %v6560 = vld [vmem:[#allocation10 + $0x17a8] sm:$0xff]
    %v6561 = vld [vmem:[#allocation10 + $0x17b0] sm:$0xff]
    %v6562 = vld [vmem:[#allocation10 + $0x17b8] sm:$0xff]
    %v6563 = vld [vmem:[#allocation10 + $0x17c0] sm:$0xff]
    %v6564 = vld [vmem:[#allocation10 + $0x17c8] sm:$0xff]
    %v6565 = vld [vmem:[#allocation10 + $0x17d0] sm:$0xff]
    %v6566 = vld [vmem:[#allocation10 + $0x17d8] sm:$0xff]
    %v6567 = vld [vmem:[#allocation10 + $0x17e0] sm:$0xff]
    %v6568 = vld [vmem:[#allocation10 + $0x17e8] sm:$0xff]
    %v6569 = vld [vmem:[#allocation10 + $0x17f0] sm:$0xff]
    %v6570 = vld [vmem:[#allocation10 + $0x17f8] sm:$0xff]
    %v6571 = vld [vmem:[#allocation10 + $0x1800] sm:$0xff]
    %v6572 = vld [vmem:[#allocation10 + $0x1808] sm:$0xff]
    %v6573 = vld [vmem:[#allocation10 + $0x1810] sm:$0xff]
    %v6574 = vld [vmem:[#allocation10 + $0x1818] sm:$0xff]
    %v6575 = vld [vmem:[#allocation10 + $0x1820] sm:$0xff]
    %v6576 = vld [vmem:[#allocation10 + $0x1828] sm:$0xff]
    %v6577 = vld [vmem:[#allocation10 + $0x1830] sm:$0xff]
    %v6578 = vld [vmem:[#allocation10 + $0x1838] sm:$0xff]
    %v6579 = vld [vmem:[#allocation10 + $0x1840] sm:$0xff]
    %v6580 = vld [vmem:[#allocation10 + $0x1848] sm:$0xff]
    %v6581 = vld [vmem:[#allocation10 + $0x1850] sm:$0xff]
    %v6582 = vld [vmem:[#allocation10 + $0x1858] sm:$0xff]
    %v6583 = vld [vmem:[#allocation10 + $0x1860] sm:$0xff]
    %v6584 = vld [vmem:[#allocation10 + $0x1868] sm:$0xff]
    %v6585 = vld [vmem:[#allocation10 + $0x1870] sm:$0xff]
    %v6586 = vld [vmem:[#allocation10 + $0x1878] sm:$0xff]
    %v6587 = vld [vmem:[#allocation10 + $0x1880] sm:$0xff]
    %v6588 = vld [vmem:[#allocation10 + $0x1888] sm:$0xff]
    %v6589 = vld [vmem:[#allocation10 + $0x1890] sm:$0xff]
    %v6590 = vld [vmem:[#allocation10 + $0x1898] sm:$0xff]
    %v6591 = vld [vmem:[#allocation10 + $0x18a0] sm:$0xff]
    %v6592 = vld [vmem:[#allocation10 + $0x18a8] sm:$0xff]
    %v6593 = vld [vmem:[#allocation10 + $0x18b0] sm:$0xff]
    %v6594 = vld [vmem:[#allocation10 + $0x18b8] sm:$0xff]
    %v6595 = vld [vmem:[#allocation10 + $0x18c0] sm:$0xff]
    %v6596 = vld [vmem:[#allocation10 + $0x18c8] sm:$0xff]
    %v6597 = vld [vmem:[#allocation10 + $0x18d0] sm:$0xff]
    %v6598 = vld [vmem:[#allocation10 + $0x18d8] sm:$0xff]
    %v6599 = vld [vmem:[#allocation10 + $0x18e0] sm:$0xff]
    %v6600 = vld [vmem:[#allocation10 + $0x18e8] sm:$0xff]
    %v6601 = vld [vmem:[#allocation10 + $0x18f0] sm:$0xff]
    %v6602 = vld [vmem:[#allocation10 + $0x18f8] sm:$0xff]
    %v6603 = vld [vmem:[#allocation10 + $0x1900] sm:$0xff]
    %v6604 = vld [vmem:[#allocation10 + $0x1908] sm:$0xff]
    %v6605 = vld [vmem:[#allocation10 + $0x1910] sm:$0xff]
    %v6606 = vld [vmem:[#allocation10 + $0x1918] sm:$0xff]
    %v6607 = vld [vmem:[#allocation10 + $0x1920] sm:$0xff]
    %v6608 = vld [vmem:[#allocation10 + $0x1928] sm:$0xff]
    %v6609 = vld [vmem:[#allocation10 + $0x1930] sm:$0xff]
    %v6610 = vld [vmem:[#allocation10 + $0x1938] sm:$0xff]
    %v6611 = vld [vmem:[#allocation10 + $0x1940] sm:$0xff]
    %v6612 = vld [vmem:[#allocation10 + $0x1948] sm:$0xff]
    %v6613 = vld [vmem:[#allocation10 + $0x1950] sm:$0xff]
    %v6614 = vld [vmem:[#allocation10 + $0x1958] sm:$0xff]
    %v6615 = vld [vmem:[#allocation10 + $0x1960] sm:$0xff]
    %v6616 = vld [vmem:[#allocation10 + $0x1968] sm:$0xff]
    %v6617 = vld [vmem:[#allocation10 + $0x1970] sm:$0xff]
    %v6618 = vld [vmem:[#allocation10 + $0x1978] sm:$0xff]
    %v6619 = vld [vmem:[#allocation10 + $0x1980] sm:$0xff]
    %v6620 = vld [vmem:[#allocation10 + $0x1988] sm:$0xff]
    %v6621 = vld [vmem:[#allocation10 + $0x1990] sm:$0xff]
    %v6622 = vld [vmem:[#allocation10 + $0x1998] sm:$0xff]
    %v6623 = vld [vmem:[#allocation10 + $0x19a0] sm:$0xff]
    %v6624 = vld [vmem:[#allocation10 + $0x19a8] sm:$0xff]
    %v6625 = vld [vmem:[#allocation10 + $0x19b0] sm:$0xff]
    %v6626 = vld [vmem:[#allocation10 + $0x19b8] sm:$0xff]
    %v6627 = vld [vmem:[#allocation10 + $0x19c0] sm:$0xff]
    %v6628 = vld [vmem:[#allocation10 + $0x19c8] sm:$0xff]
    %v6629 = vld [vmem:[#allocation10 + $0x19d0] sm:$0xff]
    %v6630 = vld [vmem:[#allocation10 + $0x19d8] sm:$0xff]
    %v6631 = vld [vmem:[#allocation10 + $0x19e0] sm:$0xff]
    %v6632 = vld [vmem:[#allocation10 + $0x19e8] sm:$0xff]
    %v6633 = vld [vmem:[#allocation10 + $0x19f0] sm:$0xff]
    %v6634 = vld [vmem:[#allocation10 + $0x19f8] sm:$0xff]
    %v6635 = vld [vmem:[#allocation10 + $0x1a00] sm:$0xff]
    %v6636 = vld [vmem:[#allocation10 + $0x1a08] sm:$0xff]
    %v6637 = vld [vmem:[#allocation10 + $0x1a10] sm:$0xff]
    %v6638 = vld [vmem:[#allocation10 + $0x1a18] sm:$0xff]
    %v6639 = vld [vmem:[#allocation10 + $0x1a20] sm:$0xff]
    %v6640 = vld [vmem:[#allocation10 + $0x1a28] sm:$0xff]
    %v6641 = vld [vmem:[#allocation10 + $0x1a30] sm:$0xff]
    %v6642 = vld [vmem:[#allocation10 + $0x1a38] sm:$0xff]
    %v6643 = vld [vmem:[#allocation10 + $0x1a40] sm:$0xff]
    %v6644 = vld [vmem:[#allocation10 + $0x1a48] sm:$0xff]
    %v6645 = vld [vmem:[#allocation10 + $0x1a50] sm:$0xff]
    %v6646 = vld [vmem:[#allocation10 + $0x1a58] sm:$0xff]
    %v6647 = vld [vmem:[#allocation10 + $0x1a60] sm:$0xff]
    %v6648 = vld [vmem:[#allocation10 + $0x1a68] sm:$0xff]
    %v6649 = vld [vmem:[#allocation10 + $0x1a70] sm:$0xff]
    %v6650 = vld [vmem:[#allocation10 + $0x1a78] sm:$0xff]
    %v6651 = vld [vmem:[#allocation10 + $0x1a80] sm:$0xff]
    %v6652 = vld [vmem:[#allocation10 + $0x1a88] sm:$0xff]
    %v6653 = vld [vmem:[#allocation10 + $0x1a90] sm:$0xff]
    %v6654 = vld [vmem:[#allocation10 + $0x1a98] sm:$0xff]
    %v6655 = vld [vmem:[#allocation10 + $0x1aa0] sm:$0xff]
    %v6656 = vld [vmem:[#allocation10 + $0x1aa8] sm:$0xff]
    %v6657 = vld [vmem:[#allocation10 + $0x1ab0] sm:$0xff]
    %v6658 = vld [vmem:[#allocation10 + $0x1ab8] sm:$0xff]
    %v6659 = vld [vmem:[#allocation10 + $0x1ac0] sm:$0xff]
    %v6660 = vld [vmem:[#allocation10 + $0x1ac8] sm:$0xff]
    %v6661 = vld [vmem:[#allocation10 + $0x1ad0] sm:$0xff]
    %v6662 = vld [vmem:[#allocation10 + $0x1ad8] sm:$0xff]
    %v6663 = vld [vmem:[#allocation10 + $0x1ae0] sm:$0xff]
    %v6664 = vld [vmem:[#allocation10 + $0x1ae8] sm:$0xff]
    %v6665 = vld [vmem:[#allocation10 + $0x1af0] sm:$0xff]
    %v6666 = vld [vmem:[#allocation10 + $0x1af8] sm:$0xff]
    %v6667 = vld [vmem:[#allocation10 + $0x1b00] sm:$0xff]
    %v6668 = vld [vmem:[#allocation10 + $0x1b08] sm:$0xff]
    %v6669 = vld [vmem:[#allocation10 + $0x1b10] sm:$0xff]
    %v6670 = vld [vmem:[#allocation10 + $0x1b18] sm:$0xff]
    %v6671 = vld [vmem:[#allocation10 + $0x1b20] sm:$0xff]
    %v6672 = vld [vmem:[#allocation10 + $0x1b28] sm:$0xff]
    %v6673 = vld [vmem:[#allocation10 + $0x1b30] sm:$0xff]
    %v6674 = vld [vmem:[#allocation10 + $0x1b38] sm:$0xff]
    %v6675 = vld [vmem:[#allocation10 + $0x1b40] sm:$0xff]
    %v6676 = vld [vmem:[#allocation10 + $0x1b48] sm:$0xff]
    %v6677 = vld [vmem:[#allocation10 + $0x1b50] sm:$0xff]
    %v6678 = vld [vmem:[#allocation10 + $0x1b58] sm:$0xff]
    %v6679 = vld [vmem:[#allocation10 + $0x1b60] sm:$0xff]
    %v6680 = vld [vmem:[#allocation10 + $0x1b68] sm:$0xff]
    %v6681 = vld [vmem:[#allocation10 + $0x1b70] sm:$0xff]
    %v6682 = vld [vmem:[#allocation10 + $0x1b78] sm:$0xff]
    %v6683 = vld [vmem:[#allocation10 + $0x1b80] sm:$0xff]
    %v6684 = vld [vmem:[#allocation10 + $0x1b88] sm:$0xff]
    %v6685 = vld [vmem:[#allocation10 + $0x1b90] sm:$0xff]
    %v6686 = vld [vmem:[#allocation10 + $0x1b98] sm:$0xff]
    %v6687 = vld [vmem:[#allocation10 + $0x1ba0] sm:$0xff]
    %v6688 = vld [vmem:[#allocation10 + $0x1ba8] sm:$0xff]
    %v6689 = vld [vmem:[#allocation10 + $0x1bb0] sm:$0xff]
    %v6690 = vld [vmem:[#allocation10 + $0x1bb8] sm:$0xff]
    %v6691 = vld [vmem:[#allocation10 + $0x1bc0] sm:$0xff]
    %v6692 = vld [vmem:[#allocation10 + $0x1bc8] sm:$0xff]
    %v6693 = vld [vmem:[#allocation10 + $0x1bd0] sm:$0xff]
    %v6694 = vld [vmem:[#allocation10 + $0x1bd8] sm:$0xff]
    %v6695 = vld [vmem:[#allocation10 + $0x1be0] sm:$0xff]
    %v6696 = vld [vmem:[#allocation10 + $0x1be8] sm:$0xff]
    %v6697 = vld [vmem:[#allocation10 + $0x1bf0] sm:$0xff]
    %v6698 = vld [vmem:[#allocation10 + $0x1bf8] sm:$0xff]
    %v6699 = vld [vmem:[#allocation10 + $0x1c00] sm:$0xff]
    %v6700 = vld [vmem:[#allocation10 + $0x1c08] sm:$0xff]
    %v6701 = vld [vmem:[#allocation10 + $0x1c10] sm:$0xff]
    %v6702 = vld [vmem:[#allocation10 + $0x1c18] sm:$0xff]
    %v6703 = vld [vmem:[#allocation10 + $0x1c20] sm:$0xff]
    %v6704 = vld [vmem:[#allocation10 + $0x1c28] sm:$0xff]
    %v6705 = vld [vmem:[#allocation10 + $0x1c30] sm:$0xff]
    %v6706 = vld [vmem:[#allocation10 + $0x1c38] sm:$0xff]
    %v6707 = vld [vmem:[#allocation10 + $0x1c40] sm:$0xff]
    %v6708 = vld [vmem:[#allocation10 + $0x1c48] sm:$0xff]
    %v6709 = vld [vmem:[#allocation10 + $0x1c50] sm:$0xff]
    %v6710 = vld [vmem:[#allocation10 + $0x1c58] sm:$0xff]
    %v6711 = vld [vmem:[#allocation10 + $0x1c60] sm:$0xff]
    %v6712 = vld [vmem:[#allocation10 + $0x1c68] sm:$0xff]
    %v6713 = vld [vmem:[#allocation10 + $0x1c70] sm:$0xff]
    %v6714 = vld [vmem:[#allocation10 + $0x1c78] sm:$0xff]
    %v6715 = vld [vmem:[#allocation10 + $0x1c80] sm:$0xff]
    %v6716 = vld [vmem:[#allocation10 + $0x1c88] sm:$0xff]
    %v6717 = vld [vmem:[#allocation10 + $0x1c90] sm:$0xff]
    %v6718 = vld [vmem:[#allocation10 + $0x1c98] sm:$0xff]
    %v6719 = vld [vmem:[#allocation10 + $0x1ca0] sm:$0xff]
    %v6720 = vld [vmem:[#allocation10 + $0x1ca8] sm:$0xff]
    %v6721 = vld [vmem:[#allocation10 + $0x1cb0] sm:$0xff]
    %v6722 = vld [vmem:[#allocation10 + $0x1cb8] sm:$0xff]
    %v6723 = vld [vmem:[#allocation10 + $0x1cc0] sm:$0xff]
    %v6724 = vld [vmem:[#allocation10 + $0x1cc8] sm:$0xff]
    %v6725 = vld [vmem:[#allocation10 + $0x1cd0] sm:$0xff]
    %v6726 = vld [vmem:[#allocation10 + $0x1cd8] sm:$0xff]
    %v6727 = vld [vmem:[#allocation10 + $0x1ce0] sm:$0xff]
    %v6728 = vld [vmem:[#allocation10 + $0x1ce8] sm:$0xff]
    %v6729 = vld [vmem:[#allocation10 + $0x1cf0] sm:$0xff]
    %v6730 = vld [vmem:[#allocation10 + $0x1cf8] sm:$0xff]
    %v6731 = vld [vmem:[#allocation10 + $0x1d00] sm:$0xff]
    %v6732 = vld [vmem:[#allocation10 + $0x1d08] sm:$0xff]
    %v6733 = vld [vmem:[#allocation10 + $0x1d10] sm:$0xff]
    %v6734 = vld [vmem:[#allocation10 + $0x1d18] sm:$0xff]
    %v6735 = vld [vmem:[#allocation10 + $0x1d20] sm:$0xff]
    %v6736 = vld [vmem:[#allocation10 + $0x1d28] sm:$0xff]
    %v6737 = vld [vmem:[#allocation10 + $0x1d30] sm:$0xff]
    %v6738 = vld [vmem:[#allocation10 + $0x1d38] sm:$0xff]
    %v6739 = vld [vmem:[#allocation10 + $0x1d40] sm:$0xff]
    %v6740 = vld [vmem:[#allocation10 + $0x1d48] sm:$0xff]
    %v6741 = vld [vmem:[#allocation10 + $0x1d50] sm:$0xff]
    %v6742 = vld [vmem:[#allocation10 + $0x1d58] sm:$0xff]
    %v6743 = vld [vmem:[#allocation10 + $0x1d60] sm:$0xff]
    %v6744 = vld [vmem:[#allocation10 + $0x1d68] sm:$0xff]
    %v6745 = vld [vmem:[#allocation10 + $0x1d70] sm:$0xff]
    %v6746 = vld [vmem:[#allocation10 + $0x1d78] sm:$0xff]
    %v6747 = vld [vmem:[#allocation10 + $0x1d80] sm:$0xff]
    %v6748 = vld [vmem:[#allocation10 + $0x1d88] sm:$0xff]
    %v6749 = vld [vmem:[#allocation10 + $0x1d90] sm:$0xff]
    %v6750 = vld [vmem:[#allocation10 + $0x1d98] sm:$0xff]
    %v6751 = vld [vmem:[#allocation10 + $0x1da0] sm:$0xff]
    %v6752 = vld [vmem:[#allocation10 + $0x1da8] sm:$0xff]
    %v6753 = vld [vmem:[#allocation10 + $0x1db0] sm:$0xff]
    %v6754 = vld [vmem:[#allocation10 + $0x1db8] sm:$0xff]
    %v6755 = vld [vmem:[#allocation10 + $0x1dc0] sm:$0xff]
    %v6756 = vld [vmem:[#allocation10 + $0x1dc8] sm:$0xff]
    %v6757 = vld [vmem:[#allocation10 + $0x1dd0] sm:$0xff]
    %v6758 = vld [vmem:[#allocation10 + $0x1dd8] sm:$0xff]
    %v6759 = vld [vmem:[#allocation10 + $0x1de0] sm:$0xff]
    %v6760 = vld [vmem:[#allocation10 + $0x1de8] sm:$0xff]
    %v6761 = vld [vmem:[#allocation10 + $0x1df0] sm:$0xff]
    %v6762 = vld [vmem:[#allocation10 + $0x1df8] sm:$0xff]
    %v6763 = vld [vmem:[#allocation10 + $0x1e00] sm:$0xff]
    %v6764 = vld [vmem:[#allocation10 + $0x1e08] sm:$0xff]
    %v6765 = vld [vmem:[#allocation10 + $0x1e10] sm:$0xff]
    %v6766 = vld [vmem:[#allocation10 + $0x1e18] sm:$0xff]
    %v6767 = vld [vmem:[#allocation10 + $0x1e20] sm:$0xff]
    %v6768 = vld [vmem:[#allocation10 + $0x1e28] sm:$0xff]
    %v6769 = vld [vmem:[#allocation10 + $0x1e30] sm:$0xff]
    %v6770 = vld [vmem:[#allocation10 + $0x1e38] sm:$0xff]
    %v6771 = vld [vmem:[#allocation10 + $0x1e40] sm:$0xff]
    %v6772 = vld [vmem:[#allocation10 + $0x1e48] sm:$0xff]
    %v6773 = vld [vmem:[#allocation10 + $0x1e50] sm:$0xff]
    %v6774 = vld [vmem:[#allocation10 + $0x1e58] sm:$0xff]
    %v6775 = vld [vmem:[#allocation10 + $0x1e60] sm:$0xff]
    %v6776 = vld [vmem:[#allocation10 + $0x1e68] sm:$0xff]
    %v6777 = vld [vmem:[#allocation10 + $0x1e70] sm:$0xff]
    %v6778 = vld [vmem:[#allocation10 + $0x1e78] sm:$0xff]
    %v6779 = vld [vmem:[#allocation10 + $0x1e80] sm:$0xff]
    %v6780 = vld [vmem:[#allocation10 + $0x1e88] sm:$0xff]
    %v6781 = vld [vmem:[#allocation10 + $0x1e90] sm:$0xff]
    %v6782 = vld [vmem:[#allocation10 + $0x1e98] sm:$0xff]
    %v6783 = vld [vmem:[#allocation10 + $0x1ea0] sm:$0xff]
    %v6784 = vld [vmem:[#allocation10 + $0x1ea8] sm:$0xff]
    %v6785 = vld [vmem:[#allocation10 + $0x1eb0] sm:$0xff]
    %v6786 = vld [vmem:[#allocation10 + $0x1eb8] sm:$0xff]
    %v6787 = vld [vmem:[#allocation10 + $0x1ec0] sm:$0xff]
    %v6788 = vld [vmem:[#allocation10 + $0x1ec8] sm:$0xff]
    %v6789 = vld [vmem:[#allocation10 + $0x1ed0] sm:$0xff]
    %v6790 = vld [vmem:[#allocation10 + $0x1ed8] sm:$0xff]
    %v6791 = vld [vmem:[#allocation10 + $0x1ee0] sm:$0xff]
    %v6792 = vld [vmem:[#allocation10 + $0x1ee8] sm:$0xff]
    %v6793 = vld [vmem:[#allocation10 + $0x1ef0] sm:$0xff]
    %v6794 = vld [vmem:[#allocation10 + $0x1ef8] sm:$0xff]
    %v6795 = vld [vmem:[#allocation10 + $0x1f00] sm:$0xff]
    %v6796 = vld [vmem:[#allocation10 + $0x1f08] sm:$0xff]
    %v6797 = vld [vmem:[#allocation10 + $0x1f10] sm:$0xff]
    %v6798 = vld [vmem:[#allocation10 + $0x1f18] sm:$0xff]
    %v6799 = vld [vmem:[#allocation10 + $0x1f20] sm:$0xff]
    %v6800 = vld [vmem:[#allocation10 + $0x1f28] sm:$0xff]
    %v6801 = vld [vmem:[#allocation10 + $0x1f30] sm:$0xff]
    %v6802 = vld [vmem:[#allocation10 + $0x1f38] sm:$0xff]
    %v6803 = vld [vmem:[#allocation10 + $0x1f40] sm:$0xff]
    %v6804 = vld [vmem:[#allocation10 + $0x1f48] sm:$0xff]
    %v6805 = vld [vmem:[#allocation10 + $0x1f50] sm:$0xff]
    %v6806 = vld [vmem:[#allocation10 + $0x1f58] sm:$0xff]
    %v6807 = vld [vmem:[#allocation10 + $0x1f60] sm:$0xff]
    %v6808 = vld [vmem:[#allocation10 + $0x1f68] sm:$0xff]
    %v6809 = vld [vmem:[#allocation10 + $0x1f70] sm:$0xff]
    %v6810 = vld [vmem:[#allocation10 + $0x1f78] sm:$0xff]
    %v6811 = vld [vmem:[#allocation10 + $0x1f80] sm:$0xff]
    %v6812 = vld [vmem:[#allocation10 + $0x1f88] sm:$0xff]
    %v6813 = vld [vmem:[#allocation10 + $0x1f90] sm:$0xff]
    %v6814 = vld [vmem:[#allocation10 + $0x1f98] sm:$0xff]
    %v6815 = vld [vmem:[#allocation10 + $0x1fa0] sm:$0xff]
    %v6816 = vld [vmem:[#allocation10 + $0x1fa8] sm:$0xff]
    %v6817 = vld [vmem:[#allocation10 + $0x1fb0] sm:$0xff]
    %v6818 = vld [vmem:[#allocation10 + $0x1fb8] sm:$0xff]
    %v6819 = vld [vmem:[#allocation10 + $0x1fc0] sm:$0xff]
    %v6820 = vld [vmem:[#allocation10 + $0x1fc8] sm:$0xff]
    %v6821 = vld [vmem:[#allocation10 + $0x1fd0] sm:$0xff]
    %v6822 = vld [vmem:[#allocation10 + $0x1fd8] sm:$0xff]
    %v6823 = vld [vmem:[#allocation10 + $0x1fe0] sm:$0xff]
    %v6824 = vld [vmem:[#allocation10 + $0x1fe8] sm:$0xff]
    %v6825 = vld [vmem:[#allocation10 + $0x1ff0] sm:$0xff]
    %v6826 = vld [vmem:[#allocation10 + $0x1ff8] sm:$0xff]
    %v6827 = vpack.c.bf16 %v5787, %v5787
    %v6828 = vpack.c.bf16 %v5788, %v5788
    %v6829 = vpack.c.bf16 %v5789, %v5789
    %v6830 = vpack.c.bf16 %v5790, %v5790
    %v6831 = vpack.c.bf16 %v5791, %v5791
    %v6832 = vpack.c.bf16 %v5792, %v5792
    %v6833 = vpack.c.bf16 %v5793, %v5793
    %v6834 = vpack.c.bf16 %v5794, %v5794
    %v6835 = vpack.c.bf16 %v5795, %v5795
    %v6836 = vpack.c.bf16 %v5796, %v5796
    %v6837 = vpack.c.bf16 %v5797, %v5797
    %v6838 = vpack.c.bf16 %v5798, %v5798
    %v6839 = vpack.c.bf16 %v5799, %v5799
    %v6840 = vpack.c.bf16 %v5800, %v5800
    %v6841 = vpack.c.bf16 %v5801, %v5801
    %v6842 = vpack.c.bf16 %v5802, %v5802
    %v6844 = vlaneseq
    %v6845 = vshrl.u32 %v6844, 7
    %v6846 = vsub.s32 0, %v6845
    %v6847 = vrot.slane %v141, %v6846
    %v6848 = vlaneseq
    %v6849 = vshrl.u32 %v6848, 7
    %v6850 = vsub.s32 1, %v6849
    %v6851 = vrot.slane %v141, %v6850
    %v6852 = vlaneseq
    %v6853 = vshrl.u32 %v6852, 7
    %v6854 = vsub.s32 2, %v6853
    %v6855 = vrot.slane %v141, %v6854
    %v6856 = vlaneseq
    %v6857 = vshrl.u32 %v6856, 7
    %v6858 = vsub.s32 3, %v6857
    %v6859 = vrot.slane %v141, %v6858
    %v6860 = vlaneseq
    %v6861 = vshrl.u32 %v6860, 7
    %v6862 = vsub.s32 4, %v6861
    %v6863 = vrot.slane %v141, %v6862
    %v6864 = vlaneseq
    %v6865 = vshrl.u32 %v6864, 7
    %v6866 = vsub.s32 5, %v6865
    %v6867 = vrot.slane %v141, %v6866
    %v6868 = vlaneseq
    %v6869 = vshrl.u32 %v6868, 7
    %v6870 = vsub.s32 6, %v6869
    %v6871 = vrot.slane %v141, %v6870
    %v6872 = vlaneseq
    %v6873 = vshrl.u32 %v6872, 7
    %v6874 = vsub.s32 7, %v6873
    %v6875 = vrot.slane %v141, %v6874
    %v7908 = vunpack.c.l.b16 %v5803
    %v7909 = vunpack.c.h.b16 %v5803
    %v7910 = vunpack.c.l.b16 %v5804
    %v7911 = vunpack.c.h.b16 %v5804
    %v7912 = vunpack.c.l.b16 %v5805
    %v7913 = vunpack.c.h.b16 %v5805
    %v7914 = vunpack.c.l.b16 %v5806
    %v7915 = vunpack.c.h.b16 %v5806
    %v7916 = vunpack.c.l.b16 %v5807
    %v7917 = vunpack.c.h.b16 %v5807
    %v7918 = vunpack.c.l.b16 %v5808
    %v7919 = vunpack.c.h.b16 %v5808
    %v7920 = vunpack.c.l.b16 %v5809
    %v7921 = vunpack.c.h.b16 %v5809
    %v7922 = vunpack.c.l.b16 %v5810
    %v7923 = vunpack.c.h.b16 %v5810
    %v7924 = vunpack.c.l.b16 %v5811
    %v7925 = vunpack.c.h.b16 %v5811
    %v7926 = vunpack.c.l.b16 %v5812
    %v7927 = vunpack.c.h.b16 %v5812
    %v7928 = vunpack.c.l.b16 %v5813
    %v7929 = vunpack.c.h.b16 %v5813
    %v7930 = vunpack.c.l.b16 %v5814
    %v7931 = vunpack.c.h.b16 %v5814
    %v7932 = vunpack.c.l.b16 %v5815
    %v7933 = vunpack.c.h.b16 %v5815
    %v7934 = vunpack.c.l.b16 %v5816
    %v7935 = vunpack.c.h.b16 %v5816
    %v7936 = vunpack.c.l.b16 %v5817
    %v7937 = vunpack.c.h.b16 %v5817
    %v7938 = vunpack.c.l.b16 %v5818
    %v7939 = vunpack.c.h.b16 %v5818
    %v7940 = vunpack.c.l.b16 %v5819
    %v7941 = vunpack.c.h.b16 %v5819
    %v7942 = vunpack.c.l.b16 %v5820
    %v7943 = vunpack.c.h.b16 %v5820
    %v7944 = vunpack.c.l.b16 %v5821
    %v7945 = vunpack.c.h.b16 %v5821
    %v7946 = vunpack.c.l.b16 %v5822
    %v7947 = vunpack.c.h.b16 %v5822
    %v7948 = vunpack.c.l.b16 %v5823
    %v7949 = vunpack.c.h.b16 %v5823
    %v7950 = vunpack.c.l.b16 %v5824
    %v7951 = vunpack.c.h.b16 %v5824
    %v7952 = vunpack.c.l.b16 %v5825
    %v7953 = vunpack.c.h.b16 %v5825
    %v7954 = vunpack.c.l.b16 %v5826
    %v7955 = vunpack.c.h.b16 %v5826
    %v7956 = vunpack.c.l.b16 %v5827
    %v7957 = vunpack.c.h.b16 %v5827
    %v7958 = vunpack.c.l.b16 %v5828
    %v7959 = vunpack.c.h.b16 %v5828
    %v7960 = vunpack.c.l.b16 %v5829
    %v7961 = vunpack.c.h.b16 %v5829
    %v7962 = vunpack.c.l.b16 %v5830
    %v7963 = vunpack.c.h.b16 %v5830
    %v7964 = vunpack.c.l.b16 %v5831
    %v7965 = vunpack.c.h.b16 %v5831
    %v7966 = vunpack.c.l.b16 %v5832
    %v7967 = vunpack.c.h.b16 %v5832
    %v7968 = vunpack.c.l.b16 %v5833
    %v7969 = vunpack.c.h.b16 %v5833
    %v7970 = vunpack.c.l.b16 %v5834
    %v7971 = vunpack.c.h.b16 %v5834
    %v7972 = vunpack.c.l.b16 %v5835
    %v7973 = vunpack.c.h.b16 %v5835
    %v7974 = vunpack.c.l.b16 %v5836
    %v7975 = vunpack.c.h.b16 %v5836
    %v7976 = vunpack.c.l.b16 %v5837
    %v7977 = vunpack.c.h.b16 %v5837
    %v7978 = vunpack.c.l.b16 %v5838
    %v7979 = vunpack.c.h.b16 %v5838
    %v7980 = vunpack.c.l.b16 %v5839
    %v7981 = vunpack.c.h.b16 %v5839
    %v7982 = vunpack.c.l.b16 %v5840
    %v7983 = vunpack.c.h.b16 %v5840
    %v7984 = vunpack.c.l.b16 %v5841
    %v7985 = vunpack.c.h.b16 %v5841
    %v7986 = vunpack.c.l.b16 %v5842
    %v7987 = vunpack.c.h.b16 %v5842
    %v7988 = vunpack.c.l.b16 %v5843
    %v7989 = vunpack.c.h.b16 %v5843
    %v7990 = vunpack.c.l.b16 %v5844
    %v7991 = vunpack.c.h.b16 %v5844
    %v7992 = vunpack.c.l.b16 %v5845
    %v7993 = vunpack.c.h.b16 %v5845
    %v7994 = vunpack.c.l.b16 %v5846
    %v7995 = vunpack.c.h.b16 %v5846
    %v7996 = vunpack.c.l.b16 %v5847
    %v7997 = vunpack.c.h.b16 %v5847
    %v7998 = vunpack.c.l.b16 %v5848
    %v7999 = vunpack.c.h.b16 %v5848
    %v8000 = vunpack.c.l.b16 %v5849
    %v8001 = vunpack.c.h.b16 %v5849
    %v8002 = vunpack.c.l.b16 %v5850
    %v8003 = vunpack.c.h.b16 %v5850
    %v8004 = vunpack.c.l.b16 %v5851
    %v8005 = vunpack.c.h.b16 %v5851
    %v8006 = vunpack.c.l.b16 %v5852
    %v8007 = vunpack.c.h.b16 %v5852
    %v8008 = vunpack.c.l.b16 %v5853
    %v8009 = vunpack.c.h.b16 %v5853
    %v8010 = vunpack.c.l.b16 %v5854
    %v8011 = vunpack.c.h.b16 %v5854
    %v8012 = vunpack.c.l.b16 %v5855
    %v8013 = vunpack.c.h.b16 %v5855
    %v8014 = vunpack.c.l.b16 %v5856
    %v8015 = vunpack.c.h.b16 %v5856
    %v8016 = vunpack.c.l.b16 %v5857
    %v8017 = vunpack.c.h.b16 %v5857
    %v8018 = vunpack.c.l.b16 %v5858
    %v8019 = vunpack.c.h.b16 %v5858
    %v8020 = vunpack.c.l.b16 %v5859
    %v8021 = vunpack.c.h.b16 %v5859
    %v8022 = vunpack.c.l.b16 %v5860
    %v8023 = vunpack.c.h.b16 %v5860
    %v8024 = vunpack.c.l.b16 %v5861
    %v8025 = vunpack.c.h.b16 %v5861
    %v8026 = vunpack.c.l.b16 %v5862
    %v8027 = vunpack.c.h.b16 %v5862
    %v8028 = vunpack.c.l.b16 %v5863
    %v8029 = vunpack.c.h.b16 %v5863
    %v8030 = vunpack.c.l.b16 %v5864
    %v8031 = vunpack.c.h.b16 %v5864
    %v8032 = vunpack.c.l.b16 %v5865
    %v8033 = vunpack.c.h.b16 %v5865
    %v8034 = vunpack.c.l.b16 %v5866
    %v8035 = vunpack.c.h.b16 %v5866
    %v8036 = vunpack.c.l.b16 %v5867
    %v8037 = vunpack.c.h.b16 %v5867
    %v8038 = vunpack.c.l.b16 %v5868
    %v8039 = vunpack.c.h.b16 %v5868
    %v8040 = vunpack.c.l.b16 %v5869
    %v8041 = vunpack.c.h.b16 %v5869
    %v8042 = vunpack.c.l.b16 %v5870
    %v8043 = vunpack.c.h.b16 %v5870
    %v8044 = vunpack.c.l.b16 %v5871
    %v8045 = vunpack.c.h.b16 %v5871
    %v8046 = vunpack.c.l.b16 %v5872
    %v8047 = vunpack.c.h.b16 %v5872
    %v8048 = vunpack.c.l.b16 %v5873
    %v8049 = vunpack.c.h.b16 %v5873
    %v8050 = vunpack.c.l.b16 %v5874
    %v8051 = vunpack.c.h.b16 %v5874
    %v8052 = vunpack.c.l.b16 %v5875
    %v8053 = vunpack.c.h.b16 %v5875
    %v8054 = vunpack.c.l.b16 %v5876
    %v8055 = vunpack.c.h.b16 %v5876
    %v8056 = vunpack.c.l.b16 %v5877
    %v8057 = vunpack.c.h.b16 %v5877
    %v8058 = vunpack.c.l.b16 %v5878
    %v8059 = vunpack.c.h.b16 %v5878
    %v8060 = vunpack.c.l.b16 %v5879
    %v8061 = vunpack.c.h.b16 %v5879
    %v8062 = vunpack.c.l.b16 %v5880
    %v8063 = vunpack.c.h.b16 %v5880
    %v8064 = vunpack.c.l.b16 %v5881
    %v8065 = vunpack.c.h.b16 %v5881
    %v8066 = vunpack.c.l.b16 %v5882
    %v8067 = vunpack.c.h.b16 %v5882
    %v8068 = vunpack.c.l.b16 %v5883
    %v8069 = vunpack.c.h.b16 %v5883
    %v8070 = vunpack.c.l.b16 %v5884
    %v8071 = vunpack.c.h.b16 %v5884
    %v8072 = vunpack.c.l.b16 %v5885
    %v8073 = vunpack.c.h.b16 %v5885
    %v8074 = vunpack.c.l.b16 %v5886
    %v8075 = vunpack.c.h.b16 %v5886
    %v8076 = vunpack.c.l.b16 %v5887
    %v8077 = vunpack.c.h.b16 %v5887
    %v8078 = vunpack.c.l.b16 %v5888
    %v8079 = vunpack.c.h.b16 %v5888
    %v8080 = vunpack.c.l.b16 %v5889
    %v8081 = vunpack.c.h.b16 %v5889
    %v8082 = vunpack.c.l.b16 %v5890
    %v8083 = vunpack.c.h.b16 %v5890
    %v8084 = vunpack.c.l.b16 %v5891
    %v8085 = vunpack.c.h.b16 %v5891
    %v8086 = vunpack.c.l.b16 %v5892
    %v8087 = vunpack.c.h.b16 %v5892
    %v8088 = vunpack.c.l.b16 %v5893
    %v8089 = vunpack.c.h.b16 %v5893
    %v8090 = vunpack.c.l.b16 %v5894
    %v8091 = vunpack.c.h.b16 %v5894
    %v8092 = vunpack.c.l.b16 %v5895
    %v8093 = vunpack.c.h.b16 %v5895
    %v8094 = vunpack.c.l.b16 %v5896
    %v8095 = vunpack.c.h.b16 %v5896
    %v8096 = vunpack.c.l.b16 %v5897
    %v8097 = vunpack.c.h.b16 %v5897
    %v8098 = vunpack.c.l.b16 %v5898
    %v8099 = vunpack.c.h.b16 %v5898
    %v8100 = vunpack.c.l.b16 %v5899
    %v8101 = vunpack.c.h.b16 %v5899
    %v8102 = vunpack.c.l.b16 %v5900
    %v8103 = vunpack.c.h.b16 %v5900
    %v8104 = vunpack.c.l.b16 %v5901
    %v8105 = vunpack.c.h.b16 %v5901
    %v8106 = vunpack.c.l.b16 %v5902
    %v8107 = vunpack.c.h.b16 %v5902
    %v8108 = vunpack.c.l.b16 %v5903
    %v8109 = vunpack.c.h.b16 %v5903
    %v8110 = vunpack.c.l.b16 %v5904
    %v8111 = vunpack.c.h.b16 %v5904
    %v8112 = vunpack.c.l.b16 %v5905
    %v8113 = vunpack.c.h.b16 %v5905
    %v8114 = vunpack.c.l.b16 %v5906
    %v8115 = vunpack.c.h.b16 %v5906
    %v8116 = vunpack.c.l.b16 %v5907
    %v8117 = vunpack.c.h.b16 %v5907
    %v8118 = vunpack.c.l.b16 %v5908
    %v8119 = vunpack.c.h.b16 %v5908
    %v8120 = vunpack.c.l.b16 %v5909
    %v8121 = vunpack.c.h.b16 %v5909
    %v8122 = vunpack.c.l.b16 %v5910
    %v8123 = vunpack.c.h.b16 %v5910
    %v8124 = vunpack.c.l.b16 %v5911
    %v8125 = vunpack.c.h.b16 %v5911
    %v8126 = vunpack.c.l.b16 %v5912
    %v8127 = vunpack.c.h.b16 %v5912
    %v8128 = vunpack.c.l.b16 %v5913
    %v8129 = vunpack.c.h.b16 %v5913
    %v8130 = vunpack.c.l.b16 %v5914
    %v8131 = vunpack.c.h.b16 %v5914
    %v8132 = vunpack.c.l.b16 %v5915
    %v8133 = vunpack.c.h.b16 %v5915
    %v8134 = vunpack.c.l.b16 %v5916
    %v8135 = vunpack.c.h.b16 %v5916
    %v8136 = vunpack.c.l.b16 %v5917
    %v8137 = vunpack.c.h.b16 %v5917
    %v8138 = vunpack.c.l.b16 %v5918
    %v8139 = vunpack.c.h.b16 %v5918
    %v8140 = vunpack.c.l.b16 %v5919
    %v8141 = vunpack.c.h.b16 %v5919
    %v8142 = vunpack.c.l.b16 %v5920
    %v8143 = vunpack.c.h.b16 %v5920
    %v8144 = vunpack.c.l.b16 %v5921
    %v8145 = vunpack.c.h.b16 %v5921
    %v8146 = vunpack.c.l.b16 %v5922
    %v8147 = vunpack.c.h.b16 %v5922
    %v8148 = vunpack.c.l.b16 %v5923
    %v8149 = vunpack.c.h.b16 %v5923
    %v8150 = vunpack.c.l.b16 %v5924
    %v8151 = vunpack.c.h.b16 %v5924
    %v8152 = vunpack.c.l.b16 %v5925
    %v8153 = vunpack.c.h.b16 %v5925
    %v8154 = vunpack.c.l.b16 %v5926
    %v8155 = vunpack.c.h.b16 %v5926
    %v8156 = vunpack.c.l.b16 %v5927
    %v8157 = vunpack.c.h.b16 %v5927
    %v8158 = vunpack.c.l.b16 %v5928
    %v8159 = vunpack.c.h.b16 %v5928
    %v8160 = vunpack.c.l.b16 %v5929
    %v8161 = vunpack.c.h.b16 %v5929
    %v8162 = vunpack.c.l.b16 %v5930
    %v8163 = vunpack.c.h.b16 %v5930
    %v8164 = vunpack.c.l.b16 %v5931
    %v8165 = vunpack.c.h.b16 %v5931
    %v8166 = vunpack.c.l.b16 %v5932
    %v8167 = vunpack.c.h.b16 %v5932
    %v8168 = vunpack.c.l.b16 %v5933
    %v8169 = vunpack.c.h.b16 %v5933
    %v8170 = vunpack.c.l.b16 %v5934
    %v8171 = vunpack.c.h.b16 %v5934
    %v8172 = vunpack.c.l.b16 %v5935
    %v8173 = vunpack.c.h.b16 %v5935
    %v8174 = vunpack.c.l.b16 %v5936
    %v8175 = vunpack.c.h.b16 %v5936
    %v8176 = vunpack.c.l.b16 %v5937
    %v8177 = vunpack.c.h.b16 %v5937
    %v8178 = vunpack.c.l.b16 %v5938
    %v8179 = vunpack.c.h.b16 %v5938
    %v8180 = vunpack.c.l.b16 %v5939
    %v8181 = vunpack.c.h.b16 %v5939
    %v8182 = vunpack.c.l.b16 %v5940
    %v8183 = vunpack.c.h.b16 %v5940
    %v8184 = vunpack.c.l.b16 %v5941
    %v8185 = vunpack.c.h.b16 %v5941
    %v8186 = vunpack.c.l.b16 %v5942
    %v8187 = vunpack.c.h.b16 %v5942
    %v8188 = vunpack.c.l.b16 %v5943
    %v8189 = vunpack.c.h.b16 %v5943
    %v8190 = vunpack.c.l.b16 %v5944
    %v8191 = vunpack.c.h.b16 %v5944
    %v8192 = vunpack.c.l.b16 %v5945
    %v8193 = vunpack.c.h.b16 %v5945
    %v8194 = vunpack.c.l.b16 %v5946
    %v8195 = vunpack.c.h.b16 %v5946
    %v8196 = vunpack.c.l.b16 %v5947
    %v8197 = vunpack.c.h.b16 %v5947
    %v8198 = vunpack.c.l.b16 %v5948
    %v8199 = vunpack.c.h.b16 %v5948
    %v8200 = vunpack.c.l.b16 %v5949
    %v8201 = vunpack.c.h.b16 %v5949
    %v8202 = vunpack.c.l.b16 %v5950
    %v8203 = vunpack.c.h.b16 %v5950
    %v8204 = vunpack.c.l.b16 %v5951
    %v8205 = vunpack.c.h.b16 %v5951
    %v8206 = vunpack.c.l.b16 %v5952
    %v8207 = vunpack.c.h.b16 %v5952
    %v8208 = vunpack.c.l.b16 %v5953
    %v8209 = vunpack.c.h.b16 %v5953
    %v8210 = vunpack.c.l.b16 %v5954
    %v8211 = vunpack.c.h.b16 %v5954
    %v8212 = vunpack.c.l.b16 %v5955
    %v8213 = vunpack.c.h.b16 %v5955
    %v8214 = vunpack.c.l.b16 %v5956
    %v8215 = vunpack.c.h.b16 %v5956
    %v8216 = vunpack.c.l.b16 %v5957
    %v8217 = vunpack.c.h.b16 %v5957
    %v8218 = vunpack.c.l.b16 %v5958
    %v8219 = vunpack.c.h.b16 %v5958
    %v8220 = vunpack.c.l.b16 %v5959
    %v8221 = vunpack.c.h.b16 %v5959
    %v8222 = vunpack.c.l.b16 %v5960
    %v8223 = vunpack.c.h.b16 %v5960
    %v8224 = vunpack.c.l.b16 %v5961
    %v8225 = vunpack.c.h.b16 %v5961
    %v8226 = vunpack.c.l.b16 %v5962
    %v8227 = vunpack.c.h.b16 %v5962
    %v8228 = vunpack.c.l.b16 %v5963
    %v8229 = vunpack.c.h.b16 %v5963
    %v8230 = vunpack.c.l.b16 %v5964
    %v8231 = vunpack.c.h.b16 %v5964
    %v8232 = vunpack.c.l.b16 %v5965
    %v8233 = vunpack.c.h.b16 %v5965
    %v8234 = vunpack.c.l.b16 %v5966
    %v8235 = vunpack.c.h.b16 %v5966
    %v8236 = vunpack.c.l.b16 %v5967
    %v8237 = vunpack.c.h.b16 %v5967
    %v8238 = vunpack.c.l.b16 %v5968
    %v8239 = vunpack.c.h.b16 %v5968
    %v8240 = vunpack.c.l.b16 %v5969
    %v8241 = vunpack.c.h.b16 %v5969
    %v8242 = vunpack.c.l.b16 %v5970
    %v8243 = vunpack.c.h.b16 %v5970
    %v8244 = vunpack.c.l.b16 %v5971
    %v8245 = vunpack.c.h.b16 %v5971
    %v8246 = vunpack.c.l.b16 %v5972
    %v8247 = vunpack.c.h.b16 %v5972
    %v8248 = vunpack.c.l.b16 %v5973
    %v8249 = vunpack.c.h.b16 %v5973
    %v8250 = vunpack.c.l.b16 %v5974
    %v8251 = vunpack.c.h.b16 %v5974
    %v8252 = vunpack.c.l.b16 %v5975
    %v8253 = vunpack.c.h.b16 %v5975
    %v8254 = vunpack.c.l.b16 %v5976
    %v8255 = vunpack.c.h.b16 %v5976
    %v8256 = vunpack.c.l.b16 %v5977
    %v8257 = vunpack.c.h.b16 %v5977
    %v8258 = vunpack.c.l.b16 %v5978
    %v8259 = vunpack.c.h.b16 %v5978
    %v8260 = vunpack.c.l.b16 %v5979
    %v8261 = vunpack.c.h.b16 %v5979
    %v8262 = vunpack.c.l.b16 %v5980
    %v8263 = vunpack.c.h.b16 %v5980
    %v8264 = vunpack.c.l.b16 %v5981
    %v8265 = vunpack.c.h.b16 %v5981
    %v8266 = vunpack.c.l.b16 %v5982
    %v8267 = vunpack.c.h.b16 %v5982
    %v8268 = vunpack.c.l.b16 %v5983
    %v8269 = vunpack.c.h.b16 %v5983
    %v8270 = vunpack.c.l.b16 %v5984
    %v8271 = vunpack.c.h.b16 %v5984
    %v8272 = vunpack.c.l.b16 %v5985
    %v8273 = vunpack.c.h.b16 %v5985
    %v8274 = vunpack.c.l.b16 %v5986
    %v8275 = vunpack.c.h.b16 %v5986
    %v8276 = vunpack.c.l.b16 %v5987
    %v8277 = vunpack.c.h.b16 %v5987
    %v8278 = vunpack.c.l.b16 %v5988
    %v8279 = vunpack.c.h.b16 %v5988
    %v8280 = vunpack.c.l.b16 %v5989
    %v8281 = vunpack.c.h.b16 %v5989
    %v8282 = vunpack.c.l.b16 %v5990
    %v8283 = vunpack.c.h.b16 %v5990
    %v8284 = vunpack.c.l.b16 %v5991
    %v8285 = vunpack.c.h.b16 %v5991
    %v8286 = vunpack.c.l.b16 %v5992
    %v8287 = vunpack.c.h.b16 %v5992
    %v8288 = vunpack.c.l.b16 %v5993
    %v8289 = vunpack.c.h.b16 %v5993
    %v8290 = vunpack.c.l.b16 %v5994
    %v8291 = vunpack.c.h.b16 %v5994
    %v8292 = vunpack.c.l.b16 %v5995
    %v8293 = vunpack.c.h.b16 %v5995
    %v8294 = vunpack.c.l.b16 %v5996
    %v8295 = vunpack.c.h.b16 %v5996
    %v8296 = vunpack.c.l.b16 %v5997
    %v8297 = vunpack.c.h.b16 %v5997
    %v8298 = vunpack.c.l.b16 %v5998
    %v8299 = vunpack.c.h.b16 %v5998
    %v8300 = vunpack.c.l.b16 %v5999
    %v8301 = vunpack.c.h.b16 %v5999
    %v8302 = vunpack.c.l.b16 %v6000
    %v8303 = vunpack.c.h.b16 %v6000
    %v8304 = vunpack.c.l.b16 %v6001
    %v8305 = vunpack.c.h.b16 %v6001
    %v8306 = vunpack.c.l.b16 %v6002
    %v8307 = vunpack.c.h.b16 %v6002
    %v8308 = vunpack.c.l.b16 %v6003
    %v8309 = vunpack.c.h.b16 %v6003
    %v8310 = vunpack.c.l.b16 %v6004
    %v8311 = vunpack.c.h.b16 %v6004
    %v8312 = vunpack.c.l.b16 %v6005
    %v8313 = vunpack.c.h.b16 %v6005
    %v8314 = vunpack.c.l.b16 %v6006
    %v8315 = vunpack.c.h.b16 %v6006
    %v8316 = vunpack.c.l.b16 %v6007
    %v8317 = vunpack.c.h.b16 %v6007
    %v8318 = vunpack.c.l.b16 %v6008
    %v8319 = vunpack.c.h.b16 %v6008
    %v8320 = vunpack.c.l.b16 %v6009
    %v8321 = vunpack.c.h.b16 %v6009
    %v8322 = vunpack.c.l.b16 %v6010
    %v8323 = vunpack.c.h.b16 %v6010
    %v8324 = vunpack.c.l.b16 %v6011
    %v8325 = vunpack.c.h.b16 %v6011
    %v8326 = vunpack.c.l.b16 %v6012
    %v8327 = vunpack.c.h.b16 %v6012
    %v8328 = vunpack.c.l.b16 %v6013
    %v8329 = vunpack.c.h.b16 %v6013
    %v8330 = vunpack.c.l.b16 %v6014
    %v8331 = vunpack.c.h.b16 %v6014
    %v8332 = vunpack.c.l.b16 %v6015
    %v8333 = vunpack.c.h.b16 %v6015
    %v8334 = vunpack.c.l.b16 %v6016
    %v8335 = vunpack.c.h.b16 %v6016
    %v8336 = vunpack.c.l.b16 %v6017
    %v8337 = vunpack.c.h.b16 %v6017
    %v8338 = vunpack.c.l.b16 %v6018
    %v8339 = vunpack.c.h.b16 %v6018
    %v8340 = vunpack.c.l.b16 %v6019
    %v8341 = vunpack.c.h.b16 %v6019
    %v8342 = vunpack.c.l.b16 %v6020
    %v8343 = vunpack.c.h.b16 %v6020
    %v8344 = vunpack.c.l.b16 %v6021
    %v8345 = vunpack.c.h.b16 %v6021
    %v8346 = vunpack.c.l.b16 %v6022
    %v8347 = vunpack.c.h.b16 %v6022
    %v8348 = vunpack.c.l.b16 %v6023
    %v8349 = vunpack.c.h.b16 %v6023
    %v8350 = vunpack.c.l.b16 %v6024
    %v8351 = vunpack.c.h.b16 %v6024
    %v8352 = vunpack.c.l.b16 %v6025
    %v8353 = vunpack.c.h.b16 %v6025
    %v8354 = vunpack.c.l.b16 %v6026
    %v8355 = vunpack.c.h.b16 %v6026
    %v8356 = vunpack.c.l.b16 %v6027
    %v8357 = vunpack.c.h.b16 %v6027
    %v8358 = vunpack.c.l.b16 %v6028
    %v8359 = vunpack.c.h.b16 %v6028
    %v8360 = vunpack.c.l.b16 %v6029
    %v8361 = vunpack.c.h.b16 %v6029
    %v8362 = vunpack.c.l.b16 %v6030
    %v8363 = vunpack.c.h.b16 %v6030
    %v8364 = vunpack.c.l.b16 %v6031
    %v8365 = vunpack.c.h.b16 %v6031
    %v8366 = vunpack.c.l.b16 %v6032
    %v8367 = vunpack.c.h.b16 %v6032
    %v8368 = vunpack.c.l.b16 %v6033
    %v8369 = vunpack.c.h.b16 %v6033
    %v8370 = vunpack.c.l.b16 %v6034
    %v8371 = vunpack.c.h.b16 %v6034
    %v8372 = vunpack.c.l.b16 %v6035
    %v8373 = vunpack.c.h.b16 %v6035
    %v8374 = vunpack.c.l.b16 %v6036
    %v8375 = vunpack.c.h.b16 %v6036
    %v8376 = vunpack.c.l.b16 %v6037
    %v8377 = vunpack.c.h.b16 %v6037
    %v8378 = vunpack.c.l.b16 %v6038
    %v8379 = vunpack.c.h.b16 %v6038
    %v8380 = vunpack.c.l.b16 %v6039
    %v8381 = vunpack.c.h.b16 %v6039
    %v8382 = vunpack.c.l.b16 %v6040
    %v8383 = vunpack.c.h.b16 %v6040
    %v8384 = vunpack.c.l.b16 %v6041
    %v8385 = vunpack.c.h.b16 %v6041
    %v8386 = vunpack.c.l.b16 %v6042
    %v8387 = vunpack.c.h.b16 %v6042
    %v8388 = vunpack.c.l.b16 %v6043
    %v8389 = vunpack.c.h.b16 %v6043
    %v8390 = vunpack.c.l.b16 %v6044
    %v8391 = vunpack.c.h.b16 %v6044
    %v8392 = vunpack.c.l.b16 %v6045
    %v8393 = vunpack.c.h.b16 %v6045
    %v8394 = vunpack.c.l.b16 %v6046
    %v8395 = vunpack.c.h.b16 %v6046
    %v8396 = vunpack.c.l.b16 %v6047
    %v8397 = vunpack.c.h.b16 %v6047
    %v8398 = vunpack.c.l.b16 %v6048
    %v8399 = vunpack.c.h.b16 %v6048
    %v8400 = vunpack.c.l.b16 %v6049
    %v8401 = vunpack.c.h.b16 %v6049
    %v8402 = vunpack.c.l.b16 %v6050
    %v8403 = vunpack.c.h.b16 %v6050
    %v8404 = vunpack.c.l.b16 %v6051
    %v8405 = vunpack.c.h.b16 %v6051
    %v8406 = vunpack.c.l.b16 %v6052
    %v8407 = vunpack.c.h.b16 %v6052
    %v8408 = vunpack.c.l.b16 %v6053
    %v8409 = vunpack.c.h.b16 %v6053
    %v8410 = vunpack.c.l.b16 %v6054
    %v8411 = vunpack.c.h.b16 %v6054
    %v8412 = vunpack.c.l.b16 %v6055
    %v8413 = vunpack.c.h.b16 %v6055
    %v8414 = vunpack.c.l.b16 %v6056
    %v8415 = vunpack.c.h.b16 %v6056
    %v8416 = vunpack.c.l.b16 %v6057
    %v8417 = vunpack.c.h.b16 %v6057
    %v8418 = vunpack.c.l.b16 %v6058
    %v8419 = vunpack.c.h.b16 %v6058
    %v8420 = vunpack.c.l.b16 %v6059
    %v8421 = vunpack.c.h.b16 %v6059
    %v8422 = vunpack.c.l.b16 %v6060
    %v8423 = vunpack.c.h.b16 %v6060
    %v8424 = vunpack.c.l.b16 %v6061
    %v8425 = vunpack.c.h.b16 %v6061
    %v8426 = vunpack.c.l.b16 %v6062
    %v8427 = vunpack.c.h.b16 %v6062
    %v8428 = vunpack.c.l.b16 %v6063
    %v8429 = vunpack.c.h.b16 %v6063
    %v8430 = vunpack.c.l.b16 %v6064
    %v8431 = vunpack.c.h.b16 %v6064
    %v8432 = vunpack.c.l.b16 %v6065
    %v8433 = vunpack.c.h.b16 %v6065
    %v8434 = vunpack.c.l.b16 %v6066
    %v8435 = vunpack.c.h.b16 %v6066
    %v8436 = vunpack.c.l.b16 %v6067
    %v8437 = vunpack.c.h.b16 %v6067
    %v8438 = vunpack.c.l.b16 %v6068
    %v8439 = vunpack.c.h.b16 %v6068
    %v8440 = vunpack.c.l.b16 %v6069
    %v8441 = vunpack.c.h.b16 %v6069
    %v8442 = vunpack.c.l.b16 %v6070
    %v8443 = vunpack.c.h.b16 %v6070
    %v8444 = vunpack.c.l.b16 %v6071
    %v8445 = vunpack.c.h.b16 %v6071
    %v8446 = vunpack.c.l.b16 %v6072
    %v8447 = vunpack.c.h.b16 %v6072
    %v8448 = vunpack.c.l.b16 %v6073
    %v8449 = vunpack.c.h.b16 %v6073
    %v8450 = vunpack.c.l.b16 %v6074
    %v8451 = vunpack.c.h.b16 %v6074
    %v8452 = vunpack.c.l.b16 %v6075
    %v8453 = vunpack.c.h.b16 %v6075
    %v8454 = vunpack.c.l.b16 %v6076
    %v8455 = vunpack.c.h.b16 %v6076
    %v8456 = vunpack.c.l.b16 %v6077
    %v8457 = vunpack.c.h.b16 %v6077
    %v8458 = vunpack.c.l.b16 %v6078
    %v8459 = vunpack.c.h.b16 %v6078
    %v8460 = vunpack.c.l.b16 %v6079
    %v8461 = vunpack.c.h.b16 %v6079
    %v8462 = vunpack.c.l.b16 %v6080
    %v8463 = vunpack.c.h.b16 %v6080
    %v8464 = vunpack.c.l.b16 %v6081
    %v8465 = vunpack.c.h.b16 %v6081
    %v8466 = vunpack.c.l.b16 %v6082
    %v8467 = vunpack.c.h.b16 %v6082
    %v8468 = vunpack.c.l.b16 %v6083
    %v8469 = vunpack.c.h.b16 %v6083
    %v8470 = vunpack.c.l.b16 %v6084
    %v8471 = vunpack.c.h.b16 %v6084
    %v8472 = vunpack.c.l.b16 %v6085
    %v8473 = vunpack.c.h.b16 %v6085
    %v8474 = vunpack.c.l.b16 %v6086
    %v8475 = vunpack.c.h.b16 %v6086
    %v8476 = vunpack.c.l.b16 %v6087
    %v8477 = vunpack.c.h.b16 %v6087
    %v8478 = vunpack.c.l.b16 %v6088
    %v8479 = vunpack.c.h.b16 %v6088
    %v8480 = vunpack.c.l.b16 %v6089
    %v8481 = vunpack.c.h.b16 %v6089
    %v8482 = vunpack.c.l.b16 %v6090
    %v8483 = vunpack.c.h.b16 %v6090
    %v8484 = vunpack.c.l.b16 %v6091
    %v8485 = vunpack.c.h.b16 %v6091
    %v8486 = vunpack.c.l.b16 %v6092
    %v8487 = vunpack.c.h.b16 %v6092
    %v8488 = vunpack.c.l.b16 %v6093
    %v8489 = vunpack.c.h.b16 %v6093
    %v8490 = vunpack.c.l.b16 %v6094
    %v8491 = vunpack.c.h.b16 %v6094
    %v8492 = vunpack.c.l.b16 %v6095
    %v8493 = vunpack.c.h.b16 %v6095
    %v8494 = vunpack.c.l.b16 %v6096
    %v8495 = vunpack.c.h.b16 %v6096
    %v8496 = vunpack.c.l.b16 %v6097
    %v8497 = vunpack.c.h.b16 %v6097
    %v8498 = vunpack.c.l.b16 %v6098
    %v8499 = vunpack.c.h.b16 %v6098
    %v8500 = vunpack.c.l.b16 %v6099
    %v8501 = vunpack.c.h.b16 %v6099
    %v8502 = vunpack.c.l.b16 %v6100
    %v8503 = vunpack.c.h.b16 %v6100
    %v8504 = vunpack.c.l.b16 %v6101
    %v8505 = vunpack.c.h.b16 %v6101
    %v8506 = vunpack.c.l.b16 %v6102
    %v8507 = vunpack.c.h.b16 %v6102
    %v8508 = vunpack.c.l.b16 %v6103
    %v8509 = vunpack.c.h.b16 %v6103
    %v8510 = vunpack.c.l.b16 %v6104
    %v8511 = vunpack.c.h.b16 %v6104
    %v8512 = vunpack.c.l.b16 %v6105
    %v8513 = vunpack.c.h.b16 %v6105
    %v8514 = vunpack.c.l.b16 %v6106
    %v8515 = vunpack.c.h.b16 %v6106
    %v8516 = vunpack.c.l.b16 %v6107
    %v8517 = vunpack.c.h.b16 %v6107
    %v8518 = vunpack.c.l.b16 %v6108
    %v8519 = vunpack.c.h.b16 %v6108
    %v8520 = vunpack.c.l.b16 %v6109
    %v8521 = vunpack.c.h.b16 %v6109
    %v8522 = vunpack.c.l.b16 %v6110
    %v8523 = vunpack.c.h.b16 %v6110
    %v8524 = vunpack.c.l.b16 %v6111
    %v8525 = vunpack.c.h.b16 %v6111
    %v8526 = vunpack.c.l.b16 %v6112
    %v8527 = vunpack.c.h.b16 %v6112
    %v8528 = vunpack.c.l.b16 %v6113
    %v8529 = vunpack.c.h.b16 %v6113
    %v8530 = vunpack.c.l.b16 %v6114
    %v8531 = vunpack.c.h.b16 %v6114
    %v8532 = vunpack.c.l.b16 %v6115
    %v8533 = vunpack.c.h.b16 %v6115
    %v8534 = vunpack.c.l.b16 %v6116
    %v8535 = vunpack.c.h.b16 %v6116
    %v8536 = vunpack.c.l.b16 %v6117
    %v8537 = vunpack.c.h.b16 %v6117
    %v8538 = vunpack.c.l.b16 %v6118
    %v8539 = vunpack.c.h.b16 %v6118
    %v8540 = vunpack.c.l.b16 %v6119
    %v8541 = vunpack.c.h.b16 %v6119
    %v8542 = vunpack.c.l.b16 %v6120
    %v8543 = vunpack.c.h.b16 %v6120
    %v8544 = vunpack.c.l.b16 %v6121
    %v8545 = vunpack.c.h.b16 %v6121
    %v8546 = vunpack.c.l.b16 %v6122
    %v8547 = vunpack.c.h.b16 %v6122
    %v8548 = vunpack.c.l.b16 %v6123
    %v8549 = vunpack.c.h.b16 %v6123
    %v8550 = vunpack.c.l.b16 %v6124
    %v8551 = vunpack.c.h.b16 %v6124
    %v8552 = vunpack.c.l.b16 %v6125
    %v8553 = vunpack.c.h.b16 %v6125
    %v8554 = vunpack.c.l.b16 %v6126
    %v8555 = vunpack.c.h.b16 %v6126
    %v8556 = vunpack.c.l.b16 %v6127
    %v8557 = vunpack.c.h.b16 %v6127
    %v8558 = vunpack.c.l.b16 %v6128
    %v8559 = vunpack.c.h.b16 %v6128
    %v8560 = vunpack.c.l.b16 %v6129
    %v8561 = vunpack.c.h.b16 %v6129
    %v8562 = vunpack.c.l.b16 %v6130
    %v8563 = vunpack.c.h.b16 %v6130
    %v8564 = vunpack.c.l.b16 %v6131
    %v8565 = vunpack.c.h.b16 %v6131
    %v8566 = vunpack.c.l.b16 %v6132
    %v8567 = vunpack.c.h.b16 %v6132
    %v8568 = vunpack.c.l.b16 %v6133
    %v8569 = vunpack.c.h.b16 %v6133
    %v8570 = vunpack.c.l.b16 %v6134
    %v8571 = vunpack.c.h.b16 %v6134
    %v8572 = vunpack.c.l.b16 %v6135
    %v8573 = vunpack.c.h.b16 %v6135
    %v8574 = vunpack.c.l.b16 %v6136
    %v8575 = vunpack.c.h.b16 %v6136
    %v8576 = vunpack.c.l.b16 %v6137
    %v8577 = vunpack.c.h.b16 %v6137
    %v8578 = vunpack.c.l.b16 %v6138
    %v8579 = vunpack.c.h.b16 %v6138
    %v8580 = vunpack.c.l.b16 %v6139
    %v8581 = vunpack.c.h.b16 %v6139
    %v8582 = vunpack.c.l.b16 %v6140
    %v8583 = vunpack.c.h.b16 %v6140
    %v8584 = vunpack.c.l.b16 %v6141
    %v8585 = vunpack.c.h.b16 %v6141
    %v8586 = vunpack.c.l.b16 %v6142
    %v8587 = vunpack.c.h.b16 %v6142
    %v8588 = vunpack.c.l.b16 %v6143
    %v8589 = vunpack.c.h.b16 %v6143
    %v8590 = vunpack.c.l.b16 %v6144
    %v8591 = vunpack.c.h.b16 %v6144
    %v8592 = vunpack.c.l.b16 %v6145
    %v8593 = vunpack.c.h.b16 %v6145
    %v8594 = vunpack.c.l.b16 %v6146
    %v8595 = vunpack.c.h.b16 %v6146
    %v8596 = vunpack.c.l.b16 %v6147
    %v8597 = vunpack.c.h.b16 %v6147
    %v8598 = vunpack.c.l.b16 %v6148
    %v8599 = vunpack.c.h.b16 %v6148
    %v8600 = vunpack.c.l.b16 %v6149
    %v8601 = vunpack.c.h.b16 %v6149
    %v8602 = vunpack.c.l.b16 %v6150
    %v8603 = vunpack.c.h.b16 %v6150
    %v8604 = vunpack.c.l.b16 %v6151
    %v8605 = vunpack.c.h.b16 %v6151
    %v8606 = vunpack.c.l.b16 %v6152
    %v8607 = vunpack.c.h.b16 %v6152
    %v8608 = vunpack.c.l.b16 %v6153
    %v8609 = vunpack.c.h.b16 %v6153
    %v8610 = vunpack.c.l.b16 %v6154
    %v8611 = vunpack.c.h.b16 %v6154
    %v8612 = vunpack.c.l.b16 %v6155
    %v8613 = vunpack.c.h.b16 %v6155
    %v8614 = vunpack.c.l.b16 %v6156
    %v8615 = vunpack.c.h.b16 %v6156
    %v8616 = vunpack.c.l.b16 %v6157
    %v8617 = vunpack.c.h.b16 %v6157
    %v8618 = vunpack.c.l.b16 %v6158
    %v8619 = vunpack.c.h.b16 %v6158
    %v8620 = vunpack.c.l.b16 %v6159
    %v8621 = vunpack.c.h.b16 %v6159
    %v8622 = vunpack.c.l.b16 %v6160
    %v8623 = vunpack.c.h.b16 %v6160
    %v8624 = vunpack.c.l.b16 %v6161
    %v8625 = vunpack.c.h.b16 %v6161
    %v8626 = vunpack.c.l.b16 %v6162
    %v8627 = vunpack.c.h.b16 %v6162
    %v8628 = vunpack.c.l.b16 %v6163
    %v8629 = vunpack.c.h.b16 %v6163
    %v8630 = vunpack.c.l.b16 %v6164
    %v8631 = vunpack.c.h.b16 %v6164
    %v8632 = vunpack.c.l.b16 %v6165
    %v8633 = vunpack.c.h.b16 %v6165
    %v8634 = vunpack.c.l.b16 %v6166
    %v8635 = vunpack.c.h.b16 %v6166
    %v8636 = vunpack.c.l.b16 %v6167
    %v8637 = vunpack.c.h.b16 %v6167
    %v8638 = vunpack.c.l.b16 %v6168
    %v8639 = vunpack.c.h.b16 %v6168
    %v8640 = vunpack.c.l.b16 %v6169
    %v8641 = vunpack.c.h.b16 %v6169
    %v8642 = vunpack.c.l.b16 %v6170
    %v8643 = vunpack.c.h.b16 %v6170
    %v8644 = vunpack.c.l.b16 %v6171
    %v8645 = vunpack.c.h.b16 %v6171
    %v8646 = vunpack.c.l.b16 %v6172
    %v8647 = vunpack.c.h.b16 %v6172
    %v8648 = vunpack.c.l.b16 %v6173
    %v8649 = vunpack.c.h.b16 %v6173
    %v8650 = vunpack.c.l.b16 %v6174
    %v8651 = vunpack.c.h.b16 %v6174
    %v8652 = vunpack.c.l.b16 %v6175
    %v8653 = vunpack.c.h.b16 %v6175
    %v8654 = vunpack.c.l.b16 %v6176
    %v8655 = vunpack.c.h.b16 %v6176
    %v8656 = vunpack.c.l.b16 %v6177
    %v8657 = vunpack.c.h.b16 %v6177
    %v8658 = vunpack.c.l.b16 %v6178
    %v8659 = vunpack.c.h.b16 %v6178
    %v8660 = vunpack.c.l.b16 %v6179
    %v8661 = vunpack.c.h.b16 %v6179
    %v8662 = vunpack.c.l.b16 %v6180
    %v8663 = vunpack.c.h.b16 %v6180
    %v8664 = vunpack.c.l.b16 %v6181
    %v8665 = vunpack.c.h.b16 %v6181
    %v8666 = vunpack.c.l.b16 %v6182
    %v8667 = vunpack.c.h.b16 %v6182
    %v8668 = vunpack.c.l.b16 %v6183
    %v8669 = vunpack.c.h.b16 %v6183
    %v8670 = vunpack.c.l.b16 %v6184
    %v8671 = vunpack.c.h.b16 %v6184
    %v8672 = vunpack.c.l.b16 %v6185
    %v8673 = vunpack.c.h.b16 %v6185
    %v8674 = vunpack.c.l.b16 %v6186
    %v8675 = vunpack.c.h.b16 %v6186
    %v8676 = vunpack.c.l.b16 %v6187
    %v8677 = vunpack.c.h.b16 %v6187
    %v8678 = vunpack.c.l.b16 %v6188
    %v8679 = vunpack.c.h.b16 %v6188
    %v8680 = vunpack.c.l.b16 %v6189
    %v8681 = vunpack.c.h.b16 %v6189
    %v8682 = vunpack.c.l.b16 %v6190
    %v8683 = vunpack.c.h.b16 %v6190
    %v8684 = vunpack.c.l.b16 %v6191
    %v8685 = vunpack.c.h.b16 %v6191
    %v8686 = vunpack.c.l.b16 %v6192
    %v8687 = vunpack.c.h.b16 %v6192
    %v8688 = vunpack.c.l.b16 %v6193
    %v8689 = vunpack.c.h.b16 %v6193
    %v8690 = vunpack.c.l.b16 %v6194
    %v8691 = vunpack.c.h.b16 %v6194
    %v8692 = vunpack.c.l.b16 %v6195
    %v8693 = vunpack.c.h.b16 %v6195
    %v8694 = vunpack.c.l.b16 %v6196
    %v8695 = vunpack.c.h.b16 %v6196
    %v8696 = vunpack.c.l.b16 %v6197
    %v8697 = vunpack.c.h.b16 %v6197
    %v8698 = vunpack.c.l.b16 %v6198
    %v8699 = vunpack.c.h.b16 %v6198
    %v8700 = vunpack.c.l.b16 %v6199
    %v8701 = vunpack.c.h.b16 %v6199
    %v8702 = vunpack.c.l.b16 %v6200
    %v8703 = vunpack.c.h.b16 %v6200
    %v8704 = vunpack.c.l.b16 %v6201
    %v8705 = vunpack.c.h.b16 %v6201
    %v8706 = vunpack.c.l.b16 %v6202
    %v8707 = vunpack.c.h.b16 %v6202
    %v8708 = vunpack.c.l.b16 %v6203
    %v8709 = vunpack.c.h.b16 %v6203
    %v8710 = vunpack.c.l.b16 %v6204
    %v8711 = vunpack.c.h.b16 %v6204
    %v8712 = vunpack.c.l.b16 %v6205
    %v8713 = vunpack.c.h.b16 %v6205
    %v8714 = vunpack.c.l.b16 %v6206
    %v8715 = vunpack.c.h.b16 %v6206
    %v8716 = vunpack.c.l.b16 %v6207
    %v8717 = vunpack.c.h.b16 %v6207
    %v8718 = vunpack.c.l.b16 %v6208
    %v8719 = vunpack.c.h.b16 %v6208
    %v8720 = vunpack.c.l.b16 %v6209
    %v8721 = vunpack.c.h.b16 %v6209
    %v8722 = vunpack.c.l.b16 %v6210
    %v8723 = vunpack.c.h.b16 %v6210
    %v8724 = vunpack.c.l.b16 %v6211
    %v8725 = vunpack.c.h.b16 %v6211
    %v8726 = vunpack.c.l.b16 %v6212
    %v8727 = vunpack.c.h.b16 %v6212
    %v8728 = vunpack.c.l.b16 %v6213
    %v8729 = vunpack.c.h.b16 %v6213
    %v8730 = vunpack.c.l.b16 %v6214
    %v8731 = vunpack.c.h.b16 %v6214
    %v8732 = vunpack.c.l.b16 %v6215
    %v8733 = vunpack.c.h.b16 %v6215
    %v8734 = vunpack.c.l.b16 %v6216
    %v8735 = vunpack.c.h.b16 %v6216
    %v8736 = vunpack.c.l.b16 %v6217
    %v8737 = vunpack.c.h.b16 %v6217
    %v8738 = vunpack.c.l.b16 %v6218
    %v8739 = vunpack.c.h.b16 %v6218
    %v8740 = vunpack.c.l.b16 %v6219
    %v8741 = vunpack.c.h.b16 %v6219
    %v8742 = vunpack.c.l.b16 %v6220
    %v8743 = vunpack.c.h.b16 %v6220
    %v8744 = vunpack.c.l.b16 %v6221
    %v8745 = vunpack.c.h.b16 %v6221
    %v8746 = vunpack.c.l.b16 %v6222
    %v8747 = vunpack.c.h.b16 %v6222
    %v8748 = vunpack.c.l.b16 %v6223
    %v8749 = vunpack.c.h.b16 %v6223
    %v8750 = vunpack.c.l.b16 %v6224
    %v8751 = vunpack.c.h.b16 %v6224
    %v8752 = vunpack.c.l.b16 %v6225
    %v8753 = vunpack.c.h.b16 %v6225
    %v8754 = vunpack.c.l.b16 %v6226
    %v8755 = vunpack.c.h.b16 %v6226
    %v8756 = vunpack.c.l.b16 %v6227
    %v8757 = vunpack.c.h.b16 %v6227
    %v8758 = vunpack.c.l.b16 %v6228
    %v8759 = vunpack.c.h.b16 %v6228
    %v8760 = vunpack.c.l.b16 %v6229
    %v8761 = vunpack.c.h.b16 %v6229
    %v8762 = vunpack.c.l.b16 %v6230
    %v8763 = vunpack.c.h.b16 %v6230
    %v8764 = vunpack.c.l.b16 %v6231
    %v8765 = vunpack.c.h.b16 %v6231
    %v8766 = vunpack.c.l.b16 %v6232
    %v8767 = vunpack.c.h.b16 %v6232
    %v8768 = vunpack.c.l.b16 %v6233
    %v8769 = vunpack.c.h.b16 %v6233
    %v8770 = vunpack.c.l.b16 %v6234
    %v8771 = vunpack.c.h.b16 %v6234
    %v8772 = vunpack.c.l.b16 %v6235
    %v8773 = vunpack.c.h.b16 %v6235
    %v8774 = vunpack.c.l.b16 %v6236
    %v8775 = vunpack.c.h.b16 %v6236
    %v8776 = vunpack.c.l.b16 %v6237
    %v8777 = vunpack.c.h.b16 %v6237
    %v8778 = vunpack.c.l.b16 %v6238
    %v8779 = vunpack.c.h.b16 %v6238
    %v8780 = vunpack.c.l.b16 %v6239
    %v8781 = vunpack.c.h.b16 %v6239
    %v8782 = vunpack.c.l.b16 %v6240
    %v8783 = vunpack.c.h.b16 %v6240
    %v8784 = vunpack.c.l.b16 %v6241
    %v8785 = vunpack.c.h.b16 %v6241
    %v8786 = vunpack.c.l.b16 %v6242
    %v8787 = vunpack.c.h.b16 %v6242
    %v8788 = vunpack.c.l.b16 %v6243
    %v8789 = vunpack.c.h.b16 %v6243
    %v8790 = vunpack.c.l.b16 %v6244
    %v8791 = vunpack.c.h.b16 %v6244
    %v8792 = vunpack.c.l.b16 %v6245
    %v8793 = vunpack.c.h.b16 %v6245
    %v8794 = vunpack.c.l.b16 %v6246
    %v8795 = vunpack.c.h.b16 %v6246
    %v8796 = vunpack.c.l.b16 %v6247
    %v8797 = vunpack.c.h.b16 %v6247
    %v8798 = vunpack.c.l.b16 %v6248
    %v8799 = vunpack.c.h.b16 %v6248
    %v8800 = vunpack.c.l.b16 %v6249
    %v8801 = vunpack.c.h.b16 %v6249
    %v8802 = vunpack.c.l.b16 %v6250
    %v8803 = vunpack.c.h.b16 %v6250
    %v8804 = vunpack.c.l.b16 %v6251
    %v8805 = vunpack.c.h.b16 %v6251
    %v8806 = vunpack.c.l.b16 %v6252
    %v8807 = vunpack.c.h.b16 %v6252
    %v8808 = vunpack.c.l.b16 %v6253
    %v8809 = vunpack.c.h.b16 %v6253
    %v8810 = vunpack.c.l.b16 %v6254
    %v8811 = vunpack.c.h.b16 %v6254
    %v8812 = vunpack.c.l.b16 %v6255
    %v8813 = vunpack.c.h.b16 %v6255
    %v8814 = vunpack.c.l.b16 %v6256
    %v8815 = vunpack.c.h.b16 %v6256
    %v8816 = vunpack.c.l.b16 %v6257
    %v8817 = vunpack.c.h.b16 %v6257
    %v8818 = vunpack.c.l.b16 %v6258
    %v8819 = vunpack.c.h.b16 %v6258
    %v8820 = vunpack.c.l.b16 %v6259
    %v8821 = vunpack.c.h.b16 %v6259
    %v8822 = vunpack.c.l.b16 %v6260
    %v8823 = vunpack.c.h.b16 %v6260
    %v8824 = vunpack.c.l.b16 %v6261
    %v8825 = vunpack.c.h.b16 %v6261
    %v8826 = vunpack.c.l.b16 %v6262
    %v8827 = vunpack.c.h.b16 %v6262
    %v8828 = vunpack.c.l.b16 %v6263
    %v8829 = vunpack.c.h.b16 %v6263
    %v8830 = vunpack.c.l.b16 %v6264
    %v8831 = vunpack.c.h.b16 %v6264
    %v8832 = vunpack.c.l.b16 %v6265
    %v8833 = vunpack.c.h.b16 %v6265
    %v8834 = vunpack.c.l.b16 %v6266
    %v8835 = vunpack.c.h.b16 %v6266
    %v8836 = vunpack.c.l.b16 %v6267
    %v8837 = vunpack.c.h.b16 %v6267
    %v8838 = vunpack.c.l.b16 %v6268
    %v8839 = vunpack.c.h.b16 %v6268
    %v8840 = vunpack.c.l.b16 %v6269
    %v8841 = vunpack.c.h.b16 %v6269
    %v8842 = vunpack.c.l.b16 %v6270
    %v8843 = vunpack.c.h.b16 %v6270
    %v8844 = vunpack.c.l.b16 %v6271
    %v8845 = vunpack.c.h.b16 %v6271
    %v8846 = vunpack.c.l.b16 %v6272
    %v8847 = vunpack.c.h.b16 %v6272
    %v8848 = vunpack.c.l.b16 %v6273
    %v8849 = vunpack.c.h.b16 %v6273
    %v8850 = vunpack.c.l.b16 %v6274
    %v8851 = vunpack.c.h.b16 %v6274
    %v8852 = vunpack.c.l.b16 %v6275
    %v8853 = vunpack.c.h.b16 %v6275
    %v8854 = vunpack.c.l.b16 %v6276
    %v8855 = vunpack.c.h.b16 %v6276
    %v8856 = vunpack.c.l.b16 %v6277
    %v8857 = vunpack.c.h.b16 %v6277
    %v8858 = vunpack.c.l.b16 %v6278
    %v8859 = vunpack.c.h.b16 %v6278
    %v8860 = vunpack.c.l.b16 %v6279
    %v8861 = vunpack.c.h.b16 %v6279
    %v8862 = vunpack.c.l.b16 %v6280
    %v8863 = vunpack.c.h.b16 %v6280
    %v8864 = vunpack.c.l.b16 %v6281
    %v8865 = vunpack.c.h.b16 %v6281
    %v8866 = vunpack.c.l.b16 %v6282
    %v8867 = vunpack.c.h.b16 %v6282
    %v8868 = vunpack.c.l.b16 %v6283
    %v8869 = vunpack.c.h.b16 %v6283
    %v8870 = vunpack.c.l.b16 %v6284
    %v8871 = vunpack.c.h.b16 %v6284
    %v8872 = vunpack.c.l.b16 %v6285
    %v8873 = vunpack.c.h.b16 %v6285
    %v8874 = vunpack.c.l.b16 %v6286
    %v8875 = vunpack.c.h.b16 %v6286
    %v8876 = vunpack.c.l.b16 %v6287
    %v8877 = vunpack.c.h.b16 %v6287
    %v8878 = vunpack.c.l.b16 %v6288
    %v8879 = vunpack.c.h.b16 %v6288
    %v8880 = vunpack.c.l.b16 %v6289
    %v8881 = vunpack.c.h.b16 %v6289
    %v8882 = vunpack.c.l.b16 %v6290
    %v8883 = vunpack.c.h.b16 %v6290
    %v8884 = vunpack.c.l.b16 %v6291
    %v8885 = vunpack.c.h.b16 %v6291
    %v8886 = vunpack.c.l.b16 %v6292
    %v8887 = vunpack.c.h.b16 %v6292
    %v8888 = vunpack.c.l.b16 %v6293
    %v8889 = vunpack.c.h.b16 %v6293
    %v8890 = vunpack.c.l.b16 %v6294
    %v8891 = vunpack.c.h.b16 %v6294
    %v8892 = vunpack.c.l.b16 %v6295
    %v8893 = vunpack.c.h.b16 %v6295
    %v8894 = vunpack.c.l.b16 %v6296
    %v8895 = vunpack.c.h.b16 %v6296
    %v8896 = vunpack.c.l.b16 %v6297
    %v8897 = vunpack.c.h.b16 %v6297
    %v8898 = vunpack.c.l.b16 %v6298
    %v8899 = vunpack.c.h.b16 %v6298
    %v8900 = vunpack.c.l.b16 %v6299
    %v8901 = vunpack.c.h.b16 %v6299
    %v8902 = vunpack.c.l.b16 %v6300
    %v8903 = vunpack.c.h.b16 %v6300
    %v8904 = vunpack.c.l.b16 %v6301
    %v8905 = vunpack.c.h.b16 %v6301
    %v8906 = vunpack.c.l.b16 %v6302
    %v8907 = vunpack.c.h.b16 %v6302
    %v8908 = vunpack.c.l.b16 %v6303
    %v8909 = vunpack.c.h.b16 %v6303
    %v8910 = vunpack.c.l.b16 %v6304
    %v8911 = vunpack.c.h.b16 %v6304
    %v8912 = vunpack.c.l.b16 %v6305
    %v8913 = vunpack.c.h.b16 %v6305
    %v8914 = vunpack.c.l.b16 %v6306
    %v8915 = vunpack.c.h.b16 %v6306
    %v8916 = vunpack.c.l.b16 %v6307
    %v8917 = vunpack.c.h.b16 %v6307
    %v8918 = vunpack.c.l.b16 %v6308
    %v8919 = vunpack.c.h.b16 %v6308
    %v8920 = vunpack.c.l.b16 %v6309
    %v8921 = vunpack.c.h.b16 %v6309
    %v8922 = vunpack.c.l.b16 %v6310
    %v8923 = vunpack.c.h.b16 %v6310
    %v8924 = vunpack.c.l.b16 %v6311
    %v8925 = vunpack.c.h.b16 %v6311
    %v8926 = vunpack.c.l.b16 %v6312
    %v8927 = vunpack.c.h.b16 %v6312
    %v8928 = vunpack.c.l.b16 %v6313
    %v8929 = vunpack.c.h.b16 %v6313
    %v8930 = vunpack.c.l.b16 %v6314
    %v8931 = vunpack.c.h.b16 %v6314
    %v8932 = vunpack.c.l.b16 %v6315
    %v8933 = vunpack.c.h.b16 %v6315
    %v8934 = vunpack.c.l.b16 %v6316
    %v8935 = vunpack.c.h.b16 %v6316
    %v8936 = vunpack.c.l.b16 %v6317
    %v8937 = vunpack.c.h.b16 %v6317
    %v8938 = vunpack.c.l.b16 %v6318
    %v8939 = vunpack.c.h.b16 %v6318
    %v8940 = vunpack.c.l.b16 %v6319
    %v8941 = vunpack.c.h.b16 %v6319
    %v8942 = vunpack.c.l.b16 %v6320
    %v8943 = vunpack.c.h.b16 %v6320
    %v8944 = vunpack.c.l.b16 %v6321
    %v8945 = vunpack.c.h.b16 %v6321
    %v8946 = vunpack.c.l.b16 %v6322
    %v8947 = vunpack.c.h.b16 %v6322
    %v8948 = vunpack.c.l.b16 %v6323
    %v8949 = vunpack.c.h.b16 %v6323
    %v8950 = vunpack.c.l.b16 %v6324
    %v8951 = vunpack.c.h.b16 %v6324
    %v8952 = vunpack.c.l.b16 %v6325
    %v8953 = vunpack.c.h.b16 %v6325
    %v8954 = vunpack.c.l.b16 %v6326
    %v8955 = vunpack.c.h.b16 %v6326
    %v8956 = vunpack.c.l.b16 %v6327
    %v8957 = vunpack.c.h.b16 %v6327
    %v8958 = vunpack.c.l.b16 %v6328
    %v8959 = vunpack.c.h.b16 %v6328
    %v8960 = vunpack.c.l.b16 %v6329
    %v8961 = vunpack.c.h.b16 %v6329
    %v8962 = vunpack.c.l.b16 %v6330
    %v8963 = vunpack.c.h.b16 %v6330
    %v8964 = vunpack.c.l.b16 %v6331
    %v8965 = vunpack.c.h.b16 %v6331
    %v8966 = vunpack.c.l.b16 %v6332
    %v8967 = vunpack.c.h.b16 %v6332
    %v8968 = vunpack.c.l.b16 %v6333
    %v8969 = vunpack.c.h.b16 %v6333
    %v8970 = vunpack.c.l.b16 %v6334
    %v8971 = vunpack.c.h.b16 %v6334
    %v8972 = vunpack.c.l.b16 %v6335
    %v8973 = vunpack.c.h.b16 %v6335
    %v8974 = vunpack.c.l.b16 %v6336
    %v8975 = vunpack.c.h.b16 %v6336
    %v8976 = vunpack.c.l.b16 %v6337
    %v8977 = vunpack.c.h.b16 %v6337
    %v8978 = vunpack.c.l.b16 %v6338
    %v8979 = vunpack.c.h.b16 %v6338
    %v8980 = vunpack.c.l.b16 %v6339
    %v8981 = vunpack.c.h.b16 %v6339
    %v8982 = vunpack.c.l.b16 %v6340
    %v8983 = vunpack.c.h.b16 %v6340
    %v8984 = vunpack.c.l.b16 %v6341
    %v8985 = vunpack.c.h.b16 %v6341
    %v8986 = vunpack.c.l.b16 %v6342
    %v8987 = vunpack.c.h.b16 %v6342
    %v8988 = vunpack.c.l.b16 %v6343
    %v8989 = vunpack.c.h.b16 %v6343
    %v8990 = vunpack.c.l.b16 %v6344
    %v8991 = vunpack.c.h.b16 %v6344
    %v8992 = vunpack.c.l.b16 %v6345
    %v8993 = vunpack.c.h.b16 %v6345
    %v8994 = vunpack.c.l.b16 %v6346
    %v8995 = vunpack.c.h.b16 %v6346
    %v8996 = vunpack.c.l.b16 %v6347
    %v8997 = vunpack.c.h.b16 %v6347
    %v8998 = vunpack.c.l.b16 %v6348
    %v8999 = vunpack.c.h.b16 %v6348
    %v9000 = vunpack.c.l.b16 %v6349
    %v9001 = vunpack.c.h.b16 %v6349
    %v9002 = vunpack.c.l.b16 %v6350
    %v9003 = vunpack.c.h.b16 %v6350
    %v9004 = vunpack.c.l.b16 %v6351
    %v9005 = vunpack.c.h.b16 %v6351
    %v9006 = vunpack.c.l.b16 %v6352
    %v9007 = vunpack.c.h.b16 %v6352
    %v9008 = vunpack.c.l.b16 %v6353
    %v9009 = vunpack.c.h.b16 %v6353
    %v9010 = vunpack.c.l.b16 %v6354
    %v9011 = vunpack.c.h.b16 %v6354
    %v9012 = vunpack.c.l.b16 %v6355
    %v9013 = vunpack.c.h.b16 %v6355
    %v9014 = vunpack.c.l.b16 %v6356
    %v9015 = vunpack.c.h.b16 %v6356
    %v9016 = vunpack.c.l.b16 %v6357
    %v9017 = vunpack.c.h.b16 %v6357
    %v9018 = vunpack.c.l.b16 %v6358
    %v9019 = vunpack.c.h.b16 %v6358
    %v9020 = vunpack.c.l.b16 %v6359
    %v9021 = vunpack.c.h.b16 %v6359
    %v9022 = vunpack.c.l.b16 %v6360
    %v9023 = vunpack.c.h.b16 %v6360
    %v9024 = vunpack.c.l.b16 %v6361
    %v9025 = vunpack.c.h.b16 %v6361
    %v9026 = vunpack.c.l.b16 %v6362
    %v9027 = vunpack.c.h.b16 %v6362
    %v9028 = vunpack.c.l.b16 %v6363
    %v9029 = vunpack.c.h.b16 %v6363
    %v9030 = vunpack.c.l.b16 %v6364
    %v9031 = vunpack.c.h.b16 %v6364
    %v9032 = vunpack.c.l.b16 %v6365
    %v9033 = vunpack.c.h.b16 %v6365
    %v9034 = vunpack.c.l.b16 %v6366
    %v9035 = vunpack.c.h.b16 %v6366
    %v9036 = vunpack.c.l.b16 %v6367
    %v9037 = vunpack.c.h.b16 %v6367
    %v9038 = vunpack.c.l.b16 %v6368
    %v9039 = vunpack.c.h.b16 %v6368
    %v9040 = vunpack.c.l.b16 %v6369
    %v9041 = vunpack.c.h.b16 %v6369
    %v9042 = vunpack.c.l.b16 %v6370
    %v9043 = vunpack.c.h.b16 %v6370
    %v9044 = vunpack.c.l.b16 %v6371
    %v9045 = vunpack.c.h.b16 %v6371
    %v9046 = vunpack.c.l.b16 %v6372
    %v9047 = vunpack.c.h.b16 %v6372
    %v9048 = vunpack.c.l.b16 %v6373
    %v9049 = vunpack.c.h.b16 %v6373
    %v9050 = vunpack.c.l.b16 %v6374
    %v9051 = vunpack.c.h.b16 %v6374
    %v9052 = vunpack.c.l.b16 %v6375
    %v9053 = vunpack.c.h.b16 %v6375
    %v9054 = vunpack.c.l.b16 %v6376
    %v9055 = vunpack.c.h.b16 %v6376
    %v9056 = vunpack.c.l.b16 %v6377
    %v9057 = vunpack.c.h.b16 %v6377
    %v9058 = vunpack.c.l.b16 %v6378
    %v9059 = vunpack.c.h.b16 %v6378
    %v9060 = vunpack.c.l.b16 %v6379
    %v9061 = vunpack.c.h.b16 %v6379
    %v9062 = vunpack.c.l.b16 %v6380
    %v9063 = vunpack.c.h.b16 %v6380
    %v9064 = vunpack.c.l.b16 %v6381
    %v9065 = vunpack.c.h.b16 %v6381
    %v9066 = vunpack.c.l.b16 %v6382
    %v9067 = vunpack.c.h.b16 %v6382
    %v9068 = vunpack.c.l.b16 %v6383
    %v9069 = vunpack.c.h.b16 %v6383
    %v9070 = vunpack.c.l.b16 %v6384
    %v9071 = vunpack.c.h.b16 %v6384
    %v9072 = vunpack.c.l.b16 %v6385
    %v9073 = vunpack.c.h.b16 %v6385
    %v9074 = vunpack.c.l.b16 %v6386
    %v9075 = vunpack.c.h.b16 %v6386
    %v9076 = vunpack.c.l.b16 %v6387
    %v9077 = vunpack.c.h.b16 %v6387
    %v9078 = vunpack.c.l.b16 %v6388
    %v9079 = vunpack.c.h.b16 %v6388
    %v9080 = vunpack.c.l.b16 %v6389
    %v9081 = vunpack.c.h.b16 %v6389
    %v9082 = vunpack.c.l.b16 %v6390
    %v9083 = vunpack.c.h.b16 %v6390
    %v9084 = vunpack.c.l.b16 %v6391
    %v9085 = vunpack.c.h.b16 %v6391
    %v9086 = vunpack.c.l.b16 %v6392
    %v9087 = vunpack.c.h.b16 %v6392
    %v9088 = vunpack.c.l.b16 %v6393
    %v9089 = vunpack.c.h.b16 %v6393
    %v9090 = vunpack.c.l.b16 %v6394
    %v9091 = vunpack.c.h.b16 %v6394
    %v9092 = vunpack.c.l.b16 %v6395
    %v9093 = vunpack.c.h.b16 %v6395
    %v9094 = vunpack.c.l.b16 %v6396
    %v9095 = vunpack.c.h.b16 %v6396
    %v9096 = vunpack.c.l.b16 %v6397
    %v9097 = vunpack.c.h.b16 %v6397
    %v9098 = vunpack.c.l.b16 %v6398
    %v9099 = vunpack.c.h.b16 %v6398
    %v9100 = vunpack.c.l.b16 %v6399
    %v9101 = vunpack.c.h.b16 %v6399
    %v9102 = vunpack.c.l.b16 %v6400
    %v9103 = vunpack.c.h.b16 %v6400
    %v9104 = vunpack.c.l.b16 %v6401
    %v9105 = vunpack.c.h.b16 %v6401
    %v9106 = vunpack.c.l.b16 %v6402
    %v9107 = vunpack.c.h.b16 %v6402
    %v9108 = vunpack.c.l.b16 %v6403
    %v9109 = vunpack.c.h.b16 %v6403
    %v9110 = vunpack.c.l.b16 %v6404
    %v9111 = vunpack.c.h.b16 %v6404
    %v9112 = vunpack.c.l.b16 %v6405
    %v9113 = vunpack.c.h.b16 %v6405
    %v9114 = vunpack.c.l.b16 %v6406
    %v9115 = vunpack.c.h.b16 %v6406
    %v9116 = vunpack.c.l.b16 %v6407
    %v9117 = vunpack.c.h.b16 %v6407
    %v9118 = vunpack.c.l.b16 %v6408
    %v9119 = vunpack.c.h.b16 %v6408
    %v9120 = vunpack.c.l.b16 %v6409
    %v9121 = vunpack.c.h.b16 %v6409
    %v9122 = vunpack.c.l.b16 %v6410
    %v9123 = vunpack.c.h.b16 %v6410
    %v9124 = vunpack.c.l.b16 %v6411
    %v9125 = vunpack.c.h.b16 %v6411
    %v9126 = vunpack.c.l.b16 %v6412
    %v9127 = vunpack.c.h.b16 %v6412
    %v9128 = vunpack.c.l.b16 %v6413
    %v9129 = vunpack.c.h.b16 %v6413
    %v9130 = vunpack.c.l.b16 %v6414
    %v9131 = vunpack.c.h.b16 %v6414
    %v9132 = vunpack.c.l.b16 %v6415
    %v9133 = vunpack.c.h.b16 %v6415
    %v9134 = vunpack.c.l.b16 %v6416
    %v9135 = vunpack.c.h.b16 %v6416
    %v9136 = vunpack.c.l.b16 %v6417
    %v9137 = vunpack.c.h.b16 %v6417
    %v9138 = vunpack.c.l.b16 %v6418
    %v9139 = vunpack.c.h.b16 %v6418
    %v9140 = vunpack.c.l.b16 %v6419
    %v9141 = vunpack.c.h.b16 %v6419
    %v9142 = vunpack.c.l.b16 %v6420
    %v9143 = vunpack.c.h.b16 %v6420
    %v9144 = vunpack.c.l.b16 %v6421
    %v9145 = vunpack.c.h.b16 %v6421
    %v9146 = vunpack.c.l.b16 %v6422
    %v9147 = vunpack.c.h.b16 %v6422
    %v9148 = vunpack.c.l.b16 %v6423
    %v9149 = vunpack.c.h.b16 %v6423
    %v9150 = vunpack.c.l.b16 %v6424
    %v9151 = vunpack.c.h.b16 %v6424
    %v9152 = vunpack.c.l.b16 %v6425
    %v9153 = vunpack.c.h.b16 %v6425
    %v9154 = vunpack.c.l.b16 %v6426
    %v9155 = vunpack.c.h.b16 %v6426
    %v9156 = vunpack.c.l.b16 %v6427
    %v9157 = vunpack.c.h.b16 %v6427
    %v9158 = vunpack.c.l.b16 %v6428
    %v9159 = vunpack.c.h.b16 %v6428
    %v9160 = vunpack.c.l.b16 %v6429
    %v9161 = vunpack.c.h.b16 %v6429
    %v9162 = vunpack.c.l.b16 %v6430
    %v9163 = vunpack.c.h.b16 %v6430
    %v9164 = vunpack.c.l.b16 %v6431
    %v9165 = vunpack.c.h.b16 %v6431
    %v9166 = vunpack.c.l.b16 %v6432
    %v9167 = vunpack.c.h.b16 %v6432
    %v9168 = vunpack.c.l.b16 %v6433
    %v9169 = vunpack.c.h.b16 %v6433
    %v9170 = vunpack.c.l.b16 %v6434
    %v9171 = vunpack.c.h.b16 %v6434
    %v9172 = vunpack.c.l.b16 %v6435
    %v9173 = vunpack.c.h.b16 %v6435
    %v9174 = vunpack.c.l.b16 %v6436
    %v9175 = vunpack.c.h.b16 %v6436
    %v9176 = vunpack.c.l.b16 %v6437
    %v9177 = vunpack.c.h.b16 %v6437
    %v9178 = vunpack.c.l.b16 %v6438
    %v9179 = vunpack.c.h.b16 %v6438
    %v9180 = vunpack.c.l.b16 %v6439
    %v9181 = vunpack.c.h.b16 %v6439
    %v9182 = vunpack.c.l.b16 %v6440
    %v9183 = vunpack.c.h.b16 %v6440
    %v9184 = vunpack.c.l.b16 %v6441
    %v9185 = vunpack.c.h.b16 %v6441
    %v9186 = vunpack.c.l.b16 %v6442
    %v9187 = vunpack.c.h.b16 %v6442
    %v9188 = vunpack.c.l.b16 %v6443
    %v9189 = vunpack.c.h.b16 %v6443
    %v9190 = vunpack.c.l.b16 %v6444
    %v9191 = vunpack.c.h.b16 %v6444
    %v9192 = vunpack.c.l.b16 %v6445
    %v9193 = vunpack.c.h.b16 %v6445
    %v9194 = vunpack.c.l.b16 %v6446
    %v9195 = vunpack.c.h.b16 %v6446
    %v9196 = vunpack.c.l.b16 %v6447
    %v9197 = vunpack.c.h.b16 %v6447
    %v9198 = vunpack.c.l.b16 %v6448
    %v9199 = vunpack.c.h.b16 %v6448
    %v9200 = vunpack.c.l.b16 %v6449
    %v9201 = vunpack.c.h.b16 %v6449
    %v9202 = vunpack.c.l.b16 %v6450
    %v9203 = vunpack.c.h.b16 %v6450
    %v9204 = vunpack.c.l.b16 %v6451
    %v9205 = vunpack.c.h.b16 %v6451
    %v9206 = vunpack.c.l.b16 %v6452
    %v9207 = vunpack.c.h.b16 %v6452
    %v9208 = vunpack.c.l.b16 %v6453
    %v9209 = vunpack.c.h.b16 %v6453
    %v9210 = vunpack.c.l.b16 %v6454
    %v9211 = vunpack.c.h.b16 %v6454
    %v9212 = vunpack.c.l.b16 %v6455
    %v9213 = vunpack.c.h.b16 %v6455
    %v9214 = vunpack.c.l.b16 %v6456
    %v9215 = vunpack.c.h.b16 %v6456
    %v9216 = vunpack.c.l.b16 %v6457
    %v9217 = vunpack.c.h.b16 %v6457
    %v9218 = vunpack.c.l.b16 %v6458
    %v9219 = vunpack.c.h.b16 %v6458
    %v9220 = vunpack.c.l.b16 %v6459
    %v9221 = vunpack.c.h.b16 %v6459
    %v9222 = vunpack.c.l.b16 %v6460
    %v9223 = vunpack.c.h.b16 %v6460
    %v9224 = vunpack.c.l.b16 %v6461
    %v9225 = vunpack.c.h.b16 %v6461
    %v9226 = vunpack.c.l.b16 %v6462
    %v9227 = vunpack.c.h.b16 %v6462
    %v9228 = vunpack.c.l.b16 %v6463
    %v9229 = vunpack.c.h.b16 %v6463
    %v9230 = vunpack.c.l.b16 %v6464
    %v9231 = vunpack.c.h.b16 %v6464
    %v9232 = vunpack.c.l.b16 %v6465
    %v9233 = vunpack.c.h.b16 %v6465
    %v9234 = vunpack.c.l.b16 %v6466
    %v9235 = vunpack.c.h.b16 %v6466
    %v9236 = vunpack.c.l.b16 %v6467
    %v9237 = vunpack.c.h.b16 %v6467
    %v9238 = vunpack.c.l.b16 %v6468
    %v9239 = vunpack.c.h.b16 %v6468
    %v9240 = vunpack.c.l.b16 %v6469
    %v9241 = vunpack.c.h.b16 %v6469
    %v9242 = vunpack.c.l.b16 %v6470
    %v9243 = vunpack.c.h.b16 %v6470
    %v9244 = vunpack.c.l.b16 %v6471
    %v9245 = vunpack.c.h.b16 %v6471
    %v9246 = vunpack.c.l.b16 %v6472
    %v9247 = vunpack.c.h.b16 %v6472
    %v9248 = vunpack.c.l.b16 %v6473
    %v9249 = vunpack.c.h.b16 %v6473
    %v9250 = vunpack.c.l.b16 %v6474
    %v9251 = vunpack.c.h.b16 %v6474
    %v9252 = vunpack.c.l.b16 %v6475
    %v9253 = vunpack.c.h.b16 %v6475
    %v9254 = vunpack.c.l.b16 %v6476
    %v9255 = vunpack.c.h.b16 %v6476
    %v9256 = vunpack.c.l.b16 %v6477
    %v9257 = vunpack.c.h.b16 %v6477
    %v9258 = vunpack.c.l.b16 %v6478
    %v9259 = vunpack.c.h.b16 %v6478
    %v9260 = vunpack.c.l.b16 %v6479
    %v9261 = vunpack.c.h.b16 %v6479
    %v9262 = vunpack.c.l.b16 %v6480
    %v9263 = vunpack.c.h.b16 %v6480
    %v9264 = vunpack.c.l.b16 %v6481
    %v9265 = vunpack.c.h.b16 %v6481
    %v9266 = vunpack.c.l.b16 %v6482
    %v9267 = vunpack.c.h.b16 %v6482
    %v9268 = vunpack.c.l.b16 %v6483
    %v9269 = vunpack.c.h.b16 %v6483
    %v9270 = vunpack.c.l.b16 %v6484
    %v9271 = vunpack.c.h.b16 %v6484
    %v9272 = vunpack.c.l.b16 %v6485
    %v9273 = vunpack.c.h.b16 %v6485
    %v9274 = vunpack.c.l.b16 %v6486
    %v9275 = vunpack.c.h.b16 %v6486
    %v9276 = vunpack.c.l.b16 %v6487
    %v9277 = vunpack.c.h.b16 %v6487
    %v9278 = vunpack.c.l.b16 %v6488
    %v9279 = vunpack.c.h.b16 %v6488
    %v9280 = vunpack.c.l.b16 %v6489
    %v9281 = vunpack.c.h.b16 %v6489
    %v9282 = vunpack.c.l.b16 %v6490
    %v9283 = vunpack.c.h.b16 %v6490
    %v9284 = vunpack.c.l.b16 %v6491
    %v9285 = vunpack.c.h.b16 %v6491
    %v9286 = vunpack.c.l.b16 %v6492
    %v9287 = vunpack.c.h.b16 %v6492
    %v9288 = vunpack.c.l.b16 %v6493
    %v9289 = vunpack.c.h.b16 %v6493
    %v9290 = vunpack.c.l.b16 %v6494
    %v9291 = vunpack.c.h.b16 %v6494
    %v9292 = vunpack.c.l.b16 %v6495
    %v9293 = vunpack.c.h.b16 %v6495
    %v9294 = vunpack.c.l.b16 %v6496
    %v9295 = vunpack.c.h.b16 %v6496
    %v9296 = vunpack.c.l.b16 %v6497
    %v9297 = vunpack.c.h.b16 %v6497
    %v9298 = vunpack.c.l.b16 %v6498
    %v9299 = vunpack.c.h.b16 %v6498
    %v9300 = vunpack.c.l.b16 %v6499
    %v9301 = vunpack.c.h.b16 %v6499
    %v9302 = vunpack.c.l.b16 %v6500
    %v9303 = vunpack.c.h.b16 %v6500
    %v9304 = vunpack.c.l.b16 %v6501
    %v9305 = vunpack.c.h.b16 %v6501
    %v9306 = vunpack.c.l.b16 %v6502
    %v9307 = vunpack.c.h.b16 %v6502
    %v9308 = vunpack.c.l.b16 %v6503
    %v9309 = vunpack.c.h.b16 %v6503
    %v9310 = vunpack.c.l.b16 %v6504
    %v9311 = vunpack.c.h.b16 %v6504
    %v9312 = vunpack.c.l.b16 %v6505
    %v9313 = vunpack.c.h.b16 %v6505
    %v9314 = vunpack.c.l.b16 %v6506
    %v9315 = vunpack.c.h.b16 %v6506
    %v9316 = vunpack.c.l.b16 %v6507
    %v9317 = vunpack.c.h.b16 %v6507
    %v9318 = vunpack.c.l.b16 %v6508
    %v9319 = vunpack.c.h.b16 %v6508
    %v9320 = vunpack.c.l.b16 %v6509
    %v9321 = vunpack.c.h.b16 %v6509
    %v9322 = vunpack.c.l.b16 %v6510
    %v9323 = vunpack.c.h.b16 %v6510
    %v9324 = vunpack.c.l.b16 %v6511
    %v9325 = vunpack.c.h.b16 %v6511
    %v9326 = vunpack.c.l.b16 %v6512
    %v9327 = vunpack.c.h.b16 %v6512
    %v9328 = vunpack.c.l.b16 %v6513
    %v9329 = vunpack.c.h.b16 %v6513
    %v9330 = vunpack.c.l.b16 %v6514
    %v9331 = vunpack.c.h.b16 %v6514
    %v9332 = vunpack.c.l.b16 %v6515
    %v9333 = vunpack.c.h.b16 %v6515
    %v9334 = vunpack.c.l.b16 %v6516
    %v9335 = vunpack.c.h.b16 %v6516
    %v9336 = vunpack.c.l.b16 %v6517
    %v9337 = vunpack.c.h.b16 %v6517
    %v9338 = vunpack.c.l.b16 %v6518
    %v9339 = vunpack.c.h.b16 %v6518
    %v9340 = vunpack.c.l.b16 %v6519
    %v9341 = vunpack.c.h.b16 %v6519
    %v9342 = vunpack.c.l.b16 %v6520
    %v9343 = vunpack.c.h.b16 %v6520
    %v9344 = vunpack.c.l.b16 %v6521
    %v9345 = vunpack.c.h.b16 %v6521
    %v9346 = vunpack.c.l.b16 %v6522
    %v9347 = vunpack.c.h.b16 %v6522
    %v9348 = vunpack.c.l.b16 %v6523
    %v9349 = vunpack.c.h.b16 %v6523
    %v9350 = vunpack.c.l.b16 %v6524
    %v9351 = vunpack.c.h.b16 %v6524
    %v9352 = vunpack.c.l.b16 %v6525
    %v9353 = vunpack.c.h.b16 %v6525
    %v9354 = vunpack.c.l.b16 %v6526
    %v9355 = vunpack.c.h.b16 %v6526
    %v9356 = vunpack.c.l.b16 %v6527
    %v9357 = vunpack.c.h.b16 %v6527
    %v9358 = vunpack.c.l.b16 %v6528
    %v9359 = vunpack.c.h.b16 %v6528
    %v9360 = vunpack.c.l.b16 %v6529
    %v9361 = vunpack.c.h.b16 %v6529
    %v9362 = vunpack.c.l.b16 %v6530
    %v9363 = vunpack.c.h.b16 %v6530
    %v9364 = vunpack.c.l.b16 %v6531
    %v9365 = vunpack.c.h.b16 %v6531
    %v9366 = vunpack.c.l.b16 %v6532
    %v9367 = vunpack.c.h.b16 %v6532
    %v9368 = vunpack.c.l.b16 %v6533
    %v9369 = vunpack.c.h.b16 %v6533
    %v9370 = vunpack.c.l.b16 %v6534
    %v9371 = vunpack.c.h.b16 %v6534
    %v9372 = vunpack.c.l.b16 %v6535
    %v9373 = vunpack.c.h.b16 %v6535
    %v9374 = vunpack.c.l.b16 %v6536
    %v9375 = vunpack.c.h.b16 %v6536
    %v9376 = vunpack.c.l.b16 %v6537
    %v9377 = vunpack.c.h.b16 %v6537
    %v9378 = vunpack.c.l.b16 %v6538
    %v9379 = vunpack.c.h.b16 %v6538
    %v9380 = vunpack.c.l.b16 %v6539
    %v9381 = vunpack.c.h.b16 %v6539
    %v9382 = vunpack.c.l.b16 %v6540
    %v9383 = vunpack.c.h.b16 %v6540
    %v9384 = vunpack.c.l.b16 %v6541
    %v9385 = vunpack.c.h.b16 %v6541
    %v9386 = vunpack.c.l.b16 %v6542
    %v9387 = vunpack.c.h.b16 %v6542
    %v9388 = vunpack.c.l.b16 %v6543
    %v9389 = vunpack.c.h.b16 %v6543
    %v9390 = vunpack.c.l.b16 %v6544
    %v9391 = vunpack.c.h.b16 %v6544
    %v9392 = vunpack.c.l.b16 %v6545
    %v9393 = vunpack.c.h.b16 %v6545
    %v9394 = vunpack.c.l.b16 %v6546
    %v9395 = vunpack.c.h.b16 %v6546
    %v9396 = vunpack.c.l.b16 %v6547
    %v9397 = vunpack.c.h.b16 %v6547
    %v9398 = vunpack.c.l.b16 %v6548
    %v9399 = vunpack.c.h.b16 %v6548
    %v9400 = vunpack.c.l.b16 %v6549
    %v9401 = vunpack.c.h.b16 %v6549
    %v9402 = vunpack.c.l.b16 %v6550
    %v9403 = vunpack.c.h.b16 %v6550
    %v9404 = vunpack.c.l.b16 %v6551
    %v9405 = vunpack.c.h.b16 %v6551
    %v9406 = vunpack.c.l.b16 %v6552
    %v9407 = vunpack.c.h.b16 %v6552
    %v9408 = vunpack.c.l.b16 %v6553
    %v9409 = vunpack.c.h.b16 %v6553
    %v9410 = vunpack.c.l.b16 %v6554
    %v9411 = vunpack.c.h.b16 %v6554
    %v9412 = vunpack.c.l.b16 %v6555
    %v9413 = vunpack.c.h.b16 %v6555
    %v9414 = vunpack.c.l.b16 %v6556
    %v9415 = vunpack.c.h.b16 %v6556
    %v9416 = vunpack.c.l.b16 %v6557
    %v9417 = vunpack.c.h.b16 %v6557
    %v9418 = vunpack.c.l.b16 %v6558
    %v9419 = vunpack.c.h.b16 %v6558
    %v9420 = vunpack.c.l.b16 %v6559
    %v9421 = vunpack.c.h.b16 %v6559
    %v9422 = vunpack.c.l.b16 %v6560
    %v9423 = vunpack.c.h.b16 %v6560
    %v9424 = vunpack.c.l.b16 %v6561
    %v9425 = vunpack.c.h.b16 %v6561
    %v9426 = vunpack.c.l.b16 %v6562
    %v9427 = vunpack.c.h.b16 %v6562
    %v9428 = vunpack.c.l.b16 %v6563
    %v9429 = vunpack.c.h.b16 %v6563
    %v9430 = vunpack.c.l.b16 %v6564
    %v9431 = vunpack.c.h.b16 %v6564
    %v9432 = vunpack.c.l.b16 %v6565
    %v9433 = vunpack.c.h.b16 %v6565
    %v9434 = vunpack.c.l.b16 %v6566
    %v9435 = vunpack.c.h.b16 %v6566
    %v9436 = vunpack.c.l.b16 %v6567
    %v9437 = vunpack.c.h.b16 %v6567
    %v9438 = vunpack.c.l.b16 %v6568
    %v9439 = vunpack.c.h.b16 %v6568
    %v9440 = vunpack.c.l.b16 %v6569
    %v9441 = vunpack.c.h.b16 %v6569
    %v9442 = vunpack.c.l.b16 %v6570
    %v9443 = vunpack.c.h.b16 %v6570
    %v9444 = vunpack.c.l.b16 %v6571
    %v9445 = vunpack.c.h.b16 %v6571
    %v9446 = vunpack.c.l.b16 %v6572
    %v9447 = vunpack.c.h.b16 %v6572
    %v9448 = vunpack.c.l.b16 %v6573
    %v9449 = vunpack.c.h.b16 %v6573
    %v9450 = vunpack.c.l.b16 %v6574
    %v9451 = vunpack.c.h.b16 %v6574
    %v9452 = vunpack.c.l.b16 %v6575
    %v9453 = vunpack.c.h.b16 %v6575
    %v9454 = vunpack.c.l.b16 %v6576
    %v9455 = vunpack.c.h.b16 %v6576
    %v9456 = vunpack.c.l.b16 %v6577
    %v9457 = vunpack.c.h.b16 %v6577
    %v9458 = vunpack.c.l.b16 %v6578
    %v9459 = vunpack.c.h.b16 %v6578
    %v9460 = vunpack.c.l.b16 %v6579
    %v9461 = vunpack.c.h.b16 %v6579
    %v9462 = vunpack.c.l.b16 %v6580
    %v9463 = vunpack.c.h.b16 %v6580
    %v9464 = vunpack.c.l.b16 %v6581
    %v9465 = vunpack.c.h.b16 %v6581
    %v9466 = vunpack.c.l.b16 %v6582
    %v9467 = vunpack.c.h.b16 %v6582
    %v9468 = vunpack.c.l.b16 %v6583
    %v9469 = vunpack.c.h.b16 %v6583
    %v9470 = vunpack.c.l.b16 %v6584
    %v9471 = vunpack.c.h.b16 %v6584
    %v9472 = vunpack.c.l.b16 %v6585
    %v9473 = vunpack.c.h.b16 %v6585
    %v9474 = vunpack.c.l.b16 %v6586
    %v9475 = vunpack.c.h.b16 %v6586
    %v9476 = vunpack.c.l.b16 %v6587
    %v9477 = vunpack.c.h.b16 %v6587
    %v9478 = vunpack.c.l.b16 %v6588
    %v9479 = vunpack.c.h.b16 %v6588
    %v9480 = vunpack.c.l.b16 %v6589
    %v9481 = vunpack.c.h.b16 %v6589
    %v9482 = vunpack.c.l.b16 %v6590
    %v9483 = vunpack.c.h.b16 %v6590
    %v9484 = vunpack.c.l.b16 %v6591
    %v9485 = vunpack.c.h.b16 %v6591
    %v9486 = vunpack.c.l.b16 %v6592
    %v9487 = vunpack.c.h.b16 %v6592
    %v9488 = vunpack.c.l.b16 %v6593
    %v9489 = vunpack.c.h.b16 %v6593
    %v9490 = vunpack.c.l.b16 %v6594
    %v9491 = vunpack.c.h.b16 %v6594
    %v9492 = vunpack.c.l.b16 %v6595
    %v9493 = vunpack.c.h.b16 %v6595
    %v9494 = vunpack.c.l.b16 %v6596
    %v9495 = vunpack.c.h.b16 %v6596
    %v9496 = vunpack.c.l.b16 %v6597
    %v9497 = vunpack.c.h.b16 %v6597
    %v9498 = vunpack.c.l.b16 %v6598
    %v9499 = vunpack.c.h.b16 %v6598
    %v9500 = vunpack.c.l.b16 %v6599
    %v9501 = vunpack.c.h.b16 %v6599
    %v9502 = vunpack.c.l.b16 %v6600
    %v9503 = vunpack.c.h.b16 %v6600
    %v9504 = vunpack.c.l.b16 %v6601
    %v9505 = vunpack.c.h.b16 %v6601
    %v9506 = vunpack.c.l.b16 %v6602
    %v9507 = vunpack.c.h.b16 %v6602
    %v9508 = vunpack.c.l.b16 %v6603
    %v9509 = vunpack.c.h.b16 %v6603
    %v9510 = vunpack.c.l.b16 %v6604
    %v9511 = vunpack.c.h.b16 %v6604
    %v9512 = vunpack.c.l.b16 %v6605
    %v9513 = vunpack.c.h.b16 %v6605
    %v9514 = vunpack.c.l.b16 %v6606
    %v9515 = vunpack.c.h.b16 %v6606
    %v9516 = vunpack.c.l.b16 %v6607
    %v9517 = vunpack.c.h.b16 %v6607
    %v9518 = vunpack.c.l.b16 %v6608
    %v9519 = vunpack.c.h.b16 %v6608
    %v9520 = vunpack.c.l.b16 %v6609
    %v9521 = vunpack.c.h.b16 %v6609
    %v9522 = vunpack.c.l.b16 %v6610
    %v9523 = vunpack.c.h.b16 %v6610
    %v9524 = vunpack.c.l.b16 %v6611
    %v9525 = vunpack.c.h.b16 %v6611
    %v9526 = vunpack.c.l.b16 %v6612
    %v9527 = vunpack.c.h.b16 %v6612
    %v9528 = vunpack.c.l.b16 %v6613
    %v9529 = vunpack.c.h.b16 %v6613
    %v9530 = vunpack.c.l.b16 %v6614
    %v9531 = vunpack.c.h.b16 %v6614
    %v9532 = vunpack.c.l.b16 %v6615
    %v9533 = vunpack.c.h.b16 %v6615
    %v9534 = vunpack.c.l.b16 %v6616
    %v9535 = vunpack.c.h.b16 %v6616
    %v9536 = vunpack.c.l.b16 %v6617
    %v9537 = vunpack.c.h.b16 %v6617
    %v9538 = vunpack.c.l.b16 %v6618
    %v9539 = vunpack.c.h.b16 %v6618
    %v9540 = vunpack.c.l.b16 %v6619
    %v9541 = vunpack.c.h.b16 %v6619
    %v9542 = vunpack.c.l.b16 %v6620
    %v9543 = vunpack.c.h.b16 %v6620
    %v9544 = vunpack.c.l.b16 %v6621
    %v9545 = vunpack.c.h.b16 %v6621
    %v9546 = vunpack.c.l.b16 %v6622
    %v9547 = vunpack.c.h.b16 %v6622
    %v9548 = vunpack.c.l.b16 %v6623
    %v9549 = vunpack.c.h.b16 %v6623
    %v9550 = vunpack.c.l.b16 %v6624
    %v9551 = vunpack.c.h.b16 %v6624
    %v9552 = vunpack.c.l.b16 %v6625
    %v9553 = vunpack.c.h.b16 %v6625
    %v9554 = vunpack.c.l.b16 %v6626
    %v9555 = vunpack.c.h.b16 %v6626
    %v9556 = vunpack.c.l.b16 %v6627
    %v9557 = vunpack.c.h.b16 %v6627
    %v9558 = vunpack.c.l.b16 %v6628
    %v9559 = vunpack.c.h.b16 %v6628
    %v9560 = vunpack.c.l.b16 %v6629
    %v9561 = vunpack.c.h.b16 %v6629
    %v9562 = vunpack.c.l.b16 %v6630
    %v9563 = vunpack.c.h.b16 %v6630
    %v9564 = vunpack.c.l.b16 %v6631
    %v9565 = vunpack.c.h.b16 %v6631
    %v9566 = vunpack.c.l.b16 %v6632
    %v9567 = vunpack.c.h.b16 %v6632
    %v9568 = vunpack.c.l.b16 %v6633
    %v9569 = vunpack.c.h.b16 %v6633
    %v9570 = vunpack.c.l.b16 %v6634
    %v9571 = vunpack.c.h.b16 %v6634
    %v9572 = vunpack.c.l.b16 %v6635
    %v9573 = vunpack.c.h.b16 %v6635
    %v9574 = vunpack.c.l.b16 %v6636
    %v9575 = vunpack.c.h.b16 %v6636
    %v9576 = vunpack.c.l.b16 %v6637
    %v9577 = vunpack.c.h.b16 %v6637
    %v9578 = vunpack.c.l.b16 %v6638
    %v9579 = vunpack.c.h.b16 %v6638
    %v9580 = vunpack.c.l.b16 %v6639
    %v9581 = vunpack.c.h.b16 %v6639
    %v9582 = vunpack.c.l.b16 %v6640
    %v9583 = vunpack.c.h.b16 %v6640
    %v9584 = vunpack.c.l.b16 %v6641
    %v9585 = vunpack.c.h.b16 %v6641
    %v9586 = vunpack.c.l.b16 %v6642
    %v9587 = vunpack.c.h.b16 %v6642
    %v9588 = vunpack.c.l.b16 %v6643
    %v9589 = vunpack.c.h.b16 %v6643
    %v9590 = vunpack.c.l.b16 %v6644
    %v9591 = vunpack.c.h.b16 %v6644
    %v9592 = vunpack.c.l.b16 %v6645
    %v9593 = vunpack.c.h.b16 %v6645
    %v9594 = vunpack.c.l.b16 %v6646
    %v9595 = vunpack.c.h.b16 %v6646
    %v9596 = vunpack.c.l.b16 %v6647
    %v9597 = vunpack.c.h.b16 %v6647
    %v9598 = vunpack.c.l.b16 %v6648
    %v9599 = vunpack.c.h.b16 %v6648
    %v9600 = vunpack.c.l.b16 %v6649
    %v9601 = vunpack.c.h.b16 %v6649
    %v9602 = vunpack.c.l.b16 %v6650
    %v9603 = vunpack.c.h.b16 %v6650
    %v9604 = vunpack.c.l.b16 %v6651
    %v9605 = vunpack.c.h.b16 %v6651
    %v9606 = vunpack.c.l.b16 %v6652
    %v9607 = vunpack.c.h.b16 %v6652
    %v9608 = vunpack.c.l.b16 %v6653
    %v9609 = vunpack.c.h.b16 %v6653
    %v9610 = vunpack.c.l.b16 %v6654
    %v9611 = vunpack.c.h.b16 %v6654
    %v9612 = vunpack.c.l.b16 %v6655
    %v9613 = vunpack.c.h.b16 %v6655
    %v9614 = vunpack.c.l.b16 %v6656
    %v9615 = vunpack.c.h.b16 %v6656
    %v9616 = vunpack.c.l.b16 %v6657
    %v9617 = vunpack.c.h.b16 %v6657
    %v9618 = vunpack.c.l.b16 %v6658
    %v9619 = vunpack.c.h.b16 %v6658
    %v9620 = vunpack.c.l.b16 %v6659
    %v9621 = vunpack.c.h.b16 %v6659
    %v9622 = vunpack.c.l.b16 %v6660
    %v9623 = vunpack.c.h.b16 %v6660
    %v9624 = vunpack.c.l.b16 %v6661
    %v9625 = vunpack.c.h.b16 %v6661
    %v9626 = vunpack.c.l.b16 %v6662
    %v9627 = vunpack.c.h.b16 %v6662
    %v9628 = vunpack.c.l.b16 %v6663
    %v9629 = vunpack.c.h.b16 %v6663
    %v9630 = vunpack.c.l.b16 %v6664
    %v9631 = vunpack.c.h.b16 %v6664
    %v9632 = vunpack.c.l.b16 %v6665
    %v9633 = vunpack.c.h.b16 %v6665
    %v9634 = vunpack.c.l.b16 %v6666
    %v9635 = vunpack.c.h.b16 %v6666
    %v9636 = vunpack.c.l.b16 %v6667
    %v9637 = vunpack.c.h.b16 %v6667
    %v9638 = vunpack.c.l.b16 %v6668
    %v9639 = vunpack.c.h.b16 %v6668
    %v9640 = vunpack.c.l.b16 %v6669
    %v9641 = vunpack.c.h.b16 %v6669
    %v9642 = vunpack.c.l.b16 %v6670
    %v9643 = vunpack.c.h.b16 %v6670
    %v9644 = vunpack.c.l.b16 %v6671
    %v9645 = vunpack.c.h.b16 %v6671
    %v9646 = vunpack.c.l.b16 %v6672
    %v9647 = vunpack.c.h.b16 %v6672
    %v9648 = vunpack.c.l.b16 %v6673
    %v9649 = vunpack.c.h.b16 %v6673
    %v9650 = vunpack.c.l.b16 %v6674
    %v9651 = vunpack.c.h.b16 %v6674
    %v9652 = vunpack.c.l.b16 %v6675
    %v9653 = vunpack.c.h.b16 %v6675
    %v9654 = vunpack.c.l.b16 %v6676
    %v9655 = vunpack.c.h.b16 %v6676
    %v9656 = vunpack.c.l.b16 %v6677
    %v9657 = vunpack.c.h.b16 %v6677
    %v9658 = vunpack.c.l.b16 %v6678
    %v9659 = vunpack.c.h.b16 %v6678
    %v9660 = vunpack.c.l.b16 %v6679
    %v9661 = vunpack.c.h.b16 %v6679
    %v9662 = vunpack.c.l.b16 %v6680
    %v9663 = vunpack.c.h.b16 %v6680
    %v9664 = vunpack.c.l.b16 %v6681
    %v9665 = vunpack.c.h.b16 %v6681
    %v9666 = vunpack.c.l.b16 %v6682
    %v9667 = vunpack.c.h.b16 %v6682
    %v9668 = vunpack.c.l.b16 %v6683
    %v9669 = vunpack.c.h.b16 %v6683
    %v9670 = vunpack.c.l.b16 %v6684
    %v9671 = vunpack.c.h.b16 %v6684
    %v9672 = vunpack.c.l.b16 %v6685
    %v9673 = vunpack.c.h.b16 %v6685
    %v9674 = vunpack.c.l.b16 %v6686
    %v9675 = vunpack.c.h.b16 %v6686
    %v9676 = vunpack.c.l.b16 %v6687
    %v9677 = vunpack.c.h.b16 %v6687
    %v9678 = vunpack.c.l.b16 %v6688
    %v9679 = vunpack.c.h.b16 %v6688
    %v9680 = vunpack.c.l.b16 %v6689
    %v9681 = vunpack.c.h.b16 %v6689
    %v9682 = vunpack.c.l.b16 %v6690
    %v9683 = vunpack.c.h.b16 %v6690
    %v9684 = vunpack.c.l.b16 %v6691
    %v9685 = vunpack.c.h.b16 %v6691
    %v9686 = vunpack.c.l.b16 %v6692
    %v9687 = vunpack.c.h.b16 %v6692
    %v9688 = vunpack.c.l.b16 %v6693
    %v9689 = vunpack.c.h.b16 %v6693
    %v9690 = vunpack.c.l.b16 %v6694
    %v9691 = vunpack.c.h.b16 %v6694
    %v9692 = vunpack.c.l.b16 %v6695
    %v9693 = vunpack.c.h.b16 %v6695
    %v9694 = vunpack.c.l.b16 %v6696
    %v9695 = vunpack.c.h.b16 %v6696
    %v9696 = vunpack.c.l.b16 %v6697
    %v9697 = vunpack.c.h.b16 %v6697
    %v9698 = vunpack.c.l.b16 %v6698
    %v9699 = vunpack.c.h.b16 %v6698
    %v9700 = vunpack.c.l.b16 %v6699
    %v9701 = vunpack.c.h.b16 %v6699
    %v9702 = vunpack.c.l.b16 %v6700
    %v9703 = vunpack.c.h.b16 %v6700
    %v9704 = vunpack.c.l.b16 %v6701
    %v9705 = vunpack.c.h.b16 %v6701
    %v9706 = vunpack.c.l.b16 %v6702
    %v9707 = vunpack.c.h.b16 %v6702
    %v9708 = vunpack.c.l.b16 %v6703
    %v9709 = vunpack.c.h.b16 %v6703
    %v9710 = vunpack.c.l.b16 %v6704
    %v9711 = vunpack.c.h.b16 %v6704
    %v9712 = vunpack.c.l.b16 %v6705
    %v9713 = vunpack.c.h.b16 %v6705
    %v9714 = vunpack.c.l.b16 %v6706
    %v9715 = vunpack.c.h.b16 %v6706
    %v9716 = vunpack.c.l.b16 %v6707
    %v9717 = vunpack.c.h.b16 %v6707
    %v9718 = vunpack.c.l.b16 %v6708
    %v9719 = vunpack.c.h.b16 %v6708
    %v9720 = vunpack.c.l.b16 %v6709
    %v9721 = vunpack.c.h.b16 %v6709
    %v9722 = vunpack.c.l.b16 %v6710
    %v9723 = vunpack.c.h.b16 %v6710
    %v9724 = vunpack.c.l.b16 %v6711
    %v9725 = vunpack.c.h.b16 %v6711
    %v9726 = vunpack.c.l.b16 %v6712
    %v9727 = vunpack.c.h.b16 %v6712
    %v9728 = vunpack.c.l.b16 %v6713
    %v9729 = vunpack.c.h.b16 %v6713
    %v9730 = vunpack.c.l.b16 %v6714
    %v9731 = vunpack.c.h.b16 %v6714
    %v9732 = vunpack.c.l.b16 %v6715
    %v9733 = vunpack.c.h.b16 %v6715
    %v9734 = vunpack.c.l.b16 %v6716
    %v9735 = vunpack.c.h.b16 %v6716
    %v9736 = vunpack.c.l.b16 %v6717
    %v9737 = vunpack.c.h.b16 %v6717
    %v9738 = vunpack.c.l.b16 %v6718
    %v9739 = vunpack.c.h.b16 %v6718
    %v9740 = vunpack.c.l.b16 %v6719
    %v9741 = vunpack.c.h.b16 %v6719
    %v9742 = vunpack.c.l.b16 %v6720
    %v9743 = vunpack.c.h.b16 %v6720
    %v9744 = vunpack.c.l.b16 %v6721
    %v9745 = vunpack.c.h.b16 %v6721
    %v9746 = vunpack.c.l.b16 %v6722
    %v9747 = vunpack.c.h.b16 %v6722
    %v9748 = vunpack.c.l.b16 %v6723
    %v9749 = vunpack.c.h.b16 %v6723
    %v9750 = vunpack.c.l.b16 %v6724
    %v9751 = vunpack.c.h.b16 %v6724
    %v9752 = vunpack.c.l.b16 %v6725
    %v9753 = vunpack.c.h.b16 %v6725
    %v9754 = vunpack.c.l.b16 %v6726
    %v9755 = vunpack.c.h.b16 %v6726
    %v9756 = vunpack.c.l.b16 %v6727
    %v9757 = vunpack.c.h.b16 %v6727
    %v9758 = vunpack.c.l.b16 %v6728
    %v9759 = vunpack.c.h.b16 %v6728
    %v9760 = vunpack.c.l.b16 %v6729
    %v9761 = vunpack.c.h.b16 %v6729
    %v9762 = vunpack.c.l.b16 %v6730
    %v9763 = vunpack.c.h.b16 %v6730
    %v9764 = vunpack.c.l.b16 %v6731
    %v9765 = vunpack.c.h.b16 %v6731
    %v9766 = vunpack.c.l.b16 %v6732
    %v9767 = vunpack.c.h.b16 %v6732
    %v9768 = vunpack.c.l.b16 %v6733
    %v9769 = vunpack.c.h.b16 %v6733
    %v9770 = vunpack.c.l.b16 %v6734
    %v9771 = vunpack.c.h.b16 %v6734
    %v9772 = vunpack.c.l.b16 %v6735
    %v9773 = vunpack.c.h.b16 %v6735
    %v9774 = vunpack.c.l.b16 %v6736
    %v9775 = vunpack.c.h.b16 %v6736
    %v9776 = vunpack.c.l.b16 %v6737
    %v9777 = vunpack.c.h.b16 %v6737
    %v9778 = vunpack.c.l.b16 %v6738
    %v9779 = vunpack.c.h.b16 %v6738
    %v9780 = vunpack.c.l.b16 %v6739
    %v9781 = vunpack.c.h.b16 %v6739
    %v9782 = vunpack.c.l.b16 %v6740
    %v9783 = vunpack.c.h.b16 %v6740
    %v9784 = vunpack.c.l.b16 %v6741
    %v9785 = vunpack.c.h.b16 %v6741
    %v9786 = vunpack.c.l.b16 %v6742
    %v9787 = vunpack.c.h.b16 %v6742
    %v9788 = vunpack.c.l.b16 %v6743
    %v9789 = vunpack.c.h.b16 %v6743
    %v9790 = vunpack.c.l.b16 %v6744
    %v9791 = vunpack.c.h.b16 %v6744
    %v9792 = vunpack.c.l.b16 %v6745
    %v9793 = vunpack.c.h.b16 %v6745
    %v9794 = vunpack.c.l.b16 %v6746
    %v9795 = vunpack.c.h.b16 %v6746
    %v9796 = vunpack.c.l.b16 %v6747
    %v9797 = vunpack.c.h.b16 %v6747
    %v9798 = vunpack.c.l.b16 %v6748
    %v9799 = vunpack.c.h.b16 %v6748
    %v9800 = vunpack.c.l.b16 %v6749
    %v9801 = vunpack.c.h.b16 %v6749
    %v9802 = vunpack.c.l.b16 %v6750
    %v9803 = vunpack.c.h.b16 %v6750
    %v9804 = vunpack.c.l.b16 %v6751
    %v9805 = vunpack.c.h.b16 %v6751
    %v9806 = vunpack.c.l.b16 %v6752
    %v9807 = vunpack.c.h.b16 %v6752
    %v9808 = vunpack.c.l.b16 %v6753
    %v9809 = vunpack.c.h.b16 %v6753
    %v9810 = vunpack.c.l.b16 %v6754
    %v9811 = vunpack.c.h.b16 %v6754
    %v9812 = vunpack.c.l.b16 %v6755
    %v9813 = vunpack.c.h.b16 %v6755
    %v9814 = vunpack.c.l.b16 %v6756
    %v9815 = vunpack.c.h.b16 %v6756
    %v9816 = vunpack.c.l.b16 %v6757
    %v9817 = vunpack.c.h.b16 %v6757
    %v9818 = vunpack.c.l.b16 %v6758
    %v9819 = vunpack.c.h.b16 %v6758
    %v9820 = vunpack.c.l.b16 %v6759
    %v9821 = vunpack.c.h.b16 %v6759
    %v9822 = vunpack.c.l.b16 %v6760
    %v9823 = vunpack.c.h.b16 %v6760
    %v9824 = vunpack.c.l.b16 %v6761
    %v9825 = vunpack.c.h.b16 %v6761
    %v9826 = vunpack.c.l.b16 %v6762
    %v9827 = vunpack.c.h.b16 %v6762
    %v9828 = vunpack.c.l.b16 %v6763
    %v9829 = vunpack.c.h.b16 %v6763
    %v9830 = vunpack.c.l.b16 %v6764
    %v9831 = vunpack.c.h.b16 %v6764
    %v9832 = vunpack.c.l.b16 %v6765
    %v9833 = vunpack.c.h.b16 %v6765
    %v9834 = vunpack.c.l.b16 %v6766
    %v9835 = vunpack.c.h.b16 %v6766
    %v9836 = vunpack.c.l.b16 %v6767
    %v9837 = vunpack.c.h.b16 %v6767
    %v9838 = vunpack.c.l.b16 %v6768
    %v9839 = vunpack.c.h.b16 %v6768
    %v9840 = vunpack.c.l.b16 %v6769
    %v9841 = vunpack.c.h.b16 %v6769
    %v9842 = vunpack.c.l.b16 %v6770
    %v9843 = vunpack.c.h.b16 %v6770
    %v9844 = vunpack.c.l.b16 %v6771
    %v9845 = vunpack.c.h.b16 %v6771
    %v9846 = vunpack.c.l.b16 %v6772
    %v9847 = vunpack.c.h.b16 %v6772
    %v9848 = vunpack.c.l.b16 %v6773
    %v9849 = vunpack.c.h.b16 %v6773
    %v9850 = vunpack.c.l.b16 %v6774
    %v9851 = vunpack.c.h.b16 %v6774
    %v9852 = vunpack.c.l.b16 %v6775
    %v9853 = vunpack.c.h.b16 %v6775
    %v9854 = vunpack.c.l.b16 %v6776
    %v9855 = vunpack.c.h.b16 %v6776
    %v9856 = vunpack.c.l.b16 %v6777
    %v9857 = vunpack.c.h.b16 %v6777
    %v9858 = vunpack.c.l.b16 %v6778
    %v9859 = vunpack.c.h.b16 %v6778
    %v9860 = vunpack.c.l.b16 %v6779
    %v9861 = vunpack.c.h.b16 %v6779
    %v9862 = vunpack.c.l.b16 %v6780
    %v9863 = vunpack.c.h.b16 %v6780
    %v9864 = vunpack.c.l.b16 %v6781
    %v9865 = vunpack.c.h.b16 %v6781
    %v9866 = vunpack.c.l.b16 %v6782
    %v9867 = vunpack.c.h.b16 %v6782
    %v9868 = vunpack.c.l.b16 %v6783
    %v9869 = vunpack.c.h.b16 %v6783
    %v9870 = vunpack.c.l.b16 %v6784
    %v9871 = vunpack.c.h.b16 %v6784
    %v9872 = vunpack.c.l.b16 %v6785
    %v9873 = vunpack.c.h.b16 %v6785
    %v9874 = vunpack.c.l.b16 %v6786
    %v9875 = vunpack.c.h.b16 %v6786
    %v9876 = vunpack.c.l.b16 %v6787
    %v9877 = vunpack.c.h.b16 %v6787
    %v9878 = vunpack.c.l.b16 %v6788
    %v9879 = vunpack.c.h.b16 %v6788
    %v9880 = vunpack.c.l.b16 %v6789
    %v9881 = vunpack.c.h.b16 %v6789
    %v9882 = vunpack.c.l.b16 %v6790
    %v9883 = vunpack.c.h.b16 %v6790
    %v9884 = vunpack.c.l.b16 %v6791
    %v9885 = vunpack.c.h.b16 %v6791
    %v9886 = vunpack.c.l.b16 %v6792
    %v9887 = vunpack.c.h.b16 %v6792
    %v9888 = vunpack.c.l.b16 %v6793
    %v9889 = vunpack.c.h.b16 %v6793
    %v9890 = vunpack.c.l.b16 %v6794
    %v9891 = vunpack.c.h.b16 %v6794
    %v9892 = vunpack.c.l.b16 %v6795
    %v9893 = vunpack.c.h.b16 %v6795
    %v9894 = vunpack.c.l.b16 %v6796
    %v9895 = vunpack.c.h.b16 %v6796
    %v9896 = vunpack.c.l.b16 %v6797
    %v9897 = vunpack.c.h.b16 %v6797
    %v9898 = vunpack.c.l.b16 %v6798
    %v9899 = vunpack.c.h.b16 %v6798
    %v9900 = vunpack.c.l.b16 %v6799
    %v9901 = vunpack.c.h.b16 %v6799
    %v9902 = vunpack.c.l.b16 %v6800
    %v9903 = vunpack.c.h.b16 %v6800
    %v9904 = vunpack.c.l.b16 %v6801
    %v9905 = vunpack.c.h.b16 %v6801
    %v9906 = vunpack.c.l.b16 %v6802
    %v9907 = vunpack.c.h.b16 %v6802
    %v9908 = vunpack.c.l.b16 %v6803
    %v9909 = vunpack.c.h.b16 %v6803
    %v9910 = vunpack.c.l.b16 %v6804
    %v9911 = vunpack.c.h.b16 %v6804
    %v9912 = vunpack.c.l.b16 %v6805
    %v9913 = vunpack.c.h.b16 %v6805
    %v9914 = vunpack.c.l.b16 %v6806
    %v9915 = vunpack.c.h.b16 %v6806
    %v9916 = vunpack.c.l.b16 %v6807
    %v9917 = vunpack.c.h.b16 %v6807
    %v9918 = vunpack.c.l.b16 %v6808
    %v9919 = vunpack.c.h.b16 %v6808
    %v9920 = vunpack.c.l.b16 %v6809
    %v9921 = vunpack.c.h.b16 %v6809
    %v9922 = vunpack.c.l.b16 %v6810
    %v9923 = vunpack.c.h.b16 %v6810
    %v9924 = vunpack.c.l.b16 %v6811
    %v9925 = vunpack.c.h.b16 %v6811
    %v9926 = vunpack.c.l.b16 %v6812
    %v9927 = vunpack.c.h.b16 %v6812
    %v9928 = vunpack.c.l.b16 %v6813
    %v9929 = vunpack.c.h.b16 %v6813
    %v9930 = vunpack.c.l.b16 %v6814
    %v9931 = vunpack.c.h.b16 %v6814
    %v9932 = vunpack.c.l.b16 %v6815
    %v9933 = vunpack.c.h.b16 %v6815
    %v9934 = vunpack.c.l.b16 %v6816
    %v9935 = vunpack.c.h.b16 %v6816
    %v9936 = vunpack.c.l.b16 %v6817
    %v9937 = vunpack.c.h.b16 %v6817
    %v9938 = vunpack.c.l.b16 %v6818
    %v9939 = vunpack.c.h.b16 %v6818
    %v9940 = vunpack.c.l.b16 %v6819
    %v9941 = vunpack.c.h.b16 %v6819
    %v9942 = vunpack.c.l.b16 %v6820
    %v9943 = vunpack.c.h.b16 %v6820
    %v9944 = vunpack.c.l.b16 %v6821
    %v9945 = vunpack.c.h.b16 %v6821
    %v9946 = vunpack.c.l.b16 %v6822
    %v9947 = vunpack.c.h.b16 %v6822
    %v9948 = vunpack.c.l.b16 %v6823
    %v9949 = vunpack.c.h.b16 %v6823
    %v9950 = vunpack.c.l.b16 %v6824
    %v9951 = vunpack.c.h.b16 %v6824
    %v9952 = vunpack.c.l.b16 %v6825
    %v9953 = vunpack.c.h.b16 %v6825
    %v9954 = vunpack.c.l.b16 %v6826
    %v9955 = vunpack.c.h.b16 %v6826
    %v9956 = vpack.c.b16 %v7916, %v7908
    %v9957 = vpack.c.b16 %v7917, %v7909
    %v9958 = vpack.c.b16 %v7918, %v7910
    %v9959 = vpack.c.b16 %v7919, %v7911
    %v9960 = vpack.c.b16 %v7920, %v7912
    %v9961 = vpack.c.b16 %v7921, %v7913
    %v9962 = vpack.c.b16 %v7922, %v7914
    %v9963 = vpack.c.b16 %v7923, %v7915
    %v9964 = vpack.c.b16 %v7932, %v7924
    %v9965 = vpack.c.b16 %v7933, %v7925
    %v9966 = vpack.c.b16 %v7934, %v7926
    %v9967 = vpack.c.b16 %v7935, %v7927
    %v9968 = vpack.c.b16 %v7936, %v7928
    %v9969 = vpack.c.b16 %v7937, %v7929
    %v9970 = vpack.c.b16 %v7938, %v7930
    %v9971 = vpack.c.b16 %v7939, %v7931
    %v9972 = vpack.c.b16 %v7948, %v7940
    %v9973 = vpack.c.b16 %v7949, %v7941
    %v9974 = vpack.c.b16 %v7950, %v7942
    %v9975 = vpack.c.b16 %v7951, %v7943
    %v9976 = vpack.c.b16 %v7952, %v7944
    %v9977 = vpack.c.b16 %v7953, %v7945
    %v9978 = vpack.c.b16 %v7954, %v7946
    %v9979 = vpack.c.b16 %v7955, %v7947
    %v9980 = vpack.c.b16 %v7964, %v7956
    %v9981 = vpack.c.b16 %v7965, %v7957
    %v9982 = vpack.c.b16 %v7966, %v7958
    %v9983 = vpack.c.b16 %v7967, %v7959
    %v9984 = vpack.c.b16 %v7968, %v7960
    %v9985 = vpack.c.b16 %v7969, %v7961
    %v9986 = vpack.c.b16 %v7970, %v7962
    %v9987 = vpack.c.b16 %v7971, %v7963
    %v9988 = vpack.c.b16 %v7980, %v7972
    %v9989 = vpack.c.b16 %v7981, %v7973
    %v9990 = vpack.c.b16 %v7982, %v7974
    %v9991 = vpack.c.b16 %v7983, %v7975
    %v9992 = vpack.c.b16 %v7984, %v7976
    %v9993 = vpack.c.b16 %v7985, %v7977
    %v9994 = vpack.c.b16 %v7986, %v7978
    %v9995 = vpack.c.b16 %v7987, %v7979
    %v9996 = vpack.c.b16 %v7996, %v7988
    %v9997 = vpack.c.b16 %v7997, %v7989
    %v9998 = vpack.c.b16 %v7998, %v7990
    %v9999 = vpack.c.b16 %v7999, %v7991
    %v10000 = vpack.c.b16 %v8000, %v7992
    %v10001 = vpack.c.b16 %v8001, %v7993
    %v10002 = vpack.c.b16 %v8002, %v7994
    %v10003 = vpack.c.b16 %v8003, %v7995
    %v10004 = vpack.c.b16 %v8012, %v8004
    %v10005 = vpack.c.b16 %v8013, %v8005
    %v10006 = vpack.c.b16 %v8014, %v8006
    %v10007 = vpack.c.b16 %v8015, %v8007
    %v10008 = vpack.c.b16 %v8016, %v8008
    %v10009 = vpack.c.b16 %v8017, %v8009
    %v10010 = vpack.c.b16 %v8018, %v8010
    %v10011 = vpack.c.b16 %v8019, %v8011
    %v10012 = vpack.c.b16 %v8028, %v8020
    %v10013 = vpack.c.b16 %v8029, %v8021
    %v10014 = vpack.c.b16 %v8030, %v8022
    %v10015 = vpack.c.b16 %v8031, %v8023
    %v10016 = vpack.c.b16 %v8032, %v8024
    %v10017 = vpack.c.b16 %v8033, %v8025
    %v10018 = vpack.c.b16 %v8034, %v8026
    %v10019 = vpack.c.b16 %v8035, %v8027
    %v10020 = vpack.c.b16 %v8044, %v8036
    %v10021 = vpack.c.b16 %v8045, %v8037
    %v10022 = vpack.c.b16 %v8046, %v8038
    %v10023 = vpack.c.b16 %v8047, %v8039
    %v10024 = vpack.c.b16 %v8048, %v8040
    %v10025 = vpack.c.b16 %v8049, %v8041
    %v10026 = vpack.c.b16 %v8050, %v8042
    %v10027 = vpack.c.b16 %v8051, %v8043
    %v10028 = vpack.c.b16 %v8060, %v8052
    %v10029 = vpack.c.b16 %v8061, %v8053
    %v10030 = vpack.c.b16 %v8062, %v8054
    %v10031 = vpack.c.b16 %v8063, %v8055
    %v10032 = vpack.c.b16 %v8064, %v8056
    %v10033 = vpack.c.b16 %v8065, %v8057
    %v10034 = vpack.c.b16 %v8066, %v8058
    %v10035 = vpack.c.b16 %v8067, %v8059
    %v10036 = vpack.c.b16 %v8076, %v8068
    %v10037 = vpack.c.b16 %v8077, %v8069
    %v10038 = vpack.c.b16 %v8078, %v8070
    %v10039 = vpack.c.b16 %v8079, %v8071
    %v10040 = vpack.c.b16 %v8080, %v8072
    %v10041 = vpack.c.b16 %v8081, %v8073
    %v10042 = vpack.c.b16 %v8082, %v8074
    %v10043 = vpack.c.b16 %v8083, %v8075
    %v10044 = vpack.c.b16 %v8092, %v8084
    %v10045 = vpack.c.b16 %v8093, %v8085
    %v10046 = vpack.c.b16 %v8094, %v8086
    %v10047 = vpack.c.b16 %v8095, %v8087
    %v10048 = vpack.c.b16 %v8096, %v8088
    %v10049 = vpack.c.b16 %v8097, %v8089
    %v10050 = vpack.c.b16 %v8098, %v8090
    %v10051 = vpack.c.b16 %v8099, %v8091
    %v10052 = vpack.c.b16 %v8108, %v8100
    %v10053 = vpack.c.b16 %v8109, %v8101
    %v10054 = vpack.c.b16 %v8110, %v8102
    %v10055 = vpack.c.b16 %v8111, %v8103
    %v10056 = vpack.c.b16 %v8112, %v8104
    %v10057 = vpack.c.b16 %v8113, %v8105
    %v10058 = vpack.c.b16 %v8114, %v8106
    %v10059 = vpack.c.b16 %v8115, %v8107
    %v10060 = vpack.c.b16 %v8124, %v8116
    %v10061 = vpack.c.b16 %v8125, %v8117
    %v10062 = vpack.c.b16 %v8126, %v8118
    %v10063 = vpack.c.b16 %v8127, %v8119
    %v10064 = vpack.c.b16 %v8128, %v8120
    %v10065 = vpack.c.b16 %v8129, %v8121
    %v10066 = vpack.c.b16 %v8130, %v8122
    %v10067 = vpack.c.b16 %v8131, %v8123
    %v10068 = vpack.c.b16 %v8140, %v8132
    %v10069 = vpack.c.b16 %v8141, %v8133
    %v10070 = vpack.c.b16 %v8142, %v8134
    %v10071 = vpack.c.b16 %v8143, %v8135
    %v10072 = vpack.c.b16 %v8144, %v8136
    %v10073 = vpack.c.b16 %v8145, %v8137
    %v10074 = vpack.c.b16 %v8146, %v8138
    %v10075 = vpack.c.b16 %v8147, %v8139
    %v10076 = vpack.c.b16 %v8156, %v8148
    %v10077 = vpack.c.b16 %v8157, %v8149
    %v10078 = vpack.c.b16 %v8158, %v8150
    %v10079 = vpack.c.b16 %v8159, %v8151
    %v10080 = vpack.c.b16 %v8160, %v8152
    %v10081 = vpack.c.b16 %v8161, %v8153
    %v10082 = vpack.c.b16 %v8162, %v8154
    %v10083 = vpack.c.b16 %v8163, %v8155
    %v10084 = vpack.c.b16 %v8172, %v8164
    %v10085 = vpack.c.b16 %v8173, %v8165
    %v10086 = vpack.c.b16 %v8174, %v8166
    %v10087 = vpack.c.b16 %v8175, %v8167
    %v10088 = vpack.c.b16 %v8176, %v8168
    %v10089 = vpack.c.b16 %v8177, %v8169
    %v10090 = vpack.c.b16 %v8178, %v8170
    %v10091 = vpack.c.b16 %v8179, %v8171
    %v10092 = vpack.c.b16 %v8188, %v8180
    %v10093 = vpack.c.b16 %v8189, %v8181
    %v10094 = vpack.c.b16 %v8190, %v8182
    %v10095 = vpack.c.b16 %v8191, %v8183
    %v10096 = vpack.c.b16 %v8192, %v8184
    %v10097 = vpack.c.b16 %v8193, %v8185
    %v10098 = vpack.c.b16 %v8194, %v8186
    %v10099 = vpack.c.b16 %v8195, %v8187
    %v10100 = vpack.c.b16 %v8204, %v8196
    %v10101 = vpack.c.b16 %v8205, %v8197
    %v10102 = vpack.c.b16 %v8206, %v8198
    %v10103 = vpack.c.b16 %v8207, %v8199
    %v10104 = vpack.c.b16 %v8208, %v8200
    %v10105 = vpack.c.b16 %v8209, %v8201
    %v10106 = vpack.c.b16 %v8210, %v8202
    %v10107 = vpack.c.b16 %v8211, %v8203
    %v10108 = vpack.c.b16 %v8220, %v8212
    %v10109 = vpack.c.b16 %v8221, %v8213
    %v10110 = vpack.c.b16 %v8222, %v8214
    %v10111 = vpack.c.b16 %v8223, %v8215
    %v10112 = vpack.c.b16 %v8224, %v8216
    %v10113 = vpack.c.b16 %v8225, %v8217
    %v10114 = vpack.c.b16 %v8226, %v8218
    %v10115 = vpack.c.b16 %v8227, %v8219
    %v10116 = vpack.c.b16 %v8236, %v8228
    %v10117 = vpack.c.b16 %v8237, %v8229
    %v10118 = vpack.c.b16 %v8238, %v8230
    %v10119 = vpack.c.b16 %v8239, %v8231
    %v10120 = vpack.c.b16 %v8240, %v8232
    %v10121 = vpack.c.b16 %v8241, %v8233
    %v10122 = vpack.c.b16 %v8242, %v8234
    %v10123 = vpack.c.b16 %v8243, %v8235
    %v10124 = vpack.c.b16 %v8252, %v8244
    %v10125 = vpack.c.b16 %v8253, %v8245
    %v10126 = vpack.c.b16 %v8254, %v8246
    %v10127 = vpack.c.b16 %v8255, %v8247
    %v10128 = vpack.c.b16 %v8256, %v8248
    %v10129 = vpack.c.b16 %v8257, %v8249
    %v10130 = vpack.c.b16 %v8258, %v8250
    %v10131 = vpack.c.b16 %v8259, %v8251
    %v10132 = vpack.c.b16 %v8268, %v8260
    %v10133 = vpack.c.b16 %v8269, %v8261
    %v10134 = vpack.c.b16 %v8270, %v8262
    %v10135 = vpack.c.b16 %v8271, %v8263
    %v10136 = vpack.c.b16 %v8272, %v8264
    %v10137 = vpack.c.b16 %v8273, %v8265
    %v10138 = vpack.c.b16 %v8274, %v8266
    %v10139 = vpack.c.b16 %v8275, %v8267
    %v10140 = vpack.c.b16 %v8284, %v8276
    %v10141 = vpack.c.b16 %v8285, %v8277
    %v10142 = vpack.c.b16 %v8286, %v8278
    %v10143 = vpack.c.b16 %v8287, %v8279
    %v10144 = vpack.c.b16 %v8288, %v8280
    %v10145 = vpack.c.b16 %v8289, %v8281
    %v10146 = vpack.c.b16 %v8290, %v8282
    %v10147 = vpack.c.b16 %v8291, %v8283
    %v10148 = vpack.c.b16 %v8300, %v8292
    %v10149 = vpack.c.b16 %v8301, %v8293
    %v10150 = vpack.c.b16 %v8302, %v8294
    %v10151 = vpack.c.b16 %v8303, %v8295
    %v10152 = vpack.c.b16 %v8304, %v8296
    %v10153 = vpack.c.b16 %v8305, %v8297
    %v10154 = vpack.c.b16 %v8306, %v8298
    %v10155 = vpack.c.b16 %v8307, %v8299
    %v10156 = vpack.c.b16 %v8316, %v8308
    %v10157 = vpack.c.b16 %v8317, %v8309
    %v10158 = vpack.c.b16 %v8318, %v8310
    %v10159 = vpack.c.b16 %v8319, %v8311
    %v10160 = vpack.c.b16 %v8320, %v8312
    %v10161 = vpack.c.b16 %v8321, %v8313
    %v10162 = vpack.c.b16 %v8322, %v8314
    %v10163 = vpack.c.b16 %v8323, %v8315
    %v10164 = vpack.c.b16 %v8332, %v8324
    %v10165 = vpack.c.b16 %v8333, %v8325
    %v10166 = vpack.c.b16 %v8334, %v8326
    %v10167 = vpack.c.b16 %v8335, %v8327
    %v10168 = vpack.c.b16 %v8336, %v8328
    %v10169 = vpack.c.b16 %v8337, %v8329
    %v10170 = vpack.c.b16 %v8338, %v8330
    %v10171 = vpack.c.b16 %v8339, %v8331
    %v10172 = vpack.c.b16 %v8348, %v8340
    %v10173 = vpack.c.b16 %v8349, %v8341
    %v10174 = vpack.c.b16 %v8350, %v8342
    %v10175 = vpack.c.b16 %v8351, %v8343
    %v10176 = vpack.c.b16 %v8352, %v8344
    %v10177 = vpack.c.b16 %v8353, %v8345
    %v10178 = vpack.c.b16 %v8354, %v8346
    %v10179 = vpack.c.b16 %v8355, %v8347
    %v10180 = vpack.c.b16 %v8364, %v8356
    %v10181 = vpack.c.b16 %v8365, %v8357
    %v10182 = vpack.c.b16 %v8366, %v8358
    %v10183 = vpack.c.b16 %v8367, %v8359
    %v10184 = vpack.c.b16 %v8368, %v8360
    %v10185 = vpack.c.b16 %v8369, %v8361
    %v10186 = vpack.c.b16 %v8370, %v8362
    %v10187 = vpack.c.b16 %v8371, %v8363
    %v10188 = vpack.c.b16 %v8380, %v8372
    %v10189 = vpack.c.b16 %v8381, %v8373
    %v10190 = vpack.c.b16 %v8382, %v8374
    %v10191 = vpack.c.b16 %v8383, %v8375
    %v10192 = vpack.c.b16 %v8384, %v8376
    %v10193 = vpack.c.b16 %v8385, %v8377
    %v10194 = vpack.c.b16 %v8386, %v8378
    %v10195 = vpack.c.b16 %v8387, %v8379
    %v10196 = vpack.c.b16 %v8396, %v8388
    %v10197 = vpack.c.b16 %v8397, %v8389
    %v10198 = vpack.c.b16 %v8398, %v8390
    %v10199 = vpack.c.b16 %v8399, %v8391
    %v10200 = vpack.c.b16 %v8400, %v8392
    %v10201 = vpack.c.b16 %v8401, %v8393
    %v10202 = vpack.c.b16 %v8402, %v8394
    %v10203 = vpack.c.b16 %v8403, %v8395
    %v10204 = vpack.c.b16 %v8412, %v8404
    %v10205 = vpack.c.b16 %v8413, %v8405
    %v10206 = vpack.c.b16 %v8414, %v8406
    %v10207 = vpack.c.b16 %v8415, %v8407
    %v10208 = vpack.c.b16 %v8416, %v8408
    %v10209 = vpack.c.b16 %v8417, %v8409
    %v10210 = vpack.c.b16 %v8418, %v8410
    %v10211 = vpack.c.b16 %v8419, %v8411
    %v10212 = vpack.c.b16 %v8428, %v8420
    %v10213 = vpack.c.b16 %v8429, %v8421
    %v10214 = vpack.c.b16 %v8430, %v8422
    %v10215 = vpack.c.b16 %v8431, %v8423
    %v10216 = vpack.c.b16 %v8432, %v8424
    %v10217 = vpack.c.b16 %v8433, %v8425
    %v10218 = vpack.c.b16 %v8434, %v8426
    %v10219 = vpack.c.b16 %v8435, %v8427
    %v10220 = vpack.c.b16 %v8444, %v8436
    %v10221 = vpack.c.b16 %v8445, %v8437
    %v10222 = vpack.c.b16 %v8446, %v8438
    %v10223 = vpack.c.b16 %v8447, %v8439
    %v10224 = vpack.c.b16 %v8448, %v8440
    %v10225 = vpack.c.b16 %v8449, %v8441
    %v10226 = vpack.c.b16 %v8450, %v8442
    %v10227 = vpack.c.b16 %v8451, %v8443
    %v10228 = vpack.c.b16 %v8460, %v8452
    %v10229 = vpack.c.b16 %v8461, %v8453
    %v10230 = vpack.c.b16 %v8462, %v8454
    %v10231 = vpack.c.b16 %v8463, %v8455
    %v10232 = vpack.c.b16 %v8464, %v8456
    %v10233 = vpack.c.b16 %v8465, %v8457
    %v10234 = vpack.c.b16 %v8466, %v8458
    %v10235 = vpack.c.b16 %v8467, %v8459
    %v10236 = vpack.c.b16 %v8476, %v8468
    %v10237 = vpack.c.b16 %v8477, %v8469
    %v10238 = vpack.c.b16 %v8478, %v8470
    %v10239 = vpack.c.b16 %v8479, %v8471
    %v10240 = vpack.c.b16 %v8480, %v8472
    %v10241 = vpack.c.b16 %v8481, %v8473
    %v10242 = vpack.c.b16 %v8482, %v8474
    %v10243 = vpack.c.b16 %v8483, %v8475
    %v10244 = vpack.c.b16 %v8492, %v8484
    %v10245 = vpack.c.b16 %v8493, %v8485
    %v10246 = vpack.c.b16 %v8494, %v8486
    %v10247 = vpack.c.b16 %v8495, %v8487
    %v10248 = vpack.c.b16 %v8496, %v8488
    %v10249 = vpack.c.b16 %v8497, %v8489
    %v10250 = vpack.c.b16 %v8498, %v8490
    %v10251 = vpack.c.b16 %v8499, %v8491
    %v10252 = vpack.c.b16 %v8508, %v8500
    %v10253 = vpack.c.b16 %v8509, %v8501
    %v10254 = vpack.c.b16 %v8510, %v8502
    %v10255 = vpack.c.b16 %v8511, %v8503
    %v10256 = vpack.c.b16 %v8512, %v8504
    %v10257 = vpack.c.b16 %v8513, %v8505
    %v10258 = vpack.c.b16 %v8514, %v8506
    %v10259 = vpack.c.b16 %v8515, %v8507
    %v10260 = vpack.c.b16 %v8524, %v8516
    %v10261 = vpack.c.b16 %v8525, %v8517
    %v10262 = vpack.c.b16 %v8526, %v8518
    %v10263 = vpack.c.b16 %v8527, %v8519
    %v10264 = vpack.c.b16 %v8528, %v8520
    %v10265 = vpack.c.b16 %v8529, %v8521
    %v10266 = vpack.c.b16 %v8530, %v8522
    %v10267 = vpack.c.b16 %v8531, %v8523
    %v10268 = vpack.c.b16 %v8540, %v8532
    %v10269 = vpack.c.b16 %v8541, %v8533
    %v10270 = vpack.c.b16 %v8542, %v8534
    %v10271 = vpack.c.b16 %v8543, %v8535
    %v10272 = vpack.c.b16 %v8544, %v8536
    %v10273 = vpack.c.b16 %v8545, %v8537
    %v10274 = vpack.c.b16 %v8546, %v8538
    %v10275 = vpack.c.b16 %v8547, %v8539
    %v10276 = vpack.c.b16 %v8556, %v8548
    %v10277 = vpack.c.b16 %v8557, %v8549
    %v10278 = vpack.c.b16 %v8558, %v8550
    %v10279 = vpack.c.b16 %v8559, %v8551
    %v10280 = vpack.c.b16 %v8560, %v8552
    %v10281 = vpack.c.b16 %v8561, %v8553
    %v10282 = vpack.c.b16 %v8562, %v8554
    %v10283 = vpack.c.b16 %v8563, %v8555
    %v10284 = vpack.c.b16 %v8572, %v8564
    %v10285 = vpack.c.b16 %v8573, %v8565
    %v10286 = vpack.c.b16 %v8574, %v8566
    %v10287 = vpack.c.b16 %v8575, %v8567
    %v10288 = vpack.c.b16 %v8576, %v8568
    %v10289 = vpack.c.b16 %v8577, %v8569
    %v10290 = vpack.c.b16 %v8578, %v8570
    %v10291 = vpack.c.b16 %v8579, %v8571
    %v10292 = vpack.c.b16 %v8588, %v8580
    %v10293 = vpack.c.b16 %v8589, %v8581
    %v10294 = vpack.c.b16 %v8590, %v8582
    %v10295 = vpack.c.b16 %v8591, %v8583
    %v10296 = vpack.c.b16 %v8592, %v8584
    %v10297 = vpack.c.b16 %v8593, %v8585
    %v10298 = vpack.c.b16 %v8594, %v8586
    %v10299 = vpack.c.b16 %v8595, %v8587
    %v10300 = vpack.c.b16 %v8604, %v8596
    %v10301 = vpack.c.b16 %v8605, %v8597
    %v10302 = vpack.c.b16 %v8606, %v8598
    %v10303 = vpack.c.b16 %v8607, %v8599
    %v10304 = vpack.c.b16 %v8608, %v8600
    %v10305 = vpack.c.b16 %v8609, %v8601
    %v10306 = vpack.c.b16 %v8610, %v8602
    %v10307 = vpack.c.b16 %v8611, %v8603
    %v10308 = vpack.c.b16 %v8620, %v8612
    %v10309 = vpack.c.b16 %v8621, %v8613
    %v10310 = vpack.c.b16 %v8622, %v8614
    %v10311 = vpack.c.b16 %v8623, %v8615
    %v10312 = vpack.c.b16 %v8624, %v8616
    %v10313 = vpack.c.b16 %v8625, %v8617
    %v10314 = vpack.c.b16 %v8626, %v8618
    %v10315 = vpack.c.b16 %v8627, %v8619
    %v10316 = vpack.c.b16 %v8636, %v8628
    %v10317 = vpack.c.b16 %v8637, %v8629
    %v10318 = vpack.c.b16 %v8638, %v8630
    %v10319 = vpack.c.b16 %v8639, %v8631
    %v10320 = vpack.c.b16 %v8640, %v8632
    %v10321 = vpack.c.b16 %v8641, %v8633
    %v10322 = vpack.c.b16 %v8642, %v8634
    %v10323 = vpack.c.b16 %v8643, %v8635
    %v10324 = vpack.c.b16 %v8652, %v8644
    %v10325 = vpack.c.b16 %v8653, %v8645
    %v10326 = vpack.c.b16 %v8654, %v8646
    %v10327 = vpack.c.b16 %v8655, %v8647
    %v10328 = vpack.c.b16 %v8656, %v8648
    %v10329 = vpack.c.b16 %v8657, %v8649
    %v10330 = vpack.c.b16 %v8658, %v8650
    %v10331 = vpack.c.b16 %v8659, %v8651
    %v10332 = vpack.c.b16 %v8668, %v8660
    %v10333 = vpack.c.b16 %v8669, %v8661
    %v10334 = vpack.c.b16 %v8670, %v8662
    %v10335 = vpack.c.b16 %v8671, %v8663
    %v10336 = vpack.c.b16 %v8672, %v8664
    %v10337 = vpack.c.b16 %v8673, %v8665
    %v10338 = vpack.c.b16 %v8674, %v8666
    %v10339 = vpack.c.b16 %v8675, %v8667
    %v10340 = vpack.c.b16 %v8684, %v8676
    %v10341 = vpack.c.b16 %v8685, %v8677
    %v10342 = vpack.c.b16 %v8686, %v8678
    %v10343 = vpack.c.b16 %v8687, %v8679
    %v10344 = vpack.c.b16 %v8688, %v8680
    %v10345 = vpack.c.b16 %v8689, %v8681
    %v10346 = vpack.c.b16 %v8690, %v8682
    %v10347 = vpack.c.b16 %v8691, %v8683
    %v10348 = vpack.c.b16 %v8700, %v8692
    %v10349 = vpack.c.b16 %v8701, %v8693
    %v10350 = vpack.c.b16 %v8702, %v8694
    %v10351 = vpack.c.b16 %v8703, %v8695
    %v10352 = vpack.c.b16 %v8704, %v8696
    %v10353 = vpack.c.b16 %v8705, %v8697
    %v10354 = vpack.c.b16 %v8706, %v8698
    %v10355 = vpack.c.b16 %v8707, %v8699
    %v10356 = vpack.c.b16 %v8716, %v8708
    %v10357 = vpack.c.b16 %v8717, %v8709
    %v10358 = vpack.c.b16 %v8718, %v8710
    %v10359 = vpack.c.b16 %v8719, %v8711
    %v10360 = vpack.c.b16 %v8720, %v8712
    %v10361 = vpack.c.b16 %v8721, %v8713
    %v10362 = vpack.c.b16 %v8722, %v8714
    %v10363 = vpack.c.b16 %v8723, %v8715
    %v10364 = vpack.c.b16 %v8732, %v8724
    %v10365 = vpack.c.b16 %v8733, %v8725
    %v10366 = vpack.c.b16 %v8734, %v8726
    %v10367 = vpack.c.b16 %v8735, %v8727
    %v10368 = vpack.c.b16 %v8736, %v8728
    %v10369 = vpack.c.b16 %v8737, %v8729
    %v10370 = vpack.c.b16 %v8738, %v8730
    %v10371 = vpack.c.b16 %v8739, %v8731
    %v10372 = vpack.c.b16 %v8748, %v8740
    %v10373 = vpack.c.b16 %v8749, %v8741
    %v10374 = vpack.c.b16 %v8750, %v8742
    %v10375 = vpack.c.b16 %v8751, %v8743
    %v10376 = vpack.c.b16 %v8752, %v8744
    %v10377 = vpack.c.b16 %v8753, %v8745
    %v10378 = vpack.c.b16 %v8754, %v8746
    %v10379 = vpack.c.b16 %v8755, %v8747
    %v10380 = vpack.c.b16 %v8764, %v8756
    %v10381 = vpack.c.b16 %v8765, %v8757
    %v10382 = vpack.c.b16 %v8766, %v8758
    %v10383 = vpack.c.b16 %v8767, %v8759
    %v10384 = vpack.c.b16 %v8768, %v8760
    %v10385 = vpack.c.b16 %v8769, %v8761
    %v10386 = vpack.c.b16 %v8770, %v8762
    %v10387 = vpack.c.b16 %v8771, %v8763
    %v10388 = vpack.c.b16 %v8780, %v8772
    %v10389 = vpack.c.b16 %v8781, %v8773
    %v10390 = vpack.c.b16 %v8782, %v8774
    %v10391 = vpack.c.b16 %v8783, %v8775
    %v10392 = vpack.c.b16 %v8784, %v8776
    %v10393 = vpack.c.b16 %v8785, %v8777
    %v10394 = vpack.c.b16 %v8786, %v8778
    %v10395 = vpack.c.b16 %v8787, %v8779
    %v10396 = vpack.c.b16 %v8796, %v8788
    %v10397 = vpack.c.b16 %v8797, %v8789
    %v10398 = vpack.c.b16 %v8798, %v8790
    %v10399 = vpack.c.b16 %v8799, %v8791
    %v10400 = vpack.c.b16 %v8800, %v8792
    %v10401 = vpack.c.b16 %v8801, %v8793
    %v10402 = vpack.c.b16 %v8802, %v8794
    %v10403 = vpack.c.b16 %v8803, %v8795
    %v10404 = vpack.c.b16 %v8812, %v8804
    %v10405 = vpack.c.b16 %v8813, %v8805
    %v10406 = vpack.c.b16 %v8814, %v8806
    %v10407 = vpack.c.b16 %v8815, %v8807
    %v10408 = vpack.c.b16 %v8816, %v8808
    %v10409 = vpack.c.b16 %v8817, %v8809
    %v10410 = vpack.c.b16 %v8818, %v8810
    %v10411 = vpack.c.b16 %v8819, %v8811
    %v10412 = vpack.c.b16 %v8828, %v8820
    %v10413 = vpack.c.b16 %v8829, %v8821
    %v10414 = vpack.c.b16 %v8830, %v8822
    %v10415 = vpack.c.b16 %v8831, %v8823
    %v10416 = vpack.c.b16 %v8832, %v8824
    %v10417 = vpack.c.b16 %v8833, %v8825
    %v10418 = vpack.c.b16 %v8834, %v8826
    %v10419 = vpack.c.b16 %v8835, %v8827
    %v10420 = vpack.c.b16 %v8844, %v8836
    %v10421 = vpack.c.b16 %v8845, %v8837
    %v10422 = vpack.c.b16 %v8846, %v8838
    %v10423 = vpack.c.b16 %v8847, %v8839
    %v10424 = vpack.c.b16 %v8848, %v8840
    %v10425 = vpack.c.b16 %v8849, %v8841
    %v10426 = vpack.c.b16 %v8850, %v8842
    %v10427 = vpack.c.b16 %v8851, %v8843
    %v10428 = vpack.c.b16 %v8860, %v8852
    %v10429 = vpack.c.b16 %v8861, %v8853
    %v10430 = vpack.c.b16 %v8862, %v8854
    %v10431 = vpack.c.b16 %v8863, %v8855
    %v10432 = vpack.c.b16 %v8864, %v8856
    %v10433 = vpack.c.b16 %v8865, %v8857
    %v10434 = vpack.c.b16 %v8866, %v8858
    %v10435 = vpack.c.b16 %v8867, %v8859
    %v10436 = vpack.c.b16 %v8876, %v8868
    %v10437 = vpack.c.b16 %v8877, %v8869
    %v10438 = vpack.c.b16 %v8878, %v8870
    %v10439 = vpack.c.b16 %v8879, %v8871
    %v10440 = vpack.c.b16 %v8880, %v8872
    %v10441 = vpack.c.b16 %v8881, %v8873
    %v10442 = vpack.c.b16 %v8882, %v8874
    %v10443 = vpack.c.b16 %v8883, %v8875
    %v10444 = vpack.c.b16 %v8892, %v8884
    %v10445 = vpack.c.b16 %v8893, %v8885
    %v10446 = vpack.c.b16 %v8894, %v8886
    %v10447 = vpack.c.b16 %v8895, %v8887
    %v10448 = vpack.c.b16 %v8896, %v8888
    %v10449 = vpack.c.b16 %v8897, %v8889
    %v10450 = vpack.c.b16 %v8898, %v8890
    %v10451 = vpack.c.b16 %v8899, %v8891
    %v10452 = vpack.c.b16 %v8908, %v8900
    %v10453 = vpack.c.b16 %v8909, %v8901
    %v10454 = vpack.c.b16 %v8910, %v8902
    %v10455 = vpack.c.b16 %v8911, %v8903
    %v10456 = vpack.c.b16 %v8912, %v8904
    %v10457 = vpack.c.b16 %v8913, %v8905
    %v10458 = vpack.c.b16 %v8914, %v8906
    %v10459 = vpack.c.b16 %v8915, %v8907
    %v10460 = vpack.c.b16 %v8924, %v8916
    %v10461 = vpack.c.b16 %v8925, %v8917
    %v10462 = vpack.c.b16 %v8926, %v8918
    %v10463 = vpack.c.b16 %v8927, %v8919
    %v10464 = vpack.c.b16 %v8928, %v8920
    %v10465 = vpack.c.b16 %v8929, %v8921
    %v10466 = vpack.c.b16 %v8930, %v8922
    %v10467 = vpack.c.b16 %v8931, %v8923
    %v10468 = vpack.c.b16 %v8940, %v8932
    %v10469 = vpack.c.b16 %v8941, %v8933
    %v10470 = vpack.c.b16 %v8942, %v8934
    %v10471 = vpack.c.b16 %v8943, %v8935
    %v10472 = vpack.c.b16 %v8944, %v8936
    %v10473 = vpack.c.b16 %v8945, %v8937
    %v10474 = vpack.c.b16 %v8946, %v8938
    %v10475 = vpack.c.b16 %v8947, %v8939
    %v10476 = vpack.c.b16 %v8956, %v8948
    %v10477 = vpack.c.b16 %v8957, %v8949
    %v10478 = vpack.c.b16 %v8958, %v8950
    %v10479 = vpack.c.b16 %v8959, %v8951
    %v10480 = vpack.c.b16 %v8960, %v8952
    %v10481 = vpack.c.b16 %v8961, %v8953
    %v10482 = vpack.c.b16 %v8962, %v8954
    %v10483 = vpack.c.b16 %v8963, %v8955
    %v10484 = vpack.c.b16 %v8972, %v8964
    %v10485 = vpack.c.b16 %v8973, %v8965
    %v10486 = vpack.c.b16 %v8974, %v8966
    %v10487 = vpack.c.b16 %v8975, %v8967
    %v10488 = vpack.c.b16 %v8976, %v8968
    %v10489 = vpack.c.b16 %v8977, %v8969
    %v10490 = vpack.c.b16 %v8978, %v8970
    %v10491 = vpack.c.b16 %v8979, %v8971
    %v10492 = vpack.c.b16 %v8988, %v8980
    %v10493 = vpack.c.b16 %v8989, %v8981
    %v10494 = vpack.c.b16 %v8990, %v8982
    %v10495 = vpack.c.b16 %v8991, %v8983
    %v10496 = vpack.c.b16 %v8992, %v8984
    %v10497 = vpack.c.b16 %v8993, %v8985
    %v10498 = vpack.c.b16 %v8994, %v8986
    %v10499 = vpack.c.b16 %v8995, %v8987
    %v10500 = vpack.c.b16 %v9004, %v8996
    %v10501 = vpack.c.b16 %v9005, %v8997
    %v10502 = vpack.c.b16 %v9006, %v8998
    %v10503 = vpack.c.b16 %v9007, %v8999
    %v10504 = vpack.c.b16 %v9008, %v9000
    %v10505 = vpack.c.b16 %v9009, %v9001
    %v10506 = vpack.c.b16 %v9010, %v9002
    %v10507 = vpack.c.b16 %v9011, %v9003
    %v10508 = vpack.c.b16 %v9020, %v9012
    %v10509 = vpack.c.b16 %v9021, %v9013
    %v10510 = vpack.c.b16 %v9022, %v9014
    %v10511 = vpack.c.b16 %v9023, %v9015
    %v10512 = vpack.c.b16 %v9024, %v9016
    %v10513 = vpack.c.b16 %v9025, %v9017
    %v10514 = vpack.c.b16 %v9026, %v9018
    %v10515 = vpack.c.b16 %v9027, %v9019
    %v10516 = vpack.c.b16 %v9036, %v9028
    %v10517 = vpack.c.b16 %v9037, %v9029
    %v10518 = vpack.c.b16 %v9038, %v9030
    %v10519 = vpack.c.b16 %v9039, %v9031
    %v10520 = vpack.c.b16 %v9040, %v9032
    %v10521 = vpack.c.b16 %v9041, %v9033
    %v10522 = vpack.c.b16 %v9042, %v9034
    %v10523 = vpack.c.b16 %v9043, %v9035
    %v10524 = vpack.c.b16 %v9052, %v9044
    %v10525 = vpack.c.b16 %v9053, %v9045
    %v10526 = vpack.c.b16 %v9054, %v9046
    %v10527 = vpack.c.b16 %v9055, %v9047
    %v10528 = vpack.c.b16 %v9056, %v9048
    %v10529 = vpack.c.b16 %v9057, %v9049
    %v10530 = vpack.c.b16 %v9058, %v9050
    %v10531 = vpack.c.b16 %v9059, %v9051
    %v10532 = vpack.c.b16 %v9068, %v9060
    %v10533 = vpack.c.b16 %v9069, %v9061
    %v10534 = vpack.c.b16 %v9070, %v9062
    %v10535 = vpack.c.b16 %v9071, %v9063
    %v10536 = vpack.c.b16 %v9072, %v9064
    %v10537 = vpack.c.b16 %v9073, %v9065
    %v10538 = vpack.c.b16 %v9074, %v9066
    %v10539 = vpack.c.b16 %v9075, %v9067
    %v10540 = vpack.c.b16 %v9084, %v9076
    %v10541 = vpack.c.b16 %v9085, %v9077
    %v10542 = vpack.c.b16 %v9086, %v9078
    %v10543 = vpack.c.b16 %v9087, %v9079
    %v10544 = vpack.c.b16 %v9088, %v9080
    %v10545 = vpack.c.b16 %v9089, %v9081
    %v10546 = vpack.c.b16 %v9090, %v9082
    %v10547 = vpack.c.b16 %v9091, %v9083
    %v10548 = vpack.c.b16 %v9100, %v9092
    %v10549 = vpack.c.b16 %v9101, %v9093
    %v10550 = vpack.c.b16 %v9102, %v9094
    %v10551 = vpack.c.b16 %v9103, %v9095
    %v10552 = vpack.c.b16 %v9104, %v9096
    %v10553 = vpack.c.b16 %v9105, %v9097
    %v10554 = vpack.c.b16 %v9106, %v9098
    %v10555 = vpack.c.b16 %v9107, %v9099
    %v10556 = vpack.c.b16 %v9116, %v9108
    %v10557 = vpack.c.b16 %v9117, %v9109
    %v10558 = vpack.c.b16 %v9118, %v9110
    %v10559 = vpack.c.b16 %v9119, %v9111
    %v10560 = vpack.c.b16 %v9120, %v9112
    %v10561 = vpack.c.b16 %v9121, %v9113
    %v10562 = vpack.c.b16 %v9122, %v9114
    %v10563 = vpack.c.b16 %v9123, %v9115
    %v10564 = vpack.c.b16 %v9132, %v9124
    %v10565 = vpack.c.b16 %v9133, %v9125
    %v10566 = vpack.c.b16 %v9134, %v9126
    %v10567 = vpack.c.b16 %v9135, %v9127
    %v10568 = vpack.c.b16 %v9136, %v9128
    %v10569 = vpack.c.b16 %v9137, %v9129
    %v10570 = vpack.c.b16 %v9138, %v9130
    %v10571 = vpack.c.b16 %v9139, %v9131
    %v10572 = vpack.c.b16 %v9148, %v9140
    %v10573 = vpack.c.b16 %v9149, %v9141
    %v10574 = vpack.c.b16 %v9150, %v9142
    %v10575 = vpack.c.b16 %v9151, %v9143
    %v10576 = vpack.c.b16 %v9152, %v9144
    %v10577 = vpack.c.b16 %v9153, %v9145
    %v10578 = vpack.c.b16 %v9154, %v9146
    %v10579 = vpack.c.b16 %v9155, %v9147
    %v10580 = vpack.c.b16 %v9164, %v9156
    %v10581 = vpack.c.b16 %v9165, %v9157
    %v10582 = vpack.c.b16 %v9166, %v9158
    %v10583 = vpack.c.b16 %v9167, %v9159
    %v10584 = vpack.c.b16 %v9168, %v9160
    %v10585 = vpack.c.b16 %v9169, %v9161
    %v10586 = vpack.c.b16 %v9170, %v9162
    %v10587 = vpack.c.b16 %v9171, %v9163
    %v10588 = vpack.c.b16 %v9180, %v9172
    %v10589 = vpack.c.b16 %v9181, %v9173
    %v10590 = vpack.c.b16 %v9182, %v9174
    %v10591 = vpack.c.b16 %v9183, %v9175
    %v10592 = vpack.c.b16 %v9184, %v9176
    %v10593 = vpack.c.b16 %v9185, %v9177
    %v10594 = vpack.c.b16 %v9186, %v9178
    %v10595 = vpack.c.b16 %v9187, %v9179
    %v10596 = vpack.c.b16 %v9196, %v9188
    %v10597 = vpack.c.b16 %v9197, %v9189
    %v10598 = vpack.c.b16 %v9198, %v9190
    %v10599 = vpack.c.b16 %v9199, %v9191
    %v10600 = vpack.c.b16 %v9200, %v9192
    %v10601 = vpack.c.b16 %v9201, %v9193
    %v10602 = vpack.c.b16 %v9202, %v9194
    %v10603 = vpack.c.b16 %v9203, %v9195
    %v10604 = vpack.c.b16 %v9212, %v9204
    %v10605 = vpack.c.b16 %v9213, %v9205
    %v10606 = vpack.c.b16 %v9214, %v9206
    %v10607 = vpack.c.b16 %v9215, %v9207
    %v10608 = vpack.c.b16 %v9216, %v9208
    %v10609 = vpack.c.b16 %v9217, %v9209
    %v10610 = vpack.c.b16 %v9218, %v9210
    %v10611 = vpack.c.b16 %v9219, %v9211
    %v10612 = vpack.c.b16 %v9228, %v9220
    %v10613 = vpack.c.b16 %v9229, %v9221
    %v10614 = vpack.c.b16 %v9230, %v9222
    %v10615 = vpack.c.b16 %v9231, %v9223
    %v10616 = vpack.c.b16 %v9232, %v9224
    %v10617 = vpack.c.b16 %v9233, %v9225
    %v10618 = vpack.c.b16 %v9234, %v9226
    %v10619 = vpack.c.b16 %v9235, %v9227
    %v10620 = vpack.c.b16 %v9244, %v9236
    %v10621 = vpack.c.b16 %v9245, %v9237
    %v10622 = vpack.c.b16 %v9246, %v9238
    %v10623 = vpack.c.b16 %v9247, %v9239
    %v10624 = vpack.c.b16 %v9248, %v9240
    %v10625 = vpack.c.b16 %v9249, %v9241
    %v10626 = vpack.c.b16 %v9250, %v9242
    %v10627 = vpack.c.b16 %v9251, %v9243
    %v10628 = vpack.c.b16 %v9260, %v9252
    %v10629 = vpack.c.b16 %v9261, %v9253
    %v10630 = vpack.c.b16 %v9262, %v9254
    %v10631 = vpack.c.b16 %v9263, %v9255
    %v10632 = vpack.c.b16 %v9264, %v9256
    %v10633 = vpack.c.b16 %v9265, %v9257
    %v10634 = vpack.c.b16 %v9266, %v9258
    %v10635 = vpack.c.b16 %v9267, %v9259
    %v10636 = vpack.c.b16 %v9276, %v9268
    %v10637 = vpack.c.b16 %v9277, %v9269
    %v10638 = vpack.c.b16 %v9278, %v9270
    %v10639 = vpack.c.b16 %v9279, %v9271
    %v10640 = vpack.c.b16 %v9280, %v9272
    %v10641 = vpack.c.b16 %v9281, %v9273
    %v10642 = vpack.c.b16 %v9282, %v9274
    %v10643 = vpack.c.b16 %v9283, %v9275
    %v10644 = vpack.c.b16 %v9292, %v9284
    %v10645 = vpack.c.b16 %v9293, %v9285
    %v10646 = vpack.c.b16 %v9294, %v9286
    %v10647 = vpack.c.b16 %v9295, %v9287
    %v10648 = vpack.c.b16 %v9296, %v9288
    %v10649 = vpack.c.b16 %v9297, %v9289
    %v10650 = vpack.c.b16 %v9298, %v9290
    %v10651 = vpack.c.b16 %v9299, %v9291
    %v10652 = vpack.c.b16 %v9308, %v9300
    %v10653 = vpack.c.b16 %v9309, %v9301
    %v10654 = vpack.c.b16 %v9310, %v9302
    %v10655 = vpack.c.b16 %v9311, %v9303
    %v10656 = vpack.c.b16 %v9312, %v9304
    %v10657 = vpack.c.b16 %v9313, %v9305
    %v10658 = vpack.c.b16 %v9314, %v9306
    %v10659 = vpack.c.b16 %v9315, %v9307
    %v10660 = vpack.c.b16 %v9324, %v9316
    %v10661 = vpack.c.b16 %v9325, %v9317
    %v10662 = vpack.c.b16 %v9326, %v9318
    %v10663 = vpack.c.b16 %v9327, %v9319
    %v10664 = vpack.c.b16 %v9328, %v9320
    %v10665 = vpack.c.b16 %v9329, %v9321
    %v10666 = vpack.c.b16 %v9330, %v9322
    %v10667 = vpack.c.b16 %v9331, %v9323
    %v10668 = vpack.c.b16 %v9340, %v9332
    %v10669 = vpack.c.b16 %v9341, %v9333
    %v10670 = vpack.c.b16 %v9342, %v9334
    %v10671 = vpack.c.b16 %v9343, %v9335
    %v10672 = vpack.c.b16 %v9344, %v9336
    %v10673 = vpack.c.b16 %v9345, %v9337
    %v10674 = vpack.c.b16 %v9346, %v9338
    %v10675 = vpack.c.b16 %v9347, %v9339
    %v10676 = vpack.c.b16 %v9356, %v9348
    %v10677 = vpack.c.b16 %v9357, %v9349
    %v10678 = vpack.c.b16 %v9358, %v9350
    %v10679 = vpack.c.b16 %v9359, %v9351
    %v10680 = vpack.c.b16 %v9360, %v9352
    %v10681 = vpack.c.b16 %v9361, %v9353
    %v10682 = vpack.c.b16 %v9362, %v9354
    %v10683 = vpack.c.b16 %v9363, %v9355
    %v10684 = vpack.c.b16 %v9372, %v9364
    %v10685 = vpack.c.b16 %v9373, %v9365
    %v10686 = vpack.c.b16 %v9374, %v9366
    %v10687 = vpack.c.b16 %v9375, %v9367
    %v10688 = vpack.c.b16 %v9376, %v9368
    %v10689 = vpack.c.b16 %v9377, %v9369
    %v10690 = vpack.c.b16 %v9378, %v9370
    %v10691 = vpack.c.b16 %v9379, %v9371
    %v10692 = vpack.c.b16 %v9388, %v9380
    %v10693 = vpack.c.b16 %v9389, %v9381
    %v10694 = vpack.c.b16 %v9390, %v9382
    %v10695 = vpack.c.b16 %v9391, %v9383
    %v10696 = vpack.c.b16 %v9392, %v9384
    %v10697 = vpack.c.b16 %v9393, %v9385
    %v10698 = vpack.c.b16 %v9394, %v9386
    %v10699 = vpack.c.b16 %v9395, %v9387
    %v10700 = vpack.c.b16 %v9404, %v9396
    %v10701 = vpack.c.b16 %v9405, %v9397
    %v10702 = vpack.c.b16 %v9406, %v9398
    %v10703 = vpack.c.b16 %v9407, %v9399
    %v10704 = vpack.c.b16 %v9408, %v9400
    %v10705 = vpack.c.b16 %v9409, %v9401
    %v10706 = vpack.c.b16 %v9410, %v9402
    %v10707 = vpack.c.b16 %v9411, %v9403
    %v10708 = vpack.c.b16 %v9420, %v9412
    %v10709 = vpack.c.b16 %v9421, %v9413
    %v10710 = vpack.c.b16 %v9422, %v9414
    %v10711 = vpack.c.b16 %v9423, %v9415
    %v10712 = vpack.c.b16 %v9424, %v9416
    %v10713 = vpack.c.b16 %v9425, %v9417
    %v10714 = vpack.c.b16 %v9426, %v9418
    %v10715 = vpack.c.b16 %v9427, %v9419
    %v10716 = vpack.c.b16 %v9436, %v9428
    %v10717 = vpack.c.b16 %v9437, %v9429
    %v10718 = vpack.c.b16 %v9438, %v9430
    %v10719 = vpack.c.b16 %v9439, %v9431
    %v10720 = vpack.c.b16 %v9440, %v9432
    %v10721 = vpack.c.b16 %v9441, %v9433
    %v10722 = vpack.c.b16 %v9442, %v9434
    %v10723 = vpack.c.b16 %v9443, %v9435
    %v10724 = vpack.c.b16 %v9452, %v9444
    %v10725 = vpack.c.b16 %v9453, %v9445
    %v10726 = vpack.c.b16 %v9454, %v9446
    %v10727 = vpack.c.b16 %v9455, %v9447
    %v10728 = vpack.c.b16 %v9456, %v9448
    %v10729 = vpack.c.b16 %v9457, %v9449
    %v10730 = vpack.c.b16 %v9458, %v9450
    %v10731 = vpack.c.b16 %v9459, %v9451
    %v10732 = vpack.c.b16 %v9468, %v9460
    %v10733 = vpack.c.b16 %v9469, %v9461
    %v10734 = vpack.c.b16 %v9470, %v9462
    %v10735 = vpack.c.b16 %v9471, %v9463
    %v10736 = vpack.c.b16 %v9472, %v9464
    %v10737 = vpack.c.b16 %v9473, %v9465
    %v10738 = vpack.c.b16 %v9474, %v9466
    %v10739 = vpack.c.b16 %v9475, %v9467
    %v10740 = vpack.c.b16 %v9484, %v9476
    %v10741 = vpack.c.b16 %v9485, %v9477
    %v10742 = vpack.c.b16 %v9486, %v9478
    %v10743 = vpack.c.b16 %v9487, %v9479
    %v10744 = vpack.c.b16 %v9488, %v9480
    %v10745 = vpack.c.b16 %v9489, %v9481
    %v10746 = vpack.c.b16 %v9490, %v9482
    %v10747 = vpack.c.b16 %v9491, %v9483
    %v10748 = vpack.c.b16 %v9500, %v9492
    %v10749 = vpack.c.b16 %v9501, %v9493
    %v10750 = vpack.c.b16 %v9502, %v9494
    %v10751 = vpack.c.b16 %v9503, %v9495
    %v10752 = vpack.c.b16 %v9504, %v9496
    %v10753 = vpack.c.b16 %v9505, %v9497
    %v10754 = vpack.c.b16 %v9506, %v9498
    %v10755 = vpack.c.b16 %v9507, %v9499
    %v10756 = vpack.c.b16 %v9516, %v9508
    %v10757 = vpack.c.b16 %v9517, %v9509
    %v10758 = vpack.c.b16 %v9518, %v9510
    %v10759 = vpack.c.b16 %v9519, %v9511
    %v10760 = vpack.c.b16 %v9520, %v9512
    %v10761 = vpack.c.b16 %v9521, %v9513
    %v10762 = vpack.c.b16 %v9522, %v9514
    %v10763 = vpack.c.b16 %v9523, %v9515
    %v10764 = vpack.c.b16 %v9532, %v9524
    %v10765 = vpack.c.b16 %v9533, %v9525
    %v10766 = vpack.c.b16 %v9534, %v9526
    %v10767 = vpack.c.b16 %v9535, %v9527
    %v10768 = vpack.c.b16 %v9536, %v9528
    %v10769 = vpack.c.b16 %v9537, %v9529
    %v10770 = vpack.c.b16 %v9538, %v9530
    %v10771 = vpack.c.b16 %v9539, %v9531
    %v10772 = vpack.c.b16 %v9548, %v9540
    %v10773 = vpack.c.b16 %v9549, %v9541
    %v10774 = vpack.c.b16 %v9550, %v9542
    %v10775 = vpack.c.b16 %v9551, %v9543
    %v10776 = vpack.c.b16 %v9552, %v9544
    %v10777 = vpack.c.b16 %v9553, %v9545
    %v10778 = vpack.c.b16 %v9554, %v9546
    %v10779 = vpack.c.b16 %v9555, %v9547
    %v10780 = vpack.c.b16 %v9564, %v9556
    %v10781 = vpack.c.b16 %v9565, %v9557
    %v10782 = vpack.c.b16 %v9566, %v9558
    %v10783 = vpack.c.b16 %v9567, %v9559
    %v10784 = vpack.c.b16 %v9568, %v9560
    %v10785 = vpack.c.b16 %v9569, %v9561
    %v10786 = vpack.c.b16 %v9570, %v9562
    %v10787 = vpack.c.b16 %v9571, %v9563
    %v10788 = vpack.c.b16 %v9580, %v9572
    %v10789 = vpack.c.b16 %v9581, %v9573
    %v10790 = vpack.c.b16 %v9582, %v9574
    %v10791 = vpack.c.b16 %v9583, %v9575
    %v10792 = vpack.c.b16 %v9584, %v9576
    %v10793 = vpack.c.b16 %v9585, %v9577
    %v10794 = vpack.c.b16 %v9586, %v9578
    %v10795 = vpack.c.b16 %v9587, %v9579
    %v10796 = vpack.c.b16 %v9596, %v9588
    %v10797 = vpack.c.b16 %v9597, %v9589
    %v10798 = vpack.c.b16 %v9598, %v9590
    %v10799 = vpack.c.b16 %v9599, %v9591
    %v10800 = vpack.c.b16 %v9600, %v9592
    %v10801 = vpack.c.b16 %v9601, %v9593
    %v10802 = vpack.c.b16 %v9602, %v9594
    %v10803 = vpack.c.b16 %v9603, %v9595
    %v10804 = vpack.c.b16 %v9612, %v9604
    %v10805 = vpack.c.b16 %v9613, %v9605
    %v10806 = vpack.c.b16 %v9614, %v9606
    %v10807 = vpack.c.b16 %v9615, %v9607
    %v10808 = vpack.c.b16 %v9616, %v9608
    %v10809 = vpack.c.b16 %v9617, %v9609
    %v10810 = vpack.c.b16 %v9618, %v9610
    %v10811 = vpack.c.b16 %v9619, %v9611
    %v10812 = vpack.c.b16 %v9628, %v9620
    %v10813 = vpack.c.b16 %v9629, %v9621
    %v10814 = vpack.c.b16 %v9630, %v9622
    %v10815 = vpack.c.b16 %v9631, %v9623
    %v10816 = vpack.c.b16 %v9632, %v9624
    %v10817 = vpack.c.b16 %v9633, %v9625
    %v10818 = vpack.c.b16 %v9634, %v9626
    %v10819 = vpack.c.b16 %v9635, %v9627
    %v10820 = vpack.c.b16 %v9644, %v9636
    %v10821 = vpack.c.b16 %v9645, %v9637
    %v10822 = vpack.c.b16 %v9646, %v9638
    %v10823 = vpack.c.b16 %v9647, %v9639
    %v10824 = vpack.c.b16 %v9648, %v9640
    %v10825 = vpack.c.b16 %v9649, %v9641
    %v10826 = vpack.c.b16 %v9650, %v9642
    %v10827 = vpack.c.b16 %v9651, %v9643
    %v10828 = vpack.c.b16 %v9660, %v9652
    %v10829 = vpack.c.b16 %v9661, %v9653
    %v10830 = vpack.c.b16 %v9662, %v9654
    %v10831 = vpack.c.b16 %v9663, %v9655
    %v10832 = vpack.c.b16 %v9664, %v9656
    %v10833 = vpack.c.b16 %v9665, %v9657
    %v10834 = vpack.c.b16 %v9666, %v9658
    %v10835 = vpack.c.b16 %v9667, %v9659
    %v10836 = vpack.c.b16 %v9676, %v9668
    %v10837 = vpack.c.b16 %v9677, %v9669
    %v10838 = vpack.c.b16 %v9678, %v9670
    %v10839 = vpack.c.b16 %v9679, %v9671
    %v10840 = vpack.c.b16 %v9680, %v9672
    %v10841 = vpack.c.b16 %v9681, %v9673
    %v10842 = vpack.c.b16 %v9682, %v9674
    %v10843 = vpack.c.b16 %v9683, %v9675
    %v10844 = vpack.c.b16 %v9692, %v9684
    %v10845 = vpack.c.b16 %v9693, %v9685
    %v10846 = vpack.c.b16 %v9694, %v9686
    %v10847 = vpack.c.b16 %v9695, %v9687
    %v10848 = vpack.c.b16 %v9696, %v9688
    %v10849 = vpack.c.b16 %v9697, %v9689
    %v10850 = vpack.c.b16 %v9698, %v9690
    %v10851 = vpack.c.b16 %v9699, %v9691
    %v10852 = vpack.c.b16 %v9708, %v9700
    %v10853 = vpack.c.b16 %v9709, %v9701
    %v10854 = vpack.c.b16 %v9710, %v9702
    %v10855 = vpack.c.b16 %v9711, %v9703
    %v10856 = vpack.c.b16 %v9712, %v9704
    %v10857 = vpack.c.b16 %v9713, %v9705
    %v10858 = vpack.c.b16 %v9714, %v9706
    %v10859 = vpack.c.b16 %v9715, %v9707
    %v10860 = vpack.c.b16 %v9724, %v9716
    %v10861 = vpack.c.b16 %v9725, %v9717
    %v10862 = vpack.c.b16 %v9726, %v9718
    %v10863 = vpack.c.b16 %v9727, %v9719
    %v10864 = vpack.c.b16 %v9728, %v9720
    %v10865 = vpack.c.b16 %v9729, %v9721
    %v10866 = vpack.c.b16 %v9730, %v9722
    %v10867 = vpack.c.b16 %v9731, %v9723
    %v10868 = vpack.c.b16 %v9740, %v9732
    %v10869 = vpack.c.b16 %v9741, %v9733
    %v10870 = vpack.c.b16 %v9742, %v9734
    %v10871 = vpack.c.b16 %v9743, %v9735
    %v10872 = vpack.c.b16 %v9744, %v9736
    %v10873 = vpack.c.b16 %v9745, %v9737
    %v10874 = vpack.c.b16 %v9746, %v9738
    %v10875 = vpack.c.b16 %v9747, %v9739
    %v10876 = vpack.c.b16 %v9756, %v9748
    %v10877 = vpack.c.b16 %v9757, %v9749
    %v10878 = vpack.c.b16 %v9758, %v9750
    %v10879 = vpack.c.b16 %v9759, %v9751
    %v10880 = vpack.c.b16 %v9760, %v9752
    %v10881 = vpack.c.b16 %v9761, %v9753
    %v10882 = vpack.c.b16 %v9762, %v9754
    %v10883 = vpack.c.b16 %v9763, %v9755
    %v10884 = vpack.c.b16 %v9772, %v9764
    %v10885 = vpack.c.b16 %v9773, %v9765
    %v10886 = vpack.c.b16 %v9774, %v9766
    %v10887 = vpack.c.b16 %v9775, %v9767
    %v10888 = vpack.c.b16 %v9776, %v9768
    %v10889 = vpack.c.b16 %v9777, %v9769
    %v10890 = vpack.c.b16 %v9778, %v9770
    %v10891 = vpack.c.b16 %v9779, %v9771
    %v10892 = vpack.c.b16 %v9788, %v9780
    %v10893 = vpack.c.b16 %v9789, %v9781
    %v10894 = vpack.c.b16 %v9790, %v9782
    %v10895 = vpack.c.b16 %v9791, %v9783
    %v10896 = vpack.c.b16 %v9792, %v9784
    %v10897 = vpack.c.b16 %v9793, %v9785
    %v10898 = vpack.c.b16 %v9794, %v9786
    %v10899 = vpack.c.b16 %v9795, %v9787
    %v10900 = vpack.c.b16 %v9804, %v9796
    %v10901 = vpack.c.b16 %v9805, %v9797
    %v10902 = vpack.c.b16 %v9806, %v9798
    %v10903 = vpack.c.b16 %v9807, %v9799
    %v10904 = vpack.c.b16 %v9808, %v9800
    %v10905 = vpack.c.b16 %v9809, %v9801
    %v10906 = vpack.c.b16 %v9810, %v9802
    %v10907 = vpack.c.b16 %v9811, %v9803
    %v10908 = vpack.c.b16 %v9820, %v9812
    %v10909 = vpack.c.b16 %v9821, %v9813
    %v10910 = vpack.c.b16 %v9822, %v9814
    %v10911 = vpack.c.b16 %v9823, %v9815
    %v10912 = vpack.c.b16 %v9824, %v9816
    %v10913 = vpack.c.b16 %v9825, %v9817
    %v10914 = vpack.c.b16 %v9826, %v9818
    %v10915 = vpack.c.b16 %v9827, %v9819
    %v10916 = vpack.c.b16 %v9836, %v9828
    %v10917 = vpack.c.b16 %v9837, %v9829
    %v10918 = vpack.c.b16 %v9838, %v9830
    %v10919 = vpack.c.b16 %v9839, %v9831
    %v10920 = vpack.c.b16 %v9840, %v9832
    %v10921 = vpack.c.b16 %v9841, %v9833
    %v10922 = vpack.c.b16 %v9842, %v9834
    %v10923 = vpack.c.b16 %v9843, %v9835
    %v10924 = vpack.c.b16 %v9852, %v9844
    %v10925 = vpack.c.b16 %v9853, %v9845
    %v10926 = vpack.c.b16 %v9854, %v9846
    %v10927 = vpack.c.b16 %v9855, %v9847
    %v10928 = vpack.c.b16 %v9856, %v9848
    %v10929 = vpack.c.b16 %v9857, %v9849
    %v10930 = vpack.c.b16 %v9858, %v9850
    %v10931 = vpack.c.b16 %v9859, %v9851
    %v10932 = vpack.c.b16 %v9868, %v9860
    %v10933 = vpack.c.b16 %v9869, %v9861
    %v10934 = vpack.c.b16 %v9870, %v9862
    %v10935 = vpack.c.b16 %v9871, %v9863
    %v10936 = vpack.c.b16 %v9872, %v9864
    %v10937 = vpack.c.b16 %v9873, %v9865
    %v10938 = vpack.c.b16 %v9874, %v9866
    %v10939 = vpack.c.b16 %v9875, %v9867
    %v10940 = vpack.c.b16 %v9884, %v9876
    %v10941 = vpack.c.b16 %v9885, %v9877
    %v10942 = vpack.c.b16 %v9886, %v9878
    %v10943 = vpack.c.b16 %v9887, %v9879
    %v10944 = vpack.c.b16 %v9888, %v9880
    %v10945 = vpack.c.b16 %v9889, %v9881
    %v10946 = vpack.c.b16 %v9890, %v9882
    %v10947 = vpack.c.b16 %v9891, %v9883
    %v10948 = vpack.c.b16 %v9900, %v9892
    %v10949 = vpack.c.b16 %v9901, %v9893
    %v10950 = vpack.c.b16 %v9902, %v9894
    %v10951 = vpack.c.b16 %v9903, %v9895
    %v10952 = vpack.c.b16 %v9904, %v9896
    %v10953 = vpack.c.b16 %v9905, %v9897
    %v10954 = vpack.c.b16 %v9906, %v9898
    %v10955 = vpack.c.b16 %v9907, %v9899
    %v10956 = vpack.c.b16 %v9916, %v9908
    %v10957 = vpack.c.b16 %v9917, %v9909
    %v10958 = vpack.c.b16 %v9918, %v9910
    %v10959 = vpack.c.b16 %v9919, %v9911
    %v10960 = vpack.c.b16 %v9920, %v9912
    %v10961 = vpack.c.b16 %v9921, %v9913
    %v10962 = vpack.c.b16 %v9922, %v9914
    %v10963 = vpack.c.b16 %v9923, %v9915
    %v10964 = vpack.c.b16 %v9932, %v9924
    %v10965 = vpack.c.b16 %v9933, %v9925
    %v10966 = vpack.c.b16 %v9934, %v9926
    %v10967 = vpack.c.b16 %v9935, %v9927
    %v10968 = vpack.c.b16 %v9936, %v9928
    %v10969 = vpack.c.b16 %v9937, %v9929
    %v10970 = vpack.c.b16 %v9938, %v9930
    %v10971 = vpack.c.b16 %v9939, %v9931
    %v10972 = vpack.c.b16 %v9948, %v9940
    %v10973 = vpack.c.b16 %v9949, %v9941
    %v10974 = vpack.c.b16 %v9950, %v9942
    %v10975 = vpack.c.b16 %v9951, %v9943
    %v10976 = vpack.c.b16 %v9952, %v9944
    %v10977 = vpack.c.b16 %v9953, %v9945
    %v10978 = vpack.c.b16 %v9954, %v9946
    %v10979 = vpack.c.b16 %v9955, %v9947
    %12004 = vmatprep.subr.bf16.mxu0 %v9957
    %12005 = vmatpush1.bf16.msra.mxu0 %v9956
    %12006 = vmatprep.subr.bf16.mxu0 %v9965
    %12007 = vmatpush1.bf16.msra.mxu0 %v9964
    %12008 = vmatprep.subr.bf16.mxu0 %v9973
    %12009 = vmatpush1.bf16.msra.mxu0 %v9972
    %12010 = vmatprep.subr.bf16.mxu0 %v9981
    %12011 = vmatpush1.bf16.msra.mxu0 %v9980
    %12012 = vmatprep.subr.bf16.mxu0 %v9989
    %12013 = vmatpush1.bf16.msra.mxu0 %v9988
    %12014 = vmatprep.subr.bf16.mxu0 %v9997
    %12015 = vmatpush1.bf16.msra.mxu0 %v9996
    %12016 = vmatprep.subr.bf16.mxu0 %v10005
    %12017 = vmatpush1.bf16.msra.mxu0 %v10004
    %12018 = vmatprep.subr.bf16.mxu0 %v10013
    %12019 = vmatpush1.bf16.msra.mxu0 %v10012
    %12020 = vmatprep.subr.bf16.mxu0 %v10021
    %12021 = vmatpush1.bf16.msra.mxu0 %v10020
    %12022 = vmatprep.subr.bf16.mxu0 %v10029
    %12023 = vmatpush1.bf16.msra.mxu0 %v10028
    %12024 = vmatprep.subr.bf16.mxu0 %v10037
    %12025 = vmatpush1.bf16.msra.mxu0 %v10036
    %12026 = vmatprep.subr.bf16.mxu0 %v10045
    %12027 = vmatpush1.bf16.msra.mxu0 %v10044
    %12028 = vmatprep.subr.bf16.mxu0 %v10053
    %12029 = vmatpush1.bf16.msra.mxu0 %v10052
    %12030 = vmatprep.subr.bf16.mxu0 %v10061
    %12031 = vmatpush1.bf16.msra.mxu0 %v10060
    %12032 = vmatprep.subr.bf16.mxu0 %v10069
    %12033 = vmatpush1.bf16.msra.mxu0 %v10068
    %12034 = vmatprep.subr.bf16.mxu0 %v10077
    %12035 = vmatpush1.bf16.msra.mxu0 %v10076
    %12036 = vmatprep.mubr.bf16.mxu0 %v6828
    %12037 = vmatmul.mubr.bf16.gmra.mrb[0].mxu0 %v6827
    %v12038 = vpop.f32.mrb[0].mxu0
    %v12039 = vadd.f32 %v6847, %v12038
    %v12040 = vpop.f32.mrb[0].mxu0
    %v12041 = vadd.f32 %v6851, %v12040
    %v12042 = vpop.f32.mrb[0].mxu0
    %v12043 = vpop.f32.mrb[0].mxu0
    %12044 = vdwg.mxu0
    %12045 = vmatprep.subr.bf16.mxu0 %v10085
    %12046 = vmatpush1.bf16.msra.mxu0 %v10084
    %12047 = vmatprep.subr.bf16.mxu0 %v10093
    %12048 = vmatpush1.bf16.msra.mxu0 %v10092
    %12049 = vmatprep.subr.bf16.mxu0 %v10101
    %12050 = vmatpush1.bf16.msra.mxu0 %v10100
    %12051 = vmatprep.subr.bf16.mxu0 %v10109
    %12052 = vmatpush1.bf16.msra.mxu0 %v10108
    %12053 = vmatprep.subr.bf16.mxu0 %v10117
    %12054 = vmatpush1.bf16.msra.mxu0 %v10116
    %12055 = vmatprep.subr.bf16.mxu0 %v10125
    %12056 = vmatpush1.bf16.msra.mxu0 %v10124
    %12057 = vmatprep.subr.bf16.mxu0 %v10133
    %12058 = vmatpush1.bf16.msra.mxu0 %v10132
    %12059 = vmatprep.subr.bf16.mxu0 %v10141
    %12060 = vmatpush1.bf16.msra.mxu0 %v10140
    %12061 = vmatprep.subr.bf16.mxu0 %v10149
    %12062 = vmatpush1.bf16.msra.mxu0 %v10148
    %12063 = vmatprep.subr.bf16.mxu0 %v10157
    %12064 = vmatpush1.bf16.msra.mxu0 %v10156
    %12065 = vmatprep.subr.bf16.mxu0 %v10165
    %12066 = vmatpush1.bf16.msra.mxu0 %v10164
    %12067 = vmatprep.subr.bf16.mxu0 %v10173
    %12068 = vmatpush1.bf16.msra.mxu0 %v10172
    %12069 = vmatprep.subr.bf16.mxu0 %v10181
    %12070 = vmatpush1.bf16.msra.mxu0 %v10180
    %12071 = vmatprep.subr.bf16.mxu0 %v10189
    %12072 = vmatpush1.bf16.msra.mxu0 %v10188
    %12073 = vmatprep.subr.bf16.mxu0 %v10197
    %12074 = vmatpush1.bf16.msra.mxu0 %v10196
    %12075 = vmatprep.subr.bf16.mxu0 %v10205
    %12076 = vmatpush1.bf16.msra.mxu0 %v10204
    %12077 = vmatprep.mubr.bf16.mxu0 %v6830
    %12078 = vmatmul.mubr.bf16.gmra.mrb[0].mxu0 %v6829
    %v12079 = vpop.f32.mrb[0].mxu0
    %v12080 = vadd.f32 %v12039, %v12079
    %v12081 = vpop.f32.mrb[0].mxu0
    %v12082 = vadd.f32 %v12041, %v12081
    %v12083 = vpop.f32.mrb[0].mxu0
    %v12084 = vpop.f32.mrb[0].mxu0
    %12085 = vdwg.mxu0
    %12086 = vmatprep.subr.bf16.mxu0 %v10213
    %12087 = vmatpush1.bf16.msra.mxu0 %v10212
    %12088 = vmatprep.subr.bf16.mxu0 %v10221
    %12089 = vmatpush1.bf16.msra.mxu0 %v10220
    %12090 = vmatprep.subr.bf16.mxu0 %v10229
    %12091 = vmatpush1.bf16.msra.mxu0 %v10228
    %12092 = vmatprep.subr.bf16.mxu0 %v10237
    %12093 = vmatpush1.bf16.msra.mxu0 %v10236
    %12094 = vmatprep.subr.bf16.mxu0 %v10245
    %12095 = vmatpush1.bf16.msra.mxu0 %v10244
    %12096 = vmatprep.subr.bf16.mxu0 %v10253
    %12097 = vmatpush1.bf16.msra.mxu0 %v10252
    %12098 = vmatprep.subr.bf16.mxu0 %v10261
    %12099 = vmatpush1.bf16.msra.mxu0 %v10260
    %12100 = vmatprep.subr.bf16.mxu0 %v10269
    %12101 = vmatpush1.bf16.msra.mxu0 %v10268
    %12102 = vmatprep.subr.bf16.mxu0 %v10277
    %12103 = vmatpush1.bf16.msra.mxu0 %v10276
    %12104 = vmatprep.subr.bf16.mxu0 %v10285
    %12105 = vmatpush1.bf16.msra.mxu0 %v10284
    %12106 = vmatprep.subr.bf16.mxu0 %v10293
    %12107 = vmatpush1.bf16.msra.mxu0 %v10292
    %12108 = vmatprep.subr.bf16.mxu0 %v10301
    %12109 = vmatpush1.bf16.msra.mxu0 %v10300
    %12110 = vmatprep.subr.bf16.mxu0 %v10309
    %12111 = vmatpush1.bf16.msra.mxu0 %v10308
    %12112 = vmatprep.subr.bf16.mxu0 %v10317
    %12113 = vmatpush1.bf16.msra.mxu0 %v10316
    %12114 = vmatprep.subr.bf16.mxu0 %v10325
    %12115 = vmatpush1.bf16.msra.mxu0 %v10324
    %12116 = vmatprep.subr.bf16.mxu0 %v10333
    %12117 = vmatpush1.bf16.msra.mxu0 %v10332
    %12118 = vmatprep.mubr.bf16.mxu0 %v6832
    %12119 = vmatmul.mubr.bf16.gmra.mrb[0].mxu0 %v6831
    %v12120 = vpop.f32.mrb[0].mxu0
    %v12121 = vadd.f32 %v12080, %v12120
    %v12122 = vpop.f32.mrb[0].mxu0
    %v12123 = vadd.f32 %v12082, %v12122
    %v12124 = vpop.f32.mrb[0].mxu0
    %v12125 = vpop.f32.mrb[0].mxu0
    %12126 = vdwg.mxu0
    %12127 = vmatprep.subr.bf16.mxu0 %v10341
    %12128 = vmatpush1.bf16.msra.mxu0 %v10340
    %12129 = vmatprep.subr.bf16.mxu0 %v10349
    %12130 = vmatpush1.bf16.msra.mxu0 %v10348
    %12131 = vmatprep.subr.bf16.mxu0 %v10357
    %12132 = vmatpush1.bf16.msra.mxu0 %v10356
    %12133 = vmatprep.subr.bf16.mxu0 %v10365
    %12134 = vmatpush1.bf16.msra.mxu0 %v10364
    %12135 = vmatprep.subr.bf16.mxu0 %v10373
    %12136 = vmatpush1.bf16.msra.mxu0 %v10372
    %12137 = vmatprep.subr.bf16.mxu0 %v10381
    %12138 = vmatpush1.bf16.msra.mxu0 %v10380
    %12139 = vmatprep.subr.bf16.mxu0 %v10389
    %12140 = vmatpush1.bf16.msra.mxu0 %v10388
    %12141 = vmatprep.subr.bf16.mxu0 %v10397
    %12142 = vmatpush1.bf16.msra.mxu0 %v10396
    %12143 = vmatprep.subr.bf16.mxu0 %v10405
    %12144 = vmatpush1.bf16.msra.mxu0 %v10404
    %12145 = vmatprep.subr.bf16.mxu0 %v10413
    %12146 = vmatpush1.bf16.msra.mxu0 %v10412
    %12147 = vmatprep.subr.bf16.mxu0 %v10421
    %12148 = vmatpush1.bf16.msra.mxu0 %v10420
    %12149 = vmatprep.subr.bf16.mxu0 %v10429
    %12150 = vmatpush1.bf16.msra.mxu0 %v10428
    %12151 = vmatprep.subr.bf16.mxu0 %v10437
    %12152 = vmatpush1.bf16.msra.mxu0 %v10436
    %12153 = vmatprep.subr.bf16.mxu0 %v10445
    %12154 = vmatpush1.bf16.msra.mxu0 %v10444
    %12155 = vmatprep.subr.bf16.mxu0 %v10453
    %12156 = vmatpush1.bf16.msra.mxu0 %v10452
    %12157 = vmatprep.subr.bf16.mxu0 %v10461
    %12158 = vmatpush1.bf16.msra.mxu0 %v10460
    %12159 = vmatprep.mubr.bf16.mxu0 %v6834
    %12160 = vmatmul.mubr.bf16.gmra.mrb[0].mxu0 %v6833
    %v12161 = vpop.f32.mrb[0].mxu0
    %v12162 = vadd.f32 %v12121, %v12161
    %v12163 = vpop.f32.mrb[0].mxu0
    %v12164 = vadd.f32 %v12123, %v12163
    %v12165 = vpop.f32.mrb[0].mxu0
    %v12166 = vpop.f32.mrb[0].mxu0
    %12167 = vdwg.mxu0
    %12168 = vmatprep.subr.bf16.mxu0 %v10469
    %12169 = vmatpush1.bf16.msra.mxu0 %v10468
    %12170 = vmatprep.subr.bf16.mxu0 %v10477
    %12171 = vmatpush1.bf16.msra.mxu0 %v10476
    %12172 = vmatprep.subr.bf16.mxu0 %v10485
    %12173 = vmatpush1.bf16.msra.mxu0 %v10484
    %12174 = vmatprep.subr.bf16.mxu0 %v10493
    %12175 = vmatpush1.bf16.msra.mxu0 %v10492
    %12176 = vmatprep.subr.bf16.mxu0 %v10501
    %12177 = vmatpush1.bf16.msra.mxu0 %v10500
    %12178 = vmatprep.subr.bf16.mxu0 %v10509
    %12179 = vmatpush1.bf16.msra.mxu0 %v10508
    %12180 = vmatprep.subr.bf16.mxu0 %v10517
    %12181 = vmatpush1.bf16.msra.mxu0 %v10516
    %12182 = vmatprep.subr.bf16.mxu0 %v10525
    %12183 = vmatpush1.bf16.msra.mxu0 %v10524
    %12184 = vmatprep.subr.bf16.mxu0 %v10533
    %12185 = vmatpush1.bf16.msra.mxu0 %v10532
    %12186 = vmatprep.subr.bf16.mxu0 %v10541
    %12187 = vmatpush1.bf16.msra.mxu0 %v10540
    %12188 = vmatprep.subr.bf16.mxu0 %v10549
    %12189 = vmatpush1.bf16.msra.mxu0 %v10548
    %12190 = vmatprep.subr.bf16.mxu0 %v10557
    %12191 = vmatpush1.bf16.msra.mxu0 %v10556
    %12192 = vmatprep.subr.bf16.mxu0 %v10565
    %12193 = vmatpush1.bf16.msra.mxu0 %v10564
    %12194 = vmatprep.subr.bf16.mxu0 %v10573
    %12195 = vmatpush1.bf16.msra.mxu0 %v10572
    %12196 = vmatprep.subr.bf16.mxu0 %v10581
    %12197 = vmatpush1.bf16.msra.mxu0 %v10580
    %12198 = vmatprep.subr.bf16.mxu0 %v10589
    %12199 = vmatpush1.bf16.msra.mxu0 %v10588
    %12200 = vmatprep.mubr.bf16.mxu0 %v6836
    %12201 = vmatmul.mubr.bf16.gmra.mrb[0].mxu0 %v6835
    %v12202 = vpop.f32.mrb[0].mxu0
    %v12203 = vadd.f32 %v12162, %v12202
    %v12204 = vpop.f32.mrb[0].mxu0
    %v12205 = vadd.f32 %v12164, %v12204
    %v12206 = vpop.f32.mrb[0].mxu0
    %v12207 = vpop.f32.mrb[0].mxu0
    %12208 = vdwg.mxu0
    %12209 = vmatprep.subr.bf16.mxu0 %v10597
    %12210 = vmatpush1.bf16.msra.mxu0 %v10596
    %12211 = vmatprep.subr.bf16.mxu0 %v10605
    %12212 = vmatpush1.bf16.msra.mxu0 %v10604
    %12213 = vmatprep.subr.bf16.mxu0 %v10613
    %12214 = vmatpush1.bf16.msra.mxu0 %v10612
    %12215 = vmatprep.subr.bf16.mxu0 %v10621
    %12216 = vmatpush1.bf16.msra.mxu0 %v10620
    %12217 = vmatprep.subr.bf16.mxu0 %v10629
    %12218 = vmatpush1.bf16.msra.mxu0 %v10628
    %12219 = vmatprep.subr.bf16.mxu0 %v10637
    %12220 = vmatpush1.bf16.msra.mxu0 %v10636
    %12221 = vmatprep.subr.bf16.mxu0 %v10645
    %12222 = vmatpush1.bf16.msra.mxu0 %v10644
    %12223 = vmatprep.subr.bf16.mxu0 %v10653
    %12224 = vmatpush1.bf16.msra.mxu0 %v10652
    %12225 = vmatprep.subr.bf16.mxu0 %v10661
    %12226 = vmatpush1.bf16.msra.mxu0 %v10660
    %12227 = vmatprep.subr.bf16.mxu0 %v10669
    %12228 = vmatpush1.bf16.msra.mxu0 %v10668
    %12229 = vmatprep.subr.bf16.mxu0 %v10677
    %12230 = vmatpush1.bf16.msra.mxu0 %v10676
    %12231 = vmatprep.subr.bf16.mxu0 %v10685
    %12232 = vmatpush1.bf16.msra.mxu0 %v10684
    %12233 = vmatprep.subr.bf16.mxu0 %v10693
    %12234 = vmatpush1.bf16.msra.mxu0 %v10692
    %12235 = vmatprep.subr.bf16.mxu0 %v10701
    %12236 = vmatpush1.bf16.msra.mxu0 %v10700
    %12237 = vmatprep.subr.bf16.mxu0 %v10709
    %12238 = vmatpush1.bf16.msra.mxu0 %v10708
    %12239 = vmatprep.subr.bf16.mxu0 %v10717
    %12240 = vmatpush1.bf16.msra.mxu0 %v10716
    %12241 = vmatprep.mubr.bf16.mxu0 %v6838
    %12242 = vmatmul.mubr.bf16.gmra.mrb[0].mxu0 %v6837
    %v12243 = vpop.f32.mrb[0].mxu0
    %v12244 = vadd.f32 %v12203, %v12243
    %v12245 = vpop.f32.mrb[0].mxu0
    %v12246 = vadd.f32 %v12205, %v12245
    %v12247 = vpop.f32.mrb[0].mxu0
    %v12248 = vpop.f32.mrb[0].mxu0
    %12249 = vdwg.mxu0
    %12250 = vmatprep.subr.bf16.mxu0 %v10725
    %12251 = vmatpush1.bf16.msra.mxu0 %v10724
    %12252 = vmatprep.subr.bf16.mxu0 %v10733
    %12253 = vmatpush1.bf16.msra.mxu0 %v10732
    %12254 = vmatprep.subr.bf16.mxu0 %v10741
    %12255 = vmatpush1.bf16.msra.mxu0 %v10740
    %12256 = vmatprep.subr.bf16.mxu0 %v10749
    %12257 = vmatpush1.bf16.msra.mxu0 %v10748
    %12258 = vmatprep.subr.bf16.mxu0 %v10757
    %12259 = vmatpush1.bf16.msra.mxu0 %v10756
    %12260 = vmatprep.subr.bf16.mxu0 %v10765
    %12261 = vmatpush1.bf16.msra.mxu0 %v10764
    %12262 = vmatprep.subr.bf16.mxu0 %v10773
    %12263 = vmatpush1.bf16.msra.mxu0 %v10772
    %12264 = vmatprep.subr.bf16.mxu0 %v10781
    %12265 = vmatpush1.bf16.msra.mxu0 %v10780
    %12266 = vmatprep.subr.bf16.mxu0 %v10789
    %12267 = vmatpush1.bf16.msra.mxu0 %v10788
    %12268 = vmatprep.subr.bf16.mxu0 %v10797
    %12269 = vmatpush1.bf16.msra.mxu0 %v10796
    %12270 = vmatprep.subr.bf16.mxu0 %v10805
    %12271 = vmatpush1.bf16.msra.mxu0 %v10804
    %12272 = vmatprep.subr.bf16.mxu0 %v10813
    %12273 = vmatpush1.bf16.msra.mxu0 %v10812
    %12274 = vmatprep.subr.bf16.mxu0 %v10821
    %12275 = vmatpush1.bf16.msra.mxu0 %v10820
    %12276 = vmatprep.subr.bf16.mxu0 %v10829
    %12277 = vmatpush1.bf16.msra.mxu0 %v10828
    %12278 = vmatprep.subr.bf16.mxu0 %v10837
    %12279 = vmatpush1.bf16.msra.mxu0 %v10836
    %12280 = vmatprep.subr.bf16.mxu0 %v10845
    %12281 = vmatpush1.bf16.msra.mxu0 %v10844
    %12282 = vmatprep.mubr.bf16.mxu0 %v6840
    %12283 = vmatmul.mubr.bf16.gmra.mrb[0].mxu0 %v6839
    %v12284 = vpop.f32.mrb[0].mxu0
    %v12285 = vadd.f32 %v12244, %v12284
    %v12286 = vpop.f32.mrb[0].mxu0
    %v12287 = vadd.f32 %v12246, %v12286
    %v12288 = vpop.f32.mrb[0].mxu0
    %v12289 = vpop.f32.mrb[0].mxu0
    %12290 = vdwg.mxu0
    %12291 = vmatprep.subr.bf16.mxu0 %v10853
    %12292 = vmatpush1.bf16.msra.mxu0 %v10852
    %12293 = vmatprep.subr.bf16.mxu0 %v10861
    %12294 = vmatpush1.bf16.msra.mxu0 %v10860
    %12295 = vmatprep.subr.bf16.mxu0 %v10869
    %12296 = vmatpush1.bf16.msra.mxu0 %v10868
    %12297 = vmatprep.subr.bf16.mxu0 %v10877
    %12298 = vmatpush1.bf16.msra.mxu0 %v10876
    %12299 = vmatprep.subr.bf16.mxu0 %v10885
    %12300 = vmatpush1.bf16.msra.mxu0 %v10884
    %12301 = vmatprep.subr.bf16.mxu0 %v10893
    %12302 = vmatpush1.bf16.msra.mxu0 %v10892
    %12303 = vmatprep.subr.bf16.mxu0 %v10901
    %12304 = vmatpush1.bf16.msra.mxu0 %v10900
    %12305 = vmatprep.subr.bf16.mxu0 %v10909
    %12306 = vmatpush1.bf16.msra.mxu0 %v10908
    %12307 = vmatprep.subr.bf16.mxu0 %v10917
    %12308 = vmatpush1.bf16.msra.mxu0 %v10916
    %12309 = vmatprep.subr.bf16.mxu0 %v10925
    %12310 = vmatpush1.bf16.msra.mxu0 %v10924
    %12311 = vmatprep.subr.bf16.mxu0 %v10933
    %12312 = vmatpush1.bf16.msra.mxu0 %v10932
    %12313 = vmatprep.subr.bf16.mxu0 %v10941
    %12314 = vmatpush1.bf16.msra.mxu0 %v10940
    %12315 = vmatprep.subr.bf16.mxu0 %v10949
    %12316 = vmatpush1.bf16.msra.mxu0 %v10948
    %12317 = vmatprep.subr.bf16.mxu0 %v10957
    %12318 = vmatpush1.bf16.msra.mxu0 %v10956
    %12319 = vmatprep.subr.bf16.mxu0 %v10965
    %12320 = vmatpush1.bf16.msra.mxu0 %v10964
    %12321 = vmatprep.subr.bf16.mxu0 %v10973
    %12322 = vmatpush1.bf16.msra.mxu0 %v10972
    %12323 = vmatprep.mubr.bf16.mxu0 %v6842
    %12324 = vmatmul.mubr.bf16.gmra.mrb[0].mxu0 %v6841
    %v12325 = vpop.f32.mrb[0].mxu0
    %v12326 = vadd.f32 %v12285, %v12325
    %v12327 = vpop.f32.mrb[0].mxu0
    %v12328 = vadd.f32 %v12287, %v12327
    %v12329 = vpop.f32.mrb[0].mxu0
    %v12330 = vpop.f32.mrb[0].mxu0
    %12331 = vdwg.mxu0
    %12332 = vmatprep.subr.bf16.mxu0 %v9959
    %12333 = vmatpush1.bf16.msra.mxu0 %v9958
    %12334 = vmatprep.subr.bf16.mxu0 %v9967
    %12335 = vmatpush1.bf16.msra.mxu0 %v9966
    %12336 = vmatprep.subr.bf16.mxu0 %v9975
    %12337 = vmatpush1.bf16.msra.mxu0 %v9974
    %12338 = vmatprep.subr.bf16.mxu0 %v9983
    %12339 = vmatpush1.bf16.msra.mxu0 %v9982
    %12340 = vmatprep.subr.bf16.mxu0 %v9991
    %12341 = vmatpush1.bf16.msra.mxu0 %v9990
    %12342 = vmatprep.subr.bf16.mxu0 %v9999
    %12343 = vmatpush1.bf16.msra.mxu0 %v9998
    %12344 = vmatprep.subr.bf16.mxu0 %v10007
    %12345 = vmatpush1.bf16.msra.mxu0 %v10006
    %12346 = vmatprep.subr.bf16.mxu0 %v10015
    %12347 = vmatpush1.bf16.msra.mxu0 %v10014
    %12348 = vmatprep.subr.bf16.mxu0 %v10023
    %12349 = vmatpush1.bf16.msra.mxu0 %v10022
    %12350 = vmatprep.subr.bf16.mxu0 %v10031
    %12351 = vmatpush1.bf16.msra.mxu0 %v10030
    %12352 = vmatprep.subr.bf16.mxu0 %v10039
    %12353 = vmatpush1.bf16.msra.mxu0 %v10038
    %12354 = vmatprep.subr.bf16.mxu0 %v10047
    %12355 = vmatpush1.bf16.msra.mxu0 %v10046
    %12356 = vmatprep.subr.bf16.mxu0 %v10055
    %12357 = vmatpush1.bf16.msra.mxu0 %v10054
    %12358 = vmatprep.subr.bf16.mxu0 %v10063
    %12359 = vmatpush1.bf16.msra.mxu0 %v10062
    %12360 = vmatprep.subr.bf16.mxu0 %v10071
    %12361 = vmatpush1.bf16.msra.mxu0 %v10070
    %12362 = vmatprep.subr.bf16.mxu0 %v10079
    %12363 = vmatpush1.bf16.msra.mxu0 %v10078
    %12364 = vmatprep.mubr.bf16.mxu0 %v6828
    %12365 = vmatmul.mubr.bf16.gmra.mrb[0].mxu0 %v6827
    %v12366 = vpop.f32.mrb[0].mxu0
    %v12367 = vadd.f32 %v6855, %v12366
    %v12368 = vpop.f32.mrb[0].mxu0
    %v12369 = vadd.f32 %v6859, %v12368
    %v12370 = vpop.f32.mrb[0].mxu0
    %v12371 = vpop.f32.mrb[0].mxu0
    %12372 = vdwg.mxu0
    %12373 = vmatprep.subr.bf16.mxu0 %v10087
    %12374 = vmatpush1.bf16.msra.mxu0 %v10086
    %12375 = vmatprep.subr.bf16.mxu0 %v10095
    %12376 = vmatpush1.bf16.msra.mxu0 %v10094
    %12377 = vmatprep.subr.bf16.mxu0 %v10103
    %12378 = vmatpush1.bf16.msra.mxu0 %v10102
    %12379 = vmatprep.subr.bf16.mxu0 %v10111
    %12380 = vmatpush1.bf16.msra.mxu0 %v10110
    %12381 = vmatprep.subr.bf16.mxu0 %v10119
    %12382 = vmatpush1.bf16.msra.mxu0 %v10118
    %12383 = vmatprep.subr.bf16.mxu0 %v10127
    %12384 = vmatpush1.bf16.msra.mxu0 %v10126
    %12385 = vmatprep.subr.bf16.mxu0 %v10135
    %12386 = vmatpush1.bf16.msra.mxu0 %v10134
    %12387 = vmatprep.subr.bf16.mxu0 %v10143
    %12388 = vmatpush1.bf16.msra.mxu0 %v10142
    %12389 = vmatprep.subr.bf16.mxu0 %v10151
    %12390 = vmatpush1.bf16.msra.mxu0 %v10150
    %12391 = vmatprep.subr.bf16.mxu0 %v10159
    %12392 = vmatpush1.bf16.msra.mxu0 %v10158
    %12393 = vmatprep.subr.bf16.mxu0 %v10167
    %12394 = vmatpush1.bf16.msra.mxu0 %v10166
    %12395 = vmatprep.subr.bf16.mxu0 %v10175
    %12396 = vmatpush1.bf16.msra.mxu0 %v10174
    %12397 = vmatprep.subr.bf16.mxu0 %v10183
    %12398 = vmatpush1.bf16.msra.mxu0 %v10182
    %12399 = vmatprep.subr.bf16.mxu0 %v10191
    %12400 = vmatpush1.bf16.msra.mxu0 %v10190
    %12401 = vmatprep.subr.bf16.mxu0 %v10199
    %12402 = vmatpush1.bf16.msra.mxu0 %v10198
    %12403 = vmatprep.subr.bf16.mxu0 %v10207
    %12404 = vmatpush1.bf16.msra.mxu0 %v10206
    %12405 = vmatprep.mubr.bf16.mxu0 %v6830
    %12406 = vmatmul.mubr.bf16.gmra.mrb[0].mxu0 %v6829
    %v12407 = vpop.f32.mrb[0].mxu0
    %v12408 = vadd.f32 %v12367, %v12407
    %v12409 = vpop.f32.mrb[0].mxu0
    %v12410 = vadd.f32 %v12369, %v12409
    %v12411 = vpop.f32.mrb[0].mxu0
    %v12412 = vpop.f32.mrb[0].mxu0
    %12413 = vdwg.mxu0
    %12414 = vmatprep.subr.bf16.mxu0 %v10215
    %12415 = vmatpush1.bf16.msra.mxu0 %v10214
    %12416 = vmatprep.subr.bf16.mxu0 %v10223
    %12417 = vmatpush1.bf16.msra.mxu0 %v10222
    %12418 = vmatprep.subr.bf16.mxu0 %v10231
    %12419 = vmatpush1.bf16.msra.mxu0 %v10230
    %12420 = vmatprep.subr.bf16.mxu0 %v10239
    %12421 = vmatpush1.bf16.msra.mxu0 %v10238
    %12422 = vmatprep.subr.bf16.mxu0 %v10247
    %12423 = vmatpush1.bf16.msra.mxu0 %v10246
    %12424 = vmatprep.subr.bf16.mxu0 %v10255
    %12425 = vmatpush1.bf16.msra.mxu0 %v10254
    %12426 = vmatprep.subr.bf16.mxu0 %v10263
    %12427 = vmatpush1.bf16.msra.mxu0 %v10262
    %12428 = vmatprep.subr.bf16.mxu0 %v10271
    %12429 = vmatpush1.bf16.msra.mxu0 %v10270
    %12430 = vmatprep.subr.bf16.mxu0 %v10279
    %12431 = vmatpush1.bf16.msra.mxu0 %v10278
    %12432 = vmatprep.subr.bf16.mxu0 %v10287
    %12433 = vmatpush1.bf16.msra.mxu0 %v10286
    %12434 = vmatprep.subr.bf16.mxu0 %v10295
    %12435 = vmatpush1.bf16.msra.mxu0 %v10294
    %12436 = vmatprep.subr.bf16.mxu0 %v10303
    %12437 = vmatpush1.bf16.msra.mxu0 %v10302
    %12438 = vmatprep.subr.bf16.mxu0 %v10311
    %12439 = vmatpush1.bf16.msra.mxu0 %v10310
    %12440 = vmatprep.subr.bf16.mxu0 %v10319
    %12441 = vmatpush1.bf16.msra.mxu0 %v10318
    %12442 = vmatprep.subr.bf16.mxu0 %v10327
    %12443 = vmatpush1.bf16.msra.mxu0 %v10326
    %12444 = vmatprep.subr.bf16.mxu0 %v10335
    %12445 = vmatpush1.bf16.msra.mxu0 %v10334
    %12446 = vmatprep.mubr.bf16.mxu0 %v6832
    %12447 = vmatmul.mubr.bf16.gmra.mrb[0].mxu0 %v6831
    %v12448 = vpop.f32.mrb[0].mxu0
    %v12449 = vadd.f32 %v12408, %v12448
    %v12450 = vpop.f32.mrb[0].mxu0
    %v12451 = vadd.f32 %v12410, %v12450
    %v12452 = vpop.f32.mrb[0].mxu0
    %v12453 = vpop.f32.mrb[0].mxu0
    %12454 = vdwg.mxu0
    %12455 = vmatprep.subr.bf16.mxu0 %v10343
    %12456 = vmatpush1.bf16.msra.mxu0 %v10342
    %12457 = vmatprep.subr.bf16.mxu0 %v10351
    %12458 = vmatpush1.bf16.msra.mxu0 %v10350
    %12459 = vmatprep.subr.bf16.mxu0 %v10359
    %12460 = vmatpush1.bf16.msra.mxu0 %v10358
    %12461 = vmatprep.subr.bf16.mxu0 %v10367
    %12462 = vmatpush1.bf16.msra.mxu0 %v10366
    %12463 = vmatprep.subr.bf16.mxu0 %v10375
    %12464 = vmatpush1.bf16.msra.mxu0 %v10374
    %12465 = vmatprep.subr.bf16.mxu0 %v10383
    %12466 = vmatpush1.bf16.msra.mxu0 %v10382
    %12467 = vmatprep.subr.bf16.mxu0 %v10391
    %12468 = vmatpush1.bf16.msra.mxu0 %v10390
    %12469 = vmatprep.subr.bf16.mxu0 %v10399
    %12470 = vmatpush1.bf16.msra.mxu0 %v10398
    %12471 = vmatprep.subr.bf16.mxu0 %v10407
    %12472 = vmatpush1.bf16.msra.mxu0 %v10406
    %12473 = vmatprep.subr.bf16.mxu0 %v10415
    %12474 = vmatpush1.bf16.msra.mxu0 %v10414
    %12475 = vmatprep.subr.bf16.mxu0 %v10423
    %12476 = vmatpush1.bf16.msra.mxu0 %v10422
    %12477 = vmatprep.subr.bf16.mxu0 %v10431
    %12478 = vmatpush1.bf16.msra.mxu0 %v10430
    %12479 = vmatprep.subr.bf16.mxu0 %v10439
    %12480 = vmatpush1.bf16.msra.mxu0 %v10438
    %12481 = vmatprep.subr.bf16.mxu0 %v10447
    %12482 = vmatpush1.bf16.msra.mxu0 %v10446
    %12483 = vmatprep.subr.bf16.mxu0 %v10455
    %12484 = vmatpush1.bf16.msra.mxu0 %v10454
    %12485 = vmatprep.subr.bf16.mxu0 %v10463
    %12486 = vmatpush1.bf16.msra.mxu0 %v10462
    %12487 = vmatprep.mubr.bf16.mxu0 %v6834
    %12488 = vmatmul.mubr.bf16.gmra.mrb[0].mxu0 %v6833
    %v12489 = vpop.f32.mrb[0].mxu0
    %v12490 = vadd.f32 %v12449, %v12489
    %v12491 = vpop.f32.mrb[0].mxu0
    %v12492 = vadd.f32 %v12451, %v12491
    %v12493 = vpop.f32.mrb[0].mxu0
    %v12494 = vpop.f32.mrb[0].mxu0
    %12495 = vdwg.mxu0
    %12496 = vmatprep.subr.bf16.mxu0 %v10471
    %12497 = vmatpush1.bf16.msra.mxu0 %v10470
    %12498 = vmatprep.subr.bf16.mxu0 %v10479
    %12499 = vmatpush1.bf16.msra.mxu0 %v10478
    %12500 = vmatprep.subr.bf16.mxu0 %v10487
    %12501 = vmatpush1.bf16.msra.mxu0 %v10486
    %12502 = vmatprep.subr.bf16.mxu0 %v10495
    %12503 = vmatpush1.bf16.msra.mxu0 %v10494
    %12504 = vmatprep.subr.bf16.mxu0 %v10503
    %12505 = vmatpush1.bf16.msra.mxu0 %v10502
    %12506 = vmatprep.subr.bf16.mxu0 %v10511
    %12507 = vmatpush1.bf16.msra.mxu0 %v10510
    %12508 = vmatprep.subr.bf16.mxu0 %v10519
    %12509 = vmatpush1.bf16.msra.mxu0 %v10518
    %12510 = vmatprep.subr.bf16.mxu0 %v10527
    %12511 = vmatpush1.bf16.msra.mxu0 %v10526
    %12512 = vmatprep.subr.bf16.mxu0 %v10535
    %12513 = vmatpush1.bf16.msra.mxu0 %v10534
    %12514 = vmatprep.subr.bf16.mxu0 %v10543
    %12515 = vmatpush1.bf16.msra.mxu0 %v10542
    %12516 = vmatprep.subr.bf16.mxu0 %v10551
    %12517 = vmatpush1.bf16.msra.mxu0 %v10550
    %12518 = vmatprep.subr.bf16.mxu0 %v10559
    %12519 = vmatpush1.bf16.msra.mxu0 %v10558
    %12520 = vmatprep.subr.bf16.mxu0 %v10567
    %12521 = vmatpush1.bf16.msra.mxu0 %v10566
    %12522 = vmatprep.subr.bf16.mxu0 %v10575
    %12523 = vmatpush1.bf16.msra.mxu0 %v10574
    %12524 = vmatprep.subr.bf16.mxu0 %v10583
    %12525 = vmatpush1.bf16.msra.mxu0 %v10582
    %12526 = vmatprep.subr.bf16.mxu0 %v10591
    %12527 = vmatpush1.bf16.msra.mxu0 %v10590
    %12528 = vmatprep.mubr.bf16.mxu0 %v6836
    %12529 = vmatmul.mubr.bf16.gmra.mrb[0].mxu0 %v6835
    %v12530 = vpop.f32.mrb[0].mxu0
    %v12531 = vadd.f32 %v12490, %v12530
    %v12532 = vpop.f32.mrb[0].mxu0
    %v12533 = vadd.f32 %v12492, %v12532
    %v12534 = vpop.f32.mrb[0].mxu0
    %v12535 = vpop.f32.mrb[0].mxu0
    %12536 = vdwg.mxu0
    %12537 = vmatprep.subr.bf16.mxu0 %v10599
    %12538 = vmatpush1.bf16.msra.mxu0 %v10598
    %12539 = vmatprep.subr.bf16.mxu0 %v10607
    %12540 = vmatpush1.bf16.msra.mxu0 %v10606
    %12541 = vmatprep.subr.bf16.mxu0 %v10615
    %12542 = vmatpush1.bf16.msra.mxu0 %v10614
    %12543 = vmatprep.subr.bf16.mxu0 %v10623
    %12544 = vmatpush1.bf16.msra.mxu0 %v10622
    %12545 = vmatprep.subr.bf16.mxu0 %v10631
    %12546 = vmatpush1.bf16.msra.mxu0 %v10630
    %12547 = vmatprep.subr.bf16.mxu0 %v10639
    %12548 = vmatpush1.bf16.msra.mxu0 %v10638
    %12549 = vmatprep.subr.bf16.mxu0 %v10647
    %12550 = vmatpush1.bf16.msra.mxu0 %v10646
    %12551 = vmatprep.subr.bf16.mxu0 %v10655
    %12552 = vmatpush1.bf16.msra.mxu0 %v10654
    %12553 = vmatprep.subr.bf16.mxu0 %v10663
    %12554 = vmatpush1.bf16.msra.mxu0 %v10662
    %12555 = vmatprep.subr.bf16.mxu0 %v10671
    %12556 = vmatpush1.bf16.msra.mxu0 %v10670
    %12557 = vmatprep.subr.bf16.mxu0 %v10679
    %12558 = vmatpush1.bf16.msra.mxu0 %v10678
    %12559 = vmatprep.subr.bf16.mxu0 %v10687
    %12560 = vmatpush1.bf16.msra.mxu0 %v10686
    %12561 = vmatprep.subr.bf16.mxu0 %v10695
    %12562 = vmatpush1.bf16.msra.mxu0 %v10694
    %12563 = vmatprep.subr.bf16.mxu0 %v10703
    %12564 = vmatpush1.bf16.msra.mxu0 %v10702
    %12565 = vmatprep.subr.bf16.mxu0 %v10711
    %12566 = vmatpush1.bf16.msra.mxu0 %v10710
    %12567 = vmatprep.subr.bf16.mxu0 %v10719
    %12568 = vmatpush1.bf16.msra.mxu0 %v10718
    %12569 = vmatprep.mubr.bf16.mxu0 %v6838
    %12570 = vmatmul.mubr.bf16.gmra.mrb[0].mxu0 %v6837
    %v12571 = vpop.f32.mrb[0].mxu0
    %v12572 = vadd.f32 %v12531, %v12571
    %v12573 = vpop.f32.mrb[0].mxu0
    %v12574 = vadd.f32 %v12533, %v12573
    %v12575 = vpop.f32.mrb[0].mxu0
    %v12576 = vpop.f32.mrb[0].mxu0
    %12577 = vdwg.mxu0
    %12578 = vmatprep.subr.bf16.mxu0 %v10727
    %12579 = vmatpush1.bf16.msra.mxu0 %v10726
    %12580 = vmatprep.subr.bf16.mxu0 %v10735
    %12581 = vmatpush1.bf16.msra.mxu0 %v10734
    %12582 = vmatprep.subr.bf16.mxu0 %v10743
    %12583 = vmatpush1.bf16.msra.mxu0 %v10742
    %12584 = vmatprep.subr.bf16.mxu0 %v10751
    %12585 = vmatpush1.bf16.msra.mxu0 %v10750
    %12586 = vmatprep.subr.bf16.mxu0 %v10759
    %12587 = vmatpush1.bf16.msra.mxu0 %v10758
    %12588 = vmatprep.subr.bf16.mxu0 %v10767
    %12589 = vmatpush1.bf16.msra.mxu0 %v10766
    %12590 = vmatprep.subr.bf16.mxu0 %v10775
    %12591 = vmatpush1.bf16.msra.mxu0 %v10774
    %12592 = vmatprep.subr.bf16.mxu0 %v10783
    %12593 = vmatpush1.bf16.msra.mxu0 %v10782
    %12594 = vmatprep.subr.bf16.mxu0 %v10791
    %12595 = vmatpush1.bf16.msra.mxu0 %v10790
    %12596 = vmatprep.subr.bf16.mxu0 %v10799
    %12597 = vmatpush1.bf16.msra.mxu0 %v10798
    %12598 = vmatprep.subr.bf16.mxu0 %v10807
    %12599 = vmatpush1.bf16.msra.mxu0 %v10806
    %12600 = vmatprep.subr.bf16.mxu0 %v10815
    %12601 = vmatpush1.bf16.msra.mxu0 %v10814
    %12602 = vmatprep.subr.bf16.mxu0 %v10823
    %12603 = vmatpush1.bf16.msra.mxu0 %v10822
    %12604 = vmatprep.subr.bf16.mxu0 %v10831
    %12605 = vmatpush1.bf16.msra.mxu0 %v10830
    %12606 = vmatprep.subr.bf16.mxu0 %v10839
    %12607 = vmatpush1.bf16.msra.mxu0 %v10838
    %12608 = vmatprep.subr.bf16.mxu0 %v10847
    %12609 = vmatpush1.bf16.msra.mxu0 %v10846
    %12610 = vmatprep.mubr.bf16.mxu0 %v6840
    %12611 = vmatmul.mubr.bf16.gmra.mrb[0].mxu0 %v6839
    %v12612 = vpop.f32.mrb[0].mxu0
    %v12613 = vadd.f32 %v12572, %v12612
    %v12614 = vpop.f32.mrb[0].mxu0
    %v12615 = vadd.f32 %v12574, %v12614
    %v12616 = vpop.f32.mrb[0].mxu0
    %v12617 = vpop.f32.mrb[0].mxu0
    %12618 = vdwg.mxu0
    %12619 = vmatprep.subr.bf16.mxu0 %v10855
    %12620 = vmatpush1.bf16.msra.mxu0 %v10854
    %12621 = vmatprep.subr.bf16.mxu0 %v10863
    %12622 = vmatpush1.bf16.msra.mxu0 %v10862
    %12623 = vmatprep.subr.bf16.mxu0 %v10871
    %12624 = vmatpush1.bf16.msra.mxu0 %v10870
    %12625 = vmatprep.subr.bf16.mxu0 %v10879
    %12626 = vmatpush1.bf16.msra.mxu0 %v10878
    %12627 = vmatprep.subr.bf16.mxu0 %v10887
    %12628 = vmatpush1.bf16.msra.mxu0 %v10886
    %12629 = vmatprep.subr.bf16.mxu0 %v10895
    %12630 = vmatpush1.bf16.msra.mxu0 %v10894
    %12631 = vmatprep.subr.bf16.mxu0 %v10903
    %12632 = vmatpush1.bf16.msra.mxu0 %v10902
    %12633 = vmatprep.subr.bf16.mxu0 %v10911
    %12634 = vmatpush1.bf16.msra.mxu0 %v10910
    %12635 = vmatprep.subr.bf16.mxu0 %v10919
    %12636 = vmatpush1.bf16.msra.mxu0 %v10918
    %12637 = vmatprep.subr.bf16.mxu0 %v10927
    %12638 = vmatpush1.bf16.msra.mxu0 %v10926
    %12639 = vmatprep.subr.bf16.mxu0 %v10935
    %12640 = vmatpush1.bf16.msra.mxu0 %v10934
    %12641 = vmatprep.subr.bf16.mxu0 %v10943
    %12642 = vmatpush1.bf16.msra.mxu0 %v10942
    %12643 = vmatprep.subr.bf16.mxu0 %v10951
    %12644 = vmatpush1.bf16.msra.mxu0 %v10950
    %12645 = vmatprep.subr.bf16.mxu0 %v10959
    %12646 = vmatpush1.bf16.msra.mxu0 %v10958
    %12647 = vmatprep.subr.bf16.mxu0 %v10967
    %12648 = vmatpush1.bf16.msra.mxu0 %v10966
    %12649 = vmatprep.subr.bf16.mxu0 %v10975
    %12650 = vmatpush1.bf16.msra.mxu0 %v10974
    %12651 = vmatprep.mubr.bf16.mxu0 %v6842
    %12652 = vmatmul.mubr.bf16.gmra.mrb[0].mxu0 %v6841
    %v12653 = vpop.f32.mrb[0].mxu0
    %v12654 = vadd.f32 %v12613, %v12653
    %v12655 = vpop.f32.mrb[0].mxu0
    %v12656 = vadd.f32 %v12615, %v12655
    %v12657 = vpop.f32.mrb[0].mxu0
    %v12658 = vpop.f32.mrb[0].mxu0
    %12659 = vdwg.mxu0
    %12660 = vmatprep.subr.bf16.mxu0 %v9961
    %12661 = vmatpush1.bf16.msra.mxu0 %v9960
    %12662 = vmatprep.subr.bf16.mxu0 %v9969
    %12663 = vmatpush1.bf16.msra.mxu0 %v9968
    %12664 = vmatprep.subr.bf16.mxu0 %v9977
    %12665 = vmatpush1.bf16.msra.mxu0 %v9976
    %12666 = vmatprep.subr.bf16.mxu0 %v9985
    %12667 = vmatpush1.bf16.msra.mxu0 %v9984
    %12668 = vmatprep.subr.bf16.mxu0 %v9993
    %12669 = vmatpush1.bf16.msra.mxu0 %v9992
    %12670 = vmatprep.subr.bf16.mxu0 %v10001
    %12671 = vmatpush1.bf16.msra.mxu0 %v10000
    %12672 = vmatprep.subr.bf16.mxu0 %v10009
    %12673 = vmatpush1.bf16.msra.mxu0 %v10008
    %12674 = vmatprep.subr.bf16.mxu0 %v10017
    %12675 = vmatpush1.bf16.msra.mxu0 %v10016
    %12676 = vmatprep.subr.bf16.mxu0 %v10025
    %12677 = vmatpush1.bf16.msra.mxu0 %v10024
    %12678 = vmatprep.subr.bf16.mxu0 %v10033
    %12679 = vmatpush1.bf16.msra.mxu0 %v10032
    %12680 = vmatprep.subr.bf16.mxu0 %v10041
    %12681 = vmatpush1.bf16.msra.mxu0 %v10040
    %12682 = vmatprep.subr.bf16.mxu0 %v10049
    %12683 = vmatpush1.bf16.msra.mxu0 %v10048
    %12684 = vmatprep.subr.bf16.mxu0 %v10057
    %12685 = vmatpush1.bf16.msra.mxu0 %v10056
    %12686 = vmatprep.subr.bf16.mxu0 %v10065
    %12687 = vmatpush1.bf16.msra.mxu0 %v10064
    %12688 = vmatprep.subr.bf16.mxu0 %v10073
    %12689 = vmatpush1.bf16.msra.mxu0 %v10072
    %12690 = vmatprep.subr.bf16.mxu0 %v10081
    %12691 = vmatpush1.bf16.msra.mxu0 %v10080
    %12692 = vmatprep.mubr.bf16.mxu0 %v6828
    %12693 = vmatmul.mubr.bf16.gmra.mrb[0].mxu0 %v6827
    %v12694 = vpop.f32.mrb[0].mxu0
    %v12695 = vadd.f32 %v6863, %v12694
    %v12696 = vpop.f32.mrb[0].mxu0
    %v12697 = vadd.f32 %v6867, %v12696
    %v12698 = vpop.f32.mrb[0].mxu0
    %v12699 = vpop.f32.mrb[0].mxu0
    %12700 = vdwg.mxu0
    %12701 = vmatprep.subr.bf16.mxu0 %v10089
    %12702 = vmatpush1.bf16.msra.mxu0 %v10088
    %12703 = vmatprep.subr.bf16.mxu0 %v10097
    %12704 = vmatpush1.bf16.msra.mxu0 %v10096
    %12705 = vmatprep.subr.bf16.mxu0 %v10105
    %12706 = vmatpush1.bf16.msra.mxu0 %v10104
    %12707 = vmatprep.subr.bf16.mxu0 %v10113
    %12708 = vmatpush1.bf16.msra.mxu0 %v10112
    %12709 = vmatprep.subr.bf16.mxu0 %v10121
    %12710 = vmatpush1.bf16.msra.mxu0 %v10120
    %12711 = vmatprep.subr.bf16.mxu0 %v10129
    %12712 = vmatpush1.bf16.msra.mxu0 %v10128
    %12713 = vmatprep.subr.bf16.mxu0 %v10137
    %12714 = vmatpush1.bf16.msra.mxu0 %v10136
    %12715 = vmatprep.subr.bf16.mxu0 %v10145
    %12716 = vmatpush1.bf16.msra.mxu0 %v10144
    %12717 = vmatprep.subr.bf16.mxu0 %v10153
    %12718 = vmatpush1.bf16.msra.mxu0 %v10152
    %12719 = vmatprep.subr.bf16.mxu0 %v10161
    %12720 = vmatpush1.bf16.msra.mxu0 %v10160
    %12721 = vmatprep.subr.bf16.mxu0 %v10169
    %12722 = vmatpush1.bf16.msra.mxu0 %v10168
    %12723 = vmatprep.subr.bf16.mxu0 %v10177
    %12724 = vmatpush1.bf16.msra.mxu0 %v10176
    %12725 = vmatprep.subr.bf16.mxu0 %v10185
    %12726 = vmatpush1.bf16.msra.mxu0 %v10184
    %12727 = vmatprep.subr.bf16.mxu0 %v10193
    %12728 = vmatpush1.bf16.msra.mxu0 %v10192
    %12729 = vmatprep.subr.bf16.mxu0 %v10201
    %12730 = vmatpush1.bf16.msra.mxu0 %v10200
    %12731 = vmatprep.subr.bf16.mxu0 %v10209
    %12732 = vmatpush1.bf16.msra.mxu0 %v10208
    %12733 = vmatprep.mubr.bf16.mxu0 %v6830
    %12734 = vmatmul.mubr.bf16.gmra.mrb[0].mxu0 %v6829
    %v12735 = vpop.f32.mrb[0].mxu0
    %v12736 = vadd.f32 %v12695, %v12735
    %v12737 = vpop.f32.mrb[0].mxu0
    %v12738 = vadd.f32 %v12697, %v12737
    %v12739 = vpop.f32.mrb[0].mxu0
    %v12740 = vpop.f32.mrb[0].mxu0
    %12741 = vdwg.mxu0
    %12742 = vmatprep.subr.bf16.mxu0 %v10217
    %12743 = vmatpush1.bf16.msra.mxu0 %v10216
    %12744 = vmatprep.subr.bf16.mxu0 %v10225
    %12745 = vmatpush1.bf16.msra.mxu0 %v10224
    %12746 = vmatprep.subr.bf16.mxu0 %v10233
    %12747 = vmatpush1.bf16.msra.mxu0 %v10232
    %12748 = vmatprep.subr.bf16.mxu0 %v10241
    %12749 = vmatpush1.bf16.msra.mxu0 %v10240
    %12750 = vmatprep.subr.bf16.mxu0 %v10249
    %12751 = vmatpush1.bf16.msra.mxu0 %v10248
    %12752 = vmatprep.subr.bf16.mxu0 %v10257
    %12753 = vmatpush1.bf16.msra.mxu0 %v10256
    %12754 = vmatprep.subr.bf16.mxu0 %v10265
    %12755 = vmatpush1.bf16.msra.mxu0 %v10264
    %12756 = vmatprep.subr.bf16.mxu0 %v10273
    %12757 = vmatpush1.bf16.msra.mxu0 %v10272
    %12758 = vmatprep.subr.bf16.mxu0 %v10281
    %12759 = vmatpush1.bf16.msra.mxu0 %v10280
    %12760 = vmatprep.subr.bf16.mxu0 %v10289
    %12761 = vmatpush1.bf16.msra.mxu0 %v10288
    %12762 = vmatprep.subr.bf16.mxu0 %v10297
    %12763 = vmatpush1.bf16.msra.mxu0 %v10296
    %12764 = vmatprep.subr.bf16.mxu0 %v10305
    %12765 = vmatpush1.bf16.msra.mxu0 %v10304
    %12766 = vmatprep.subr.bf16.mxu0 %v10313
    %12767 = vmatpush1.bf16.msra.mxu0 %v10312
    %12768 = vmatprep.subr.bf16.mxu0 %v10321
    %12769 = vmatpush1.bf16.msra.mxu0 %v10320
    %12770 = vmatprep.subr.bf16.mxu0 %v10329
    %12771 = vmatpush1.bf16.msra.mxu0 %v10328
    %12772 = vmatprep.subr.bf16.mxu0 %v10337
    %12773 = vmatpush1.bf16.msra.mxu0 %v10336
    %12774 = vmatprep.mubr.bf16.mxu0 %v6832
    %12775 = vmatmul.mubr.bf16.gmra.mrb[0].mxu0 %v6831
    %v12776 = vpop.f32.mrb[0].mxu0
    %v12777 = vadd.f32 %v12736, %v12776
    %v12778 = vpop.f32.mrb[0].mxu0
    %v12779 = vadd.f32 %v12738, %v12778
    %v12780 = vpop.f32.mrb[0].mxu0
    %v12781 = vpop.f32.mrb[0].mxu0
    %12782 = vdwg.mxu0
    %12783 = vmatprep.subr.bf16.mxu0 %v10345
    %12784 = vmatpush1.bf16.msra.mxu0 %v10344
    %12785 = vmatprep.subr.bf16.mxu0 %v10353
    %12786 = vmatpush1.bf16.msra.mxu0 %v10352
    %12787 = vmatprep.subr.bf16.mxu0 %v10361
    %12788 = vmatpush1.bf16.msra.mxu0 %v10360
    %12789 = vmatprep.subr.bf16.mxu0 %v10369
    %12790 = vmatpush1.bf16.msra.mxu0 %v10368
    %12791 = vmatprep.subr.bf16.mxu0 %v10377
    %12792 = vmatpush1.bf16.msra.mxu0 %v10376
    %12793 = vmatprep.subr.bf16.mxu0 %v10385
    %12794 = vmatpush1.bf16.msra.mxu0 %v10384
    %12795 = vmatprep.subr.bf16.mxu0 %v10393
    %12796 = vmatpush1.bf16.msra.mxu0 %v10392
    %12797 = vmatprep.subr.bf16.mxu0 %v10401
    %12798 = vmatpush1.bf16.msra.mxu0 %v10400
    %12799 = vmatprep.subr.bf16.mxu0 %v10409
    %12800 = vmatpush1.bf16.msra.mxu0 %v10408
    %12801 = vmatprep.subr.bf16.mxu0 %v10417
    %12802 = vmatpush1.bf16.msra.mxu0 %v10416
    %12803 = vmatprep.subr.bf16.mxu0 %v10425
    %12804 = vmatpush1.bf16.msra.mxu0 %v10424
    %12805 = vmatprep.subr.bf16.mxu0 %v10433
    %12806 = vmatpush1.bf16.msra.mxu0 %v10432
    %12807 = vmatprep.subr.bf16.mxu0 %v10441
    %12808 = vmatpush1.bf16.msra.mxu0 %v10440
    %12809 = vmatprep.subr.bf16.mxu0 %v10449
    %12810 = vmatpush1.bf16.msra.mxu0 %v10448
    %12811 = vmatprep.subr.bf16.mxu0 %v10457
    %12812 = vmatpush1.bf16.msra.mxu0 %v10456
    %12813 = vmatprep.subr.bf16.mxu0 %v10465
    %12814 = vmatpush1.bf16.msra.mxu0 %v10464
    %12815 = vmatprep.mubr.bf16.mxu0 %v6834
    %12816 = vmatmul.mubr.bf16.gmra.mrb[0].mxu0 %v6833
    %v12817 = vpop.f32.mrb[0].mxu0
    %v12818 = vadd.f32 %v12777, %v12817
    %v12819 = vpop.f32.mrb[0].mxu0
    %v12820 = vadd.f32 %v12779, %v12819
    %v12821 = vpop.f32.mrb[0].mxu0
    %v12822 = vpop.f32.mrb[0].mxu0
    %12823 = vdwg.mxu0
    %12824 = vmatprep.subr.bf16.mxu0 %v10473
    %12825 = vmatpush1.bf16.msra.mxu0 %v10472
    %12826 = vmatprep.subr.bf16.mxu0 %v10481
    %12827 = vmatpush1.bf16.msra.mxu0 %v10480
    %12828 = vmatprep.subr.bf16.mxu0 %v10489
    %12829 = vmatpush1.bf16.msra.mxu0 %v10488
    %12830 = vmatprep.subr.bf16.mxu0 %v10497
    %12831 = vmatpush1.bf16.msra.mxu0 %v10496
    %12832 = vmatprep.subr.bf16.mxu0 %v10505
    %12833 = vmatpush1.bf16.msra.mxu0 %v10504
    %12834 = vmatprep.subr.bf16.mxu0 %v10513
    %12835 = vmatpush1.bf16.msra.mxu0 %v10512
    %12836 = vmatprep.subr.bf16.mxu0 %v10521
    %12837 = vmatpush1.bf16.msra.mxu0 %v10520
    %12838 = vmatprep.subr.bf16.mxu0 %v10529
    %12839 = vmatpush1.bf16.msra.mxu0 %v10528
    %12840 = vmatprep.subr.bf16.mxu0 %v10537
    %12841 = vmatpush1.bf16.msra.mxu0 %v10536
    %12842 = vmatprep.subr.bf16.mxu0 %v10545
    %12843 = vmatpush1.bf16.msra.mxu0 %v10544
    %12844 = vmatprep.subr.bf16.mxu0 %v10553
    %12845 = vmatpush1.bf16.msra.mxu0 %v10552
    %12846 = vmatprep.subr.bf16.mxu0 %v10561
    %12847 = vmatpush1.bf16.msra.mxu0 %v10560
    %12848 = vmatprep.subr.bf16.mxu0 %v10569
    %12849 = vmatpush1.bf16.msra.mxu0 %v10568
    %12850 = vmatprep.subr.bf16.mxu0 %v10577
    %12851 = vmatpush1.bf16.msra.mxu0 %v10576
    %12852 = vmatprep.subr.bf16.mxu0 %v10585
    %12853 = vmatpush1.bf16.msra.mxu0 %v10584
    %12854 = vmatprep.subr.bf16.mxu0 %v10593
    %12855 = vmatpush1.bf16.msra.mxu0 %v10592
    %12856 = vmatprep.mubr.bf16.mxu0 %v6836
    %12857 = vmatmul.mubr.bf16.gmra.mrb[0].mxu0 %v6835
    %v12858 = vpop.f32.mrb[0].mxu0
    %v12859 = vadd.f32 %v12818, %v12858
    %v12860 = vpop.f32.mrb[0].mxu0
    %v12861 = vadd.f32 %v12820, %v12860
    %v12862 = vpop.f32.mrb[0].mxu0
    %v12863 = vpop.f32.mrb[0].mxu0
    %12864 = vdwg.mxu0
    %12865 = vmatprep.subr.bf16.mxu0 %v10601
    %12866 = vmatpush1.bf16.msra.mxu0 %v10600
    %12867 = vmatprep.subr.bf16.mxu0 %v10609
    %12868 = vmatpush1.bf16.msra.mxu0 %v10608
    %12869 = vmatprep.subr.bf16.mxu0 %v10617
    %12870 = vmatpush1.bf16.msra.mxu0 %v10616
    %12871 = vmatprep.subr.bf16.mxu0 %v10625
    %12872 = vmatpush1.bf16.msra.mxu0 %v10624
    %12873 = vmatprep.subr.bf16.mxu0 %v10633
    %12874 = vmatpush1.bf16.msra.mxu0 %v10632
    %12875 = vmatprep.subr.bf16.mxu0 %v10641
    %12876 = vmatpush1.bf16.msra.mxu0 %v10640
    %12877 = vmatprep.subr.bf16.mxu0 %v10649
    %12878 = vmatpush1.bf16.msra.mxu0 %v10648
    %12879 = vmatprep.subr.bf16.mxu0 %v10657
    %12880 = vmatpush1.bf16.msra.mxu0 %v10656
    %12881 = vmatprep.subr.bf16.mxu0 %v10665
    %12882 = vmatpush1.bf16.msra.mxu0 %v10664
    %12883 = vmatprep.subr.bf16.mxu0 %v10673
    %12884 = vmatpush1.bf16.msra.mxu0 %v10672
    %12885 = vmatprep.subr.bf16.mxu0 %v10681
    %12886 = vmatpush1.bf16.msra.mxu0 %v10680
    %12887 = vmatprep.subr.bf16.mxu0 %v10689
    %12888 = vmatpush1.bf16.msra.mxu0 %v10688
    %12889 = vmatprep.subr.bf16.mxu0 %v10697
    %12890 = vmatpush1.bf16.msra.mxu0 %v10696
    %12891 = vmatprep.subr.bf16.mxu0 %v10705
    %12892 = vmatpush1.bf16.msra.mxu0 %v10704
    %12893 = vmatprep.subr.bf16.mxu0 %v10713
    %12894 = vmatpush1.bf16.msra.mxu0 %v10712
    %12895 = vmatprep.subr.bf16.mxu0 %v10721
    %12896 = vmatpush1.bf16.msra.mxu0 %v10720
    %12897 = vmatprep.mubr.bf16.mxu0 %v6838
    %12898 = vmatmul.mubr.bf16.gmra.mrb[0].mxu0 %v6837
    %v12899 = vpop.f32.mrb[0].mxu0
    %v12900 = vadd.f32 %v12859, %v12899
    %v12901 = vpop.f32.mrb[0].mxu0
    %v12902 = vadd.f32 %v12861, %v12901
    %v12903 = vpop.f32.mrb[0].mxu0
    %v12904 = vpop.f32.mrb[0].mxu0
    %12905 = vdwg.mxu0
    %12906 = vmatprep.subr.bf16.mxu0 %v10729
    %12907 = vmatpush1.bf16.msra.mxu0 %v10728
    %12908 = vmatprep.subr.bf16.mxu0 %v10737
    %12909 = vmatpush1.bf16.msra.mxu0 %v10736
    %12910 = vmatprep.subr.bf16.mxu0 %v10745
    %12911 = vmatpush1.bf16.msra.mxu0 %v10744
    %12912 = vmatprep.subr.bf16.mxu0 %v10753
    %12913 = vmatpush1.bf16.msra.mxu0 %v10752
    %12914 = vmatprep.subr.bf16.mxu0 %v10761
    %12915 = vmatpush1.bf16.msra.mxu0 %v10760
    %12916 = vmatprep.subr.bf16.mxu0 %v10769
    %12917 = vmatpush1.bf16.msra.mxu0 %v10768
    %12918 = vmatprep.subr.bf16.mxu0 %v10777
    %12919 = vmatpush1.bf16.msra.mxu0 %v10776
    %12920 = vmatprep.subr.bf16.mxu0 %v10785
    %12921 = vmatpush1.bf16.msra.mxu0 %v10784
    %12922 = vmatprep.subr.bf16.mxu0 %v10793
    %12923 = vmatpush1.bf16.msra.mxu0 %v10792
    %12924 = vmatprep.subr.bf16.mxu0 %v10801
    %12925 = vmatpush1.bf16.msra.mxu0 %v10800
    %12926 = vmatprep.subr.bf16.mxu0 %v10809
    %12927 = vmatpush1.bf16.msra.mxu0 %v10808
    %12928 = vmatprep.subr.bf16.mxu0 %v10817
    %12929 = vmatpush1.bf16.msra.mxu0 %v10816
    %12930 = vmatprep.subr.bf16.mxu0 %v10825
    %12931 = vmatpush1.bf16.msra.mxu0 %v10824
    %12932 = vmatprep.subr.bf16.mxu0 %v10833
    %12933 = vmatpush1.bf16.msra.mxu0 %v10832
    %12934 = vmatprep.subr.bf16.mxu0 %v10841
    %12935 = vmatpush1.bf16.msra.mxu0 %v10840
    %12936 = vmatprep.subr.bf16.mxu0 %v10849
    %12937 = vmatpush1.bf16.msra.mxu0 %v10848
    %12938 = vmatprep.mubr.bf16.mxu0 %v6840
    %12939 = vmatmul.mubr.bf16.gmra.mrb[0].mxu0 %v6839
    %v12940 = vpop.f32.mrb[0].mxu0
    %v12941 = vadd.f32 %v12900, %v12940
    %v12942 = vpop.f32.mrb[0].mxu0
    %v12943 = vadd.f32 %v12902, %v12942
    %v12944 = vpop.f32.mrb[0].mxu0
    %v12945 = vpop.f32.mrb[0].mxu0
    %12946 = vdwg.mxu0
    %12947 = vmatprep.subr.bf16.mxu0 %v10857
    %12948 = vmatpush1.bf16.msra.mxu0 %v10856
    %12949 = vmatprep.subr.bf16.mxu0 %v10865
    %12950 = vmatpush1.bf16.msra.mxu0 %v10864
    %12951 = vmatprep.subr.bf16.mxu0 %v10873
    %12952 = vmatpush1.bf16.msra.mxu0 %v10872
    %12953 = vmatprep.subr.bf16.mxu0 %v10881
    %12954 = vmatpush1.bf16.msra.mxu0 %v10880
    %12955 = vmatprep.subr.bf16.mxu0 %v10889
    %12956 = vmatpush1.bf16.msra.mxu0 %v10888
    %12957 = vmatprep.subr.bf16.mxu0 %v10897
    %12958 = vmatpush1.bf16.msra.mxu0 %v10896
    %12959 = vmatprep.subr.bf16.mxu0 %v10905
    %12960 = vmatpush1.bf16.msra.mxu0 %v10904
    %12961 = vmatprep.subr.bf16.mxu0 %v10913
    %12962 = vmatpush1.bf16.msra.mxu0 %v10912
    %12963 = vmatprep.subr.bf16.mxu0 %v10921
    %12964 = vmatpush1.bf16.msra.mxu0 %v10920
    %12965 = vmatprep.subr.bf16.mxu0 %v10929
    %12966 = vmatpush1.bf16.msra.mxu0 %v10928
    %12967 = vmatprep.subr.bf16.mxu0 %v10937
    %12968 = vmatpush1.bf16.msra.mxu0 %v10936
    %12969 = vmatprep.subr.bf16.mxu0 %v10945
    %12970 = vmatpush1.bf16.msra.mxu0 %v10944
    %12971 = vmatprep.subr.bf16.mxu0 %v10953
    %12972 = vmatpush1.bf16.msra.mxu0 %v10952
    %12973 = vmatprep.subr.bf16.mxu0 %v10961
    %12974 = vmatpush1.bf16.msra.mxu0 %v10960
    %12975 = vmatprep.subr.bf16.mxu0 %v10969
    %12976 = vmatpush1.bf16.msra.mxu0 %v10968
    %12977 = vmatprep.subr.bf16.mxu0 %v10977
    %12978 = vmatpush1.bf16.msra.mxu0 %v10976
    %12979 = vmatprep.mubr.bf16.mxu0 %v6842
    %12980 = vmatmul.mubr.bf16.gmra.mrb[0].mxu0 %v6841
    %v12981 = vpop.f32.mrb[0].mxu0
    %v12982 = vadd.f32 %v12941, %v12981
    %v12983 = vpop.f32.mrb[0].mxu0
    %v12984 = vadd.f32 %v12943, %v12983
    %v12985 = vpop.f32.mrb[0].mxu0
    %v12986 = vpop.f32.mrb[0].mxu0
    %12987 = vdwg.mxu0
    %12988 = vmatprep.subr.bf16.mxu0 %v9963
    %12989 = vmatpush1.bf16.msra.mxu0 %v9962
    %12990 = vmatprep.subr.bf16.mxu0 %v9971
    %12991 = vmatpush1.bf16.msra.mxu0 %v9970
    %12992 = vmatprep.subr.bf16.mxu0 %v9979
    %12993 = vmatpush1.bf16.msra.mxu0 %v9978
    %12994 = vmatprep.subr.bf16.mxu0 %v9987
    %12995 = vmatpush1.bf16.msra.mxu0 %v9986
    %12996 = vmatprep.subr.bf16.mxu0 %v9995
    %12997 = vmatpush1.bf16.msra.mxu0 %v9994
    %12998 = vmatprep.subr.bf16.mxu0 %v10003
    %12999 = vmatpush1.bf16.msra.mxu0 %v10002
    %13000 = vmatprep.subr.bf16.mxu0 %v10011
    %13001 = vmatpush1.bf16.msra.mxu0 %v10010
    %13002 = vmatprep.subr.bf16.mxu0 %v10019
    %13003 = vmatpush1.bf16.msra.mxu0 %v10018
    %13004 = vmatprep.subr.bf16.mxu0 %v10027
    %13005 = vmatpush1.bf16.msra.mxu0 %v10026
    %13006 = vmatprep.subr.bf16.mxu0 %v10035
    %13007 = vmatpush1.bf16.msra.mxu0 %v10034
    %13008 = vmatprep.subr.bf16.mxu0 %v10043
    %13009 = vmatpush1.bf16.msra.mxu0 %v10042
    %13010 = vmatprep.subr.bf16.mxu0 %v10051
    %13011 = vmatpush1.bf16.msra.mxu0 %v10050
    %13012 = vmatprep.subr.bf16.mxu0 %v10059
    %13013 = vmatpush1.bf16.msra.mxu0 %v10058
    %13014 = vmatprep.subr.bf16.mxu0 %v10067
    %13015 = vmatpush1.bf16.msra.mxu0 %v10066
    %13016 = vmatprep.subr.bf16.mxu0 %v10075
    %13017 = vmatpush1.bf16.msra.mxu0 %v10074
    %13018 = vmatprep.subr.bf16.mxu0 %v10083
    %13019 = vmatpush1.bf16.msra.mxu0 %v10082
    %13020 = vmatprep.mubr.bf16.mxu0 %v6828
    %13021 = vmatmul.mubr.bf16.gmra.mrb[0].mxu0 %v6827
    %v13022 = vpop.f32.mrb[0].mxu0
    %v13023 = vadd.f32 %v6871, %v13022
    %v13024 = vpop.f32.mrb[0].mxu0
    %v13025 = vadd.f32 %v6875, %v13024
    %v13026 = vpop.f32.mrb[0].mxu0
    %v13027 = vpop.f32.mrb[0].mxu0
    %13028 = vdwg.mxu0
    %13029 = vmatprep.subr.bf16.mxu0 %v10091
    %13030 = vmatpush1.bf16.msra.mxu0 %v10090
    %13031 = vmatprep.subr.bf16.mxu0 %v10099
    %13032 = vmatpush1.bf16.msra.mxu0 %v10098
    %13033 = vmatprep.subr.bf16.mxu0 %v10107
    %13034 = vmatpush1.bf16.msra.mxu0 %v10106
    %13035 = vmatprep.subr.bf16.mxu0 %v10115
    %13036 = vmatpush1.bf16.msra.mxu0 %v10114
    %13037 = vmatprep.subr.bf16.mxu0 %v10123
    %13038 = vmatpush1.bf16.msra.mxu0 %v10122
    %13039 = vmatprep.subr.bf16.mxu0 %v10131
    %13040 = vmatpush1.bf16.msra.mxu0 %v10130
    %13041 = vmatprep.subr.bf16.mxu0 %v10139
    %13042 = vmatpush1.bf16.msra.mxu0 %v10138
    %13043 = vmatprep.subr.bf16.mxu0 %v10147
    %13044 = vmatpush1.bf16.msra.mxu0 %v10146
    %13045 = vmatprep.subr.bf16.mxu0 %v10155
    %13046 = vmatpush1.bf16.msra.mxu0 %v10154
    %13047 = vmatprep.subr.bf16.mxu0 %v10163
    %13048 = vmatpush1.bf16.msra.mxu0 %v10162
    %13049 = vmatprep.subr.bf16.mxu0 %v10171
    %13050 = vmatpush1.bf16.msra.mxu0 %v10170
    %13051 = vmatprep.subr.bf16.mxu0 %v10179
    %13052 = vmatpush1.bf16.msra.mxu0 %v10178
    %13053 = vmatprep.subr.bf16.mxu0 %v10187
    %13054 = vmatpush1.bf16.msra.mxu0 %v10186
    %13055 = vmatprep.subr.bf16.mxu0 %v10195
    %13056 = vmatpush1.bf16.msra.mxu0 %v10194
    %13057 = vmatprep.subr.bf16.mxu0 %v10203
    %13058 = vmatpush1.bf16.msra.mxu0 %v10202
    %13059 = vmatprep.subr.bf16.mxu0 %v10211
    %13060 = vmatpush1.bf16.msra.mxu0 %v10210
    %13061 = vmatprep.mubr.bf16.mxu0 %v6830
    %13062 = vmatmul.mubr.bf16.gmra.mrb[0].mxu0 %v6829
    %v13063 = vpop.f32.mrb[0].mxu0
    %v13064 = vadd.f32 %v13023, %v13063
    %v13065 = vpop.f32.mrb[0].mxu0
    %v13066 = vadd.f32 %v13025, %v13065
    %v13067 = vpop.f32.mrb[0].mxu0
    %v13068 = vpop.f32.mrb[0].mxu0
    %13069 = vdwg.mxu0
    %13070 = vmatprep.subr.bf16.mxu0 %v10219
    %13071 = vmatpush1.bf16.msra.mxu0 %v10218
    %13072 = vmatprep.subr.bf16.mxu0 %v10227
    %13073 = vmatpush1.bf16.msra.mxu0 %v10226
    %13074 = vmatprep.subr.bf16.mxu0 %v10235
    %13075 = vmatpush1.bf16.msra.mxu0 %v10234
    %13076 = vmatprep.subr.bf16.mxu0 %v10243
    %13077 = vmatpush1.bf16.msra.mxu0 %v10242
    %13078 = vmatprep.subr.bf16.mxu0 %v10251
    %13079 = vmatpush1.bf16.msra.mxu0 %v10250
    %13080 = vmatprep.subr.bf16.mxu0 %v10259
    %13081 = vmatpush1.bf16.msra.mxu0 %v10258
    %13082 = vmatprep.subr.bf16.mxu0 %v10267
    %13083 = vmatpush1.bf16.msra.mxu0 %v10266
    %13084 = vmatprep.subr.bf16.mxu0 %v10275
    %13085 = vmatpush1.bf16.msra.mxu0 %v10274
    %13086 = vmatprep.subr.bf16.mxu0 %v10283
    %13087 = vmatpush1.bf16.msra.mxu0 %v10282
    %13088 = vmatprep.subr.bf16.mxu0 %v10291
    %13089 = vmatpush1.bf16.msra.mxu0 %v10290
    %13090 = vmatprep.subr.bf16.mxu0 %v10299
    %13091 = vmatpush1.bf16.msra.mxu0 %v10298
    %13092 = vmatprep.subr.bf16.mxu0 %v10307
    %13093 = vmatpush1.bf16.msra.mxu0 %v10306
    %13094 = vmatprep.subr.bf16.mxu0 %v10315
    %13095 = vmatpush1.bf16.msra.mxu0 %v10314
    %13096 = vmatprep.subr.bf16.mxu0 %v10323
    %13097 = vmatpush1.bf16.msra.mxu0 %v10322
    %13098 = vmatprep.subr.bf16.mxu0 %v10331
    %13099 = vmatpush1.bf16.msra.mxu0 %v10330
    %13100 = vmatprep.subr.bf16.mxu0 %v10339
    %13101 = vmatpush1.bf16.msra.mxu0 %v10338
    %13102 = vmatprep.mubr.bf16.mxu0 %v6832
    %13103 = vmatmul.mubr.bf16.gmra.mrb[0].mxu0 %v6831
    %v13104 = vpop.f32.mrb[0].mxu0
    %v13105 = vadd.f32 %v13064, %v13104
    %v13106 = vpop.f32.mrb[0].mxu0
    %v13107 = vadd.f32 %v13066, %v13106
    %v13108 = vpop.f32.mrb[0].mxu0
    %v13109 = vpop.f32.mrb[0].mxu0
    %13110 = vdwg.mxu0
    %13111 = vmatprep.subr.bf16.mxu0 %v10347
    %13112 = vmatpush1.bf16.msra.mxu0 %v10346
    %13113 = vmatprep.subr.bf16.mxu0 %v10355
    %13114 = vmatpush1.bf16.msra.mxu0 %v10354
    %13115 = vmatprep.subr.bf16.mxu0 %v10363
    %13116 = vmatpush1.bf16.msra.mxu0 %v10362
    %13117 = vmatprep.subr.bf16.mxu0 %v10371
    %13118 = vmatpush1.bf16.msra.mxu0 %v10370
    %13119 = vmatprep.subr.bf16.mxu0 %v10379
    %13120 = vmatpush1.bf16.msra.mxu0 %v10378
    %13121 = vmatprep.subr.bf16.mxu0 %v10387
    %13122 = vmatpush1.bf16.msra.mxu0 %v10386
    %13123 = vmatprep.subr.bf16.mxu0 %v10395
    %13124 = vmatpush1.bf16.msra.mxu0 %v10394
    %13125 = vmatprep.subr.bf16.mxu0 %v10403
    %13126 = vmatpush1.bf16.msra.mxu0 %v10402
    %13127 = vmatprep.subr.bf16.mxu0 %v10411
    %13128 = vmatpush1.bf16.msra.mxu0 %v10410
    %13129 = vmatprep.subr.bf16.mxu0 %v10419
    %13130 = vmatpush1.bf16.msra.mxu0 %v10418
    %13131 = vmatprep.subr.bf16.mxu0 %v10427
    %13132 = vmatpush1.bf16.msra.mxu0 %v10426
    %13133 = vmatprep.subr.bf16.mxu0 %v10435
    %13134 = vmatpush1.bf16.msra.mxu0 %v10434
    %13135 = vmatprep.subr.bf16.mxu0 %v10443
    %13136 = vmatpush1.bf16.msra.mxu0 %v10442
    %13137 = vmatprep.subr.bf16.mxu0 %v10451
    %13138 = vmatpush1.bf16.msra.mxu0 %v10450
    %13139 = vmatprep.subr.bf16.mxu0 %v10459
    %13140 = vmatpush1.bf16.msra.mxu0 %v10458
    %13141 = vmatprep.subr.bf16.mxu0 %v10467
    %13142 = vmatpush1.bf16.msra.mxu0 %v10466
    %13143 = vmatprep.mubr.bf16.mxu0 %v6834
    %13144 = vmatmul.mubr.bf16.gmra.mrb[0].mxu0 %v6833
    %v13145 = vpop.f32.mrb[0].mxu0
    %v13146 = vadd.f32 %v13105, %v13145
    %v13147 = vpop.f32.mrb[0].mxu0
    %v13148 = vadd.f32 %v13107, %v13147
    %v13149 = vpop.f32.mrb[0].mxu0
    %v13150 = vpop.f32.mrb[0].mxu0
    %13151 = vdwg.mxu0
    %13152 = vmatprep.subr.bf16.mxu0 %v10475
    %13153 = vmatpush1.bf16.msra.mxu0 %v10474
    %13154 = vmatprep.subr.bf16.mxu0 %v10483
    %13155 = vmatpush1.bf16.msra.mxu0 %v10482
    %13156 = vmatprep.subr.bf16.mxu0 %v10491
    %13157 = vmatpush1.bf16.msra.mxu0 %v10490
    %13158 = vmatprep.subr.bf16.mxu0 %v10499
    %13159 = vmatpush1.bf16.msra.mxu0 %v10498
    %13160 = vmatprep.subr.bf16.mxu0 %v10507
    %13161 = vmatpush1.bf16.msra.mxu0 %v10506
    %13162 = vmatprep.subr.bf16.mxu0 %v10515
    %13163 = vmatpush1.bf16.msra.mxu0 %v10514
    %13164 = vmatprep.subr.bf16.mxu0 %v10523
    %13165 = vmatpush1.bf16.msra.mxu0 %v10522
    %13166 = vmatprep.subr.bf16.mxu0 %v10531
    %13167 = vmatpush1.bf16.msra.mxu0 %v10530
    %13168 = vmatprep.subr.bf16.mxu0 %v10539
    %13169 = vmatpush1.bf16.msra.mxu0 %v10538
    %13170 = vmatprep.subr.bf16.mxu0 %v10547
    %13171 = vmatpush1.bf16.msra.mxu0 %v10546
    %13172 = vmatprep.subr.bf16.mxu0 %v10555
    %13173 = vmatpush1.bf16.msra.mxu0 %v10554
    %13174 = vmatprep.subr.bf16.mxu0 %v10563
    %13175 = vmatpush1.bf16.msra.mxu0 %v10562
    %13176 = vmatprep.subr.bf16.mxu0 %v10571
    %13177 = vmatpush1.bf16.msra.mxu0 %v10570
    %13178 = vmatprep.subr.bf16.mxu0 %v10579
    %13179 = vmatpush1.bf16.msra.mxu0 %v10578
    %13180 = vmatprep.subr.bf16.mxu0 %v10587
    %13181 = vmatpush1.bf16.msra.mxu0 %v10586
    %13182 = vmatprep.subr.bf16.mxu0 %v10595
    %13183 = vmatpush1.bf16.msra.mxu0 %v10594
    %13184 = vmatprep.mubr.bf16.mxu0 %v6836
    %13185 = vmatmul.mubr.bf16.gmra.mrb[0].mxu0 %v6835
    %v13186 = vpop.f32.mrb[0].mxu0
    %v13187 = vadd.f32 %v13146, %v13186
    %v13188 = vpop.f32.mrb[0].mxu0
    %v13189 = vadd.f32 %v13148, %v13188
    %v13190 = vpop.f32.mrb[0].mxu0
    %v13191 = vpop.f32.mrb[0].mxu0
    %13192 = vdwg.mxu0
    %13193 = vmatprep.subr.bf16.mxu0 %v10603
    %13194 = vmatpush1.bf16.msra.mxu0 %v10602
    %13195 = vmatprep.subr.bf16.mxu0 %v10611
    %13196 = vmatpush1.bf16.msra.mxu0 %v10610
    %13197 = vmatprep.subr.bf16.mxu0 %v10619
    %13198 = vmatpush1.bf16.msra.mxu0 %v10618
    %13199 = vmatprep.subr.bf16.mxu0 %v10627
    %13200 = vmatpush1.bf16.msra.mxu0 %v10626
    %13201 = vmatprep.subr.bf16.mxu0 %v10635
    %13202 = vmatpush1.bf16.msra.mxu0 %v10634
    %13203 = vmatprep.subr.bf16.mxu0 %v10643
    %13204 = vmatpush1.bf16.msra.mxu0 %v10642
    %13205 = vmatprep.subr.bf16.mxu0 %v10651
    %13206 = vmatpush1.bf16.msra.mxu0 %v10650
    %13207 = vmatprep.subr.bf16.mxu0 %v10659
    %13208 = vmatpush1.bf16.msra.mxu0 %v10658
    %13209 = vmatprep.subr.bf16.mxu0 %v10667
    %13210 = vmatpush1.bf16.msra.mxu0 %v10666
    %13211 = vmatprep.subr.bf16.mxu0 %v10675
    %13212 = vmatpush1.bf16.msra.mxu0 %v10674
    %13213 = vmatprep.subr.bf16.mxu0 %v10683
    %13214 = vmatpush1.bf16.msra.mxu0 %v10682
    %13215 = vmatprep.subr.bf16.mxu0 %v10691
    %13216 = vmatpush1.bf16.msra.mxu0 %v10690
    %13217 = vmatprep.subr.bf16.mxu0 %v10699
    %13218 = vmatpush1.bf16.msra.mxu0 %v10698
    %13219 = vmatprep.subr.bf16.mxu0 %v10707
    %13220 = vmatpush1.bf16.msra.mxu0 %v10706
    %13221 = vmatprep.subr.bf16.mxu0 %v10715
    %13222 = vmatpush1.bf16.msra.mxu0 %v10714
    %13223 = vmatprep.subr.bf16.mxu0 %v10723
    %13224 = vmatpush1.bf16.msra.mxu0 %v10722
    %13225 = vmatprep.mubr.bf16.mxu0 %v6838
    %13226 = vmatmul.mubr.bf16.gmra.mrb[0].mxu0 %v6837
    %v13227 = vpop.f32.mrb[0].mxu0
    %v13228 = vadd.f32 %v13187, %v13227
    %v13229 = vpop.f32.mrb[0].mxu0
    %v13230 = vadd.f32 %v13189, %v13229
    %v13231 = vpop.f32.mrb[0].mxu0
    %v13232 = vpop.f32.mrb[0].mxu0
    %13233 = vdwg.mxu0
    %13234 = vmatprep.subr.bf16.mxu0 %v10731
    %13235 = vmatpush1.bf16.msra.mxu0 %v10730
    %13236 = vmatprep.subr.bf16.mxu0 %v10739
    %13237 = vmatpush1.bf16.msra.mxu0 %v10738
    %13238 = vmatprep.subr.bf16.mxu0 %v10747
    %13239 = vmatpush1.bf16.msra.mxu0 %v10746
    %13240 = vmatprep.subr.bf16.mxu0 %v10755
    %13241 = vmatpush1.bf16.msra.mxu0 %v10754
    %13242 = vmatprep.subr.bf16.mxu0 %v10763
    %13243 = vmatpush1.bf16.msra.mxu0 %v10762
    %13244 = vmatprep.subr.bf16.mxu0 %v10771
    %13245 = vmatpush1.bf16.msra.mxu0 %v10770
    %13246 = vmatprep.subr.bf16.mxu0 %v10779
    %13247 = vmatpush1.bf16.msra.mxu0 %v10778
    %13248 = vmatprep.subr.bf16.mxu0 %v10787
    %13249 = vmatpush1.bf16.msra.mxu0 %v10786
    %13250 = vmatprep.subr.bf16.mxu0 %v10795
    %13251 = vmatpush1.bf16.msra.mxu0 %v10794
    %13252 = vmatprep.subr.bf16.mxu0 %v10803
    %13253 = vmatpush1.bf16.msra.mxu0 %v10802
    %13254 = vmatprep.subr.bf16.mxu0 %v10811
    %13255 = vmatpush1.bf16.msra.mxu0 %v10810
    %13256 = vmatprep.subr.bf16.mxu0 %v10819
    %13257 = vmatpush1.bf16.msra.mxu0 %v10818
    %13258 = vmatprep.subr.bf16.mxu0 %v10827
    %13259 = vmatpush1.bf16.msra.mxu0 %v10826
    %13260 = vmatprep.subr.bf16.mxu0 %v10835
    %13261 = vmatpush1.bf16.msra.mxu0 %v10834
    %13262 = vmatprep.subr.bf16.mxu0 %v10843
    %13263 = vmatpush1.bf16.msra.mxu0 %v10842
    %13264 = vmatprep.subr.bf16.mxu0 %v10851
    %13265 = vmatpush1.bf16.msra.mxu0 %v10850
    %13266 = vmatprep.mubr.bf16.mxu0 %v6840
    %13267 = vmatmul.mubr.bf16.gmra.mrb[0].mxu0 %v6839
    %v13268 = vpop.f32.mrb[0].mxu0
    %v13269 = vadd.f32 %v13228, %v13268
    %v13270 = vpop.f32.mrb[0].mxu0
    %v13271 = vadd.f32 %v13230, %v13270
    %v13272 = vpop.f32.mrb[0].mxu0
    %v13273 = vpop.f32.mrb[0].mxu0
    %13274 = vdwg.mxu0
    %13275 = vmatprep.subr.bf16.mxu0 %v10859
    %13276 = vmatpush1.bf16.msra.mxu0 %v10858
    %13277 = vmatprep.subr.bf16.mxu0 %v10867
    %13278 = vmatpush1.bf16.msra.mxu0 %v10866
    %13279 = vmatprep.subr.bf16.mxu0 %v10875
    %13280 = vmatpush1.bf16.msra.mxu0 %v10874
    %13281 = vmatprep.subr.bf16.mxu0 %v10883
    %13282 = vmatpush1.bf16.msra.mxu0 %v10882
    %13283 = vmatprep.subr.bf16.mxu0 %v10891
    %13284 = vmatpush1.bf16.msra.mxu0 %v10890
    %13285 = vmatprep.subr.bf16.mxu0 %v10899
    %13286 = vmatpush1.bf16.msra.mxu0 %v10898
    %13287 = vmatprep.subr.bf16.mxu0 %v10907
    %13288 = vmatpush1.bf16.msra.mxu0 %v10906
    %13289 = vmatprep.subr.bf16.mxu0 %v10915
    %13290 = vmatpush1.bf16.msra.mxu0 %v10914
    %13291 = vmatprep.subr.bf16.mxu0 %v10923
    %13292 = vmatpush1.bf16.msra.mxu0 %v10922
    %13293 = vmatprep.subr.bf16.mxu0 %v10931
    %13294 = vmatpush1.bf16.msra.mxu0 %v10930
    %13295 = vmatprep.subr.bf16.mxu0 %v10939
    %13296 = vmatpush1.bf16.msra.mxu0 %v10938
    %13297 = vmatprep.subr.bf16.mxu0 %v10947
    %13298 = vmatpush1.bf16.msra.mxu0 %v10946
    %13299 = vmatprep.subr.bf16.mxu0 %v10955
    %13300 = vmatpush1.bf16.msra.mxu0 %v10954
    %13301 = vmatprep.subr.bf16.mxu0 %v10963
    %13302 = vmatpush1.bf16.msra.mxu0 %v10962
    %13303 = vmatprep.subr.bf16.mxu0 %v10971
    %13304 = vmatpush1.bf16.msra.mxu0 %v10970
    %13305 = vmatprep.subr.bf16.mxu0 %v10979
    %13306 = vmatpush1.bf16.msra.mxu0 %v10978
    %13307 = vmatprep.mubr.bf16.mxu0 %v6842
    %13308 = vmatmul.mubr.bf16.gmra.mrb[0].mxu0 %v6841
    %v13309 = vpop.f32.mrb[0].mxu0
    %v13310 = vadd.f32 %v13269, %v13309
    %v13311 = vpop.f32.mrb[0].mxu0
    %v13312 = vadd.f32 %v13271, %v13311
    %v13313 = vpop.f32.mrb[0].mxu0
    %v13314 = vpop.f32.mrb[0].mxu0
    %13315 = vdwg.mxu0
    %v13316 = vxor.u32 %v12326, 2147483648
    %v13317 = vxor.u32 %v12328, 2147483648
    %v13318 = vxor.u32 %v12654, 2147483648
    %v13319 = vxor.u32 %v12656, 2147483648
    %v13320 = vxor.u32 %v12982, 2147483648
    %v13321 = vxor.u32 %v12984, 2147483648
    %v13322 = vxor.u32 %v13310, 2147483648
    %v13323 = vxor.u32 %v13312, 2147483648
    %v13324 = vmul.f32 %v13316, 1.442695
    %v13325 = vpow.pop %v13324
    %v13326 = vmul.f32 %v13317, 1.442695
    %v13327 = vpow.pop %v13326
    %v13328 = vmul.f32 %v13318, 1.442695
    %v13329 = vpow.pop %v13328
    %v13330 = vmul.f32 %v13319, 1.442695
    %v13331 = vpow.pop %v13330
    %v13332 = vmul.f32 %v13320, 1.442695
    %v13333 = vpow.pop %v13332
    %v13334 = vmul.f32 %v13321, 1.442695
    %v13335 = vpow.pop %v13334
    %v13336 = vmul.f32 %v13322, 1.442695
    %v13337 = vpow.pop %v13336
    %v13338 = vmul.f32 %v13323, 1.442695
    %v13339 = vpow.pop %v13338
    %v13340 = vadd.f32 %v13325, 1.0
    %v13341 = vadd.f32 %v13327, 1.0
    %v13342 = vadd.f32 %v13329, 1.0
    %v13343 = vadd.f32 %v13331, 1.0
    %v13344 = vadd.f32 %v13333, 1.0
    %v13345 = vadd.f32 %v13335, 1.0
    %v13346 = vadd.f32 %v13337, 1.0
    %v13347 = vadd.f32 %v13339, 1.0
    %v13348 = vrcp.pop %v13340
    %v13349 = vmul.f32 1.0, %v13348
    %v13350 = vrcp.pop %v13341
    %v13351 = vmul.f32 1.0, %v13350
    %v13352 = vrcp.pop %v13342
    %v13353 = vmul.f32 1.0, %v13352
    %v13354 = vrcp.pop %v13343
    %v13355 = vmul.f32 1.0, %v13354
    %v13356 = vrcp.pop %v13344
    %v13357 = vmul.f32 1.0, %v13356
    %v13358 = vrcp.pop %v13345
    %v13359 = vmul.f32 1.0, %v13358
    %v13360 = vrcp.pop %v13346
    %v13361 = vmul.f32 1.0, %v13360
    %v13362 = vrcp.pop %v13347
    %v13363 = vmul.f32 1.0, %v13362
    %v13372 = vcombine.low %v13349, %v13351
    %v13373 = vcombine.low %v13353, %v13355
    %v13375 = vunpack.c.l.s4 1983009808
    %v13376 = vunpack.c.0.s8 %v13375
    %v13377 = vlaneseq
    %v13378 = vshrl.u32 %v13377, 7
    %v13379 = vsub.s32 %v13376, %v13378
    %v13380 = vrot.slane %v13372, %v13379
    %v13382 = vunpack.c.l.s4 1983009808
    %v13383 = vunpack.c.0.s8 %v13382
    %v13384 = vlaneseq
    %v13385 = vshrl.u32 %v13384, 7
    %v13386 = vsub.s32 %v13383, %v13385
    %v13387 = vrot.slane %v13373, %v13386
    %v13388 = vcombine.low %v13380, %v13387
    %v13389 = vcombine.low %v13357, %v13359
    %v13390 = vcombine.low %v13361, %v13363
    %v13392 = vunpack.c.l.s4 1983009808
    %v13393 = vunpack.c.0.s8 %v13392
    %v13394 = vlaneseq
    %v13395 = vshrl.u32 %v13394, 7
    %v13396 = vsub.s32 %v13393, %v13395
    %v13397 = vrot.slane %v13389, %v13396
    %v13399 = vunpack.c.l.s4 1983009808
    %v13400 = vunpack.c.0.s8 %v13399
    %v13401 = vlaneseq
    %v13402 = vshrl.u32 %v13401, 7
    %v13403 = vsub.s32 %v13400, %v13402
    %v13404 = vrot.slane %v13390, %v13403
    %v13405 = vcombine.low %v13397, %v13404
    %13408 = vst [vmem:[%s12] sm:$0xff] %v13388
    %13409 = vst [vmem:[%s12 + $0x8] sm:$0xff] %v13405
    // Predicated region
    $region78: #{cnnvae_forward.1} parent=1 // pred_check
      _
    $region79: #{cnnvae_forward.1} parent=1 // pred_check_branch
      %13411 = sbr.rel (0) target = $region81
    $region80: #{cnnvae_forward.1} parent=1 // pred_region
      _
    $region81: #{cnnvae_forward.1} parent=1 // pred_fallthru
      _
    // Predicated region
    $region82: #{cnnvae_forward.1} parent=1 // pred_check
      _
    $region83: #{cnnvae_forward.1} parent=1 // pred_check_branch
      %13413 = sbr.rel (0) target = $region85
    $region84: #{cnnvae_forward.1} parent=1 // pred_region
      _
    $region85: #{cnnvae_forward.1} parent=1 // pred_fallthru
      _
    // Predicated region
    $region86: #{cnnvae_forward.1} parent=1 // pred_check
      _
    $region87: #{cnnvae_forward.1} parent=1 // pred_check_branch
      %13415 = sbr.rel (0) target = $region89
    $region88: #{cnnvae_forward.1} parent=1 // pred_region
      _
    $region89: #{cnnvae_forward.1} parent=1 // pred_fallthru
      _
    // Predicated region
    $region90: #{cnnvae_forward.1} parent=1 // pred_check
      _
    $region91: #{cnnvae_forward.1} parent=1 // pred_check_branch
      %13417 = sbr.rel (0) target = $region93
    $region92: #{cnnvae_forward.1} parent=1 // pred_region
      _
    $region93: #{cnnvae_forward.1} parent=1 // pred_fallthru
      _
    %13418 = vsyncpa [#allocation3], 1
    %13419 = vsyncpa [#allocation5], 1
    %13420 = vsyncpa [#allocation8], 1
    %13421 = vsyncpa [#allocation11], 1

</llo_original>
